<compile_context>
chip_gen: v7x
topology: tpu7x:2x2x1
jax: 0.10.0
libtpu: 0.0.40
codegen_flags: <defaults>
</compile_context>

<pallas_src>
import numpy as np
import jax
import jax.numpy as jnp
from jax.experimental import pallas as pl
from jax.experimental.pallas import tpu as pltpu

POOL = 7
S = POOL * POOL            # 49 true flattened spatial positions
SP_PAD = 56                # padded to a multiple of 8 sublanes
EPS = 1e-5                 # GroupNorm eps (PyTorch default)
GROUPS = 32
VEC_C_PAD = 16             # matC rows: 0..8 per-C vectors, 9..15 zero, 16..47 A_C^T
VEC_CI_PAD = 8             # matCi rows: 0..5 per-Ci vectors, 6..7 zero, 8..39 A_Ci^T
BLOCK_B = 8                # samples fused per grid step (B*56 = 448 matmul rows)


# ----------------------------------------------------------------------------
# ROIAlignV2 (detectron2 semantics: aligned=True, sampling_ratio=0)  [JAX glue]
# ----------------------------------------------------------------------------
def _bilinear_grid(feat, ys, xs):
    # feat: (C, H, W); ys: (Ny,), xs: (Nx,)  ->  (C, Ny, Nx)
    C, H, W = feat.shape
    ys = jnp.asarray(ys, jnp.float32)
    xs = jnp.asarray(xs, jnp.float32)
    oob_y = (ys < -1.0) | (ys > H)
    oob_x = (xs < -1.0) | (xs > W)
    y = jnp.maximum(ys, 0.0)
    x = jnp.maximum(xs, 0.0)
    y_low0 = jnp.floor(y).astype(jnp.int32)
    x_low0 = jnp.floor(x).astype(jnp.int32)
    cy = y_low0 >= H - 1
    cx = x_low0 >= W - 1
    y_low = jnp.where(cy, H - 1, y_low0)
    y_high = jnp.where(cy, H - 1, y_low0 + 1)
    y = jnp.where(cy, jnp.float32(H - 1), y)
    x_low = jnp.where(cx, W - 1, x_low0)
    x_high = jnp.where(cx, W - 1, x_low0 + 1)
    x = jnp.where(cx, jnp.float32(W - 1), x)
    ly = y - y_low.astype(jnp.float32)
    lx = x - x_low.astype(jnp.float32)
    hy = 1.0 - ly
    hx = 1.0 - lx
    w1 = hy[:, None] * hx[None, :]
    w2 = hy[:, None] * lx[None, :]
    w3 = ly[:, None] * hx[None, :]
    w4 = ly[:, None] * lx[None, :]
    v_ll = feat[:, y_low[:, None], x_low[None, :]]
    v_lh = feat[:, y_low[:, None], x_high[None, :]]
    v_hl = feat[:, y_high[:, None], x_low[None, :]]
    v_hh = feat[:, y_high[:, None], x_high[None, :]]
    out = w1 * v_ll + w2 * v_lh + w3 * v_hl + w4 * v_hh
    mask = ((~oob_y)[:, None] & (~oob_x)[None, :]).astype(feat.dtype)
    return out * mask[None, :, :]


def _roi_align_v2(feat, box, spatial_scale, out_size):
    # TODO(synk): ROIAlignV2's data-dependent bilinear gather (adaptive per-ROI
    # sampling grid) stays in plain JAX; it has no clean static Pallas tiling.
    C, H, W = feat.shape
    x1, y1, x2, y2 = [float(v) for v in box]
    rsw = x1 * spatial_scale - 0.5
    rsh = y1 * spatial_scale - 0.5
    rew = x2 * spatial_scale - 0.5
    reh = y2 * spatial_scale - 0.5
    roi_w = rew - rsw
    roi_h = reh - rsh
    bin_w = roi_w / out_size
    bin_h = roi_h / out_size
    gw = max(int(np.ceil(roi_w / out_size)), 1)
    gh = max(int(np.ceil(roi_h / out_size)), 1)
    ys = np.array([rsh + ph * bin_h + (iy + 0.5) * bin_h / gh
                   for ph in range(out_size) for iy in range(gh)], np.float32)
    xs = np.array([rsw + pw * bin_w + (ix + 0.5) * bin_w / gw
                   for pw in range(out_size) for ix in range(gw)], np.float32)
    vals = _bilinear_grid(feat, ys, xs)                      # (C, 7*gh, 7*gw)
    vals = vals.reshape(C, out_size, gh, out_size, gw)
    return vals.mean(axis=(2, 4))


def _assign_boxes_to_levels(boxes_per_image, min_level, max_level,
                            canonical_box_size=224, canonical_level=4):
    areas = np.concatenate([(b[:, 2] - b[:, 0]) * (b[:, 3] - b[:, 1])
                            for b in boxes_per_image])
    sizes = np.sqrt(np.maximum(areas, 0.0))
    lvl = np.floor(canonical_level + np.log2(sizes / canonical_box_size + 1e-8))
    lvl = np.clip(lvl, min_level, max_level)
    return (lvl - min_level).astype(np.int64)


def multilevel_roi_pool(features, boxes_per_image, strides, out_size=POOL):
    scales = [1.0 / s for s in strides]
    min_level = int(round(-np.log2(scales[0])))
    max_level = int(round(-np.log2(scales[-1])))
    levels = _assign_boxes_to_levels(boxes_per_image, min_level, max_level)
    fmt = [(bi, box) for bi, boxes in enumerate(boxes_per_image) for box in boxes]
    outs = []
    for m, (bi, box) in enumerate(fmt):
        lvl = int(levels[m])
        outs.append(_roi_align_v2(features[lvl][bi], np.asarray(box, np.float64),
                                  scales[lvl], out_size))
    return jnp.stack(outs, axis=0)                            # (M, C, 7, 7)


# ----------------------------------------------------------------------------
# adaptive_avg_pool2d(x, (7,7))  (GlobalAdaptiveAvgPool2d semantics) [JAX glue]
# ----------------------------------------------------------------------------
def _adaptive_pool_matrix(in_size, out_size):
    P = np.zeros((out_size, in_size), dtype=np.float32)
    for i in range(out_size):
        start = (i * in_size) // out_size
        end = int(np.ceil((i + 1) * in_size / out_size))
        P[i, start:end] = 1.0 / (end - start)
    return P


def adaptive_avg_pool(x, out_size):
    _, _, H, W = x.shape
    Ph = jnp.asarray(_adaptive_pool_matrix(H, out_size))
    Pw = jnp.asarray(_adaptive_pool_matrix(W, out_size))
    return jnp.einsum('ih,jw,nchw->ncij', Ph, Pw, x,
                      precision=jax.lax.Precision.HIGHEST)


# ----------------------------------------------------------------------------
# Pallas kernel: fused conv3x3 + GN + ReLU, then MS_CAM gate and multiply.
# All tensors are 2D inside the kernel: rows = B samples x 56 padded spatial
# positions (channels on lanes).  Per-sample reductions / broadcasts are done
# with small 0/1 selector matmuls so everything stays batched on the MXU.
# ----------------------------------------------------------------------------
def _sample_selectors(b, sp, s_true):
    """rsum[i,r]=1 iff row r is a TRUE (non-pad) row of sample i  (B, B*sp)
       rexp[r,i]=1 iff row r belongs to sample i                  (B*sp, B)"""
    rr = jax.lax.broadcasted_iota(jnp.int32, (b, b * sp), 1)
    bb = jax.lax.broadcasted_iota(jnp.int32, (b, b * sp), 0)
    lo = bb * sp
    rsum = jnp.where((rr >= lo) & (rr < lo + s_true), 1.0, 0.0)
    rr2 = jax.lax.broadcasted_iota(jnp.int32, (b * sp, b), 0)
    bb2 = jax.lax.broadcasted_iota(jnp.int32, (b * sp, b), 1)
    lo2 = bb2 * sp
    rexp = jnp.where((rr2 >= lo2) & (rr2 < lo2 + sp), 1.0, 0.0)
    return rsum, rexp


def _group_norm_rows(x, rsum, rexp, A, AT, gamma, beta, count):
    """Batched GroupNorm over (49 true spatial rows x channels-per-group).
    x: (B*SP, Cx) f32; A: (Cx, G) one-hot channel->group; AT: (G, Cx)."""
    b = rsum.shape[0]
    s1 = jnp.dot(rsum, x, preferred_element_type=jnp.float32)          # (B, Cx)
    s2 = jnp.dot(rsum, x * x, preferred_element_type=jnp.float32)      # (B, Cx)
    gst = jnp.dot(jnp.concatenate([s1, s2], axis=0), A,
                  preferred_element_type=jnp.float32)                  # (2B, G)
    inv_n = 1.0 / count
    mean_g = gst[:b] * inv_n
    var_g = jnp.maximum(gst[b:] * inv_n - mean_g * mean_g, 0.0)
    rstd_g = jax.lax.rsqrt(var_g + EPS)
    mrc = jnp.dot(jnp.concatenate([mean_g, rstd_g], axis=0), AT,
                  preferred_element_type=jnp.float32)                  # (2B, Cx)
    mean_r = jnp.dot(rexp, mrc[:b], preferred_element_type=jnp.float32)
    rstd_r = jnp.dot(rexp, mrc[b:], preferred_element_type=jnp.float32)
    return (x - mean_r) * rstd_r * gamma + beta


def _group_norm_vec(x, A, AT, gamma, beta, count):
    """GroupNorm for the 1x1-spatial (global branch) case. x: (B, Cx) f32."""
    b = x.shape[0]
    gst = jnp.dot(jnp.concatenate([x, x * x], axis=0), A,
                  preferred_element_type=jnp.float32)                  # (2B, G)
    inv_n = 1.0 / count
    mean_g = gst[:b] * inv_n
    var_g = jnp.maximum(gst[b:] * inv_n - mean_g * mean_g, 0.0)
    rstd_g = jax.lax.rsqrt(var_g + EPS)
    mrc = jnp.dot(jnp.concatenate([mean_g, rstd_g], axis=0), AT,
                  preferred_element_type=jnp.float32)                  # (2B, Cx)
    return (x - mrc[:b]) * mrc[b:] * gamma + beta


def _fusion_kernel(xim_ref, ctx_ref, convw_ref, w1_ref, w2_ref, w3_ref, w4_ref,
                   matC_ref, matCi_ref, AC_ref, ACi_ref, out_ref):
    bsp, C = out_ref.shape
    b = bsp // SP_PAD
    G = AC_ref.shape[1]
    Ci = ACi_ref.shape[0]

    vC = matC_ref[...]                      # (VEC_C_PAD + G, C)   f32
    vCi = matCi_ref[...]                    # (VEC_CI_PAD + G, Ci) f32
    AC = AC_ref[...]                        # (C, G)
    ACi = ACi_ref[...]                      # (Ci, G)
    ATC = vC[VEC_C_PAD:, :]                 # (G, C)
    ATCi = vCi[VEC_CI_PAD:, :]              # (G, Ci)

    rsum, rexp = _sample_selectors(b, SP_PAD, S)

    # --- conv3x3 as one fused K=9C bf16 matmul + bias, GroupNorm(32,C), ReLU
    acc = jnp.dot(xim_ref[...], convw_ref[...],
                  preferred_element_type=jnp.float32) + vC[0:1, :]     # (B*SP, C)
    x = _group_norm_rows(acc, rsum, rexp, AC, ATC, vC[1:2, :], vC[2:3, :],
                         count=S * (C // G))
    x = jnp.maximum(x, 0.0)

    # --- MS_CAM local branch on context
    ctx_bf = ctx_ref[...]                                              # (B*SP, C) bf16
    h = jnp.dot(ctx_bf, w1_ref[...],
                preferred_element_type=jnp.float32) + vCi[0:1, :]      # (B*SP, Ci)
    h = _group_norm_rows(h, rsum, rexp, ACi, ATCi, vCi[1:2, :], vCi[2:3, :],
                         count=S * (Ci // G))
    h = jnp.maximum(h, 0.0).astype(ctx_bf.dtype)
    loc = jnp.dot(h, w2_ref[...],
                  preferred_element_type=jnp.float32) + vC[3:4, :]     # (B*SP, C)
    loc = _group_norm_rows(loc, rsum, rexp, AC, ATC, vC[4:5, :], vC[5:6, :],
                           count=S * (C // G))

    # --- MS_CAM global branch (AdaptiveAvgPool2d(1) -> 1x1 convs)
    gavg = jnp.dot(rsum, ctx_bf.astype(jnp.float32),
                   preferred_element_type=jnp.float32) * (1.0 / S)     # (B, C)
    gh = jnp.dot(gavg.astype(ctx_bf.dtype), w3_ref[...],
                 preferred_element_type=jnp.float32) + vCi[3:4, :]     # (B, Ci)
    gh = _group_norm_vec(gh, ACi, ATCi, vCi[4:5, :], vCi[5:6, :], count=Ci // G)
    gh = jnp.maximum(gh, 0.0).astype(ctx_bf.dtype)
    gl = jnp.dot(gh, w4_ref[...],
                 preferred_element_type=jnp.float32) + vC[6:7, :]      # (B, C)
    gl = _group_norm_vec(gl, AC, ATC, vC[7:8, :], vC[8:9, :], count=C // G)
    gl_rows = jnp.dot(rexp, gl, preferred_element_type=jnp.float32)    # (B*SP, C)

    # --- sigmoid gate (exp on EUP + approx reciprocal) and multiply
    lg = loc + gl_rows
    wei = pl.reciprocal(1.0 + jnp.exp(-lg), approx=True)
    out_ref[...] = (x * wei).astype(out_ref.dtype)


def _fused_pallas(xim2d, ctx2d, p, block_b):
    rows, nine_c = xim2d.shape
    C = ctx2d.shape[1]
    Ci = p['A_Ci'].shape[0]
    mp = rows // SP_PAD
    assert mp % block_b == 0
    grid = (mp // block_b,)
    block_rows = block_b * SP_PAD

    weights = [p['conv_w'], p['w1'], p['w2'], p['w3'], p['w4'],
               p['matC'], p['matCi'], p['A_C'], p['A_Ci']]

    def const_spec(w):
        return pl.BlockSpec(tuple(w.shape), lambda n: (0, 0))

    in_specs = [pl.BlockSpec((block_rows, nine_c), lambda n: (n, 0)),
                pl.BlockSpec((block_rows, C), lambda n: (n, 0))]
    in_specs += [const_spec(w) for w in weights]
    out_spec = pl.BlockSpec((block_rows, C), lambda n: (n, 0))

    flops = (2 * rows * C * (9 * C + 2 * Ci)       # conv + local 1x1 matmuls
             + 4 * mp * C * Ci                     # global 1x1 matmuls
             + 8 * rows * block_b * C)             # GN selector matmuls (approx)
    cost = pl.CostEstimate(
        flops=int(flops),
        transcendentals=int(rows * C),
        bytes_accessed=int(xim2d.size * 2 + ctx2d.size * 2 + rows * C * 4 +
                           sum(int(w.size) * w.dtype.itemsize for w in weights)))

    return pl.pallas_call(
        _fusion_kernel,
        out_shape=jax.ShapeDtypeStruct((rows, C), jnp.float32),
        grid_spec=pltpu.PrefetchScalarGridSpec(
            num_scalar_prefetch=0,
            grid=grid,
            in_specs=in_specs,
            out_specs=out_spec,
        ),
        compiler_params=pltpu.CompilerParams(
            dimension_semantics=("parallel",),
            vmem_limit_bytes=32 * 1024 * 1024),
        cost_estimate=cost,
    )(xim2d, ctx2d, *weights)


# ----------------------------------------------------------------------------
# Full FeatureFusionModuleV2 forward
# ----------------------------------------------------------------------------
def feature_fusion_v2(features, boxes_per_image, kparams, strides,
                      block_b=BLOCK_B):
    C = features[0].shape[1]
    pooled = multilevel_roi_pool(features, boxes_per_image, strides, POOL)  # (M,C,7,7)
    ctx = jnp.mean(jnp.stack([adaptive_avg_pool(f, POOL) for f in features],
                             axis=0), axis=0)                               # (N,C,7,7)
    M, N = pooled.shape[0], ctx.shape[0]
    assert M == N, "x * wei broadcast in MS_CAM requires #boxes == batch size"

    # layout glue: NCHW -> channels-last, flatten 7x7, im2col packed along the
    # lane dim so the kernel runs a single (B*56, 9C) @ (9C, C) matmul.
    pooled_nhwc = jnp.transpose(pooled, (0, 2, 3, 1))
    padded = jnp.pad(pooled_nhwc, ((0, 0), (1, 1), (1, 1), (0, 0)))
    xim = jnp.concatenate(
        [padded[:, dy:dy + POOL, dx:dx + POOL, :].reshape(M, S, C)
         for dy in range(3) for dx in range(3)], axis=-1)                   # (M,49,9C)
    ctx_flat = jnp.transpose(ctx, (0, 2, 3, 1)).reshape(N, S, C)

    # pad spatial 49 -> 56 and samples -> multiple of the per-step batch B
    mp = int(np.ceil(M / block_b)) * block_b
    xim = jnp.pad(xim, ((0, mp - M), (0, SP_PAD - S), (0, 0)))
    ctx_flat = jnp.pad(ctx_flat, ((0, mp - M), (0, SP_PAD - S), (0, 0)))

    xim2d = xim.astype(jnp.bfloat16).reshape(mp * SP_PAD, 9 * C)
    ctx2d = ctx_flat.astype(jnp.bfloat16).reshape(mp * SP_PAD, C)

    out2d = _fused_pallas(xim2d, ctx2d, kparams, block_b)                   # (mp*56,C)
    out = out2d.reshape(mp, SP_PAD, C)[:M, :S, :]
    return out.reshape(M, POOL, POOL, C).transpose(0, 3, 1, 2)              # (M,C,7,7)


# ----------------------------------------------------------------------------
# Deterministic parameter init (torch layout + packed kernel layout)
# ----------------------------------------------------------------------------
def init_params(key, C):
    Ci = C // 4
    G = GROUPS
    assert C % G == 0 and Ci % G == 0, "GroupNorm(32, .) requires C >= 128"
    keys = jax.random.split(key, 20)
    ki = iter(keys)

    def w(shape, scale=0.05):
        return scale * jax.random.normal(next(ki), shape, dtype=jnp.float32)

    tp = {
        'conv_w': w((C, C, 3, 3)), 'conv_b': w((C,)),
        'gn0_g': 1.0 + w((C,)), 'gn0_b': w((C,)),
        'l_w1': w((Ci, C, 1, 1)), 'l_b1': w((Ci,)),
        'l_g1g': 1.0 + w((Ci,)), 'l_g1b': w((Ci,)),
        'l_w2': w((C, Ci, 1, 1)), 'l_b2': w((C,)),
        'l_g2g': 1.0 + w((C,)), 'l_g2b': w((C,)),
        'g_w1': w((Ci, C, 1, 1)), 'g_b1': w((Ci,)),
        'g_g1g': 1.0 + w((Ci,)), 'g_g1b': w((Ci,)),
        'g_w2': w((C, Ci, 1, 1)), 'g_b2': w((C,)),
        'g_g2g': 1.0 + w((C,)), 'g_g2b': w((C,)),
    }

    A_C = np.kron(np.eye(G, dtype=np.float32),
                  np.ones((C // G, 1), np.float32))                  # (C, 32)
    A_Ci = np.kron(np.eye(G, dtype=np.float32),
                   np.ones((Ci // G, 1), np.float32))                # (Ci, 32)

    conv_packed = jnp.concatenate([tp['conv_w'][:, :, dy, dx].T
                                   for dy in range(3) for dx in range(3)],
                                  axis=0)                             # (9C, C)
    matC = jnp.concatenate([
        jnp.stack([tp['conv_b'], tp['gn0_g'], tp['gn0_b'],
                   tp['l_b2'], tp['l_g2g'], tp['l_g2b'],
                   tp['g_b2'], tp['g_g2g'], tp['g_g2b']], axis=0),
        jnp.zeros((VEC_C_PAD - 9, C), jnp.float32),
        jnp.asarray(A_C.T)], axis=0)                                  # (48, C)
    matCi = jnp.concatenate([
        jnp.stack([tp['l_b1'], tp['l_g1g'], tp['l_g1b'],
                   tp['g_b1'], tp['g_g1g'], tp['g_g1b']], axis=0),
        jnp.zeros((VEC_CI_PAD - 6, Ci), jnp.float32),
        jnp.asarray(A_Ci.T)], axis=0)                                 # (40, Ci)

    kp = {
        'conv_w': conv_packed.astype(jnp.bfloat16),
        'w1': tp['l_w1'][:, :, 0, 0].T.astype(jnp.bfloat16),
        'w2': tp['l_w2'][:, :, 0, 0].T.astype(jnp.bfloat16),
        'w3': tp['g_w1'][:, :, 0, 0].T.astype(jnp.bfloat16),
        'w4': tp['g_w2'][:, :, 0, 0].T.astype(jnp.bfloat16),
        'matC': matC, 'matCi': matCi,
        'A_C': jnp.asarray(A_C), 'A_Ci': jnp.asarray(A_Ci),
    }
    return tp, kp


# ----------------------------------------------------------------------------
# Pure-JAX reference of the post-ROI part (mirrors PyTorch ops), for validation
# ----------------------------------------------------------------------------
def ref_forward(pooled, ctx, tp):
    def gn(x, gamma, beta, groups=32):
        Nn, Cc = x.shape[0], x.shape[1]
        xr = x.reshape(Nn, groups, -1)
        mean = xr.mean(-1, keepdims=True)
        var = xr.var(-1, keepdims=True)
        xn = ((xr - mean) / jnp.sqrt(var + EPS)).reshape(x.shape)
        return xn * gamma.reshape(1, Cc, 1, 1) + beta.reshape(1, Cc, 1, 1)

    def conv1x1(x, w, b):
        return jnp.einsum('nchw,oc->nohw', x, w[:, :, 0, 0],
                          precision=jax.lax.Precision.HIGHEST) + b.reshape(1, -1, 1, 1)

    x = jax.lax.conv_general_dilated(
        pooled, tp['conv_w'], (1, 1), ((1, 1), (1, 1)),
        dimension_numbers=('NCHW', 'OIHW', 'NCHW'),
        precision=jax.lax.Precision.HIGHEST) + tp['conv_b'].reshape(1, -1, 1, 1)
    x = jax.nn.relu(gn(x, tp['gn0_g'], tp['gn0_b']))
    h = jax.nn.relu(gn(conv1x1(ctx, tp['l_w1'], tp['l_b1']), tp['l_g1g'], tp['l_g1b']))
    local = gn(conv1x1(h, tp['l_w2'], tp['l_b2']), tp['l_g2g'], tp['l_g2b'])
    g = ctx.mean(axis=(2, 3), keepdims=True)
    gh = jax.nn.relu(gn(conv1x1(g, tp['g_w1'], tp['g_b1']), tp['g_g1g'], tp['g_g1b']))
    glob = gn(conv1x1(gh, tp['g_w2'], tp['g_b2']), tp['g_g2g'], tp['g_g2b'])
    wei = jax.nn.sigmoid(local + glob)
    return x * wei


if __name__ == "__main__":
    key = jax.random.PRNGKey(0)
    C = 128                 # GroupNorm(32, C) and GroupNorm(32, C//4) require C>=128
    strides = [4, 8]
    N = 2
    img = 56

    kf0, kf1, kp = jax.random.split(key, 3)
    features = [
        jax.random.normal(kf0, (N, C, img // strides[0], img // strides[0]), jnp.float32),
        jax.random.normal(kf1, (N, C, img // strides[1], img // strides[1]), jnp.float32),
    ]
    # one box per image (original-image coords), so M == N for the MS_CAM broadcast
    boxes = [np.array([[4.0, 6.0, 40.0, 44.0]], np.float32),
             np.array([[10.0, 8.0, 50.0, 52.0]], np.float32)]

    torch_params, kernel_params = init_params(kp, C)

    out = feature_fusion_v2(features, boxes, kernel_params, strides)
    out = jax.block_until_ready(out)                      # (M, C, 7, 7) NCHW

    # validate the Pallas-computed part against a pure-JAX f32 reference
    pooled = multilevel_roi_pool(features, boxes, strides, POOL)
    ctx = jnp.mean(jnp.stack([adaptive_avg_pool(f, POOL) for f in features],
                             axis=0), axis=0)
    ref = ref_forward(pooled, ctx, torch_params)
    # tolerance accounts for bf16 matmul inputs (f32 accumulation in-kernel)
    np.testing.assert_allclose(np.asarray(out), np.asarray(ref), rtol=2e-2, atol=3e-2)

    print("KERNEL_OK")
</pallas_src>

<mosaic_0001>
module attributes {stable_mosaic.version = 11 : i64} {
  func.func @_fusion_kernel(%arg0: i32, %arg1: memref<448x1152xbf16, #tpu.memory_space<vmem>>, %arg2: memref<448x128xbf16, #tpu.memory_space<vmem>>, %arg3: memref<1152x128xbf16, #tpu.memory_space<vmem>>, %arg4: memref<128x32xbf16, #tpu.memory_space<vmem>>, %arg5: memref<32x128xbf16, #tpu.memory_space<vmem>>, %arg6: memref<128x32xbf16, #tpu.memory_space<vmem>>, %arg7: memref<32x128xbf16, #tpu.memory_space<vmem>>, %arg8: memref<48x128xf32, #tpu.memory_space<vmem>>, %arg9: memref<40x32xf32, #tpu.memory_space<vmem>>, %arg10: memref<128x32xf32, #tpu.memory_space<vmem>>, %arg11: memref<32x32xf32, #tpu.memory_space<vmem>>, %arg12: memref<448x128xf32, #tpu.memory_space<vmem>>) attributes {dimension_semantics = [#tpu.dimension_semantics<parallel>], iteration_bounds = array<i64: 1>, scalar_prefetch = 0 : i64, scratch_operands = 0 : i64, tpu.core_type = #tpu.core_type<tc>, window_params = [{transform_indices = @transform_0, window_bounds = array<i64: 448, 1152>}, {transform_indices = @transform_1, window_bounds = array<i64: 448, 128>}, {pipeline_mode = #tpu.pipeline_mode<synchronous>, transform_indices = @transform_2, window_bounds = array<i64: 1152, 128>}, {pipeline_mode = #tpu.pipeline_mode<synchronous>, transform_indices = @transform_3, window_bounds = array<i64: 128, 32>}, {pipeline_mode = #tpu.pipeline_mode<synchronous>, transform_indices = @transform_4, window_bounds = array<i64: 32, 128>}, {pipeline_mode = #tpu.pipeline_mode<synchronous>, transform_indices = @transform_5, window_bounds = array<i64: 128, 32>}, {pipeline_mode = #tpu.pipeline_mode<synchronous>, transform_indices = @transform_6, window_bounds = array<i64: 32, 128>}, {pipeline_mode = #tpu.pipeline_mode<synchronous>, transform_indices = @transform_7, window_bounds = array<i64: 48, 128>}, {pipeline_mode = #tpu.pipeline_mode<synchronous>, transform_indices = @transform_8, window_bounds = array<i64: 40, 32>}, {pipeline_mode = #tpu.pipeline_mode<synchronous>, transform_indices = @transform_9, window_bounds = array<i64: 128, 32>}, {pipeline_mode = #tpu.pipeline_mode<synchronous>, transform_indices = @transform_10, window_bounds = array<i64: 32, 32>}, {transform_indices = @transform_11, window_bounds = array<i64: 448, 128>}]} {
    %c0 = arith.constant 0 : index
    %c0_0 = arith.constant 0 : index
    %0 = vector.load %arg8[%c0, %c0_0] : memref<48x128xf32, #tpu.memory_space<vmem>>, vector<48x128xf32>
    %c0_1 = arith.constant 0 : index
    %c0_2 = arith.constant 0 : index
    %1 = vector.load %arg9[%c0_1, %c0_2] : memref<40x32xf32, #tpu.memory_space<vmem>>, vector<40x32xf32>
    %c0_3 = arith.constant 0 : index
    %c0_4 = arith.constant 0 : index
    %2 = vector.load %arg10[%c0_3, %c0_4] : memref<128x32xf32, #tpu.memory_space<vmem>>, vector<128x32xf32>
    %c0_5 = arith.constant 0 : index
    %c0_6 = arith.constant 0 : index
    %3 = vector.load %arg11[%c0_5, %c0_6] : memref<32x32xf32, #tpu.memory_space<vmem>>, vector<32x32xf32>
    %4 = vector.extract_strided_slice %0 {offsets = [16, 0], sizes = [32, 128], strides = [1, 1]} : vector<48x128xf32> to vector<32x128xf32>
    %5 = vector.extract_strided_slice %1 {offsets = [8, 0], sizes = [32, 32], strides = [1, 1]} : vector<40x32xf32> to vector<32x32xf32>
    %6 = tpu.iota {dimensions = array<i32: 1>} : vector<8x448xi32>
    %7 = tpu.iota {dimensions = array<i32: 0>} : vector<8x448xi32>
    %c56_i32 = arith.constant 56 : i32
    %8 = vector.broadcast %c56_i32 : i32 to vector<8x448xi32>
    %9 = arith.muli %7, %8 : vector<8x448xi32>
    %10 = arith.cmpi sge, %6, %9 : vector<8x448xi32>
    %c49_i32 = arith.constant 49 : i32
    %11 = vector.broadcast %c49_i32 : i32 to vector<8x448xi32>
    %12 = arith.addi %9, %11 : vector<8x448xi32>
    %13 = arith.cmpi slt, %6, %12 : vector<8x448xi32>
    %14 = arith.andi %10, %13 : vector<8x448xi1>
    %cst = arith.constant 1.000000e+00 : f32
    %cst_7 = arith.constant 0.000000e+00 : f32
    %15 = vector.broadcast %cst : f32 to vector<8x448xf32>
    %16 = vector.broadcast %cst_7 : f32 to vector<8x448xf32>
    %17 = arith.select %14, %15, %16 : vector<8x448xi1>, vector<8x448xf32>
    %18 = tpu.iota {dimensions = array<i32: 0>} : vector<448x8xi32>
    %19 = tpu.iota {dimensions = array<i32: 1>} : vector<448x8xi32>
    %c56_i32_8 = arith.constant 56 : i32
    %20 = vector.broadcast %c56_i32_8 : i32 to vector<448x8xi32>
    %21 = arith.muli %19, %20 : vector<448x8xi32>
    %22 = arith.cmpi sge, %18, %21 : vector<448x8xi32>
    %c56_i32_9 = arith.constant 56 : i32
    %23 = vector.broadcast %c56_i32_9 : i32 to vector<448x8xi32>
    %24 = arith.addi %21, %23 : vector<448x8xi32>
    %25 = arith.cmpi slt, %18, %24 : vector<448x8xi32>
    %26 = arith.andi %22, %25 : vector<448x8xi1>
    %cst_10 = arith.constant 1.000000e+00 : f32
    %cst_11 = arith.constant 0.000000e+00 : f32
    %27 = vector.broadcast %cst_10 : f32 to vector<448x8xf32>
    %28 = vector.broadcast %cst_11 : f32 to vector<448x8xf32>
    %29 = arith.select %26, %27, %28 : vector<448x8xi1>, vector<448x8xf32>
    %c0_12 = arith.constant 0 : index
    %c0_13 = arith.constant 0 : index
    %30 = vector.load %arg1[%c0_12, %c0_13] : memref<448x1152xbf16, #tpu.memory_space<vmem>>, vector<448x1152xbf16>
    %c0_14 = arith.constant 0 : index
    %c0_15 = arith.constant 0 : index
    %31 = vector.load %arg3[%c0_14, %c0_15] : memref<1152x128xbf16, #tpu.memory_space<vmem>>, vector<1152x128xbf16>
    %cst_16 = arith.constant dense<0.000000e+00> : vector<448x128xf32>
    %32 = tpu.matmul %30, %31, %cst_16 {dimension_numbers = #tpu.dot_dimension_numbers<[1], [0], [0], [1], [0, 0, 1, 1], [], []>} : vector<448x1152xbf16>, vector<1152x128xbf16>, vector<448x128xf32> -> vector<448x128xf32>
    %33 = vector.extract_strided_slice %0 {offsets = [0, 0], sizes = [1, 128], strides = [1, 1]} : vector<48x128xf32> to vector<1x128xf32>
    %34 = vector.broadcast %33 : vector<1x128xf32> to vector<448x128xf32>
    %35 = arith.addf %32, %34 : vector<448x128xf32>
    %36 = vector.extract_strided_slice %0 {offsets = [1, 0], sizes = [1, 128], strides = [1, 1]} : vector<48x128xf32> to vector<1x128xf32>
    %37 = vector.extract_strided_slice %0 {offsets = [2, 0], sizes = [1, 128], strides = [1, 1]} : vector<48x128xf32> to vector<1x128xf32>
    %cst_17 = arith.constant dense<0.000000e+00> : vector<8x128xf32>
    %38 = tpu.matmul %17, %35, %cst_17 {dimension_numbers = #tpu.dot_dimension_numbers<[1], [0], [0], [1], [0, 0, 1, 1], [], []>} : vector<8x448xf32>, vector<448x128xf32>, vector<8x128xf32> -> vector<8x128xf32>
    %39 = arith.mulf %35, %35 : vector<448x128xf32>
    %cst_18 = arith.constant dense<0.000000e+00> : vector<8x128xf32>
    %40 = tpu.matmul %17, %39, %cst_18 {dimension_numbers = #tpu.dot_dimension_numbers<[1], [0], [0], [1], [0, 0, 1, 1], [], []>} : vector<8x448xf32>, vector<448x128xf32>, vector<8x128xf32> -> vector<8x128xf32>
    %41 = tpu.concatenate %38, %40 in 0 : vector<8x128xf32>, vector<8x128xf32> -> vector<16x128xf32>
    %cst_19 = arith.constant dense<0.000000e+00> : vector<16x32xf32>
    %42 = tpu.matmul %41, %2, %cst_19 {dimension_numbers = #tpu.dot_dimension_numbers<[1], [0], [0], [1], [0, 0, 1, 1], [], []>} : vector<16x128xf32>, vector<128x32xf32>, vector<16x32xf32> -> vector<16x32xf32>
    %43 = vector.extract_strided_slice %42 {offsets = [0, 0], sizes = [8, 32], strides = [1, 1]} : vector<16x32xf32> to vector<8x32xf32>
    %cst_20 = arith.constant 0.00510204071 : f32
    %44 = vector.broadcast %cst_20 : f32 to vector<8x32xf32>
    %45 = arith.mulf %43, %44 : vector<8x32xf32>
    %46 = vector.extract_strided_slice %42 {offsets = [8, 0], sizes = [8, 32], strides = [1, 1]} : vector<16x32xf32> to vector<8x32xf32>
    %cst_21 = arith.constant 0.00510204071 : f32
    %47 = vector.broadcast %cst_21 : f32 to vector<8x32xf32>
    %48 = arith.mulf %46, %47 : vector<8x32xf32>
    %49 = arith.mulf %45, %45 : vector<8x32xf32>
    %50 = arith.subf %48, %49 : vector<8x32xf32>
    %cst_22 = arith.constant 0.000000e+00 : f32
    %51 = vector.broadcast %cst_22 : f32 to vector<8x32xf32>
    %52 = arith.maximumf %50, %51 : vector<8x32xf32>
    %cst_23 = arith.constant 9.99999974E-6 : f32
    %53 = vector.broadcast %cst_23 : f32 to vector<8x32xf32>
    %54 = arith.addf %52, %53 : vector<8x32xf32>
    %55 = math.rsqrt %54 : vector<8x32xf32>
    %56 = tpu.concatenate %45, %55 in 0 : vector<8x32xf32>, vector<8x32xf32> -> vector<16x32xf32>
    %cst_24 = arith.constant dense<0.000000e+00> : vector<16x128xf32>
    %57 = tpu.matmul %56, %4, %cst_24 {dimension_numbers = #tpu.dot_dimension_numbers<[1], [0], [0], [1], [0, 0, 1, 1], [], []>} : vector<16x32xf32>, vector<32x128xf32>, vector<16x128xf32> -> vector<16x128xf32>
    %58 = vector.extract_strided_slice %57 {offsets = [0, 0], sizes = [8, 128], strides = [1, 1]} : vector<16x128xf32> to vector<8x128xf32>
    %cst_25 = arith.constant dense<0.000000e+00> : vector<448x128xf32>
    %59 = tpu.matmul %29, %58, %cst_25 {dimension_numbers = #tpu.dot_dimension_numbers<[1], [0], [0], [1], [0, 0, 1, 1], [], []>} : vector<448x8xf32>, vector<8x128xf32>, vector<448x128xf32> -> vector<448x128xf32>
    %60 = vector.extract_strided_slice %57 {offsets = [8, 0], sizes = [8, 128], strides = [1, 1]} : vector<16x128xf32> to vector<8x128xf32>
    %cst_26 = arith.constant dense<0.000000e+00> : vector<448x128xf32>
    %61 = tpu.matmul %29, %60, %cst_26 {dimension_numbers = #tpu.dot_dimension_numbers<[1], [0], [0], [1], [0, 0, 1, 1], [], []>} : vector<448x8xf32>, vector<8x128xf32>, vector<448x128xf32> -> vector<448x128xf32>
    %62 = arith.subf %35, %59 : vector<448x128xf32>
    %63 = arith.mulf %62, %61 : vector<448x128xf32>
    %64 = vector.broadcast %36 : vector<1x128xf32> to vector<448x128xf32>
    %65 = arith.mulf %63, %64 : vector<448x128xf32>
    %66 = vector.broadcast %37 : vector<1x128xf32> to vector<448x128xf32>
    %67 = arith.addf %65, %66 : vector<448x128xf32>
    %cst_27 = arith.constant 0.000000e+00 : f32
    %68 = vector.broadcast %cst_27 : f32 to vector<448x128xf32>
    %69 = arith.maximumf %67, %68 : vector<448x128xf32>
    %c0_28 = arith.constant 0 : index
    %c0_29 = arith.constant 0 : index
    %70 = vector.load %arg2[%c0_28, %c0_29] : memref<448x128xbf16, #tpu.memory_space<vmem>>, vector<448x128xbf16>
    %c0_30 = arith.constant 0 : index
    %c0_31 = arith.constant 0 : index
    %71 = vector.load %arg4[%c0_30, %c0_31] : memref<128x32xbf16, #tpu.memory_space<vmem>>, vector<128x32xbf16>
    %cst_32 = arith.constant dense<0.000000e+00> : vector<448x32xf32>
    %72 = tpu.matmul %70, %71, %cst_32 {dimension_numbers = #tpu.dot_dimension_numbers<[1], [0], [0], [1], [0, 0, 1, 1], [], []>} : vector<448x128xbf16>, vector<128x32xbf16>, vector<448x32xf32> -> vector<448x32xf32>
    %73 = vector.extract_strided_slice %1 {offsets = [0, 0], sizes = [1, 32], strides = [1, 1]} : vector<40x32xf32> to vector<1x32xf32>
    %74 = vector.broadcast %73 : vector<1x32xf32> to vector<448x32xf32>
    %75 = arith.addf %72, %74 : vector<448x32xf32>
    %76 = vector.extract_strided_slice %1 {offsets = [1, 0], sizes = [1, 32], strides = [1, 1]} : vector<40x32xf32> to vector<1x32xf32>
    %77 = vector.extract_strided_slice %1 {offsets = [2, 0], sizes = [1, 32], strides = [1, 1]} : vector<40x32xf32> to vector<1x32xf32>
    %cst_33 = arith.constant dense<0.000000e+00> : vector<8x32xf32>
    %78 = tpu.matmul %17, %75, %cst_33 {dimension_numbers = #tpu.dot_dimension_numbers<[1], [0], [0], [1], [0, 0, 1, 1], [], []>} : vector<8x448xf32>, vector<448x32xf32>, vector<8x32xf32> -> vector<8x32xf32>
    %79 = arith.mulf %75, %75 : vector<448x32xf32>
    %cst_34 = arith.constant dense<0.000000e+00> : vector<8x32xf32>
    %80 = tpu.matmul %17, %79, %cst_34 {dimension_numbers = #tpu.dot_dimension_numbers<[1], [0], [0], [1], [0, 0, 1, 1], [], []>} : vector<8x448xf32>, vector<448x32xf32>, vector<8x32xf32> -> vector<8x32xf32>
    %81 = tpu.concatenate %78, %80 in 0 : vector<8x32xf32>, vector<8x32xf32> -> vector<16x32xf32>
    %cst_35 = arith.constant dense<0.000000e+00> : vector<16x32xf32>
    %82 = tpu.matmul %81, %3, %cst_35 {dimension_numbers = #tpu.dot_dimension_numbers<[1], [0], [0], [1], [0, 0, 1, 1], [], []>} : vector<16x32xf32>, vector<32x32xf32>, vector<16x32xf32> -> vector<16x32xf32>
    %83 = vector.extract_strided_slice %82 {offsets = [0, 0], sizes = [8, 32], strides = [1, 1]} : vector<16x32xf32> to vector<8x32xf32>
    %cst_36 = arith.constant 0.0204081628 : f32
    %84 = vector.broadcast %cst_36 : f32 to vector<8x32xf32>
    %85 = arith.mulf %83, %84 : vector<8x32xf32>
    %86 = vector.extract_strided_slice %82 {offsets = [8, 0], sizes = [8, 32], strides = [1, 1]} : vector<16x32xf32> to vector<8x32xf32>
    %cst_37 = arith.constant 0.0204081628 : f32
    %87 = vector.broadcast %cst_37 : f32 to vector<8x32xf32>
    %88 = arith.mulf %86, %87 : vector<8x32xf32>
    %89 = arith.mulf %85, %85 : vector<8x32xf32>
    %90 = arith.subf %88, %89 : vector<8x32xf32>
    %cst_38 = arith.constant 0.000000e+00 : f32
    %91 = vector.broadcast %cst_38 : f32 to vector<8x32xf32>
    %92 = arith.maximumf %90, %91 : vector<8x32xf32>
    %cst_39 = arith.constant 9.99999974E-6 : f32
    %93 = vector.broadcast %cst_39 : f32 to vector<8x32xf32>
    %94 = arith.addf %92, %93 : vector<8x32xf32>
    %95 = math.rsqrt %94 : vector<8x32xf32>
    %96 = tpu.concatenate %85, %95 in 0 : vector<8x32xf32>, vector<8x32xf32> -> vector<16x32xf32>
    %cst_40 = arith.constant dense<0.000000e+00> : vector<16x32xf32>
    %97 = tpu.matmul %96, %5, %cst_40 {dimension_numbers = #tpu.dot_dimension_numbers<[1], [0], [0], [1], [0, 0, 1, 1], [], []>} : vector<16x32xf32>, vector<32x32xf32>, vector<16x32xf32> -> vector<16x32xf32>
    %98 = vector.extract_strided_slice %97 {offsets = [0, 0], sizes = [8, 32], strides = [1, 1]} : vector<16x32xf32> to vector<8x32xf32>
    %cst_41 = arith.constant dense<0.000000e+00> : vector<448x32xf32>
    %99 = tpu.matmul %29, %98, %cst_41 {dimension_numbers = #tpu.dot_dimension_numbers<[1], [0], [0], [1], [0, 0, 1, 1], [], []>} : vector<448x8xf32>, vector<8x32xf32>, vector<448x32xf32> -> vector<448x32xf32>
    %100 = vector.extract_strided_slice %97 {offsets = [8, 0], sizes = [8, 32], strides = [1, 1]} : vector<16x32xf32> to vector<8x32xf32>
    %cst_42 = arith.constant dense<0.000000e+00> : vector<448x32xf32>
    %101 = tpu.matmul %29, %100, %cst_42 {dimension_numbers = #tpu.dot_dimension_numbers<[1], [0], [0], [1], [0, 0, 1, 1], [], []>} : vector<448x8xf32>, vector<8x32xf32>, vector<448x32xf32> -> vector<448x32xf32>
    %102 = arith.subf %75, %99 : vector<448x32xf32>
    %103 = arith.mulf %102, %101 : vector<448x32xf32>
    %104 = vector.broadcast %76 : vector<1x32xf32> to vector<448x32xf32>
    %105 = arith.mulf %103, %104 : vector<448x32xf32>
    %106 = vector.broadcast %77 : vector<1x32xf32> to vector<448x32xf32>
    %107 = arith.addf %105, %106 : vector<448x32xf32>
    %cst_43 = arith.constant 0.000000e+00 : f32
    %108 = vector.broadcast %cst_43 : f32 to vector<448x32xf32>
    %109 = arith.maximumf %107, %108 : vector<448x32xf32>
    %110 = arith.truncf %109 : vector<448x32xf32> to vector<448x32xbf16>
    %c0_44 = arith.constant 0 : index
    %c0_45 = arith.constant 0 : index
    %111 = vector.load %arg5[%c0_44, %c0_45] : memref<32x128xbf16, #tpu.memory_space<vmem>>, vector<32x128xbf16>
    %cst_46 = arith.constant dense<0.000000e+00> : vector<448x128xf32>
    %112 = tpu.matmul %110, %111, %cst_46 {dimension_numbers = #tpu.dot_dimension_numbers<[1], [0], [0], [1], [0, 0, 1, 1], [], []>} : vector<448x32xbf16>, vector<32x128xbf16>, vector<448x128xf32> -> vector<448x128xf32>
    %113 = vector.extract_strided_slice %0 {offsets = [3, 0], sizes = [1, 128], strides = [1, 1]} : vector<48x128xf32> to vector<1x128xf32>
    %114 = vector.broadcast %113 : vector<1x128xf32> to vector<448x128xf32>
    %115 = arith.addf %112, %114 : vector<448x128xf32>
    %116 = vector.extract_strided_slice %0 {offsets = [4, 0], sizes = [1, 128], strides = [1, 1]} : vector<48x128xf32> to vector<1x128xf32>
    %117 = vector.extract_strided_slice %0 {offsets = [5, 0], sizes = [1, 128], strides = [1, 1]} : vector<48x128xf32> to vector<1x128xf32>
    %cst_47 = arith.constant dense<0.000000e+00> : vector<8x128xf32>
    %118 = tpu.matmul %17, %115, %cst_47 {dimension_numbers = #tpu.dot_dimension_numbers<[1], [0], [0], [1], [0, 0, 1, 1], [], []>} : vector<8x448xf32>, vector<448x128xf32>, vector<8x128xf32> -> vector<8x128xf32>
    %119 = arith.mulf %115, %115 : vector<448x128xf32>
    %cst_48 = arith.constant dense<0.000000e+00> : vector<8x128xf32>
    %120 = tpu.matmul %17, %119, %cst_48 {dimension_numbers = #tpu.dot_dimension_numbers<[1], [0], [0], [1], [0, 0, 1, 1], [], []>} : vector<8x448xf32>, vector<448x128xf32>, vector<8x128xf32> -> vector<8x128xf32>
    %121 = tpu.concatenate %118, %120 in 0 : vector<8x128xf32>, vector<8x128xf32> -> vector<16x128xf32>
    %cst_49 = arith.constant dense<0.000000e+00> : vector<16x32xf32>
    %122 = tpu.matmul %121, %2, %cst_49 {dimension_numbers = #tpu.dot_dimension_numbers<[1], [0], [0], [1], [0, 0, 1, 1], [], []>} : vector<16x128xf32>, vector<128x32xf32>, vector<16x32xf32> -> vector<16x32xf32>
    %123 = vector.extract_strided_slice %122 {offsets = [0, 0], sizes = [8, 32], strides = [1, 1]} : vector<16x32xf32> to vector<8x32xf32>
    %cst_50 = arith.constant 0.00510204071 : f32
    %124 = vector.broadcast %cst_50 : f32 to vector<8x32xf32>
    %125 = arith.mulf %123, %124 : vector<8x32xf32>
    %126 = vector.extract_strided_slice %122 {offsets = [8, 0], sizes = [8, 32], strides = [1, 1]} : vector<16x32xf32> to vector<8x32xf32>
    %cst_51 = arith.constant 0.00510204071 : f32
    %127 = vector.broadcast %cst_51 : f32 to vector<8x32xf32>
    %128 = arith.mulf %126, %127 : vector<8x32xf32>
    %129 = arith.mulf %125, %125 : vector<8x32xf32>
    %130 = arith.subf %128, %129 : vector<8x32xf32>
    %cst_52 = arith.constant 0.000000e+00 : f32
    %131 = vector.broadcast %cst_52 : f32 to vector<8x32xf32>
    %132 = arith.maximumf %130, %131 : vector<8x32xf32>
    %cst_53 = arith.constant 9.99999974E-6 : f32
    %133 = vector.broadcast %cst_53 : f32 to vector<8x32xf32>
    %134 = arith.addf %132, %133 : vector<8x32xf32>
    %135 = math.rsqrt %134 : vector<8x32xf32>
    %136 = tpu.concatenate %125, %135 in 0 : vector<8x32xf32>, vector<8x32xf32> -> vector<16x32xf32>
    %cst_54 = arith.constant dense<0.000000e+00> : vector<16x128xf32>
    %137 = tpu.matmul %136, %4, %cst_54 {dimension_numbers = #tpu.dot_dimension_numbers<[1], [0], [0], [1], [0, 0, 1, 1], [], []>} : vector<16x32xf32>, vector<32x128xf32>, vector<16x128xf32> -> vector<16x128xf32>
    %138 = vector.extract_strided_slice %137 {offsets = [0, 0], sizes = [8, 128], strides = [1, 1]} : vector<16x128xf32> to vector<8x128xf32>
    %cst_55 = arith.constant dense<0.000000e+00> : vector<448x128xf32>
    %139 = tpu.matmul %29, %138, %cst_55 {dimension_numbers = #tpu.dot_dimension_numbers<[1], [0], [0], [1], [0, 0, 1, 1], [], []>} : vector<448x8xf32>, vector<8x128xf32>, vector<448x128xf32> -> vector<448x128xf32>
    %140 = vector.extract_strided_slice %137 {offsets = [8, 0], sizes = [8, 128], strides = [1, 1]} : vector<16x128xf32> to vector<8x128xf32>
    %cst_56 = arith.constant dense<0.000000e+00> : vector<448x128xf32>
    %141 = tpu.matmul %29, %140, %cst_56 {dimension_numbers = #tpu.dot_dimension_numbers<[1], [0], [0], [1], [0, 0, 1, 1], [], []>} : vector<448x8xf32>, vector<8x128xf32>, vector<448x128xf32> -> vector<448x128xf32>
    %142 = arith.subf %115, %139 : vector<448x128xf32>
    %143 = arith.mulf %142, %141 : vector<448x128xf32>
    %144 = vector.broadcast %116 : vector<1x128xf32> to vector<448x128xf32>
    %145 = arith.mulf %143, %144 : vector<448x128xf32>
    %146 = vector.broadcast %117 : vector<1x128xf32> to vector<448x128xf32>
    %147 = arith.addf %145, %146 : vector<448x128xf32>
    %148 = arith.extf %70 : vector<448x128xbf16> to vector<448x128xf32>
    %cst_57 = arith.constant dense<0.000000e+00> : vector<8x128xf32>
    %149 = tpu.matmul %17, %148, %cst_57 {dimension_numbers = #tpu.dot_dimension_numbers<[1], [0], [0], [1], [0, 0, 1, 1], [], []>} : vector<8x448xf32>, vector<448x128xf32>, vector<8x128xf32> -> vector<8x128xf32>
    %cst_58 = arith.constant 0.0204081628 : f32
    %150 = vector.broadcast %cst_58 : f32 to vector<8x128xf32>
    %151 = arith.mulf %149, %150 : vector<8x128xf32>
    %152 = arith.truncf %151 : vector<8x128xf32> to vector<8x128xbf16>
    %c0_59 = arith.constant 0 : index
    %c0_60 = arith.constant 0 : index
    %153 = vector.load %arg6[%c0_59, %c0_60] : memref<128x32xbf16, #tpu.memory_space<vmem>>, vector<128x32xbf16>
    %cst_61 = arith.constant dense<0.000000e+00> : vector<8x32xf32>
    %154 = tpu.matmul %152, %153, %cst_61 {dimension_numbers = #tpu.dot_dimension_numbers<[1], [0], [0], [1], [0, 0, 1, 1], [], []>} : vector<8x128xbf16>, vector<128x32xbf16>, vector<8x32xf32> -> vector<8x32xf32>
    %155 = vector.extract_strided_slice %1 {offsets = [3, 0], sizes = [1, 32], strides = [1, 1]} : vector<40x32xf32> to vector<1x32xf32>
    %156 = vector.broadcast %155 : vector<1x32xf32> to vector<8x32xf32>
    %157 = arith.addf %154, %156 : vector<8x32xf32>
    %158 = vector.extract_strided_slice %1 {offsets = [4, 0], sizes = [1, 32], strides = [1, 1]} : vector<40x32xf32> to vector<1x32xf32>
    %159 = vector.extract_strided_slice %1 {offsets = [5, 0], sizes = [1, 32], strides = [1, 1]} : vector<40x32xf32> to vector<1x32xf32>
    %160 = arith.mulf %157, %157 : vector<8x32xf32>
    %161 = tpu.concatenate %157, %160 in 0 : vector<8x32xf32>, vector<8x32xf32> -> vector<16x32xf32>
    %cst_62 = arith.constant dense<0.000000e+00> : vector<16x32xf32>
    %162 = tpu.matmul %161, %3, %cst_62 {dimension_numbers = #tpu.dot_dimension_numbers<[1], [0], [0], [1], [0, 0, 1, 1], [], []>} : vector<16x32xf32>, vector<32x32xf32>, vector<16x32xf32> -> vector<16x32xf32>
    %163 = vector.extract_strided_slice %162 {offsets = [0, 0], sizes = [8, 32], strides = [1, 1]} : vector<16x32xf32> to vector<8x32xf32>
    %cst_63 = arith.constant 1.000000e+00 : f32
    %164 = vector.broadcast %cst_63 : f32 to vector<8x32xf32>
    %165 = arith.mulf %163, %164 : vector<8x32xf32>
    %166 = vector.extract_strided_slice %162 {offsets = [8, 0], sizes = [8, 32], strides = [1, 1]} : vector<16x32xf32> to vector<8x32xf32>
    %cst_64 = arith.constant 1.000000e+00 : f32
    %167 = vector.broadcast %cst_64 : f32 to vector<8x32xf32>
    %168 = arith.mulf %166, %167 : vector<8x32xf32>
    %169 = arith.mulf %165, %165 : vector<8x32xf32>
    %170 = arith.subf %168, %169 : vector<8x32xf32>
    %cst_65 = arith.constant 0.000000e+00 : f32
    %171 = vector.broadcast %cst_65 : f32 to vector<8x32xf32>
    %172 = arith.maximumf %170, %171 : vector<8x32xf32>
    %cst_66 = arith.constant 9.99999974E-6 : f32
    %173 = vector.broadcast %cst_66 : f32 to vector<8x32xf32>
    %174 = arith.addf %172, %173 : vector<8x32xf32>
    %175 = math.rsqrt %174 : vector<8x32xf32>
    %176 = tpu.concatenate %165, %175 in 0 : vector<8x32xf32>, vector<8x32xf32> -> vector<16x32xf32>
    %cst_67 = arith.constant dense<0.000000e+00> : vector<16x32xf32>
    %177 = tpu.matmul %176, %5, %cst_67 {dimension_numbers = #tpu.dot_dimension_numbers<[1], [0], [0], [1], [0, 0, 1, 1], [], []>} : vector<16x32xf32>, vector<32x32xf32>, vector<16x32xf32> -> vector<16x32xf32>
    %178 = vector.extract_strided_slice %177 {offsets = [0, 0], sizes = [8, 32], strides = [1, 1]} : vector<16x32xf32> to vector<8x32xf32>
    %179 = arith.subf %157, %178 : vector<8x32xf32>
    %180 = vector.extract_strided_slice %177 {offsets = [8, 0], sizes = [8, 32], strides = [1, 1]} : vector<16x32xf32> to vector<8x32xf32>
    %181 = arith.mulf %179, %180 : vector<8x32xf32>
    %182 = vector.broadcast %158 : vector<1x32xf32> to vector<8x32xf32>
    %183 = arith.mulf %181, %182 : vector<8x32xf32>
    %184 = vector.broadcast %159 : vector<1x32xf32> to vector<8x32xf32>
    %185 = arith.addf %183, %184 : vector<8x32xf32>
    %cst_68 = arith.constant 0.000000e+00 : f32
    %186 = vector.broadcast %cst_68 : f32 to vector<8x32xf32>
    %187 = arith.maximumf %185, %186 : vector<8x32xf32>
    %188 = arith.truncf %187 : vector<8x32xf32> to vector<8x32xbf16>
    %c0_69 = arith.constant 0 : index
    %c0_70 = arith.constant 0 : index
    %189 = vector.load %arg7[%c0_69, %c0_70] : memref<32x128xbf16, #tpu.memory_space<vmem>>, vector<32x128xbf16>
    %cst_71 = arith.constant dense<0.000000e+00> : vector<8x128xf32>
    %190 = tpu.matmul %188, %189, %cst_71 {dimension_numbers = #tpu.dot_dimension_numbers<[1], [0], [0], [1], [0, 0, 1, 1], [], []>} : vector<8x32xbf16>, vector<32x128xbf16>, vector<8x128xf32> -> vector<8x128xf32>
    %191 = vector.extract_strided_slice %0 {offsets = [6, 0], sizes = [1, 128], strides = [1, 1]} : vector<48x128xf32> to vector<1x128xf32>
    %192 = vector.broadcast %191 : vector<1x128xf32> to vector<8x128xf32>
    %193 = arith.addf %190, %192 : vector<8x128xf32>
    %194 = vector.extract_strided_slice %0 {offsets = [7, 0], sizes = [1, 128], strides = [1, 1]} : vector<48x128xf32> to vector<1x128xf32>
    %195 = vector.extract_strided_slice %0 {offsets = [8, 0], sizes = [1, 128], strides = [1, 1]} : vector<48x128xf32> to vector<1x128xf32>
    %196 = arith.mulf %193, %193 : vector<8x128xf32>
    %197 = tpu.concatenate %193, %196 in 0 : vector<8x128xf32>, vector<8x128xf32> -> vector<16x128xf32>
    %cst_72 = arith.constant dense<0.000000e+00> : vector<16x32xf32>
    %198 = tpu.matmul %197, %2, %cst_72 {dimension_numbers = #tpu.dot_dimension_numbers<[1], [0], [0], [1], [0, 0, 1, 1], [], []>} : vector<16x128xf32>, vector<128x32xf32>, vector<16x32xf32> -> vector<16x32xf32>
    %199 = vector.extract_strided_slice %198 {offsets = [0, 0], sizes = [8, 32], strides = [1, 1]} : vector<16x32xf32> to vector<8x32xf32>
    %cst_73 = arith.constant 2.500000e-01 : f32
    %200 = vector.broadcast %cst_73 : f32 to vector<8x32xf32>
    %201 = arith.mulf %199, %200 : vector<8x32xf32>
    %202 = vector.extract_strided_slice %198 {offsets = [8, 0], sizes = [8, 32], strides = [1, 1]} : vector<16x32xf32> to vector<8x32xf32>
    %cst_74 = arith.constant 2.500000e-01 : f32
    %203 = vector.broadcast %cst_74 : f32 to vector<8x32xf32>
    %204 = arith.mulf %202, %203 : vector<8x32xf32>
    %205 = arith.mulf %201, %201 : vector<8x32xf32>
    %206 = arith.subf %204, %205 : vector<8x32xf32>
    %cst_75 = arith.constant 0.000000e+00 : f32
    %207 = vector.broadcast %cst_75 : f32 to vector<8x32xf32>
    %208 = arith.maximumf %206, %207 : vector<8x32xf32>
    %cst_76 = arith.constant 9.99999974E-6 : f32
    %209 = vector.broadcast %cst_76 : f32 to vector<8x32xf32>
    %210 = arith.addf %208, %209 : vector<8x32xf32>
    %211 = math.rsqrt %210 : vector<8x32xf32>
    %212 = tpu.concatenate %201, %211 in 0 : vector<8x32xf32>, vector<8x32xf32> -> vector<16x32xf32>
    %cst_77 = arith.constant dense<0.000000e+00> : vector<16x128xf32>
    %213 = tpu.matmul %212, %4, %cst_77 {dimension_numbers = #tpu.dot_dimension_numbers<[1], [0], [0], [1], [0, 0, 1, 1], [], []>} : vector<16x32xf32>, vector<32x128xf32>, vector<16x128xf32> -> vector<16x128xf32>
    %214 = vector.extract_strided_slice %213 {offsets = [0, 0], sizes = [8, 128], strides = [1, 1]} : vector<16x128xf32> to vector<8x128xf32>
    %215 = arith.subf %193, %214 : vector<8x128xf32>
    %216 = vector.extract_strided_slice %213 {offsets = [8, 0], sizes = [8, 128], strides = [1, 1]} : vector<16x128xf32> to vector<8x128xf32>
    %217 = arith.mulf %215, %216 : vector<8x128xf32>
    %218 = vector.broadcast %194 : vector<1x128xf32> to vector<8x128xf32>
    %219 = arith.mulf %217, %218 : vector<8x128xf32>
    %220 = vector.broadcast %195 : vector<1x128xf32> to vector<8x128xf32>
    %221 = arith.addf %219, %220 : vector<8x128xf32>
    %cst_78 = arith.constant dense<0.000000e+00> : vector<448x128xf32>
    %222 = tpu.matmul %29, %221, %cst_78 {dimension_numbers = #tpu.dot_dimension_numbers<[1], [0], [0], [1], [0, 0, 1, 1], [], []>} : vector<448x8xf32>, vector<8x128xf32>, vector<448x128xf32> -> vector<448x128xf32>
    %223 = arith.addf %147, %222 : vector<448x128xf32>
    %cst_79 = arith.constant 0.000000e+00 : f32
    %224 = vector.broadcast %cst_79 : f32 to vector<448x128xf32>
    %225 = arith.subf %224, %223 : vector<448x128xf32>
    %226 = math.exp %225 : vector<448x128xf32>
    %cst_80 = arith.constant 1.000000e+00 : f32
    %227 = vector.broadcast %cst_80 : f32 to vector<448x128xf32>
    %228 = arith.addf %227, %226 : vector<448x128xf32>
    %229 = tpu.reciprocal %228 {approx = true} : vector<448x128xf32> -> vector<448x128xf32>
    %230 = arith.mulf %69, %229 : vector<448x128xf32>
    %c0_81 = arith.constant 0 : index
    %c0_82 = arith.constant 0 : index
    %231 = vector.load %arg12[%c0_81, %c0_82] : memref<448x128xf32, #tpu.memory_space<vmem>>, vector<448x128xf32>
    tpu.vector_store %arg12[%c0_81, %c0_82], %230 {strides = array<i32>} : memref<448x128xf32, #tpu.memory_space<vmem>>, vector<448x128xf32>,
    return
  }
  func.func @transform_0(%arg0: i32) -> (i32, i32) {
    %c0_i32 = arith.constant 0 : i32
    %c0_i32_0 = arith.constant 0 : i32
    return %arg0, %c0_i32 : i32, i32
  }
  func.func @transform_1(%arg0: i32) -> (i32, i32) {
    %c0_i32 = arith.constant 0 : i32
    %c0_i32_0 = arith.constant 0 : i32
    return %arg0, %c0_i32 : i32, i32
  }
  func.func @transform_2(%arg0: i32) -> (i32, i32) {
    %c0_i32 = arith.constant 0 : i32
    %c0_i32_0 = arith.constant 0 : i32
    %c0_i32_1 = arith.constant 0 : i32
    return %c0_i32, %c0_i32_0 : i32, i32
  }
  func.func @transform_3(%arg0: i32) -> (i32, i32) {
    %c0_i32 = arith.constant 0 : i32
    %c0_i32_0 = arith.constant 0 : i32
    %c0_i32_1 = arith.constant 0 : i32
    return %c0_i32, %c0_i32_0 : i32, i32
  }
  func.func @transform_4(%arg0: i32) -> (i32, i32) {
    %c0_i32 = arith.constant 0 : i32
    %c0_i32_0 = arith.constant 0 : i32
    %c0_i32_1 = arith.constant 0 : i32
    return %c0_i32, %c0_i32_0 : i32, i32
  }
  func.func @transform_5(%arg0: i32) -> (i32, i32) {
    %c0_i32 = arith.constant 0 : i32
    %c0_i32_0 = arith.constant 0 : i32
    %c0_i32_1 = arith.constant 0 : i32
    return %c0_i32, %c0_i32_0 : i32, i32
  }
  func.func @transform_6(%arg0: i32) -> (i32, i32) {
    %c0_i32 = arith.constant 0 : i32
    %c0_i32_0 = arith.constant 0 : i32
    %c0_i32_1 = arith.constant 0 : i32
    return %c0_i32, %c0_i32_0 : i32, i32
  }
  func.func @transform_7(%arg0: i32) -> (i32, i32) {
    %c0_i32 = arith.constant 0 : i32
    %c0_i32_0 = arith.constant 0 : i32
    %c0_i32_1 = arith.constant 0 : i32
    return %c0_i32, %c0_i32_0 : i32, i32
  }
  func.func @transform_8(%arg0: i32) -> (i32, i32) {
    %c0_i32 = arith.constant 0 : i32
    %c0_i32_0 = arith.constant 0 : i32
    %c0_i32_1 = arith.constant 0 : i32
    return %c0_i32, %c0_i32_0 : i32, i32
  }
  func.func @transform_9(%arg0: i32) -> (i32, i32) {
    %c0_i32 = arith.constant 0 : i32
    %c0_i32_0 = arith.constant 0 : i32
    %c0_i32_1 = arith.constant 0 : i32
    return %c0_i32, %c0_i32_0 : i32, i32
  }
  func.func @transform_10(%arg0: i32) -> (i32, i32) {
    %c0_i32 = arith.constant 0 : i32
    %c0_i32_0 = arith.constant 0 : i32
    %c0_i32_1 = arith.constant 0 : i32
    return %c0_i32, %c0_i32_0 : i32, i32
  }
  func.func @transform_11(%arg0: i32) -> (i32, i32) {
    %c0_i32 = arith.constant 0 : i32
    %c0_i32_0 = arith.constant 0 : i32
    return %arg0, %c0_i32 : i32, i32
  }
}

</mosaic_0001>

<llo_original>
// kernel: tpu_custom_call.1
$region0: #{tpu_custom_call.1}
  #allocation0 [shape = 'u32[]', space=smem, size = 0x4, offset = 0x4, fixed_abs, tag = 'smem constant byte address 0x4 - core index']
  #allocation1 [shape = 'u32[144,128]{1,0:T(1,128)}', space=vmem, size = 0x12000, scoped, tag = 'internal scratch']
  %s0 = inlined_call_operand.hbm [shape: bf16[448,1152], index: 0, kind: input, shape index: {}]
  %s1 = inlined_call_operand.vmem [shape: bf16[448,128], index: 1, kind: input, shape index: {}]
  %s2 = inlined_call_operand.hbm [shape: bf16[1152,128], index: 2, kind: input, shape index: {}]
  %s3 = inlined_call_operand.vmem [shape: bf16[128,32], index: 3, kind: input, shape index: {}]
  %s4 = inlined_call_operand.vmem [shape: bf16[32,128], index: 4, kind: input, shape index: {}]
  %s5 = inlined_call_operand.vmem [shape: bf16[128,32], index: 5, kind: input, shape index: {}]
  %s6 = inlined_call_operand.vmem [shape: bf16[32,128], index: 6, kind: input, shape index: {}]
  %s7 = inlined_call_operand.vmem [shape: f32[48,128], index: 7, kind: input, shape index: {}]
  %s8 = inlined_call_operand.vmem [shape: f32[40,32], index: 8, kind: input, shape index: {}]
  %s9 = inlined_call_operand.vmem [shape: f32[128,32], index: 9, kind: input, shape index: {}]
  %s10 = inlined_call_operand.vmem [shape: f32[32,32], index: 10, kind: input, shape index: {}]
  %s11 = inlined_call_operand.hbm [shape: f32[448,128], index: 11, kind: output, shape index: {}]
  %s12 = sld [smem:[#allocation0]]
  $region62: #{tpu_custom_call.1} parent=0
    _
  %s14 = ssub.s32 1, %s12
  %s15 = scalar_select 0, %s14, %s12
  $region1: #{tpu_custom_call.1} parent=0
    #allocation2 [shape = 'u8[1032192]{0}', space=vmem, size = 0xfc000, scoped, tag = 'input window, operand 0, single buffered']
    #allocation3 [shape = 's32[1]{0}', space=sflag, size = 0x4, scoped, tag = 'scoped memory for tpu_custom_call.1']
    #allocation4 [shape = 's32[1]{0}', space=sflag, size = 0x4, scoped, tag = 'scoped memory for tpu_custom_call.1']
    #allocation5 [shape = 'u8[294912]{0}', space=vmem, size = 0x48000, scoped, tag = 'input window, operand 2, single buffered']
    #allocation6 [shape = 's32[1]{0}', space=sflag, size = 0x4, scoped, tag = 'scoped memory for tpu_custom_call.1']
    #allocation7 [shape = 'u8[229376]{0}', space=vmem, size = 0x38000, scoped, tag = 'output window, operand 0, single buffered']
    %16 = vsyncpa [#allocation3], 0
    %17 = vsyncpa [#allocation6], 0
    %18 = vsyncpa [#allocation4], 0
    // Predicated region
    $region2: #{tpu_custom_call.1} parent=1 // pred_check
      _
    $region3: #{tpu_custom_call.1} parent=1 // pred_check_branch
      %20 = sbr.rel (0) target = $region5
    $region4: #{tpu_custom_call.1} parent=1 // pred_region
      %s22 = ssub.s32 32256, 32256
      %23 = vsyncadd [#allocation3], %s22
      %s24 = sshll.u32 [#allocation2], 4
      %s25 = int_to_ptr.vmem [resolvable:$true] %s24
      %30 = dma.hbm_to_vmem [thread:$0]  %s0, 32256, %s25, [#allocation3], 576, 576, 36
    $region5: #{tpu_custom_call.1} parent=1 // pred_fallthru
      _
    // Predicated region
    $region6: #{tpu_custom_call.1} parent=1 // pred_check
      _
    $region7: #{tpu_custom_call.1} parent=1 // pred_check_branch
      %32 = sbr.rel (0) target = $region9
    $region8: #{tpu_custom_call.1} parent=1 // pred_region
      _
    $region9: #{tpu_custom_call.1} parent=1 // pred_fallthru
      _
    // Predicated region
    $region10: #{tpu_custom_call.1} parent=1 // pred_check
      _
    $region11: #{tpu_custom_call.1} parent=1 // pred_check_branch
      %34 = sbr.rel (0) target = $region13
    $region12: #{tpu_custom_call.1} parent=1 // pred_region
      %s36 = ssub.s32 9216, 9216
      %37 = vsyncadd [#allocation6], %s36
      %s38 = sshll.u32 [#allocation5], 4
      %s39 = int_to_ptr.vmem [resolvable:$true] %s38
      %44 = dma.hbm_to_vmem [thread:$0]  %s2, 9216, %s39, [#allocation6], 64, 64, 4
    $region13: #{tpu_custom_call.1} parent=1 // pred_fallthru
      _
    // Predicated region
    $region14: #{tpu_custom_call.1} parent=1 // pred_check
      _
    $region15: #{tpu_custom_call.1} parent=1 // pred_check_branch
      %46 = sbr.rel (0) target = $region17
    $region16: #{tpu_custom_call.1} parent=1 // pred_region
      _
    $region17: #{tpu_custom_call.1} parent=1 // pred_fallthru
      _
    // Predicated region
    $region18: #{tpu_custom_call.1} parent=1 // pred_check
      _
    $region19: #{tpu_custom_call.1} parent=1 // pred_check_branch
      %48 = sbr.rel (0) target = $region21
    $region20: #{tpu_custom_call.1} parent=1 // pred_region
      _
    $region21: #{tpu_custom_call.1} parent=1 // pred_fallthru
      _
    // Predicated region
    $region22: #{tpu_custom_call.1} parent=1 // pred_check
      _
    $region23: #{tpu_custom_call.1} parent=1 // pred_check_branch
      %50 = sbr.rel (0) target = $region25
    $region24: #{tpu_custom_call.1} parent=1 // pred_region
      _
    $region25: #{tpu_custom_call.1} parent=1 // pred_fallthru
      _
    // Predicated region
    $region26: #{tpu_custom_call.1} parent=1 // pred_check
      _
    $region27: #{tpu_custom_call.1} parent=1 // pred_check_branch
      %52 = sbr.rel (0) target = $region29
    $region28: #{tpu_custom_call.1} parent=1 // pred_region
      _
    $region29: #{tpu_custom_call.1} parent=1 // pred_fallthru
      _
    // Predicated region
    $region30: #{tpu_custom_call.1} parent=1 // pred_check
      _
    $region31: #{tpu_custom_call.1} parent=1 // pred_check_branch
      %54 = sbr.rel (0) target = $region33
    $region32: #{tpu_custom_call.1} parent=1 // pred_region
      _
    $region33: #{tpu_custom_call.1} parent=1 // pred_fallthru
      _
    // Predicated region
    $region34: #{tpu_custom_call.1} parent=1 // pred_check
      _
    $region35: #{tpu_custom_call.1} parent=1 // pred_check_branch
      %56 = sbr.rel (0) target = $region37
    $region36: #{tpu_custom_call.1} parent=1 // pred_region
      _
    $region37: #{tpu_custom_call.1} parent=1 // pred_fallthru
      _
    // Predicated region
    $region38: #{tpu_custom_call.1} parent=1 // pred_check
      _
    $region39: #{tpu_custom_call.1} parent=1 // pred_check_branch
      %58 = sbr.rel (0) target = $region41
    $region40: #{tpu_custom_call.1} parent=1 // pred_region
      _
    $region41: #{tpu_custom_call.1} parent=1 // pred_fallthru
      _
    // Predicated region
    $region42: #{tpu_custom_call.1} parent=1 // pred_check
      _
    $region43: #{tpu_custom_call.1} parent=1 // pred_check_branch
      %60 = sbr.rel (0) target = $region45
    $region44: #{tpu_custom_call.1} parent=1 // pred_region
      _
    $region45: #{tpu_custom_call.1} parent=1 // pred_fallthru
      _
    // Predicated region
    $region46: #{tpu_custom_call.1} parent=1 // pred_check
      _
    $region47: #{tpu_custom_call.1} parent=1 // pred_check_branch
      %62 = sbr.rel (0) target = $region49
    $region48: #{tpu_custom_call.1} parent=1 // pred_region
      %63 = dma.done [#allocation3], 32256
    $region49: #{tpu_custom_call.1} parent=1 // pred_fallthru
      _
    // Predicated region
    $region50: #{tpu_custom_call.1} parent=1 // pred_check
      _
    $region51: #{tpu_custom_call.1} parent=1 // pred_check_branch
      %65 = sbr.rel (0) target = $region53
    $region52: #{tpu_custom_call.1} parent=1 // pred_region
      %66 = dma.done [#allocation6], 9216
    $region53: #{tpu_custom_call.1} parent=1 // pred_fallthru
      _
    %v68 = vld [vmem:[%s7] sm:$0xff]
    %v69 = vld [vmem:[%s7 + $0x8] sm:$0xff]
    %v70 = vld [vmem:[%s7 + $0x10] sm:$0xff]
    %v71 = vld [vmem:[%s7 + $0x18] sm:$0xff]
    %v72 = vld [vmem:[%s7 + $0x20] sm:$0xff]
    %v73 = vld [vmem:[%s7 + $0x28] sm:$0xff]
    %v74 = vld [vmem:[%s8] sm:$0xff]
    %v75 = vld [vmem:[%s8 + $0x8] sm:$0xff]
    %v76 = vld [vmem:[%s8 + $0x10] sm:$0xff]
    %v77 = vld [vmem:[%s8 + $0x18] sm:$0xff]
    %v78 = vld [vmem:[%s8 + $0x20] sm:$0xff]
    %v79 = vld [vmem:[%s9] sm:$0xff]
    %v80 = vld [vmem:[%s9 + $0x8] sm:$0xff]
    %v81 = vld [vmem:[%s9 + $0x10] sm:$0xff]
    %v82 = vld [vmem:[%s9 + $0x18] sm:$0xff]
    %v83 = vld [vmem:[%s9 + $0x20] sm:$0xff]
    %v84 = vld [vmem:[%s9 + $0x28] sm:$0xff]
    %v85 = vld [vmem:[%s9 + $0x30] sm:$0xff]
    %v86 = vld [vmem:[%s9 + $0x38] sm:$0xff]
    %v87 = vld [vmem:[%s9 + $0x40] sm:$0xff]
    %v88 = vld [vmem:[%s9 + $0x48] sm:$0xff]
    %v89 = vld [vmem:[%s9 + $0x50] sm:$0xff]
    %v90 = vld [vmem:[%s9 + $0x58] sm:$0xff]
    %v91 = vld [vmem:[%s9 + $0x60] sm:$0xff]
    %v92 = vld [vmem:[%s9 + $0x68] sm:$0xff]
    %v93 = vld [vmem:[%s9 + $0x70] sm:$0xff]
    %v94 = vld [vmem:[%s9 + $0x78] sm:$0xff]
    %v95 = vld [vmem:[%s10] sm:$0xff]
    %v96 = vld [vmem:[%s10 + $0x8] sm:$0xff]
    %v97 = vld [vmem:[%s10 + $0x10] sm:$0xff]
    %v98 = vld [vmem:[%s10 + $0x18] sm:$0xff]
    %v99 = vlaneseq
    %v100 = vand.u32 %v99, 127
    %v101 = vadd.s32 %v100, 128
    %v102 = vadd.s32 %v100, 256
    %v103 = vadd.s32 %v100, 384
    %v104 = vlaneseq
    %v105 = vshrl.u32 %v104, 7
    %v106 = vmul.u32 %v105, 56
    %vm107 = vcmp.ge.s32.totalorder %v100, %v106
    %vm108 = vcmp.ge.s32.totalorder %v101, %v106
    %vm109 = vcmp.ge.s32.totalorder %v102, %v106
    %vm110 = vcmp.ge.s32.totalorder %v103, %v106
    %v111 = vadd.s32 %v106, 49
    %vm112 = vcmp.lt.s32.totalorder %v100, %v111
    %vm113 = vcmp.lt.s32.totalorder %v101, %v111
    %vm114 = vcmp.lt.s32.totalorder %v102, %v111
    %vm115 = vcmp.lt.s32.totalorder %v103, %v111
    %vm116 = vmand %vm107, %vm112
    %vm117 = vmand %vm108, %vm113
    %vm118 = vmand %vm109, %vm114
    %vm119 = vmand %vm110, %vm115
    %v120 = vsel %vm116, 1.0, 0.0
    %v121 = vsel %vm117, 1.0, 0.0
    %v122 = vsel %vm118, 1.0, 0.0
    %v123 = vsel %vm119, 1.0, 0.0
    %v124 = vadd.s32 %v105, 8
    %v125 = vadd.s32 %v105, 16
    %v126 = vadd.s32 %v105, 24
    %v127 = vadd.s32 %v105, 32
    %v128 = vadd.s32 %v105, 40
    %v129 = vadd.s32 %v105, 48
    %v130 = vadd.s32 %v105, 56
    %v131 = vadd.s32 %v105, 64
    %v132 = vadd.s32 %v105, 72
    %v133 = vadd.s32 %v105, 80
    %v134 = vadd.s32 %v105, 88
    %v135 = vadd.s32 %v105, 96
    %v136 = vadd.s32 %v105, 104
    %v137 = vadd.s32 %v105, 112
    %v138 = vadd.s32 %v105, 120
    %v139 = vadd.s32 %v105, 128
    %v140 = vadd.s32 %v105, 136
    %v141 = vadd.s32 %v105, 144
    %v142 = vadd.s32 %v105, 152
    %v143 = vadd.s32 %v105, 160
    %v144 = vadd.s32 %v105, 168
    %v145 = vadd.s32 %v105, 176
    %v146 = vadd.s32 %v105, 184
    %v147 = vadd.s32 %v105, 192
    %v148 = vadd.s32 %v105, 200
    %v149 = vadd.s32 %v105, 208
    %v150 = vadd.s32 %v105, 216
    %v151 = vadd.s32 %v105, 224
    %v152 = vadd.s32 %v105, 232
    %v153 = vadd.s32 %v105, 240
    %v154 = vadd.s32 %v105, 248
    %v155 = vadd.s32 %v105, 256
    %v156 = vadd.s32 %v105, 264
    %v157 = vadd.s32 %v105, 272
    %v158 = vadd.s32 %v105, 280
    %v159 = vadd.s32 %v105, 288
    %v160 = vadd.s32 %v105, 296
    %v161 = vadd.s32 %v105, 304
    %v162 = vadd.s32 %v105, 312
    %v163 = vadd.s32 %v105, 320
    %v164 = vadd.s32 %v105, 328
    %v165 = vadd.s32 %v105, 336
    %v166 = vadd.s32 %v105, 344
    %v167 = vadd.s32 %v105, 352
    %v168 = vadd.s32 %v105, 360
    %v169 = vadd.s32 %v105, 368
    %v170 = vadd.s32 %v105, 376
    %v171 = vadd.s32 %v105, 384
    %v172 = vadd.s32 %v105, 392
    %v173 = vadd.s32 %v105, 400
    %v174 = vadd.s32 %v105, 408
    %v175 = vadd.s32 %v105, 416
    %v176 = vadd.s32 %v105, 424
    %v177 = vadd.s32 %v105, 432
    %v178 = vadd.s32 %v105, 440
    %v179 = vmul.u32 %v100, 56
    %vm180 = vcmp.ge.s32.totalorder %v105, %v179
    %vm181 = vcmp.ge.s32.totalorder %v124, %v179
    %vm182 = vcmp.ge.s32.totalorder %v125, %v179
    %vm183 = vcmp.ge.s32.totalorder %v126, %v179
    %vm184 = vcmp.ge.s32.totalorder %v127, %v179
    %vm185 = vcmp.ge.s32.totalorder %v128, %v179
    %vm186 = vcmp.ge.s32.totalorder %v129, %v179
    %vm187 = vcmp.ge.s32.totalorder %v130, %v179
    %vm188 = vcmp.ge.s32.totalorder %v131, %v179
    %vm189 = vcmp.ge.s32.totalorder %v132, %v179
    %vm190 = vcmp.ge.s32.totalorder %v133, %v179
    %vm191 = vcmp.ge.s32.totalorder %v134, %v179
    %vm192 = vcmp.ge.s32.totalorder %v135, %v179
    %vm193 = vcmp.ge.s32.totalorder %v136, %v179
    %vm194 = vcmp.ge.s32.totalorder %v137, %v179
    %vm195 = vcmp.ge.s32.totalorder %v138, %v179
    %vm196 = vcmp.ge.s32.totalorder %v139, %v179
    %vm197 = vcmp.ge.s32.totalorder %v140, %v179
    %vm198 = vcmp.ge.s32.totalorder %v141, %v179
    %vm199 = vcmp.ge.s32.totalorder %v142, %v179
    %vm200 = vcmp.ge.s32.totalorder %v143, %v179
    %vm201 = vcmp.ge.s32.totalorder %v144, %v179
    %vm202 = vcmp.ge.s32.totalorder %v145, %v179
    %vm203 = vcmp.ge.s32.totalorder %v146, %v179
    %vm204 = vcmp.ge.s32.totalorder %v147, %v179
    %vm205 = vcmp.ge.s32.totalorder %v148, %v179
    %vm206 = vcmp.ge.s32.totalorder %v149, %v179
    %vm207 = vcmp.ge.s32.totalorder %v150, %v179
    %vm208 = vcmp.ge.s32.totalorder %v151, %v179
    %vm209 = vcmp.ge.s32.totalorder %v152, %v179
    %vm210 = vcmp.ge.s32.totalorder %v153, %v179
    %vm211 = vcmp.ge.s32.totalorder %v154, %v179
    %vm212 = vcmp.ge.s32.totalorder %v155, %v179
    %vm213 = vcmp.ge.s32.totalorder %v156, %v179
    %vm214 = vcmp.ge.s32.totalorder %v157, %v179
    %vm215 = vcmp.ge.s32.totalorder %v158, %v179
    %vm216 = vcmp.ge.s32.totalorder %v159, %v179
    %vm217 = vcmp.ge.s32.totalorder %v160, %v179
    %vm218 = vcmp.ge.s32.totalorder %v161, %v179
    %vm219 = vcmp.ge.s32.totalorder %v162, %v179
    %vm220 = vcmp.ge.s32.totalorder %v163, %v179
    %vm221 = vcmp.ge.s32.totalorder %v164, %v179
    %vm222 = vcmp.ge.s32.totalorder %v165, %v179
    %vm223 = vcmp.ge.s32.totalorder %v166, %v179
    %vm224 = vcmp.ge.s32.totalorder %v167, %v179
    %vm225 = vcmp.ge.s32.totalorder %v168, %v179
    %vm226 = vcmp.ge.s32.totalorder %v169, %v179
    %vm227 = vcmp.ge.s32.totalorder %v170, %v179
    %vm228 = vcmp.ge.s32.totalorder %v171, %v179
    %vm229 = vcmp.ge.s32.totalorder %v172, %v179
    %vm230 = vcmp.ge.s32.totalorder %v173, %v179
    %vm231 = vcmp.ge.s32.totalorder %v174, %v179
    %vm232 = vcmp.ge.s32.totalorder %v175, %v179
    %vm233 = vcmp.ge.s32.totalorder %v176, %v179
    %vm234 = vcmp.ge.s32.totalorder %v177, %v179
    %vm235 = vcmp.ge.s32.totalorder %v178, %v179
    %v236 = vadd.s32 %v179, 56
    %vm237 = vcmp.lt.s32.totalorder %v105, %v236
    %vm238 = vcmp.lt.s32.totalorder %v124, %v236
    %vm239 = vcmp.lt.s32.totalorder %v125, %v236
    %vm240 = vcmp.lt.s32.totalorder %v126, %v236
    %vm241 = vcmp.lt.s32.totalorder %v127, %v236
    %vm242 = vcmp.lt.s32.totalorder %v128, %v236
    %vm243 = vcmp.lt.s32.totalorder %v129, %v236
    %vm244 = vcmp.lt.s32.totalorder %v130, %v236
    %vm245 = vcmp.lt.s32.totalorder %v131, %v236
    %vm246 = vcmp.lt.s32.totalorder %v132, %v236
    %vm247 = vcmp.lt.s32.totalorder %v133, %v236
    %vm248 = vcmp.lt.s32.totalorder %v134, %v236
    %vm249 = vcmp.lt.s32.totalorder %v135, %v236
    %vm250 = vcmp.lt.s32.totalorder %v136, %v236
    %vm251 = vcmp.lt.s32.totalorder %v137, %v236
    %vm252 = vcmp.lt.s32.totalorder %v138, %v236
    %vm253 = vcmp.lt.s32.totalorder %v139, %v236
    %vm254 = vcmp.lt.s32.totalorder %v140, %v236
    %vm255 = vcmp.lt.s32.totalorder %v141, %v236
    %vm256 = vcmp.lt.s32.totalorder %v142, %v236
    %vm257 = vcmp.lt.s32.totalorder %v143, %v236
    %vm258 = vcmp.lt.s32.totalorder %v144, %v236
    %vm259 = vcmp.lt.s32.totalorder %v145, %v236
    %vm260 = vcmp.lt.s32.totalorder %v146, %v236
    %vm261 = vcmp.lt.s32.totalorder %v147, %v236
    %vm262 = vcmp.lt.s32.totalorder %v148, %v236
    %vm263 = vcmp.lt.s32.totalorder %v149, %v236
    %vm264 = vcmp.lt.s32.totalorder %v150, %v236
    %vm265 = vcmp.lt.s32.totalorder %v151, %v236
    %vm266 = vcmp.lt.s32.totalorder %v152, %v236
    %vm267 = vcmp.lt.s32.totalorder %v153, %v236
    %vm268 = vcmp.lt.s32.totalorder %v154, %v236
    %vm269 = vcmp.lt.s32.totalorder %v155, %v236
    %vm270 = vcmp.lt.s32.totalorder %v156, %v236
    %vm271 = vcmp.lt.s32.totalorder %v157, %v236
    %vm272 = vcmp.lt.s32.totalorder %v158, %v236
    %vm273 = vcmp.lt.s32.totalorder %v159, %v236
    %vm274 = vcmp.lt.s32.totalorder %v160, %v236
    %vm275 = vcmp.lt.s32.totalorder %v161, %v236
    %vm276 = vcmp.lt.s32.totalorder %v162, %v236
    %vm277 = vcmp.lt.s32.totalorder %v163, %v236
    %vm278 = vcmp.lt.s32.totalorder %v164, %v236
    %vm279 = vcmp.lt.s32.totalorder %v165, %v236
    %vm280 = vcmp.lt.s32.totalorder %v166, %v236
    %vm281 = vcmp.lt.s32.totalorder %v167, %v236
    %vm282 = vcmp.lt.s32.totalorder %v168, %v236
    %vm283 = vcmp.lt.s32.totalorder %v169, %v236
    %vm284 = vcmp.lt.s32.totalorder %v170, %v236
    %vm285 = vcmp.lt.s32.totalorder %v171, %v236
    %vm286 = vcmp.lt.s32.totalorder %v172, %v236
    %vm287 = vcmp.lt.s32.totalorder %v173, %v236
    %vm288 = vcmp.lt.s32.totalorder %v174, %v236
    %vm289 = vcmp.lt.s32.totalorder %v175, %v236
    %vm290 = vcmp.lt.s32.totalorder %v176, %v236
    %vm291 = vcmp.lt.s32.totalorder %v177, %v236
    %vm292 = vcmp.lt.s32.totalorder %v178, %v236
    %vm293 = vmand %vm180, %vm237
    %vm294 = vmand %vm181, %vm238
    %vm295 = vmand %vm182, %vm239
    %vm296 = vmand %vm183, %vm240
    %vm297 = vmand %vm184, %vm241
    %vm298 = vmand %vm185, %vm242
    %vm299 = vmand %vm186, %vm243
    %vm300 = vmand %vm187, %vm244
    %vm301 = vmand %vm188, %vm245
    %vm302 = vmand %vm189, %vm246
    %vm303 = vmand %vm190, %vm247
    %vm304 = vmand %vm191, %vm248
    %vm305 = vmand %vm192, %vm249
    %vm306 = vmand %vm193, %vm250
    %vm307 = vmand %vm194, %vm251
    %vm308 = vmand %vm195, %vm252
    %vm309 = vmand %vm196, %vm253
    %vm310 = vmand %vm197, %vm254
    %vm311 = vmand %vm198, %vm255
    %vm312 = vmand %vm199, %vm256
    %vm313 = vmand %vm200, %vm257
    %vm314 = vmand %vm201, %vm258
    %vm315 = vmand %vm202, %vm259
    %vm316 = vmand %vm203, %vm260
    %vm317 = vmand %vm204, %vm261
    %vm318 = vmand %vm205, %vm262
    %vm319 = vmand %vm206, %vm263
    %vm320 = vmand %vm207, %vm264
    %vm321 = vmand %vm208, %vm265
    %vm322 = vmand %vm209, %vm266
    %vm323 = vmand %vm210, %vm267
    %vm324 = vmand %vm211, %vm268
    %vm325 = vmand %vm212, %vm269
    %vm326 = vmand %vm213, %vm270
    %vm327 = vmand %vm214, %vm271
    %vm328 = vmand %vm215, %vm272
    %vm329 = vmand %vm216, %vm273
    %vm330 = vmand %vm217, %vm274
    %vm331 = vmand %vm218, %vm275
    %vm332 = vmand %vm219, %vm276
    %vm333 = vmand %vm220, %vm277
    %vm334 = vmand %vm221, %vm278
    %vm335 = vmand %vm222, %vm279
    %vm336 = vmand %vm223, %vm280
    %vm337 = vmand %vm224, %vm281
    %vm338 = vmand %vm225, %vm282
    %vm339 = vmand %vm226, %vm283
    %vm340 = vmand %vm227, %vm284
    %vm341 = vmand %vm228, %vm285
    %vm342 = vmand %vm229, %vm286
    %vm343 = vmand %vm230, %vm287
    %vm344 = vmand %vm231, %vm288
    %vm345 = vmand %vm232, %vm289
    %vm346 = vmand %vm233, %vm290
    %vm347 = vmand %vm234, %vm291
    %vm348 = vmand %vm235, %vm292
    %v349 = vsel %vm293, 1.0, 0.0
    %v350 = vsel %vm294, 1.0, 0.0
    %v351 = vsel %vm295, 1.0, 0.0
    %v352 = vsel %vm296, 1.0, 0.0
    %v353 = vsel %vm297, 1.0, 0.0
    %v354 = vsel %vm298, 1.0, 0.0
    %v355 = vsel %vm299, 1.0, 0.0
    %v356 = vsel %vm300, 1.0, 0.0
    %v357 = vsel %vm301, 1.0, 0.0
    %v358 = vsel %vm302, 1.0, 0.0
    %v359 = vsel %vm303, 1.0, 0.0
    %v360 = vsel %vm304, 1.0, 0.0
    %v361 = vsel %vm305, 1.0, 0.0
    %v362 = vsel %vm306, 1.0, 0.0
    %v363 = vsel %vm307, 1.0, 0.0
    %v364 = vsel %vm308, 1.0, 0.0
    %v365 = vsel %vm309, 1.0, 0.0
    %v366 = vsel %vm310, 1.0, 0.0
    %v367 = vsel %vm311, 1.0, 0.0
    %v368 = vsel %vm312, 1.0, 0.0
    %v369 = vsel %vm313, 1.0, 0.0
    %v370 = vsel %vm314, 1.0, 0.0
    %v371 = vsel %vm315, 1.0, 0.0
    %v372 = vsel %vm316, 1.0, 0.0
    %v373 = vsel %vm317, 1.0, 0.0
    %v374 = vsel %vm318, 1.0, 0.0
    %v375 = vsel %vm319, 1.0, 0.0
    %v376 = vsel %vm320, 1.0, 0.0
    %v377 = vsel %vm321, 1.0, 0.0
    %v378 = vsel %vm322, 1.0, 0.0
    %v379 = vsel %vm323, 1.0, 0.0
    %v380 = vsel %vm324, 1.0, 0.0
    %v381 = vsel %vm325, 1.0, 0.0
    %v382 = vsel %vm326, 1.0, 0.0
    %v383 = vsel %vm327, 1.0, 0.0
    %v384 = vsel %vm328, 1.0, 0.0
    %v385 = vsel %vm329, 1.0, 0.0
    %v386 = vsel %vm330, 1.0, 0.0
    %v387 = vsel %vm331, 1.0, 0.0
    %v388 = vsel %vm332, 1.0, 0.0
    %v389 = vsel %vm333, 1.0, 0.0
    %v390 = vsel %vm334, 1.0, 0.0
    %v391 = vsel %vm335, 1.0, 0.0
    %v392 = vsel %vm336, 1.0, 0.0
    %v393 = vsel %vm337, 1.0, 0.0
    %v394 = vsel %vm338, 1.0, 0.0
    %v395 = vsel %vm339, 1.0, 0.0
    %v396 = vsel %vm340, 1.0, 0.0
    %v397 = vsel %vm341, 1.0, 0.0
    %v398 = vsel %vm342, 1.0, 0.0
    %v399 = vsel %vm343, 1.0, 0.0
    %v400 = vsel %vm344, 1.0, 0.0
    %v401 = vsel %vm345, 1.0, 0.0
    %v402 = vsel %vm346, 1.0, 0.0
    %v403 = vsel %vm347, 1.0, 0.0
    %v404 = vsel %vm348, 1.0, 0.0
    %v405 = vld [vmem:[#allocation2] sm:$0xff]
    %v406 = vld [vmem:[#allocation2 + $0x8] sm:$0xff]
    %v407 = vld [vmem:[#allocation2 + $0x10] sm:$0xff]
    %v408 = vld [vmem:[#allocation2 + $0x18] sm:$0xff]
    %v409 = vld [vmem:[#allocation2 + $0x20] sm:$0xf]
    %v410 = vld [vmem:[#allocation2 + $0x24] sm:$0xff]
    %v411 = vld [vmem:[#allocation2 + $0x2c] sm:$0xff]
    %v412 = vld [vmem:[#allocation2 + $0x34] sm:$0xff]
    %v413 = vld [vmem:[#allocation2 + $0x3c] sm:$0xff]
    %v414 = vld [vmem:[#allocation2 + $0x44] sm:$0xf]
    %v415 = vld [vmem:[#allocation2 + $0x48] sm:$0xff]
    %v416 = vld [vmem:[#allocation2 + $0x50] sm:$0xff]
    %v417 = vld [vmem:[#allocation2 + $0x58] sm:$0xff]
    %v418 = vld [vmem:[#allocation2 + $0x60] sm:$0xff]
    %v419 = vld [vmem:[#allocation2 + $0x68] sm:$0xf]
    %v420 = vld [vmem:[#allocation2 + $0x6c] sm:$0xff]
    %v421 = vld [vmem:[#allocation2 + $0x74] sm:$0xff]
    %v422 = vld [vmem:[#allocation2 + $0x7c] sm:$0xff]
    %v423 = vld [vmem:[#allocation2 + $0x84] sm:$0xff]
    %v424 = vld [vmem:[#allocation2 + $0x8c] sm:$0xf]
    %v425 = vld [vmem:[#allocation2 + $0x90] sm:$0xff]
    %v426 = vld [vmem:[#allocation2 + $0x98] sm:$0xff]
    %v427 = vld [vmem:[#allocation2 + $0xa0] sm:$0xff]
    %v428 = vld [vmem:[#allocation2 + $0xa8] sm:$0xff]
    %v429 = vld [vmem:[#allocation2 + $0xb0] sm:$0xf]
    %v430 = vld [vmem:[#allocation2 + $0xb4] sm:$0xff]
    %v431 = vld [vmem:[#allocation2 + $0xbc] sm:$0xff]
    %v432 = vld [vmem:[#allocation2 + $0xc4] sm:$0xff]
    %v433 = vld [vmem:[#allocation2 + $0xcc] sm:$0xff]
    %v434 = vld [vmem:[#allocation2 + $0xd4] sm:$0xf]
    %v435 = vld [vmem:[#allocation2 + $0xd8] sm:$0xff]
    %v436 = vld [vmem:[#allocation2 + $0xe0] sm:$0xff]
    %v437 = vld [vmem:[#allocation2 + $0xe8] sm:$0xff]
    %v438 = vld [vmem:[#allocation2 + $0xf0] sm:$0xff]
    %v439 = vld [vmem:[#allocation2 + $0xf8] sm:$0xf]
    %v440 = vld [vmem:[#allocation2 + $0xfc] sm:$0xff]
    %v441 = vld [vmem:[#allocation2 + $0x104] sm:$0xff]
    %v442 = vld [vmem:[#allocation2 + $0x10c] sm:$0xff]
    %v443 = vld [vmem:[#allocation2 + $0x114] sm:$0xff]
    %v444 = vld [vmem:[#allocation2 + $0x11c] sm:$0xf]
    %v445 = vld [vmem:[#allocation2 + $0x120] sm:$0xff]
    %v446 = vld [vmem:[#allocation2 + $0x128] sm:$0xff]
    %v447 = vld [vmem:[#allocation2 + $0x130] sm:$0xff]
    %v448 = vld [vmem:[#allocation2 + $0x138] sm:$0xff]
    %v449 = vld [vmem:[#allocation2 + $0x140] sm:$0xf]
    %v450 = vld [vmem:[#allocation2 + $0x144] sm:$0xff]
    %v451 = vld [vmem:[#allocation2 + $0x14c] sm:$0xff]
    %v452 = vld [vmem:[#allocation2 + $0x154] sm:$0xff]
    %v453 = vld [vmem:[#allocation2 + $0x15c] sm:$0xff]
    %v454 = vld [vmem:[#allocation2 + $0x164] sm:$0xf]
    %v455 = vld [vmem:[#allocation2 + $0x168] sm:$0xff]
    %v456 = vld [vmem:[#allocation2 + $0x170] sm:$0xff]
    %v457 = vld [vmem:[#allocation2 + $0x178] sm:$0xff]
    %v458 = vld [vmem:[#allocation2 + $0x180] sm:$0xff]
    %v459 = vld [vmem:[#allocation2 + $0x188] sm:$0xf]
    %v460 = vld [vmem:[#allocation2 + $0x18c] sm:$0xff]
    %v461 = vld [vmem:[#allocation2 + $0x194] sm:$0xff]
    %v462 = vld [vmem:[#allocation2 + $0x19c] sm:$0xff]
    %v463 = vld [vmem:[#allocation2 + $0x1a4] sm:$0xff]
    %v464 = vld [vmem:[#allocation2 + $0x1ac] sm:$0xf]
    %v465 = vld [vmem:[#allocation2 + $0x1b0] sm:$0xff]
    %v466 = vld [vmem:[#allocation2 + $0x1b8] sm:$0xff]
    %v467 = vld [vmem:[#allocation2 + $0x1c0] sm:$0xff]
    %v468 = vld [vmem:[#allocation2 + $0x1c8] sm:$0xff]
    %v469 = vld [vmem:[#allocation2 + $0x1d0] sm:$0xf]
    %v470 = vld [vmem:[#allocation2 + $0x1d4] sm:$0xff]
    %v471 = vld [vmem:[#allocation2 + $0x1dc] sm:$0xff]
    %v472 = vld [vmem:[#allocation2 + $0x1e4] sm:$0xff]
    %v473 = vld [vmem:[#allocation2 + $0x1ec] sm:$0xff]
    %v474 = vld [vmem:[#allocation2 + $0x1f4] sm:$0xf]
    %v475 = vld [vmem:[#allocation2 + $0x1f8] sm:$0xff]
    %v476 = vld [vmem:[#allocation2 + $0x200] sm:$0xff]
    %v477 = vld [vmem:[#allocation2 + $0x208] sm:$0xff]
    %v478 = vld [vmem:[#allocation2 + $0x210] sm:$0xff]
    %v479 = vld [vmem:[#allocation2 + $0x218] sm:$0xf]
    %v480 = vld [vmem:[#allocation2 + $0x21c] sm:$0xff]
    %v481 = vld [vmem:[#allocation2 + $0x224] sm:$0xff]
    %v482 = vld [vmem:[#allocation2 + $0x22c] sm:$0xff]
    %v483 = vld [vmem:[#allocation2 + $0x234] sm:$0xff]
    %v484 = vld [vmem:[#allocation2 + $0x23c] sm:$0xf]
    %v485 = vld [vmem:[#allocation2 + $0x240] sm:$0xff]
    %v486 = vld [vmem:[#allocation2 + $0x248] sm:$0xff]
    %v487 = vld [vmem:[#allocation2 + $0x250] sm:$0xff]
    %v488 = vld [vmem:[#allocation2 + $0x258] sm:$0xff]
    %v489 = vld [vmem:[#allocation2 + $0x260] sm:$0xf]
    %v490 = vld [vmem:[#allocation2 + $0x264] sm:$0xff]
    %v491 = vld [vmem:[#allocation2 + $0x26c] sm:$0xff]
    %v492 = vld [vmem:[#allocation2 + $0x274] sm:$0xff]
    %v493 = vld [vmem:[#allocation2 + $0x27c] sm:$0xff]
    %v494 = vld [vmem:[#allocation2 + $0x284] sm:$0xf]
    %v495 = vld [vmem:[#allocation2 + $0x288] sm:$0xff]
    %v496 = vld [vmem:[#allocation2 + $0x290] sm:$0xff]
    %v497 = vld [vmem:[#allocation2 + $0x298] sm:$0xff]
    %v498 = vld [vmem:[#allocation2 + $0x2a0] sm:$0xff]
    %v499 = vld [vmem:[#allocation2 + $0x2a8] sm:$0xf]
    %v500 = vld [vmem:[#allocation2 + $0x2ac] sm:$0xff]
    %v501 = vld [vmem:[#allocation2 + $0x2b4] sm:$0xff]
    %v502 = vld [vmem:[#allocation2 + $0x2bc] sm:$0xff]
    %v503 = vld [vmem:[#allocation2 + $0x2c4] sm:$0xff]
    %v504 = vld [vmem:[#allocation2 + $0x2cc] sm:$0xf]
    %v505 = vld [vmem:[#allocation2 + $0x2d0] sm:$0xff]
    %v506 = vld [vmem:[#allocation2 + $0x2d8] sm:$0xff]
    %v507 = vld [vmem:[#allocation2 + $0x2e0] sm:$0xff]
    %v508 = vld [vmem:[#allocation2 + $0x2e8] sm:$0xff]
    %v509 = vld [vmem:[#allocation2 + $0x2f0] sm:$0xf]
    %v510 = vld [vmem:[#allocation2 + $0x2f4] sm:$0xff]
    %v511 = vld [vmem:[#allocation2 + $0x2fc] sm:$0xff]
    %v512 = vld [vmem:[#allocation2 + $0x304] sm:$0xff]
    %v513 = vld [vmem:[#allocation2 + $0x30c] sm:$0xff]
    %v514 = vld [vmem:[#allocation2 + $0x314] sm:$0xf]
    %v515 = vld [vmem:[#allocation2 + $0x318] sm:$0xff]
    %v516 = vld [vmem:[#allocation2 + $0x320] sm:$0xff]
    %v517 = vld [vmem:[#allocation2 + $0x328] sm:$0xff]
    %v518 = vld [vmem:[#allocation2 + $0x330] sm:$0xff]
    %v519 = vld [vmem:[#allocation2 + $0x338] sm:$0xf]
    %v520 = vld [vmem:[#allocation2 + $0x33c] sm:$0xff]
    %v521 = vld [vmem:[#allocation2 + $0x344] sm:$0xff]
    %v522 = vld [vmem:[#allocation2 + $0x34c] sm:$0xff]
    %v523 = vld [vmem:[#allocation2 + $0x354] sm:$0xff]
    %v524 = vld [vmem:[#allocation2 + $0x35c] sm:$0xf]
    %v525 = vld [vmem:[#allocation2 + $0x360] sm:$0xff]
    %v526 = vld [vmem:[#allocation2 + $0x368] sm:$0xff]
    %v527 = vld [vmem:[#allocation2 + $0x370] sm:$0xff]
    %v528 = vld [vmem:[#allocation2 + $0x378] sm:$0xff]
    %v529 = vld [vmem:[#allocation2 + $0x380] sm:$0xf]
    %v530 = vld [vmem:[#allocation2 + $0x384] sm:$0xff]
    %v531 = vld [vmem:[#allocation2 + $0x38c] sm:$0xff]
    %v532 = vld [vmem:[#allocation2 + $0x394] sm:$0xff]
    %v533 = vld [vmem:[#allocation2 + $0x39c] sm:$0xff]
    %v534 = vld [vmem:[#allocation2 + $0x3a4] sm:$0xf]
    %v535 = vld [vmem:[#allocation2 + $0x3a8] sm:$0xff]
    %v536 = vld [vmem:[#allocation2 + $0x3b0] sm:$0xff]
    %v537 = vld [vmem:[#allocation2 + $0x3b8] sm:$0xff]
    %v538 = vld [vmem:[#allocation2 + $0x3c0] sm:$0xff]
    %v539 = vld [vmem:[#allocation2 + $0x3c8] sm:$0xf]
    %v540 = vld [vmem:[#allocation2 + $0x3cc] sm:$0xff]
    %v541 = vld [vmem:[#allocation2 + $0x3d4] sm:$0xff]
    %v542 = vld [vmem:[#allocation2 + $0x3dc] sm:$0xff]
    %v543 = vld [vmem:[#allocation2 + $0x3e4] sm:$0xff]
    %v544 = vld [vmem:[#allocation2 + $0x3ec] sm:$0xf]
    %v545 = vld [vmem:[#allocation2 + $0x3f0] sm:$0xff]
    %v546 = vld [vmem:[#allocation2 + $0x3f8] sm:$0xff]
    %v547 = vld [vmem:[#allocation2 + $0x400] sm:$0xff]
    %v548 = vld [vmem:[#allocation2 + $0x408] sm:$0xff]
    %v549 = vld [vmem:[#allocation2 + $0x410] sm:$0xf]
    %v550 = vld [vmem:[#allocation2 + $0x414] sm:$0xff]
    %v551 = vld [vmem:[#allocation2 + $0x41c] sm:$0xff]
    %v552 = vld [vmem:[#allocation2 + $0x424] sm:$0xff]
    %v553 = vld [vmem:[#allocation2 + $0x42c] sm:$0xff]
    %v554 = vld [vmem:[#allocation2 + $0x434] sm:$0xf]
    %v555 = vld [vmem:[#allocation2 + $0x438] sm:$0xff]
    %v556 = vld [vmem:[#allocation2 + $0x440] sm:$0xff]
    %v557 = vld [vmem:[#allocation2 + $0x448] sm:$0xff]
    %v558 = vld [vmem:[#allocation2 + $0x450] sm:$0xff]
    %v559 = vld [vmem:[#allocation2 + $0x458] sm:$0xf]
    %v560 = vld [vmem:[#allocation2 + $0x45c] sm:$0xff]
    %v561 = vld [vmem:[#allocation2 + $0x464] sm:$0xff]
    %v562 = vld [vmem:[#allocation2 + $0x46c] sm:$0xff]
    %v563 = vld [vmem:[#allocation2 + $0x474] sm:$0xff]
    %v564 = vld [vmem:[#allocation2 + $0x47c] sm:$0xf]
    %v565 = vld [vmem:[#allocation2 + $0x480] sm:$0xff]
    %v566 = vld [vmem:[#allocation2 + $0x488] sm:$0xff]
    %v567 = vld [vmem:[#allocation2 + $0x490] sm:$0xff]
    %v568 = vld [vmem:[#allocation2 + $0x498] sm:$0xff]
    %v569 = vld [vmem:[#allocation2 + $0x4a0] sm:$0xf]
    %v570 = vld [vmem:[#allocation2 + $0x4a4] sm:$0xff]
    %v571 = vld [vmem:[#allocation2 + $0x4ac] sm:$0xff]
    %v572 = vld [vmem:[#allocation2 + $0x4b4] sm:$0xff]
    %v573 = vld [vmem:[#allocation2 + $0x4bc] sm:$0xff]
    %v574 = vld [vmem:[#allocation2 + $0x4c4] sm:$0xf]
    %v575 = vld [vmem:[#allocation2 + $0x4c8] sm:$0xff]
    %v576 = vld [vmem:[#allocation2 + $0x4d0] sm:$0xff]
    %v577 = vld [vmem:[#allocation2 + $0x4d8] sm:$0xff]
    %v578 = vld [vmem:[#allocation2 + $0x4e0] sm:$0xff]
    %v579 = vld [vmem:[#allocation2 + $0x4e8] sm:$0xf]
    %v580 = vld [vmem:[#allocation2 + $0x4ec] sm:$0xff]
    %v581 = vld [vmem:[#allocation2 + $0x4f4] sm:$0xff]
    %v582 = vld [vmem:[#allocation2 + $0x4fc] sm:$0xff]
    %v583 = vld [vmem:[#allocation2 + $0x504] sm:$0xff]
    %v584 = vld [vmem:[#allocation2 + $0x50c] sm:$0xf]
    %v585 = vld [vmem:[#allocation2 + $0x510] sm:$0xff]
    %v586 = vld [vmem:[#allocation2 + $0x518] sm:$0xff]
    %v587 = vld [vmem:[#allocation2 + $0x520] sm:$0xff]
    %v588 = vld [vmem:[#allocation2 + $0x528] sm:$0xff]
    %v589 = vld [vmem:[#allocation2 + $0x530] sm:$0xf]
    %v590 = vld [vmem:[#allocation2 + $0x534] sm:$0xff]
    %v591 = vld [vmem:[#allocation2 + $0x53c] sm:$0xff]
    %v592 = vld [vmem:[#allocation2 + $0x544] sm:$0xff]
    %v593 = vld [vmem:[#allocation2 + $0x54c] sm:$0xff]
    %v594 = vld [vmem:[#allocation2 + $0x554] sm:$0xf]
    %v595 = vld [vmem:[#allocation2 + $0x558] sm:$0xff]
    %v596 = vld [vmem:[#allocation2 + $0x560] sm:$0xff]
    %v597 = vld [vmem:[#allocation2 + $0x568] sm:$0xff]
    %v598 = vld [vmem:[#allocation2 + $0x570] sm:$0xff]
    %v599 = vld [vmem:[#allocation2 + $0x578] sm:$0xf]
    %v600 = vld [vmem:[#allocation2 + $0x57c] sm:$0xff]
    %v601 = vld [vmem:[#allocation2 + $0x584] sm:$0xff]
    %v602 = vld [vmem:[#allocation2 + $0x58c] sm:$0xff]
    %v603 = vld [vmem:[#allocation2 + $0x594] sm:$0xff]
    %v604 = vld [vmem:[#allocation2 + $0x59c] sm:$0xf]
    %v605 = vld [vmem:[#allocation2 + $0x5a0] sm:$0xff]
    %v606 = vld [vmem:[#allocation2 + $0x5a8] sm:$0xff]
    %v607 = vld [vmem:[#allocation2 + $0x5b0] sm:$0xff]
    %v608 = vld [vmem:[#allocation2 + $0x5b8] sm:$0xff]
    %v609 = vld [vmem:[#allocation2 + $0x5c0] sm:$0xf]
    %v610 = vld [vmem:[#allocation2 + $0x5c4] sm:$0xff]
    %v611 = vld [vmem:[#allocation2 + $0x5cc] sm:$0xff]
    %v612 = vld [vmem:[#allocation2 + $0x5d4] sm:$0xff]
    %v613 = vld [vmem:[#allocation2 + $0x5dc] sm:$0xff]
    %v614 = vld [vmem:[#allocation2 + $0x5e4] sm:$0xf]
    %v615 = vld [vmem:[#allocation2 + $0x5e8] sm:$0xff]
    %v616 = vld [vmem:[#allocation2 + $0x5f0] sm:$0xff]
    %v617 = vld [vmem:[#allocation2 + $0x5f8] sm:$0xff]
    %v618 = vld [vmem:[#allocation2 + $0x600] sm:$0xff]
    %v619 = vld [vmem:[#allocation2 + $0x608] sm:$0xf]
    %v620 = vld [vmem:[#allocation2 + $0x60c] sm:$0xff]
    %v621 = vld [vmem:[#allocation2 + $0x614] sm:$0xff]
    %v622 = vld [vmem:[#allocation2 + $0x61c] sm:$0xff]
    %v623 = vld [vmem:[#allocation2 + $0x624] sm:$0xff]
    %v624 = vld [vmem:[#allocation2 + $0x62c] sm:$0xf]
    %v625 = vld [vmem:[#allocation2 + $0x630] sm:$0xff]
    %v626 = vld [vmem:[#allocation2 + $0x638] sm:$0xff]
    %v627 = vld [vmem:[#allocation2 + $0x640] sm:$0xff]
    %v628 = vld [vmem:[#allocation2 + $0x648] sm:$0xff]
    %v629 = vld [vmem:[#allocation2 + $0x650] sm:$0xf]
    %v630 = vld [vmem:[#allocation2 + $0x654] sm:$0xff]
    %v631 = vld [vmem:[#allocation2 + $0x65c] sm:$0xff]
    %v632 = vld [vmem:[#allocation2 + $0x664] sm:$0xff]
    %v633 = vld [vmem:[#allocation2 + $0x66c] sm:$0xff]
    %v634 = vld [vmem:[#allocation2 + $0x674] sm:$0xf]
    %v635 = vld [vmem:[#allocation2 + $0x678] sm:$0xff]
    %v636 = vld [vmem:[#allocation2 + $0x680] sm:$0xff]
    %v637 = vld [vmem:[#allocation2 + $0x688] sm:$0xff]
    %v638 = vld [vmem:[#allocation2 + $0x690] sm:$0xff]
    %v639 = vld [vmem:[#allocation2 + $0x698] sm:$0xf]
    %v640 = vld [vmem:[#allocation2 + $0x69c] sm:$0xff]
    %v641 = vld [vmem:[#allocation2 + $0x6a4] sm:$0xff]
    %v642 = vld [vmem:[#allocation2 + $0x6ac] sm:$0xff]
    %v643 = vld [vmem:[#allocation2 + $0x6b4] sm:$0xff]
    %v644 = vld [vmem:[#allocation2 + $0x6bc] sm:$0xf]
    %v645 = vld [vmem:[#allocation2 + $0x6c0] sm:$0xff]
    %v646 = vld [vmem:[#allocation2 + $0x6c8] sm:$0xff]
    %v647 = vld [vmem:[#allocation2 + $0x6d0] sm:$0xff]
    %v648 = vld [vmem:[#allocation2 + $0x6d8] sm:$0xff]
    %v649 = vld [vmem:[#allocation2 + $0x6e0] sm:$0xf]
    %v650 = vld [vmem:[#allocation2 + $0x6e4] sm:$0xff]
    %v651 = vld [vmem:[#allocation2 + $0x6ec] sm:$0xff]
    %v652 = vld [vmem:[#allocation2 + $0x6f4] sm:$0xff]
    %v653 = vld [vmem:[#allocation2 + $0x6fc] sm:$0xff]
    %v654 = vld [vmem:[#allocation2 + $0x704] sm:$0xf]
    %v655 = vld [vmem:[#allocation2 + $0x708] sm:$0xff]
    %v656 = vld [vmem:[#allocation2 + $0x710] sm:$0xff]
    %v657 = vld [vmem:[#allocation2 + $0x718] sm:$0xff]
    %v658 = vld [vmem:[#allocation2 + $0x720] sm:$0xff]
    %v659 = vld [vmem:[#allocation2 + $0x728] sm:$0xf]
    %v660 = vld [vmem:[#allocation2 + $0x72c] sm:$0xff]
    %v661 = vld [vmem:[#allocation2 + $0x734] sm:$0xff]
    %v662 = vld [vmem:[#allocation2 + $0x73c] sm:$0xff]
    %v663 = vld [vmem:[#allocation2 + $0x744] sm:$0xff]
    %v664 = vld [vmem:[#allocation2 + $0x74c] sm:$0xf]
    %v665 = vld [vmem:[#allocation2 + $0x750] sm:$0xff]
    %v666 = vld [vmem:[#allocation2 + $0x758] sm:$0xff]
    %v667 = vld [vmem:[#allocation2 + $0x760] sm:$0xff]
    %v668 = vld [vmem:[#allocation2 + $0x768] sm:$0xff]
    %v669 = vld [vmem:[#allocation2 + $0x770] sm:$0xf]
    %v670 = vld [vmem:[#allocation2 + $0x774] sm:$0xff]
    %v671 = vld [vmem:[#allocation2 + $0x77c] sm:$0xff]
    %v672 = vld [vmem:[#allocation2 + $0x784] sm:$0xff]
    %v673 = vld [vmem:[#allocation2 + $0x78c] sm:$0xff]
    %v674 = vld [vmem:[#allocation2 + $0x794] sm:$0xf]
    %v675 = vld [vmem:[#allocation2 + $0x798] sm:$0xff]
    %v676 = vld [vmem:[#allocation2 + $0x7a0] sm:$0xff]
    %v677 = vld [vmem:[#allocation2 + $0x7a8] sm:$0xff]
    %v678 = vld [vmem:[#allocation2 + $0x7b0] sm:$0xff]
    %v679 = vld [vmem:[#allocation2 + $0x7b8] sm:$0xf]
    %v680 = vld [vmem:[#allocation2 + $0x7bc] sm:$0xff]
    %v681 = vld [vmem:[#allocation2 + $0x7c4] sm:$0xff]
    %v682 = vld [vmem:[#allocation2 + $0x7cc] sm:$0xff]
    %v683 = vld [vmem:[#allocation2 + $0x7d4] sm:$0xff]
    %v684 = vld [vmem:[#allocation2 + $0x7dc] sm:$0xf]
    %v685 = vld [vmem:[#allocation5] sm:$0xf]
    %v686 = vld [vmem:[#allocation5 + $0x4] sm:$0xf]
    %v687 = vld [vmem:[#allocation5 + $0x8] sm:$0xf]
    %v688 = vld [vmem:[#allocation5 + $0xc] sm:$0xf]
    %v689 = vld [vmem:[#allocation5 + $0x10] sm:$0xf]
    %v690 = vld [vmem:[#allocation5 + $0x14] sm:$0xf]
    %v691 = vld [vmem:[#allocation5 + $0x18] sm:$0xf]
    %v692 = vld [vmem:[#allocation5 + $0x1c] sm:$0xf]
    %v693 = vld [vmem:[#allocation5 + $0x20] sm:$0xf]
    %v694 = vld [vmem:[#allocation5 + $0x24] sm:$0xf]
    %v695 = vld [vmem:[#allocation5 + $0x28] sm:$0xf]
    %v696 = vld [vmem:[#allocation5 + $0x2c] sm:$0xf]
    %v697 = vld [vmem:[#allocation5 + $0x30] sm:$0xf]
    %v698 = vld [vmem:[#allocation5 + $0x34] sm:$0xf]
    %v699 = vld [vmem:[#allocation5 + $0x38] sm:$0xf]
    %v700 = vld [vmem:[#allocation5 + $0x3c] sm:$0xf]
    %v701 = vld [vmem:[#allocation5 + $0x40] sm:$0xf]
    %v702 = vld [vmem:[#allocation5 + $0x44] sm:$0xf]
    %v703 = vld [vmem:[#allocation5 + $0x48] sm:$0xf]
    %v704 = vld [vmem:[#allocation5 + $0x4c] sm:$0xf]
    %v705 = vld [vmem:[#allocation5 + $0x50] sm:$0xf]
    %v706 = vld [vmem:[#allocation5 + $0x54] sm:$0xf]
    %v707 = vld [vmem:[#allocation5 + $0x58] sm:$0xf]
    %v708 = vld [vmem:[#allocation5 + $0x5c] sm:$0xf]
    %v709 = vld [vmem:[#allocation5 + $0x60] sm:$0xf]
    %v710 = vld [vmem:[#allocation5 + $0x64] sm:$0xf]
    %v711 = vld [vmem:[#allocation5 + $0x68] sm:$0xf]
    %v712 = vld [vmem:[#allocation5 + $0x6c] sm:$0xf]
    %v713 = vld [vmem:[#allocation5 + $0x70] sm:$0xf]
    %v714 = vld [vmem:[#allocation5 + $0x74] sm:$0xf]
    %v715 = vld [vmem:[#allocation5 + $0x78] sm:$0xf]
    %v716 = vld [vmem:[#allocation5 + $0x7c] sm:$0xf]
    %v717 = vld [vmem:[#allocation5 + $0x80] sm:$0xf]
    %v718 = vld [vmem:[#allocation5 + $0x84] sm:$0xf]
    %v719 = vld [vmem:[#allocation5 + $0x88] sm:$0xf]
    %v720 = vld [vmem:[#allocation5 + $0x8c] sm:$0xf]
    %v721 = vld [vmem:[#allocation5 + $0x90] sm:$0xf]
    %v722 = vld [vmem:[#allocation5 + $0x94] sm:$0xf]
    %v723 = vld [vmem:[#allocation5 + $0x98] sm:$0xf]
    %v724 = vld [vmem:[#allocation5 + $0x9c] sm:$0xf]
    %v725 = vld [vmem:[#allocation5 + $0xa0] sm:$0xf]
    %v726 = vld [vmem:[#allocation5 + $0xa4] sm:$0xf]
    %v727 = vld [vmem:[#allocation5 + $0xa8] sm:$0xf]
    %v728 = vld [vmem:[#allocation5 + $0xac] sm:$0xf]
    %v729 = vld [vmem:[#allocation5 + $0xb0] sm:$0xf]
    %v730 = vld [vmem:[#allocation5 + $0xb4] sm:$0xf]
    %v731 = vld [vmem:[#allocation5 + $0xb8] sm:$0xf]
    %v732 = vld [vmem:[#allocation5 + $0xbc] sm:$0xf]
    %v733 = vld [vmem:[#allocation5 + $0xc0] sm:$0xf]
    %v734 = vld [vmem:[#allocation5 + $0xc4] sm:$0xf]
    %v735 = vld [vmem:[#allocation5 + $0xc8] sm:$0xf]
    %v736 = vld [vmem:[#allocation5 + $0xcc] sm:$0xf]
    %v737 = vld [vmem:[#allocation5 + $0xd0] sm:$0xf]
    %v738 = vld [vmem:[#allocation5 + $0xd4] sm:$0xf]
    %v739 = vld [vmem:[#allocation5 + $0xd8] sm:$0xf]
    %v740 = vld [vmem:[#allocation5 + $0xdc] sm:$0xf]
    %v741 = vld [vmem:[#allocation5 + $0xe0] sm:$0xf]
    %v742 = vld [vmem:[#allocation5 + $0xe4] sm:$0xf]
    %v743 = vld [vmem:[#allocation5 + $0xe8] sm:$0xf]
    %v744 = vld [vmem:[#allocation5 + $0xec] sm:$0xf]
    %v745 = vld [vmem:[#allocation5 + $0xf0] sm:$0xf]
    %v746 = vld [vmem:[#allocation5 + $0xf4] sm:$0xf]
    %v747 = vld [vmem:[#allocation5 + $0xf8] sm:$0xf]
    %v748 = vld [vmem:[#allocation5 + $0xfc] sm:$0xf]
    %v749 = vld [vmem:[#allocation5 + $0x100] sm:$0xf]
    %v750 = vld [vmem:[#allocation5 + $0x104] sm:$0xf]
    %v751 = vld [vmem:[#allocation5 + $0x108] sm:$0xf]
    %v752 = vld [vmem:[#allocation5 + $0x10c] sm:$0xf]
    %v753 = vld [vmem:[#allocation5 + $0x110] sm:$0xf]
    %v754 = vld [vmem:[#allocation5 + $0x114] sm:$0xf]
    %v755 = vld [vmem:[#allocation5 + $0x118] sm:$0xf]
    %v756 = vld [vmem:[#allocation5 + $0x11c] sm:$0xf]
    %v757 = vld [vmem:[#allocation5 + $0x120] sm:$0xf]
    %v758 = vld [vmem:[#allocation5 + $0x124] sm:$0xf]
    %v759 = vld [vmem:[#allocation5 + $0x128] sm:$0xf]
    %v760 = vld [vmem:[#allocation5 + $0x12c] sm:$0xf]
    %v761 = vld [vmem:[#allocation5 + $0x130] sm:$0xf]
    %v762 = vld [vmem:[#allocation5 + $0x134] sm:$0xf]
    %v763 = vld [vmem:[#allocation5 + $0x138] sm:$0xf]
    %v764 = vld [vmem:[#allocation5 + $0x13c] sm:$0xf]
    %v765 = vld [vmem:[#allocation5 + $0x140] sm:$0xf]
    %v766 = vld [vmem:[#allocation5 + $0x144] sm:$0xf]
    %v767 = vld [vmem:[#allocation5 + $0x148] sm:$0xf]
    %v768 = vld [vmem:[#allocation5 + $0x14c] sm:$0xf]
    %v769 = vld [vmem:[#allocation5 + $0x150] sm:$0xf]
    %v770 = vld [vmem:[#allocation5 + $0x154] sm:$0xf]
    %v771 = vld [vmem:[#allocation5 + $0x158] sm:$0xf]
    %v772 = vld [vmem:[#allocation5 + $0x15c] sm:$0xf]
    %v773 = vld [vmem:[#allocation5 + $0x160] sm:$0xf]
    %v774 = vld [vmem:[#allocation5 + $0x164] sm:$0xf]
    %v775 = vld [vmem:[#allocation5 + $0x168] sm:$0xf]
    %v776 = vld [vmem:[#allocation5 + $0x16c] sm:$0xf]
    %v777 = vld [vmem:[#allocation5 + $0x170] sm:$0xf]
    %v778 = vld [vmem:[#allocation5 + $0x174] sm:$0xf]
    %v779 = vld [vmem:[#allocation5 + $0x178] sm:$0xf]
    %v780 = vld [vmem:[#allocation5 + $0x17c] sm:$0xf]
    %v781 = vld [vmem:[#allocation5 + $0x180] sm:$0xf]
    %v782 = vld [vmem:[#allocation5 + $0x184] sm:$0xf]
    %v783 = vld [vmem:[#allocation5 + $0x188] sm:$0xf]
    %v784 = vld [vmem:[#allocation5 + $0x18c] sm:$0xf]
    %v785 = vld [vmem:[#allocation5 + $0x190] sm:$0xf]
    %v786 = vld [vmem:[#allocation5 + $0x194] sm:$0xf]
    %v787 = vld [vmem:[#allocation5 + $0x198] sm:$0xf]
    %v788 = vld [vmem:[#allocation5 + $0x19c] sm:$0xf]
    %v789 = vld [vmem:[#allocation5 + $0x1a0] sm:$0xf]
    %v790 = vld [vmem:[#allocation5 + $0x1a4] sm:$0xf]
    %v791 = vld [vmem:[#allocation5 + $0x1a8] sm:$0xf]
    %v792 = vld [vmem:[#allocation5 + $0x1ac] sm:$0xf]
    %v793 = vld [vmem:[#allocation5 + $0x1b0] sm:$0xf]
    %v794 = vld [vmem:[#allocation5 + $0x1b4] sm:$0xf]
    %v795 = vld [vmem:[#allocation5 + $0x1b8] sm:$0xf]
    %v796 = vld [vmem:[#allocation5 + $0x1bc] sm:$0xf]
    %v797 = vld [vmem:[#allocation5 + $0x1c0] sm:$0xf]
    %v798 = vld [vmem:[#allocation5 + $0x1c4] sm:$0xf]
    %v799 = vld [vmem:[#allocation5 + $0x1c8] sm:$0xf]
    %v800 = vld [vmem:[#allocation5 + $0x1cc] sm:$0xf]
    %v801 = vld [vmem:[#allocation5 + $0x1d0] sm:$0xf]
    %v802 = vld [vmem:[#allocation5 + $0x1d4] sm:$0xf]
    %v803 = vld [vmem:[#allocation5 + $0x1d8] sm:$0xf]
    %v804 = vld [vmem:[#allocation5 + $0x1dc] sm:$0xf]
    %v805 = vld [vmem:[#allocation5 + $0x1e0] sm:$0xf]
    %v806 = vld [vmem:[#allocation5 + $0x1e4] sm:$0xf]
    %v807 = vld [vmem:[#allocation5 + $0x1e8] sm:$0xf]
    %v808 = vld [vmem:[#allocation5 + $0x1ec] sm:$0xf]
    %v809 = vld [vmem:[#allocation5 + $0x1f0] sm:$0xf]
    %v810 = vld [vmem:[#allocation5 + $0x1f4] sm:$0xf]
    %v811 = vld [vmem:[#allocation5 + $0x1f8] sm:$0xf]
    %v812 = vld [vmem:[#allocation5 + $0x1fc] sm:$0xf]
    %v813 = vld [vmem:[#allocation5 + $0x200] sm:$0xf]
    %v814 = vld [vmem:[#allocation5 + $0x204] sm:$0xf]
    %v815 = vld [vmem:[#allocation5 + $0x208] sm:$0xf]
    %v816 = vld [vmem:[#allocation5 + $0x20c] sm:$0xf]
    %v817 = vld [vmem:[#allocation5 + $0x210] sm:$0xf]
    %v818 = vld [vmem:[#allocation5 + $0x214] sm:$0xf]
    %v819 = vld [vmem:[#allocation5 + $0x218] sm:$0xf]
    %v820 = vld [vmem:[#allocation5 + $0x21c] sm:$0xf]
    %v821 = vld [vmem:[#allocation5 + $0x220] sm:$0xf]
    %v822 = vld [vmem:[#allocation5 + $0x224] sm:$0xf]
    %v823 = vld [vmem:[#allocation5 + $0x228] sm:$0xf]
    %v824 = vld [vmem:[#allocation5 + $0x22c] sm:$0xf]
    %v825 = vld [vmem:[#allocation5 + $0x230] sm:$0xf]
    %v826 = vld [vmem:[#allocation5 + $0x234] sm:$0xf]
    %v827 = vld [vmem:[#allocation5 + $0x238] sm:$0xf]
    %v828 = vld [vmem:[#allocation5 + $0x23c] sm:$0xf]
    %v829 = vlaneseq
    %v830 = vshrl.u32 %v829, 7
    %v831 = vsub.s32 0, %v830
    %v832 = vrot.slane %v68, %v831
    %v1113 = vunpack.c.l.b16 %v405
    %v1114 = vunpack.c.h.b16 %v405
    %v1115 = vunpack.c.l.b16 %v406
    %v1116 = vunpack.c.h.b16 %v406
    %v1117 = vunpack.c.l.b16 %v407
    %v1118 = vunpack.c.h.b16 %v407
    %v1119 = vunpack.c.l.b16 %v408
    %v1120 = vunpack.c.h.b16 %v408
    %v1121 = vunpack.c.l.b16 %v409
    %v1122 = vunpack.c.l.b16 %v410
    %v1123 = vunpack.c.h.b16 %v410
    %v1124 = vunpack.c.l.b16 %v411
    %v1125 = vunpack.c.h.b16 %v411
    %v1126 = vunpack.c.l.b16 %v412
    %v1127 = vunpack.c.h.b16 %v412
    %v1128 = vunpack.c.l.b16 %v413
    %v1129 = vunpack.c.h.b16 %v413
    %v1130 = vunpack.c.l.b16 %v414
    %v1131 = vunpack.c.l.b16 %v415
    %v1132 = vunpack.c.h.b16 %v415
    %v1133 = vunpack.c.l.b16 %v416
    %v1134 = vunpack.c.h.b16 %v416
    %v1135 = vunpack.c.l.b16 %v417
    %v1136 = vunpack.c.h.b16 %v417
    %v1137 = vunpack.c.l.b16 %v418
    %v1138 = vunpack.c.h.b16 %v418
    %v1139 = vunpack.c.l.b16 %v419
    %v1140 = vunpack.c.l.b16 %v420
    %v1141 = vunpack.c.h.b16 %v420
    %v1142 = vunpack.c.l.b16 %v421
    %v1143 = vunpack.c.h.b16 %v421
    %v1144 = vunpack.c.l.b16 %v422
    %v1145 = vunpack.c.h.b16 %v422
    %v1146 = vunpack.c.l.b16 %v423
    %v1147 = vunpack.c.h.b16 %v423
    %v1148 = vunpack.c.l.b16 %v424
    %v1149 = vunpack.c.l.b16 %v425
    %v1150 = vunpack.c.h.b16 %v425
    %v1151 = vunpack.c.l.b16 %v426
    %v1152 = vunpack.c.h.b16 %v426
    %v1153 = vunpack.c.l.b16 %v427
    %v1154 = vunpack.c.h.b16 %v427
    %v1155 = vunpack.c.l.b16 %v428
    %v1156 = vunpack.c.h.b16 %v428
    %v1157 = vunpack.c.l.b16 %v429
    %v1158 = vunpack.c.l.b16 %v430
    %v1159 = vunpack.c.h.b16 %v430
    %v1160 = vunpack.c.l.b16 %v431
    %v1161 = vunpack.c.h.b16 %v431
    %v1162 = vunpack.c.l.b16 %v432
    %v1163 = vunpack.c.h.b16 %v432
    %v1164 = vunpack.c.l.b16 %v433
    %v1165 = vunpack.c.h.b16 %v433
    %v1166 = vunpack.c.l.b16 %v434
    %v1167 = vunpack.c.l.b16 %v435
    %v1168 = vunpack.c.h.b16 %v435
    %v1169 = vunpack.c.l.b16 %v436
    %v1170 = vunpack.c.h.b16 %v436
    %v1171 = vunpack.c.l.b16 %v437
    %v1172 = vunpack.c.h.b16 %v437
    %v1173 = vunpack.c.l.b16 %v438
    %v1174 = vunpack.c.h.b16 %v438
    %v1175 = vunpack.c.l.b16 %v439
    %v1176 = vunpack.c.l.b16 %v440
    %v1177 = vunpack.c.h.b16 %v440
    %v1178 = vunpack.c.l.b16 %v441
    %v1179 = vunpack.c.h.b16 %v441
    %v1180 = vunpack.c.l.b16 %v442
    %v1181 = vunpack.c.h.b16 %v442
    %v1182 = vunpack.c.l.b16 %v443
    %v1183 = vunpack.c.h.b16 %v443
    %v1184 = vunpack.c.l.b16 %v444
    %v1185 = vunpack.c.l.b16 %v445
    %v1186 = vunpack.c.h.b16 %v445
    %v1187 = vunpack.c.l.b16 %v446
    %v1188 = vunpack.c.h.b16 %v446
    %v1189 = vunpack.c.l.b16 %v447
    %v1190 = vunpack.c.h.b16 %v447
    %v1191 = vunpack.c.l.b16 %v448
    %v1192 = vunpack.c.h.b16 %v448
    %v1193 = vunpack.c.l.b16 %v449
    %v1194 = vunpack.c.l.b16 %v450
    %v1195 = vunpack.c.h.b16 %v450
    %v1196 = vunpack.c.l.b16 %v451
    %v1197 = vunpack.c.h.b16 %v451
    %v1198 = vunpack.c.l.b16 %v452
    %v1199 = vunpack.c.h.b16 %v452
    %v1200 = vunpack.c.l.b16 %v453
    %v1201 = vunpack.c.h.b16 %v453
    %v1202 = vunpack.c.l.b16 %v454
    %v1203 = vunpack.c.l.b16 %v455
    %v1204 = vunpack.c.h.b16 %v455
    %v1205 = vunpack.c.l.b16 %v456
    %v1206 = vunpack.c.h.b16 %v456
    %v1207 = vunpack.c.l.b16 %v457
    %v1208 = vunpack.c.h.b16 %v457
    %v1209 = vunpack.c.l.b16 %v458
    %v1210 = vunpack.c.h.b16 %v458
    %v1211 = vunpack.c.l.b16 %v459
    %v1212 = vunpack.c.l.b16 %v460
    %v1213 = vunpack.c.h.b16 %v460
    %v1214 = vunpack.c.l.b16 %v461
    %v1215 = vunpack.c.h.b16 %v461
    %v1216 = vunpack.c.l.b16 %v462
    %v1217 = vunpack.c.h.b16 %v462
    %v1218 = vunpack.c.l.b16 %v463
    %v1219 = vunpack.c.h.b16 %v463
    %v1220 = vunpack.c.l.b16 %v464
    %v1221 = vunpack.c.l.b16 %v465
    %v1222 = vunpack.c.h.b16 %v465
    %v1223 = vunpack.c.l.b16 %v466
    %v1224 = vunpack.c.h.b16 %v466
    %v1225 = vunpack.c.l.b16 %v467
    %v1226 = vunpack.c.h.b16 %v467
    %v1227 = vunpack.c.l.b16 %v468
    %v1228 = vunpack.c.h.b16 %v468
    %v1229 = vunpack.c.l.b16 %v469
    %v1230 = vunpack.c.l.b16 %v470
    %v1231 = vunpack.c.h.b16 %v470
    %v1232 = vunpack.c.l.b16 %v471
    %v1233 = vunpack.c.h.b16 %v471
    %v1234 = vunpack.c.l.b16 %v472
    %v1235 = vunpack.c.h.b16 %v472
    %v1236 = vunpack.c.l.b16 %v473
    %v1237 = vunpack.c.h.b16 %v473
    %v1238 = vunpack.c.l.b16 %v474
    %v1239 = vunpack.c.l.b16 %v475
    %v1240 = vunpack.c.h.b16 %v475
    %v1241 = vunpack.c.l.b16 %v476
    %v1242 = vunpack.c.h.b16 %v476
    %v1243 = vunpack.c.l.b16 %v477
    %v1244 = vunpack.c.h.b16 %v477
    %v1245 = vunpack.c.l.b16 %v478
    %v1246 = vunpack.c.h.b16 %v478
    %v1247 = vunpack.c.l.b16 %v479
    %v1248 = vunpack.c.l.b16 %v480
    %v1249 = vunpack.c.h.b16 %v480
    %v1250 = vunpack.c.l.b16 %v481
    %v1251 = vunpack.c.h.b16 %v481
    %v1252 = vunpack.c.l.b16 %v482
    %v1253 = vunpack.c.h.b16 %v482
    %v1254 = vunpack.c.l.b16 %v483
    %v1255 = vunpack.c.h.b16 %v483
    %v1256 = vunpack.c.l.b16 %v484
    %v1257 = vunpack.c.l.b16 %v485
    %v1258 = vunpack.c.h.b16 %v485
    %v1259 = vunpack.c.l.b16 %v486
    %v1260 = vunpack.c.h.b16 %v486
    %v1261 = vunpack.c.l.b16 %v487
    %v1262 = vunpack.c.h.b16 %v487
    %v1263 = vunpack.c.l.b16 %v488
    %v1264 = vunpack.c.h.b16 %v488
    %v1265 = vunpack.c.l.b16 %v489
    %v1266 = vunpack.c.l.b16 %v490
    %v1267 = vunpack.c.h.b16 %v490
    %v1268 = vunpack.c.l.b16 %v491
    %v1269 = vunpack.c.h.b16 %v491
    %v1270 = vunpack.c.l.b16 %v492
    %v1271 = vunpack.c.h.b16 %v492
    %v1272 = vunpack.c.l.b16 %v493
    %v1273 = vunpack.c.h.b16 %v493
    %v1274 = vunpack.c.l.b16 %v494
    %v1275 = vunpack.c.l.b16 %v495
    %v1276 = vunpack.c.h.b16 %v495
    %v1277 = vunpack.c.l.b16 %v496
    %v1278 = vunpack.c.h.b16 %v496
    %v1279 = vunpack.c.l.b16 %v497
    %v1280 = vunpack.c.h.b16 %v497
    %v1281 = vunpack.c.l.b16 %v498
    %v1282 = vunpack.c.h.b16 %v498
    %v1283 = vunpack.c.l.b16 %v499
    %v1284 = vunpack.c.l.b16 %v500
    %v1285 = vunpack.c.h.b16 %v500
    %v1286 = vunpack.c.l.b16 %v501
    %v1287 = vunpack.c.h.b16 %v501
    %v1288 = vunpack.c.l.b16 %v502
    %v1289 = vunpack.c.h.b16 %v502
    %v1290 = vunpack.c.l.b16 %v503
    %v1291 = vunpack.c.h.b16 %v503
    %v1292 = vunpack.c.l.b16 %v504
    %v1293 = vunpack.c.l.b16 %v505
    %v1294 = vunpack.c.h.b16 %v505
    %v1295 = vunpack.c.l.b16 %v506
    %v1296 = vunpack.c.h.b16 %v506
    %v1297 = vunpack.c.l.b16 %v507
    %v1298 = vunpack.c.h.b16 %v507
    %v1299 = vunpack.c.l.b16 %v508
    %v1300 = vunpack.c.h.b16 %v508
    %v1301 = vunpack.c.l.b16 %v509
    %v1302 = vunpack.c.l.b16 %v510
    %v1303 = vunpack.c.h.b16 %v510
    %v1304 = vunpack.c.l.b16 %v511
    %v1305 = vunpack.c.h.b16 %v511
    %v1306 = vunpack.c.l.b16 %v512
    %v1307 = vunpack.c.h.b16 %v512
    %v1308 = vunpack.c.l.b16 %v513
    %v1309 = vunpack.c.h.b16 %v513
    %v1310 = vunpack.c.l.b16 %v514
    %v1311 = vunpack.c.l.b16 %v515
    %v1312 = vunpack.c.h.b16 %v515
    %v1313 = vunpack.c.l.b16 %v516
    %v1314 = vunpack.c.h.b16 %v516
    %v1315 = vunpack.c.l.b16 %v517
    %v1316 = vunpack.c.h.b16 %v517
    %v1317 = vunpack.c.l.b16 %v518
    %v1318 = vunpack.c.h.b16 %v518
    %v1319 = vunpack.c.l.b16 %v519
    %v1320 = vunpack.c.l.b16 %v520
    %v1321 = vunpack.c.h.b16 %v520
    %v1322 = vunpack.c.l.b16 %v521
    %v1323 = vunpack.c.h.b16 %v521
    %v1324 = vunpack.c.l.b16 %v522
    %v1325 = vunpack.c.h.b16 %v522
    %v1326 = vunpack.c.l.b16 %v523
    %v1327 = vunpack.c.h.b16 %v523
    %v1328 = vunpack.c.l.b16 %v524
    %v1329 = vunpack.c.l.b16 %v525
    %v1330 = vunpack.c.h.b16 %v525
    %v1331 = vunpack.c.l.b16 %v526
    %v1332 = vunpack.c.h.b16 %v526
    %v1333 = vunpack.c.l.b16 %v527
    %v1334 = vunpack.c.h.b16 %v527
    %v1335 = vunpack.c.l.b16 %v528
    %v1336 = vunpack.c.h.b16 %v528
    %v1337 = vunpack.c.l.b16 %v529
    %v1338 = vunpack.c.l.b16 %v530
    %v1339 = vunpack.c.h.b16 %v530
    %v1340 = vunpack.c.l.b16 %v531
    %v1341 = vunpack.c.h.b16 %v531
    %v1342 = vunpack.c.l.b16 %v532
    %v1343 = vunpack.c.h.b16 %v532
    %v1344 = vunpack.c.l.b16 %v533
    %v1345 = vunpack.c.h.b16 %v533
    %v1346 = vunpack.c.l.b16 %v534
    %v1347 = vunpack.c.l.b16 %v535
    %v1348 = vunpack.c.h.b16 %v535
    %v1349 = vunpack.c.l.b16 %v536
    %v1350 = vunpack.c.h.b16 %v536
    %v1351 = vunpack.c.l.b16 %v537
    %v1352 = vunpack.c.h.b16 %v537
    %v1353 = vunpack.c.l.b16 %v538
    %v1354 = vunpack.c.h.b16 %v538
    %v1355 = vunpack.c.l.b16 %v539
    %v1356 = vunpack.c.l.b16 %v540
    %v1357 = vunpack.c.h.b16 %v540
    %v1358 = vunpack.c.l.b16 %v541
    %v1359 = vunpack.c.h.b16 %v541
    %v1360 = vunpack.c.l.b16 %v542
    %v1361 = vunpack.c.h.b16 %v542
    %v1362 = vunpack.c.l.b16 %v543
    %v1363 = vunpack.c.h.b16 %v543
    %v1364 = vunpack.c.l.b16 %v544
    %v1365 = vunpack.c.l.b16 %v545
    %v1366 = vunpack.c.h.b16 %v545
    %v1367 = vunpack.c.l.b16 %v546
    %v1368 = vunpack.c.h.b16 %v546
    %v1369 = vunpack.c.l.b16 %v547
    %v1370 = vunpack.c.h.b16 %v547
    %v1371 = vunpack.c.l.b16 %v548
    %v1372 = vunpack.c.h.b16 %v548
    %v1373 = vunpack.c.l.b16 %v549
    %v1374 = vunpack.c.l.b16 %v550
    %v1375 = vunpack.c.h.b16 %v550
    %v1376 = vunpack.c.l.b16 %v551
    %v1377 = vunpack.c.h.b16 %v551
    %v1378 = vunpack.c.l.b16 %v552
    %v1379 = vunpack.c.h.b16 %v552
    %v1380 = vunpack.c.l.b16 %v553
    %v1381 = vunpack.c.h.b16 %v553
    %v1382 = vunpack.c.l.b16 %v554
    %v1383 = vunpack.c.l.b16 %v555
    %v1384 = vunpack.c.h.b16 %v555
    %v1385 = vunpack.c.l.b16 %v556
    %v1386 = vunpack.c.h.b16 %v556
    %v1387 = vunpack.c.l.b16 %v557
    %v1388 = vunpack.c.h.b16 %v557
    %v1389 = vunpack.c.l.b16 %v558
    %v1390 = vunpack.c.h.b16 %v558
    %v1391 = vunpack.c.l.b16 %v559
    %v1392 = vunpack.c.l.b16 %v560
    %v1393 = vunpack.c.h.b16 %v560
    %v1394 = vunpack.c.l.b16 %v561
    %v1395 = vunpack.c.h.b16 %v561
    %v1396 = vunpack.c.l.b16 %v562
    %v1397 = vunpack.c.h.b16 %v562
    %v1398 = vunpack.c.l.b16 %v563
    %v1399 = vunpack.c.h.b16 %v563
    %v1400 = vunpack.c.l.b16 %v564
    %v1401 = vunpack.c.l.b16 %v565
    %v1402 = vunpack.c.h.b16 %v565
    %v1403 = vunpack.c.l.b16 %v566
    %v1404 = vunpack.c.h.b16 %v566
    %v1405 = vunpack.c.l.b16 %v567
    %v1406 = vunpack.c.h.b16 %v567
    %v1407 = vunpack.c.l.b16 %v568
    %v1408 = vunpack.c.h.b16 %v568
    %v1409 = vunpack.c.l.b16 %v569
    %v1410 = vunpack.c.l.b16 %v570
    %v1411 = vunpack.c.h.b16 %v570
    %v1412 = vunpack.c.l.b16 %v571
    %v1413 = vunpack.c.h.b16 %v571
    %v1414 = vunpack.c.l.b16 %v572
    %v1415 = vunpack.c.h.b16 %v572
    %v1416 = vunpack.c.l.b16 %v573
    %v1417 = vunpack.c.h.b16 %v573
    %v1418 = vunpack.c.l.b16 %v574
    %v1419 = vunpack.c.l.b16 %v575
    %v1420 = vunpack.c.h.b16 %v575
    %v1421 = vunpack.c.l.b16 %v576
    %v1422 = vunpack.c.h.b16 %v576
    %v1423 = vunpack.c.l.b16 %v577
    %v1424 = vunpack.c.h.b16 %v577
    %v1425 = vunpack.c.l.b16 %v578
    %v1426 = vunpack.c.h.b16 %v578
    %v1427 = vunpack.c.l.b16 %v579
    %v1428 = vunpack.c.l.b16 %v580
    %v1429 = vunpack.c.h.b16 %v580
    %v1430 = vunpack.c.l.b16 %v581
    %v1431 = vunpack.c.h.b16 %v581
    %v1432 = vunpack.c.l.b16 %v582
    %v1433 = vunpack.c.h.b16 %v582
    %v1434 = vunpack.c.l.b16 %v583
    %v1435 = vunpack.c.h.b16 %v583
    %v1436 = vunpack.c.l.b16 %v584
    %v1437 = vunpack.c.l.b16 %v585
    %v1438 = vunpack.c.h.b16 %v585
    %v1439 = vunpack.c.l.b16 %v586
    %v1440 = vunpack.c.h.b16 %v586
    %v1441 = vunpack.c.l.b16 %v587
    %v1442 = vunpack.c.h.b16 %v587
    %v1443 = vunpack.c.l.b16 %v588
    %v1444 = vunpack.c.h.b16 %v588
    %v1445 = vunpack.c.l.b16 %v589
    %v1446 = vunpack.c.l.b16 %v590
    %v1447 = vunpack.c.h.b16 %v590
    %v1448 = vunpack.c.l.b16 %v591
    %v1449 = vunpack.c.h.b16 %v591
    %v1450 = vunpack.c.l.b16 %v592
    %v1451 = vunpack.c.h.b16 %v592
    %v1452 = vunpack.c.l.b16 %v593
    %v1453 = vunpack.c.h.b16 %v593
    %v1454 = vunpack.c.l.b16 %v594
    %v1455 = vunpack.c.l.b16 %v595
    %v1456 = vunpack.c.h.b16 %v595
    %v1457 = vunpack.c.l.b16 %v596
    %v1458 = vunpack.c.h.b16 %v596
    %v1459 = vunpack.c.l.b16 %v597
    %v1460 = vunpack.c.h.b16 %v597
    %v1461 = vunpack.c.l.b16 %v598
    %v1462 = vunpack.c.h.b16 %v598
    %v1463 = vunpack.c.l.b16 %v599
    %v1464 = vunpack.c.l.b16 %v600
    %v1465 = vunpack.c.h.b16 %v600
    %v1466 = vunpack.c.l.b16 %v601
    %v1467 = vunpack.c.h.b16 %v601
    %v1468 = vunpack.c.l.b16 %v602
    %v1469 = vunpack.c.h.b16 %v602
    %v1470 = vunpack.c.l.b16 %v603
    %v1471 = vunpack.c.h.b16 %v603
    %v1472 = vunpack.c.l.b16 %v604
    %v1473 = vunpack.c.l.b16 %v605
    %v1474 = vunpack.c.h.b16 %v605
    %v1475 = vunpack.c.l.b16 %v606
    %v1476 = vunpack.c.h.b16 %v606
    %v1477 = vunpack.c.l.b16 %v607
    %v1478 = vunpack.c.h.b16 %v607
    %v1479 = vunpack.c.l.b16 %v608
    %v1480 = vunpack.c.h.b16 %v608
    %v1481 = vunpack.c.l.b16 %v609
    %v1482 = vunpack.c.l.b16 %v610
    %v1483 = vunpack.c.h.b16 %v610
    %v1484 = vunpack.c.l.b16 %v611
    %v1485 = vunpack.c.h.b16 %v611
    %v1486 = vunpack.c.l.b16 %v612
    %v1487 = vunpack.c.h.b16 %v612
    %v1488 = vunpack.c.l.b16 %v613
    %v1489 = vunpack.c.h.b16 %v613
    %v1490 = vunpack.c.l.b16 %v614
    %v1491 = vunpack.c.l.b16 %v615
    %v1492 = vunpack.c.h.b16 %v615
    %v1493 = vunpack.c.l.b16 %v616
    %v1494 = vunpack.c.h.b16 %v616
    %v1495 = vunpack.c.l.b16 %v617
    %v1496 = vunpack.c.h.b16 %v617
    %v1497 = vunpack.c.l.b16 %v618
    %v1498 = vunpack.c.h.b16 %v618
    %v1499 = vunpack.c.l.b16 %v619
    %v1500 = vunpack.c.l.b16 %v620
    %v1501 = vunpack.c.h.b16 %v620
    %v1502 = vunpack.c.l.b16 %v621
    %v1503 = vunpack.c.h.b16 %v621
    %v1504 = vunpack.c.l.b16 %v622
    %v1505 = vunpack.c.h.b16 %v622
    %v1506 = vunpack.c.l.b16 %v623
    %v1507 = vunpack.c.h.b16 %v623
    %v1508 = vunpack.c.l.b16 %v624
    %v1509 = vunpack.c.l.b16 %v625
    %v1510 = vunpack.c.h.b16 %v625
    %v1511 = vunpack.c.l.b16 %v626
    %v1512 = vunpack.c.h.b16 %v626
    %v1513 = vunpack.c.l.b16 %v627
    %v1514 = vunpack.c.h.b16 %v627
    %v1515 = vunpack.c.l.b16 %v628
    %v1516 = vunpack.c.h.b16 %v628
    %v1517 = vunpack.c.l.b16 %v629
    %v1518 = vunpack.c.l.b16 %v630
    %v1519 = vunpack.c.h.b16 %v630
    %v1520 = vunpack.c.l.b16 %v631
    %v1521 = vunpack.c.h.b16 %v631
    %v1522 = vunpack.c.l.b16 %v632
    %v1523 = vunpack.c.h.b16 %v632
    %v1524 = vunpack.c.l.b16 %v633
    %v1525 = vunpack.c.h.b16 %v633
    %v1526 = vunpack.c.l.b16 %v634
    %v1527 = vunpack.c.l.b16 %v635
    %v1528 = vunpack.c.h.b16 %v635
    %v1529 = vunpack.c.l.b16 %v636
    %v1530 = vunpack.c.h.b16 %v636
    %v1531 = vunpack.c.l.b16 %v637
    %v1532 = vunpack.c.h.b16 %v637
    %v1533 = vunpack.c.l.b16 %v638
    %v1534 = vunpack.c.h.b16 %v638
    %v1535 = vunpack.c.l.b16 %v639
    %v1536 = vunpack.c.l.b16 %v640
    %v1537 = vunpack.c.h.b16 %v640
    %v1538 = vunpack.c.l.b16 %v641
    %v1539 = vunpack.c.h.b16 %v641
    %v1540 = vunpack.c.l.b16 %v642
    %v1541 = vunpack.c.h.b16 %v642
    %v1542 = vunpack.c.l.b16 %v643
    %v1543 = vunpack.c.h.b16 %v643
    %v1544 = vunpack.c.l.b16 %v644
    %v1545 = vunpack.c.l.b16 %v645
    %v1546 = vunpack.c.h.b16 %v645
    %v1547 = vunpack.c.l.b16 %v646
    %v1548 = vunpack.c.h.b16 %v646
    %v1549 = vunpack.c.l.b16 %v647
    %v1550 = vunpack.c.h.b16 %v647
    %v1551 = vunpack.c.l.b16 %v648
    %v1552 = vunpack.c.h.b16 %v648
    %v1553 = vunpack.c.l.b16 %v649
    %v1554 = vunpack.c.l.b16 %v650
    %v1555 = vunpack.c.h.b16 %v650
    %v1556 = vunpack.c.l.b16 %v651
    %v1557 = vunpack.c.h.b16 %v651
    %v1558 = vunpack.c.l.b16 %v652
    %v1559 = vunpack.c.h.b16 %v652
    %v1560 = vunpack.c.l.b16 %v653
    %v1561 = vunpack.c.h.b16 %v653
    %v1562 = vunpack.c.l.b16 %v654
    %v1563 = vunpack.c.l.b16 %v655
    %v1564 = vunpack.c.h.b16 %v655
    %v1565 = vunpack.c.l.b16 %v656
    %v1566 = vunpack.c.h.b16 %v656
    %v1567 = vunpack.c.l.b16 %v657
    %v1568 = vunpack.c.h.b16 %v657
    %v1569 = vunpack.c.l.b16 %v658
    %v1570 = vunpack.c.h.b16 %v658
    %v1571 = vunpack.c.l.b16 %v659
    %v1572 = vunpack.c.l.b16 %v660
    %v1573 = vunpack.c.h.b16 %v660
    %v1574 = vunpack.c.l.b16 %v661
    %v1575 = vunpack.c.h.b16 %v661
    %v1576 = vunpack.c.l.b16 %v662
    %v1577 = vunpack.c.h.b16 %v662
    %v1578 = vunpack.c.l.b16 %v663
    %v1579 = vunpack.c.h.b16 %v663
    %v1580 = vunpack.c.l.b16 %v664
    %v1581 = vunpack.c.l.b16 %v665
    %v1582 = vunpack.c.h.b16 %v665
    %v1583 = vunpack.c.l.b16 %v666
    %v1584 = vunpack.c.h.b16 %v666
    %v1585 = vunpack.c.l.b16 %v667
    %v1586 = vunpack.c.h.b16 %v667
    %v1587 = vunpack.c.l.b16 %v668
    %v1588 = vunpack.c.h.b16 %v668
    %v1589 = vunpack.c.l.b16 %v669
    %v1590 = vunpack.c.l.b16 %v670
    %v1591 = vunpack.c.h.b16 %v670
    %v1592 = vunpack.c.l.b16 %v671
    %v1593 = vunpack.c.h.b16 %v671
    %v1594 = vunpack.c.l.b16 %v672
    %v1595 = vunpack.c.h.b16 %v672
    %v1596 = vunpack.c.l.b16 %v673
    %v1597 = vunpack.c.h.b16 %v673
    %v1598 = vunpack.c.l.b16 %v674
    %v1599 = vunpack.c.l.b16 %v675
    %v1600 = vunpack.c.h.b16 %v675
    %v1601 = vunpack.c.l.b16 %v676
    %v1602 = vunpack.c.h.b16 %v676
    %v1603 = vunpack.c.l.b16 %v677
    %v1604 = vunpack.c.h.b16 %v677
    %v1605 = vunpack.c.l.b16 %v678
    %v1606 = vunpack.c.h.b16 %v678
    %v1607 = vunpack.c.l.b16 %v679
    %v1608 = vunpack.c.l.b16 %v680
    %v1609 = vunpack.c.h.b16 %v680
    %v1610 = vunpack.c.l.b16 %v681
    %v1611 = vunpack.c.h.b16 %v681
    %v1612 = vunpack.c.l.b16 %v682
    %v1613 = vunpack.c.h.b16 %v682
    %v1614 = vunpack.c.l.b16 %v683
    %v1615 = vunpack.c.h.b16 %v683
    %v1616 = vunpack.c.l.b16 %v684
    %v1617 = vpack.c.b16 %v1122, %v1113
    %v1618 = vpack.c.b16 %v1123, %v1114
    %v1619 = vpack.c.b16 %v1124, %v1115
    %v1620 = vpack.c.b16 %v1125, %v1116
    %v1621 = vpack.c.b16 %v1126, %v1117
    %v1622 = vpack.c.b16 %v1127, %v1118
    %v1623 = vpack.c.b16 %v1128, %v1119
    %v1624 = vpack.c.b16 %v1129, %v1120
    %v1625 = vpack.c.b16 %v1130, %v1121
    %v1626 = vpack.c.b16 %v1140, %v1131
    %v1627 = vpack.c.b16 %v1141, %v1132
    %v1628 = vpack.c.b16 %v1142, %v1133
    %v1629 = vpack.c.b16 %v1143, %v1134
    %v1630 = vpack.c.b16 %v1144, %v1135
    %v1631 = vpack.c.b16 %v1145, %v1136
    %v1632 = vpack.c.b16 %v1146, %v1137
    %v1633 = vpack.c.b16 %v1147, %v1138
    %v1634 = vpack.c.b16 %v1148, %v1139
    %v1635 = vpack.c.b16 %v1158, %v1149
    %v1636 = vpack.c.b16 %v1159, %v1150
    %v1637 = vpack.c.b16 %v1160, %v1151
    %v1638 = vpack.c.b16 %v1161, %v1152
    %v1639 = vpack.c.b16 %v1162, %v1153
    %v1640 = vpack.c.b16 %v1163, %v1154
    %v1641 = vpack.c.b16 %v1164, %v1155
    %v1642 = vpack.c.b16 %v1165, %v1156
    %v1643 = vpack.c.b16 %v1166, %v1157
    %v1644 = vpack.c.b16 %v1176, %v1167
    %v1645 = vpack.c.b16 %v1177, %v1168
    %v1646 = vpack.c.b16 %v1178, %v1169
    %v1647 = vpack.c.b16 %v1179, %v1170
    %v1648 = vpack.c.b16 %v1180, %v1171
    %v1649 = vpack.c.b16 %v1181, %v1172
    %v1650 = vpack.c.b16 %v1182, %v1173
    %v1651 = vpack.c.b16 %v1183, %v1174
    %v1652 = vpack.c.b16 %v1184, %v1175
    %v1653 = vpack.c.b16 %v1194, %v1185
    %v1654 = vpack.c.b16 %v1195, %v1186
    %v1655 = vpack.c.b16 %v1196, %v1187
    %v1656 = vpack.c.b16 %v1197, %v1188
    %v1657 = vpack.c.b16 %v1198, %v1189
    %v1658 = vpack.c.b16 %v1199, %v1190
    %v1659 = vpack.c.b16 %v1200, %v1191
    %v1660 = vpack.c.b16 %v1201, %v1192
    %v1661 = vpack.c.b16 %v1202, %v1193
    %v1662 = vpack.c.b16 %v1212, %v1203
    %v1663 = vpack.c.b16 %v1213, %v1204
    %v1664 = vpack.c.b16 %v1214, %v1205
    %v1665 = vpack.c.b16 %v1215, %v1206
    %v1666 = vpack.c.b16 %v1216, %v1207
    %v1667 = vpack.c.b16 %v1217, %v1208
    %v1668 = vpack.c.b16 %v1218, %v1209
    %v1669 = vpack.c.b16 %v1219, %v1210
    %v1670 = vpack.c.b16 %v1220, %v1211
    %v1671 = vpack.c.b16 %v1230, %v1221
    %v1672 = vpack.c.b16 %v1231, %v1222
    %v1673 = vpack.c.b16 %v1232, %v1223
    %v1674 = vpack.c.b16 %v1233, %v1224
    %v1675 = vpack.c.b16 %v1234, %v1225
    %v1676 = vpack.c.b16 %v1235, %v1226
    %v1677 = vpack.c.b16 %v1236, %v1227
    %v1678 = vpack.c.b16 %v1237, %v1228
    %v1679 = vpack.c.b16 %v1238, %v1229
    %v1680 = vpack.c.b16 %v1248, %v1239
    %v1681 = vpack.c.b16 %v1249, %v1240
    %v1682 = vpack.c.b16 %v1250, %v1241
    %v1683 = vpack.c.b16 %v1251, %v1242
    %v1684 = vpack.c.b16 %v1252, %v1243
    %v1685 = vpack.c.b16 %v1253, %v1244
    %v1686 = vpack.c.b16 %v1254, %v1245
    %v1687 = vpack.c.b16 %v1255, %v1246
    %v1688 = vpack.c.b16 %v1256, %v1247
    %v1689 = vpack.c.b16 %v1266, %v1257
    %v1690 = vpack.c.b16 %v1267, %v1258
    %v1691 = vpack.c.b16 %v1268, %v1259
    %v1692 = vpack.c.b16 %v1269, %v1260
    %v1693 = vpack.c.b16 %v1270, %v1261
    %v1694 = vpack.c.b16 %v1271, %v1262
    %v1695 = vpack.c.b16 %v1272, %v1263
    %v1696 = vpack.c.b16 %v1273, %v1264
    %v1697 = vpack.c.b16 %v1274, %v1265
    %v1698 = vpack.c.b16 %v1284, %v1275
    %v1699 = vpack.c.b16 %v1285, %v1276
    %v1700 = vpack.c.b16 %v1286, %v1277
    %v1701 = vpack.c.b16 %v1287, %v1278
    %v1702 = vpack.c.b16 %v1288, %v1279
    %v1703 = vpack.c.b16 %v1289, %v1280
    %v1704 = vpack.c.b16 %v1290, %v1281
    %v1705 = vpack.c.b16 %v1291, %v1282
    %v1706 = vpack.c.b16 %v1292, %v1283
    %v1707 = vpack.c.b16 %v1302, %v1293
    %v1708 = vpack.c.b16 %v1303, %v1294
    %v1709 = vpack.c.b16 %v1304, %v1295
    %v1710 = vpack.c.b16 %v1305, %v1296
    %v1711 = vpack.c.b16 %v1306, %v1297
    %v1712 = vpack.c.b16 %v1307, %v1298
    %v1713 = vpack.c.b16 %v1308, %v1299
    %v1714 = vpack.c.b16 %v1309, %v1300
    %v1715 = vpack.c.b16 %v1310, %v1301
    %v1716 = vpack.c.b16 %v1320, %v1311
    %v1717 = vpack.c.b16 %v1321, %v1312
    %v1718 = vpack.c.b16 %v1322, %v1313
    %v1719 = vpack.c.b16 %v1323, %v1314
    %v1720 = vpack.c.b16 %v1324, %v1315
    %v1721 = vpack.c.b16 %v1325, %v1316
    %v1722 = vpack.c.b16 %v1326, %v1317
    %v1723 = vpack.c.b16 %v1327, %v1318
    %v1724 = vpack.c.b16 %v1328, %v1319
    %v1725 = vpack.c.b16 %v1338, %v1329
    %v1726 = vpack.c.b16 %v1339, %v1330
    %v1727 = vpack.c.b16 %v1340, %v1331
    %v1728 = vpack.c.b16 %v1341, %v1332
    %v1729 = vpack.c.b16 %v1342, %v1333
    %v1730 = vpack.c.b16 %v1343, %v1334
    %v1731 = vpack.c.b16 %v1344, %v1335
    %v1732 = vpack.c.b16 %v1345, %v1336
    %v1733 = vpack.c.b16 %v1346, %v1337
    %v1734 = vpack.c.b16 %v1356, %v1347
    %v1735 = vpack.c.b16 %v1357, %v1348
    %v1736 = vpack.c.b16 %v1358, %v1349
    %v1737 = vpack.c.b16 %v1359, %v1350
    %v1738 = vpack.c.b16 %v1360, %v1351
    %v1739 = vpack.c.b16 %v1361, %v1352
    %v1740 = vpack.c.b16 %v1362, %v1353
    %v1741 = vpack.c.b16 %v1363, %v1354
    %v1742 = vpack.c.b16 %v1364, %v1355
    %v1743 = vpack.c.b16 %v1374, %v1365
    %v1744 = vpack.c.b16 %v1375, %v1366
    %v1745 = vpack.c.b16 %v1376, %v1367
    %v1746 = vpack.c.b16 %v1377, %v1368
    %v1747 = vpack.c.b16 %v1378, %v1369
    %v1748 = vpack.c.b16 %v1379, %v1370
    %v1749 = vpack.c.b16 %v1380, %v1371
    %v1750 = vpack.c.b16 %v1381, %v1372
    %v1751 = vpack.c.b16 %v1382, %v1373
    %v1752 = vpack.c.b16 %v1392, %v1383
    %v1753 = vpack.c.b16 %v1393, %v1384
    %v1754 = vpack.c.b16 %v1394, %v1385
    %v1755 = vpack.c.b16 %v1395, %v1386
    %v1756 = vpack.c.b16 %v1396, %v1387
    %v1757 = vpack.c.b16 %v1397, %v1388
    %v1758 = vpack.c.b16 %v1398, %v1389
    %v1759 = vpack.c.b16 %v1399, %v1390
    %v1760 = vpack.c.b16 %v1400, %v1391
    %v1761 = vpack.c.b16 %v1410, %v1401
    %v1762 = vpack.c.b16 %v1411, %v1402
    %v1763 = vpack.c.b16 %v1412, %v1403
    %v1764 = vpack.c.b16 %v1413, %v1404
    %v1765 = vpack.c.b16 %v1414, %v1405
    %v1766 = vpack.c.b16 %v1415, %v1406
    %v1767 = vpack.c.b16 %v1416, %v1407
    %v1768 = vpack.c.b16 %v1417, %v1408
    %v1769 = vpack.c.b16 %v1418, %v1409
    %v1770 = vpack.c.b16 %v1428, %v1419
    %v1771 = vpack.c.b16 %v1429, %v1420
    %v1772 = vpack.c.b16 %v1430, %v1421
    %v1773 = vpack.c.b16 %v1431, %v1422
    %v1774 = vpack.c.b16 %v1432, %v1423
    %v1775 = vpack.c.b16 %v1433, %v1424
    %v1776 = vpack.c.b16 %v1434, %v1425
    %v1777 = vpack.c.b16 %v1435, %v1426
    %v1778 = vpack.c.b16 %v1436, %v1427
    %v1779 = vpack.c.b16 %v1446, %v1437
    %v1780 = vpack.c.b16 %v1447, %v1438
    %v1781 = vpack.c.b16 %v1448, %v1439
    %v1782 = vpack.c.b16 %v1449, %v1440
    %v1783 = vpack.c.b16 %v1450, %v1441
    %v1784 = vpack.c.b16 %v1451, %v1442
    %v1785 = vpack.c.b16 %v1452, %v1443
    %v1786 = vpack.c.b16 %v1453, %v1444
    %v1787 = vpack.c.b16 %v1454, %v1445
    %v1788 = vpack.c.b16 %v1464, %v1455
    %v1789 = vpack.c.b16 %v1465, %v1456
    %v1790 = vpack.c.b16 %v1466, %v1457
    %v1791 = vpack.c.b16 %v1467, %v1458
    %v1792 = vpack.c.b16 %v1468, %v1459
    %v1793 = vpack.c.b16 %v1469, %v1460
    %v1794 = vpack.c.b16 %v1470, %v1461
    %v1795 = vpack.c.b16 %v1471, %v1462
    %v1796 = vpack.c.b16 %v1472, %v1463
    %v1797 = vpack.c.b16 %v1482, %v1473
    %v1798 = vpack.c.b16 %v1483, %v1474
    %v1799 = vpack.c.b16 %v1484, %v1475
    %v1800 = vpack.c.b16 %v1485, %v1476
    %v1801 = vpack.c.b16 %v1486, %v1477
    %v1802 = vpack.c.b16 %v1487, %v1478
    %v1803 = vpack.c.b16 %v1488, %v1479
    %v1804 = vpack.c.b16 %v1489, %v1480
    %v1805 = vpack.c.b16 %v1490, %v1481
    %v1806 = vpack.c.b16 %v1500, %v1491
    %v1807 = vpack.c.b16 %v1501, %v1492
    %v1808 = vpack.c.b16 %v1502, %v1493
    %v1809 = vpack.c.b16 %v1503, %v1494
    %v1810 = vpack.c.b16 %v1504, %v1495
    %v1811 = vpack.c.b16 %v1505, %v1496
    %v1812 = vpack.c.b16 %v1506, %v1497
    %v1813 = vpack.c.b16 %v1507, %v1498
    %v1814 = vpack.c.b16 %v1508, %v1499
    %v1815 = vpack.c.b16 %v1518, %v1509
    %v1816 = vpack.c.b16 %v1519, %v1510
    %v1817 = vpack.c.b16 %v1520, %v1511
    %v1818 = vpack.c.b16 %v1521, %v1512
    %v1819 = vpack.c.b16 %v1522, %v1513
    %v1820 = vpack.c.b16 %v1523, %v1514
    %v1821 = vpack.c.b16 %v1524, %v1515
    %v1822 = vpack.c.b16 %v1525, %v1516
    %v1823 = vpack.c.b16 %v1526, %v1517
    %v1824 = vpack.c.b16 %v1536, %v1527
    %v1825 = vpack.c.b16 %v1537, %v1528
    %v1826 = vpack.c.b16 %v1538, %v1529
    %v1827 = vpack.c.b16 %v1539, %v1530
    %v1828 = vpack.c.b16 %v1540, %v1531
    %v1829 = vpack.c.b16 %v1541, %v1532
    %v1830 = vpack.c.b16 %v1542, %v1533
    %v1831 = vpack.c.b16 %v1543, %v1534
    %v1832 = vpack.c.b16 %v1544, %v1535
    %v1833 = vpack.c.b16 %v1554, %v1545
    %v1834 = vpack.c.b16 %v1555, %v1546
    %v1835 = vpack.c.b16 %v1556, %v1547
    %v1836 = vpack.c.b16 %v1557, %v1548
    %v1837 = vpack.c.b16 %v1558, %v1549
    %v1838 = vpack.c.b16 %v1559, %v1550
    %v1839 = vpack.c.b16 %v1560, %v1551
    %v1840 = vpack.c.b16 %v1561, %v1552
    %v1841 = vpack.c.b16 %v1562, %v1553
    %v1842 = vpack.c.b16 %v1572, %v1563
    %v1843 = vpack.c.b16 %v1573, %v1564
    %v1844 = vpack.c.b16 %v1574, %v1565
    %v1845 = vpack.c.b16 %v1575, %v1566
    %v1846 = vpack.c.b16 %v1576, %v1567
    %v1847 = vpack.c.b16 %v1577, %v1568
    %v1848 = vpack.c.b16 %v1578, %v1569
    %v1849 = vpack.c.b16 %v1579, %v1570
    %v1850 = vpack.c.b16 %v1580, %v1571
    %v1851 = vpack.c.b16 %v1590, %v1581
    %v1852 = vpack.c.b16 %v1591, %v1582
    %v1853 = vpack.c.b16 %v1592, %v1583
    %v1854 = vpack.c.b16 %v1593, %v1584
    %v1855 = vpack.c.b16 %v1594, %v1585
    %v1856 = vpack.c.b16 %v1595, %v1586
    %v1857 = vpack.c.b16 %v1596, %v1587
    %v1858 = vpack.c.b16 %v1597, %v1588
    %v1859 = vpack.c.b16 %v1598, %v1589
    %v1860 = vpack.c.b16 %v1608, %v1599
    %v1861 = vpack.c.b16 %v1609, %v1600
    %v1862 = vpack.c.b16 %v1610, %v1601
    %v1863 = vpack.c.b16 %v1611, %v1602
    %v1864 = vpack.c.b16 %v1612, %v1603
    %v1865 = vpack.c.b16 %v1613, %v1604
    %v1866 = vpack.c.b16 %v1614, %v1605
    %v1867 = vpack.c.b16 %v1615, %v1606
    %v1868 = vpack.c.b16 %v1616, %v1607
    %v2265 = vunpack.c.l.b16 %v685
    %v2266 = vunpack.c.l.b16 %v686
    %v2267 = vunpack.c.l.b16 %v687
    %v2268 = vunpack.c.l.b16 %v688
    %v2269 = vunpack.c.l.b16 %v689
    %v2270 = vunpack.c.l.b16 %v690
    %v2271 = vunpack.c.l.b16 %v691
    %v2272 = vunpack.c.l.b16 %v692
    %v2273 = vunpack.c.l.b16 %v693
    %v2274 = vunpack.c.l.b16 %v694
    %v2275 = vunpack.c.l.b16 %v695
    %v2276 = vunpack.c.l.b16 %v696
    %v2277 = vunpack.c.l.b16 %v697
    %v2278 = vunpack.c.l.b16 %v698
    %v2279 = vunpack.c.l.b16 %v699
    %v2280 = vunpack.c.l.b16 %v700
    %v2281 = vunpack.c.l.b16 %v701
    %v2282 = vunpack.c.l.b16 %v702
    %v2283 = vunpack.c.l.b16 %v703
    %v2284 = vunpack.c.l.b16 %v704
    %v2285 = vunpack.c.l.b16 %v705
    %v2286 = vunpack.c.l.b16 %v706
    %v2287 = vunpack.c.l.b16 %v707
    %v2288 = vunpack.c.l.b16 %v708
    %v2289 = vunpack.c.l.b16 %v709
    %v2290 = vunpack.c.l.b16 %v710
    %v2291 = vunpack.c.l.b16 %v711
    %v2292 = vunpack.c.l.b16 %v712
    %v2293 = vunpack.c.l.b16 %v713
    %v2294 = vunpack.c.l.b16 %v714
    %v2295 = vunpack.c.l.b16 %v715
    %v2296 = vunpack.c.l.b16 %v716
    %v2297 = vunpack.c.l.b16 %v717
    %v2298 = vunpack.c.l.b16 %v718
    %v2299 = vunpack.c.l.b16 %v719
    %v2300 = vunpack.c.l.b16 %v720
    %v2301 = vunpack.c.l.b16 %v721
    %v2302 = vunpack.c.l.b16 %v722
    %v2303 = vunpack.c.l.b16 %v723
    %v2304 = vunpack.c.l.b16 %v724
    %v2305 = vunpack.c.l.b16 %v725
    %v2306 = vunpack.c.l.b16 %v726
    %v2307 = vunpack.c.l.b16 %v727
    %v2308 = vunpack.c.l.b16 %v728
    %v2309 = vunpack.c.l.b16 %v729
    %v2310 = vunpack.c.l.b16 %v730
    %v2311 = vunpack.c.l.b16 %v731
    %v2312 = vunpack.c.l.b16 %v732
    %v2313 = vunpack.c.l.b16 %v733
    %v2314 = vunpack.c.l.b16 %v734
    %v2315 = vunpack.c.l.b16 %v735
    %v2316 = vunpack.c.l.b16 %v736
    %v2317 = vunpack.c.l.b16 %v737
    %v2318 = vunpack.c.l.b16 %v738
    %v2319 = vunpack.c.l.b16 %v739
    %v2320 = vunpack.c.l.b16 %v740
    %v2321 = vunpack.c.l.b16 %v741
    %v2322 = vunpack.c.l.b16 %v742
    %v2323 = vunpack.c.l.b16 %v743
    %v2324 = vunpack.c.l.b16 %v744
    %v2325 = vunpack.c.l.b16 %v745
    %v2326 = vunpack.c.l.b16 %v746
    %v2327 = vunpack.c.l.b16 %v747
    %v2328 = vunpack.c.l.b16 %v748
    %v2329 = vunpack.c.l.b16 %v749
    %v2330 = vunpack.c.l.b16 %v750
    %v2331 = vunpack.c.l.b16 %v751
    %v2332 = vunpack.c.l.b16 %v752
    %v2333 = vunpack.c.l.b16 %v753
    %v2334 = vunpack.c.l.b16 %v754
    %v2335 = vunpack.c.l.b16 %v755
    %v2336 = vunpack.c.l.b16 %v756
    %v2337 = vunpack.c.l.b16 %v757
    %v2338 = vunpack.c.l.b16 %v758
    %v2339 = vunpack.c.l.b16 %v759
    %v2340 = vunpack.c.l.b16 %v760
    %v2341 = vunpack.c.l.b16 %v761
    %v2342 = vunpack.c.l.b16 %v762
    %v2343 = vunpack.c.l.b16 %v763
    %v2344 = vunpack.c.l.b16 %v764
    %v2345 = vunpack.c.l.b16 %v765
    %v2346 = vunpack.c.l.b16 %v766
    %v2347 = vunpack.c.l.b16 %v767
    %v2348 = vunpack.c.l.b16 %v768
    %v2349 = vunpack.c.l.b16 %v769
    %v2350 = vunpack.c.l.b16 %v770
    %v2351 = vunpack.c.l.b16 %v771
    %v2352 = vunpack.c.l.b16 %v772
    %v2353 = vunpack.c.l.b16 %v773
    %v2354 = vunpack.c.l.b16 %v774
    %v2355 = vunpack.c.l.b16 %v775
    %v2356 = vunpack.c.l.b16 %v776
    %v2357 = vunpack.c.l.b16 %v777
    %v2358 = vunpack.c.l.b16 %v778
    %v2359 = vunpack.c.l.b16 %v779
    %v2360 = vunpack.c.l.b16 %v780
    %v2361 = vunpack.c.l.b16 %v781
    %v2362 = vunpack.c.l.b16 %v782
    %v2363 = vunpack.c.l.b16 %v783
    %v2364 = vunpack.c.l.b16 %v784
    %v2365 = vunpack.c.l.b16 %v785
    %v2366 = vunpack.c.l.b16 %v786
    %v2367 = vunpack.c.l.b16 %v787
    %v2368 = vunpack.c.l.b16 %v788
    %v2369 = vunpack.c.l.b16 %v789
    %v2370 = vunpack.c.l.b16 %v790
    %v2371 = vunpack.c.l.b16 %v791
    %v2372 = vunpack.c.l.b16 %v792
    %v2373 = vunpack.c.l.b16 %v793
    %v2374 = vunpack.c.l.b16 %v794
    %v2375 = vunpack.c.l.b16 %v795
    %v2376 = vunpack.c.l.b16 %v796
    %v2377 = vunpack.c.l.b16 %v797
    %v2378 = vunpack.c.l.b16 %v798
    %v2379 = vunpack.c.l.b16 %v799
    %v2380 = vunpack.c.l.b16 %v800
    %v2381 = vunpack.c.l.b16 %v801
    %v2382 = vunpack.c.l.b16 %v802
    %v2383 = vunpack.c.l.b16 %v803
    %v2384 = vunpack.c.l.b16 %v804
    %v2385 = vunpack.c.l.b16 %v805
    %v2386 = vunpack.c.l.b16 %v806
    %v2387 = vunpack.c.l.b16 %v807
    %v2388 = vunpack.c.l.b16 %v808
    %v2389 = vunpack.c.l.b16 %v809
    %v2390 = vunpack.c.l.b16 %v810
    %v2391 = vunpack.c.l.b16 %v811
    %v2392 = vunpack.c.l.b16 %v812
    %v2393 = vunpack.c.l.b16 %v813
    %v2394 = vunpack.c.l.b16 %v814
    %v2395 = vunpack.c.l.b16 %v815
    %v2396 = vunpack.c.l.b16 %v816
    %v2397 = vunpack.c.l.b16 %v817
    %v2398 = vunpack.c.l.b16 %v818
    %v2399 = vunpack.c.l.b16 %v819
    %v2400 = vunpack.c.l.b16 %v820
    %v2401 = vunpack.c.l.b16 %v821
    %v2402 = vunpack.c.l.b16 %v822
    %v2403 = vunpack.c.l.b16 %v823
    %v2404 = vunpack.c.l.b16 %v824
    %v2405 = vunpack.c.l.b16 %v825
    %v2406 = vunpack.c.l.b16 %v826
    %v2407 = vunpack.c.l.b16 %v827
    %v2408 = vunpack.c.l.b16 %v828
    %v2409 = vpack.c.b16 %v2266, %v2265
    %v2410 = vpack.c.b16 %v2268, %v2267
    %v2411 = vpack.c.b16 %v2270, %v2269
    %v2412 = vpack.c.b16 %v2272, %v2271
    %v2413 = vpack.c.b16 %v2274, %v2273
    %v2414 = vpack.c.b16 %v2276, %v2275
    %v2415 = vpack.c.b16 %v2278, %v2277
    %v2416 = vpack.c.b16 %v2280, %v2279
    %v2417 = vpack.c.b16 %v2282, %v2281
    %v2418 = vpack.c.b16 %v2284, %v2283
    %v2419 = vpack.c.b16 %v2286, %v2285
    %v2420 = vpack.c.b16 %v2288, %v2287
    %v2421 = vpack.c.b16 %v2290, %v2289
    %v2422 = vpack.c.b16 %v2292, %v2291
    %v2423 = vpack.c.b16 %v2294, %v2293
    %v2424 = vpack.c.b16 %v2296, %v2295
    %v2425 = vpack.c.b16 %v2298, %v2297
    %v2426 = vpack.c.b16 %v2300, %v2299
    %v2427 = vpack.c.b16 %v2302, %v2301
    %v2428 = vpack.c.b16 %v2304, %v2303
    %v2429 = vpack.c.b16 %v2306, %v2305
    %v2430 = vpack.c.b16 %v2308, %v2307
    %v2431 = vpack.c.b16 %v2310, %v2309
    %v2432 = vpack.c.b16 %v2312, %v2311
    %v2433 = vpack.c.b16 %v2314, %v2313
    %v2434 = vpack.c.b16 %v2316, %v2315
    %v2435 = vpack.c.b16 %v2318, %v2317
    %v2436 = vpack.c.b16 %v2320, %v2319
    %v2437 = vpack.c.b16 %v2322, %v2321
    %v2438 = vpack.c.b16 %v2324, %v2323
    %v2439 = vpack.c.b16 %v2326, %v2325
    %v2440 = vpack.c.b16 %v2328, %v2327
    %v2441 = vpack.c.b16 %v2330, %v2329
    %v2442 = vpack.c.b16 %v2332, %v2331
    %v2443 = vpack.c.b16 %v2334, %v2333
    %v2444 = vpack.c.b16 %v2336, %v2335
    %v2445 = vpack.c.b16 %v2338, %v2337
    %v2446 = vpack.c.b16 %v2340, %v2339
    %v2447 = vpack.c.b16 %v2342, %v2341
    %v2448 = vpack.c.b16 %v2344, %v2343
    %v2449 = vpack.c.b16 %v2346, %v2345
    %v2450 = vpack.c.b16 %v2348, %v2347
    %v2451 = vpack.c.b16 %v2350, %v2349
    %v2452 = vpack.c.b16 %v2352, %v2351
    %v2453 = vpack.c.b16 %v2354, %v2353
    %v2454 = vpack.c.b16 %v2356, %v2355
    %v2455 = vpack.c.b16 %v2358, %v2357
    %v2456 = vpack.c.b16 %v2360, %v2359
    %v2457 = vpack.c.b16 %v2362, %v2361
    %v2458 = vpack.c.b16 %v2364, %v2363
    %v2459 = vpack.c.b16 %v2366, %v2365
    %v2460 = vpack.c.b16 %v2368, %v2367
    %v2461 = vpack.c.b16 %v2370, %v2369
    %v2462 = vpack.c.b16 %v2372, %v2371
    %v2463 = vpack.c.b16 %v2374, %v2373
    %v2464 = vpack.c.b16 %v2376, %v2375
    %v2465 = vpack.c.b16 %v2378, %v2377
    %v2466 = vpack.c.b16 %v2380, %v2379
    %v2467 = vpack.c.b16 %v2382, %v2381
    %v2468 = vpack.c.b16 %v2384, %v2383
    %v2469 = vpack.c.b16 %v2386, %v2385
    %v2470 = vpack.c.b16 %v2388, %v2387
    %v2471 = vpack.c.b16 %v2390, %v2389
    %v2472 = vpack.c.b16 %v2392, %v2391
    %v2473 = vpack.c.b16 %v2394, %v2393
    %v2474 = vpack.c.b16 %v2396, %v2395
    %v2475 = vpack.c.b16 %v2398, %v2397
    %v2476 = vpack.c.b16 %v2400, %v2399
    %v2477 = vpack.c.b16 %v2402, %v2401
    %v2478 = vpack.c.b16 %v2404, %v2403
    %v2479 = vpack.c.b16 %v2406, %v2405
    %v2480 = vpack.c.b16 %v2408, %v2407
    %2553 = vmatprep.subr.bf16.mxu0 0
    %2554 = vmatpush1.bf16.msra.mxu0 %v2409
    %2555 = vmatprep.subr.bf16.mxu0 0
    %2556 = vmatpush1.bf16.msra.mxu0 %v2410
    %2557 = vmatprep.subr.bf16.mxu0 0
    %2558 = vmatpush1.bf16.msra.mxu0 %v2411
    %2559 = vmatprep.subr.bf16.mxu0 0
    %2560 = vmatpush1.bf16.msra.mxu0 %v2412
    %2561 = vmatprep.subr.bf16.mxu0 0
    %2562 = vmatpush1.bf16.msra.mxu0 %v2413
    %2563 = vmatprep.subr.bf16.mxu0 0
    %2564 = vmatpush1.bf16.msra.mxu0 %v2414
    %2565 = vmatprep.subr.bf16.mxu0 0
    %2566 = vmatpush1.bf16.msra.mxu0 %v2415
    %2567 = vmatprep.subr.bf16.mxu0 0
    %2568 = vmatpush1.bf16.msra.mxu0 %v2416
    %2569 = vmatprep.subr.bf16.mxu0 0
    %2570 = vmatpush1.bf16.msra.mxu0 %v2417
    %2571 = vmatprep.subr.bf16.mxu0 0
    %2572 = vmatpush1.bf16.msra.mxu0 %v2418
    %2573 = vmatprep.subr.bf16.mxu0 0
    %2574 = vmatpush1.bf16.msra.mxu0 %v2419
    %2575 = vmatprep.subr.bf16.mxu0 0
    %2576 = vmatpush1.bf16.msra.mxu0 %v2420
    %2577 = vmatprep.subr.bf16.mxu0 0
    %2578 = vmatpush1.bf16.msra.mxu0 %v2421
    %2579 = vmatprep.subr.bf16.mxu0 0
    %2580 = vmatpush1.bf16.msra.mxu0 %v2422
    %2581 = vmatprep.subr.bf16.mxu0 0
    %2582 = vmatpush1.bf16.msra.mxu0 %v2423
    %2583 = vmatprep.subr.bf16.mxu0 0
    %2584 = vmatpush1.bf16.msra.mxu0 %v2424
    %2585 = vmatprep.mubr.bf16.mxu0 %v1618
    %2586 = vmatmul.mubr.bf16.gmra.mrb[0].mxu0 %v1617
    %v2587 = vpop.f32.mrb[0].mxu0
    %v2588 = vadd.f32 %v832, %v2587
    %v2589 = vpop.f32.mrb[0].mxu0
    %v2590 = vpop.f32.mrb[0].mxu0
    %v2591 = vadd.f32 %v832, %v2590
    %v2592 = vpop.f32.mrb[0].mxu0
    %2593 = vmatprep.mubr.bf16.mxu0 %v1627
    %2594 = vmatmul.mubr.bf16.gmra.mrb[0].mxu0 %v1626
    %v2595 = vpop.f32.mrb[0].mxu0
    %v2596 = vadd.f32 %v832, %v2595
    %v2597 = vpop.f32.mrb[0].mxu0
    %v2598 = vpop.f32.mrb[0].mxu0
    %v2599 = vadd.f32 %v832, %v2598
    %v2600 = vpop.f32.mrb[0].mxu0
    %2601 = vmatprep.mubr.bf16.mxu0 %v1636
    %2602 = vmatmul.mubr.bf16.gmra.mrb[0].mxu0 %v1635
    %v2603 = vpop.f32.mrb[0].mxu0
    %v2604 = vadd.f32 %v832, %v2603
    %v2605 = vpop.f32.mrb[0].mxu0
    %v2606 = vpop.f32.mrb[0].mxu0
    %v2607 = vadd.f32 %v832, %v2606
    %v2608 = vpop.f32.mrb[0].mxu0
    %2609 = vmatprep.mubr.bf16.mxu0 %v1645
    %2610 = vmatmul.mubr.bf16.gmra.mrb[0].mxu0 %v1644
    %v2611 = vpop.f32.mrb[0].mxu0
    %v2612 = vadd.f32 %v832, %v2611
    %v2613 = vpop.f32.mrb[0].mxu0
    %v2614 = vpop.f32.mrb[0].mxu0
    %v2615 = vadd.f32 %v832, %v2614
    %v2616 = vpop.f32.mrb[0].mxu0
    %2617 = vmatprep.mubr.bf16.mxu0 %v1654
    %2618 = vmatmul.mubr.bf16.gmra.mrb[0].mxu0 %v1653
    %v2619 = vpop.f32.mrb[0].mxu0
    %v2620 = vadd.f32 %v832, %v2619
    %v2621 = vpop.f32.mrb[0].mxu0
    %v2622 = vpop.f32.mrb[0].mxu0
    %v2623 = vadd.f32 %v832, %v2622
    %v2624 = vpop.f32.mrb[0].mxu0
    %2625 = vmatprep.mubr.bf16.mxu0 %v1663
    %2626 = vmatmul.mubr.bf16.gmra.mrb[0].mxu0 %v1662
    %v2627 = vpop.f32.mrb[0].mxu0
    %v2628 = vadd.f32 %v832, %v2627
    %v2629 = vpop.f32.mrb[0].mxu0
    %v2630 = vpop.f32.mrb[0].mxu0
    %v2631 = vadd.f32 %v832, %v2630
    %v2632 = vpop.f32.mrb[0].mxu0
    %2633 = vmatprep.mubr.bf16.mxu0 %v1672
    %2634 = vmatmul.mubr.bf16.gmra.mrb[0].mxu0 %v1671
    %v2635 = vpop.f32.mrb[0].mxu0
    %v2636 = vadd.f32 %v832, %v2635
    %v2637 = vpop.f32.mrb[0].mxu0
    %v2638 = vpop.f32.mrb[0].mxu0
    %v2639 = vadd.f32 %v832, %v2638
    %v2640 = vpop.f32.mrb[0].mxu0
    %2641 = vmatprep.mubr.bf16.mxu0 %v1681
    %2642 = vmatmul.mubr.bf16.gmra.mrb[0].mxu0 %v1680
    %v2643 = vpop.f32.mrb[0].mxu0
    %v2644 = vadd.f32 %v832, %v2643
    %v2645 = vpop.f32.mrb[0].mxu0
    %v2646 = vpop.f32.mrb[0].mxu0
    %v2647 = vadd.f32 %v832, %v2646
    %v2648 = vpop.f32.mrb[0].mxu0
    %2649 = vmatprep.mubr.bf16.mxu0 %v1690
    %2650 = vmatmul.mubr.bf16.gmra.mrb[0].mxu0 %v1689
    %v2651 = vpop.f32.mrb[0].mxu0
    %v2652 = vadd.f32 %v832, %v2651
    %v2653 = vpop.f32.mrb[0].mxu0
    %v2654 = vpop.f32.mrb[0].mxu0
    %v2655 = vadd.f32 %v832, %v2654
    %v2656 = vpop.f32.mrb[0].mxu0
    %2657 = vmatprep.mubr.bf16.mxu0 %v1699
    %2658 = vmatmul.mubr.bf16.gmra.mrb[0].mxu0 %v1698
    %v2659 = vpop.f32.mrb[0].mxu0
    %v2660 = vadd.f32 %v832, %v2659
    %v2661 = vpop.f32.mrb[0].mxu0
    %v2662 = vpop.f32.mrb[0].mxu0
    %v2663 = vadd.f32 %v832, %v2662
    %v2664 = vpop.f32.mrb[0].mxu0
    %2665 = vmatprep.mubr.bf16.mxu0 %v1708
    %2666 = vmatmul.mubr.bf16.gmra.mrb[0].mxu0 %v1707
    %v2667 = vpop.f32.mrb[0].mxu0
    %v2668 = vadd.f32 %v832, %v2667
    %v2669 = vpop.f32.mrb[0].mxu0
    %v2670 = vpop.f32.mrb[0].mxu0
    %v2671 = vadd.f32 %v832, %v2670
    %v2672 = vpop.f32.mrb[0].mxu0
    %2673 = vmatprep.mubr.bf16.mxu0 %v1717
    %2674 = vmatmul.mubr.bf16.gmra.mrb[0].mxu0 %v1716
    %v2675 = vpop.f32.mrb[0].mxu0
    %v2676 = vadd.f32 %v832, %v2675
    %v2677 = vpop.f32.mrb[0].mxu0
    %v2678 = vpop.f32.mrb[0].mxu0
    %v2679 = vadd.f32 %v832, %v2678
    %v2680 = vpop.f32.mrb[0].mxu0
    %2681 = vmatprep.mubr.bf16.mxu0 %v1726
    %2682 = vmatmul.mubr.bf16.gmra.mrb[0].mxu0 %v1725
    %v2683 = vpop.f32.mrb[0].mxu0
    %v2684 = vadd.f32 %v832, %v2683
    %v2685 = vpop.f32.mrb[0].mxu0
    %v2686 = vpop.f32.mrb[0].mxu0
    %v2687 = vadd.f32 %v832, %v2686
    %v2688 = vpop.f32.mrb[0].mxu0
    %2689 = vmatprep.mubr.bf16.mxu0 %v1735
    %2690 = vmatmul.mubr.bf16.gmra.mrb[0].mxu0 %v1734
    %v2691 = vpop.f32.mrb[0].mxu0
    %v2692 = vadd.f32 %v832, %v2691
    %v2693 = vpop.f32.mrb[0].mxu0
    %v2694 = vpop.f32.mrb[0].mxu0
    %v2695 = vadd.f32 %v832, %v2694
    %v2696 = vpop.f32.mrb[0].mxu0
    %2697 = vmatprep.mubr.bf16.mxu0 %v1744
    %2698 = vmatmul.mubr.bf16.gmra.mrb[0].mxu0 %v1743
    %v2699 = vpop.f32.mrb[0].mxu0
    %v2700 = vadd.f32 %v832, %v2699
    %v2701 = vpop.f32.mrb[0].mxu0
    %v2702 = vpop.f32.mrb[0].mxu0
    %v2703 = vadd.f32 %v832, %v2702
    %v2704 = vpop.f32.mrb[0].mxu0
    %2705 = vmatprep.mubr.bf16.mxu0 %v1753
    %2706 = vmatmul.mubr.bf16.gmra.mrb[0].mxu0 %v1752
    %v2707 = vpop.f32.mrb[0].mxu0
    %v2708 = vadd.f32 %v832, %v2707
    %v2709 = vpop.f32.mrb[0].mxu0
    %v2710 = vpop.f32.mrb[0].mxu0
    %v2711 = vadd.f32 %v832, %v2710
    %v2712 = vpop.f32.mrb[0].mxu0
    %2713 = vmatprep.mubr.bf16.mxu0 %v1762
    %2714 = vmatmul.mubr.bf16.gmra.mrb[0].mxu0 %v1761
    %v2715 = vpop.f32.mrb[0].mxu0
    %v2716 = vadd.f32 %v832, %v2715
    %v2717 = vpop.f32.mrb[0].mxu0
    %v2718 = vpop.f32.mrb[0].mxu0
    %v2719 = vadd.f32 %v832, %v2718
    %v2720 = vpop.f32.mrb[0].mxu0
    %2721 = vmatprep.mubr.bf16.mxu0 %v1771
    %2722 = vmatmul.mubr.bf16.gmra.mrb[0].mxu0 %v1770
    %v2723 = vpop.f32.mrb[0].mxu0
    %v2724 = vadd.f32 %v832, %v2723
    %v2725 = vpop.f32.mrb[0].mxu0
    %v2726 = vpop.f32.mrb[0].mxu0
    %v2727 = vadd.f32 %v832, %v2726
    %v2728 = vpop.f32.mrb[0].mxu0
    %2729 = vmatprep.mubr.bf16.mxu0 %v1780
    %2730 = vmatmul.mubr.bf16.gmra.mrb[0].mxu0 %v1779
    %v2731 = vpop.f32.mrb[0].mxu0
    %v2732 = vadd.f32 %v832, %v2731
    %v2733 = vpop.f32.mrb[0].mxu0
    %v2734 = vpop.f32.mrb[0].mxu0
    %v2735 = vadd.f32 %v832, %v2734
    %v2736 = vpop.f32.mrb[0].mxu0
    %2737 = vmatprep.mubr.bf16.mxu0 %v1789
    %2738 = vmatmul.mubr.bf16.gmra.mrb[0].mxu0 %v1788
    %v2739 = vpop.f32.mrb[0].mxu0
    %v2740 = vadd.f32 %v832, %v2739
    %v2741 = vpop.f32.mrb[0].mxu0
    %v2742 = vpop.f32.mrb[0].mxu0
    %v2743 = vadd.f32 %v832, %v2742
    %v2744 = vpop.f32.mrb[0].mxu0
    %2745 = vmatprep.mubr.bf16.mxu0 %v1798
    %2746 = vmatmul.mubr.bf16.gmra.mrb[0].mxu0 %v1797
    %v2747 = vpop.f32.mrb[0].mxu0
    %v2748 = vadd.f32 %v832, %v2747
    %v2749 = vpop.f32.mrb[0].mxu0
    %v2750 = vpop.f32.mrb[0].mxu0
    %v2751 = vadd.f32 %v832, %v2750
    %v2752 = vpop.f32.mrb[0].mxu0
    %2753 = vmatprep.mubr.bf16.mxu0 %v1807
    %2754 = vmatmul.mubr.bf16.gmra.mrb[0].mxu0 %v1806
    %v2755 = vpop.f32.mrb[0].mxu0
    %v2756 = vadd.f32 %v832, %v2755
    %v2757 = vpop.f32.mrb[0].mxu0
    %v2758 = vpop.f32.mrb[0].mxu0
    %v2759 = vadd.f32 %v832, %v2758
    %v2760 = vpop.f32.mrb[0].mxu0
    %2761 = vmatprep.mubr.bf16.mxu0 %v1816
    %2762 = vmatmul.mubr.bf16.gmra.mrb[0].mxu0 %v1815
    %v2763 = vpop.f32.mrb[0].mxu0
    %v2764 = vadd.f32 %v832, %v2763
    %v2765 = vpop.f32.mrb[0].mxu0
    %v2766 = vpop.f32.mrb[0].mxu0
    %v2767 = vadd.f32 %v832, %v2766
    %v2768 = vpop.f32.mrb[0].mxu0
    %2769 = vmatprep.mubr.bf16.mxu0 %v1825
    %2770 = vmatmul.mubr.bf16.gmra.mrb[0].mxu0 %v1824
    %v2771 = vpop.f32.mrb[0].mxu0
    %v2772 = vadd.f32 %v832, %v2771
    %v2773 = vpop.f32.mrb[0].mxu0
    %v2774 = vpop.f32.mrb[0].mxu0
    %v2775 = vadd.f32 %v832, %v2774
    %v2776 = vpop.f32.mrb[0].mxu0
    %2777 = vmatprep.mubr.bf16.mxu0 %v1834
    %2778 = vmatmul.mubr.bf16.gmra.mrb[0].mxu0 %v1833
    %v2779 = vpop.f32.mrb[0].mxu0
    %v2780 = vadd.f32 %v832, %v2779
    %v2781 = vpop.f32.mrb[0].mxu0
    %v2782 = vpop.f32.mrb[0].mxu0
    %v2783 = vadd.f32 %v832, %v2782
    %v2784 = vpop.f32.mrb[0].mxu0
    %2785 = vmatprep.mubr.bf16.mxu0 %v1843
    %2786 = vmatmul.mubr.bf16.gmra.mrb[0].mxu0 %v1842
    %v2787 = vpop.f32.mrb[0].mxu0
    %v2788 = vadd.f32 %v832, %v2787
    %v2789 = vpop.f32.mrb[0].mxu0
    %v2790 = vpop.f32.mrb[0].mxu0
    %v2791 = vadd.f32 %v832, %v2790
    %v2792 = vpop.f32.mrb[0].mxu0
    %2793 = vmatprep.mubr.bf16.mxu0 %v1852
    %2794 = vmatmul.mubr.bf16.gmra.mrb[0].mxu0 %v1851
    %v2795 = vpop.f32.mrb[0].mxu0
    %v2796 = vadd.f32 %v832, %v2795
    %v2797 = vpop.f32.mrb[0].mxu0
    %v2798 = vpop.f32.mrb[0].mxu0
    %v2799 = vadd.f32 %v832, %v2798
    %v2800 = vpop.f32.mrb[0].mxu0
    %2801 = vmatprep.mubr.bf16.mxu0 %v1861
    %2802 = vmatmul.mubr.bf16.gmra.mrb[0].mxu0 %v1860
    %v2803 = vpop.f32.mrb[0].mxu0
    %v2804 = vadd.f32 %v832, %v2803
    %v2805 = vpop.f32.mrb[0].mxu0
    %v2806 = vpop.f32.mrb[0].mxu0
    %v2807 = vadd.f32 %v832, %v2806
    %v2808 = vpop.f32.mrb[0].mxu0
    %2809 = vdwg.mxu0
    %2810 = vmatprep.subr.bf16.mxu0 0
    %2811 = vmatpush1.bf16.msra.mxu0 %v2425
    %2812 = vmatprep.subr.bf16.mxu0 0
    %2813 = vmatpush1.bf16.msra.mxu0 %v2426
    %2814 = vmatprep.subr.bf16.mxu0 0
    %2815 = vmatpush1.bf16.msra.mxu0 %v2427
    %2816 = vmatprep.subr.bf16.mxu0 0
    %2817 = vmatpush1.bf16.msra.mxu0 %v2428
    %2818 = vmatprep.subr.bf16.mxu0 0
    %2819 = vmatpush1.bf16.msra.mxu0 %v2429
    %2820 = vmatprep.subr.bf16.mxu0 0
    %2821 = vmatpush1.bf16.msra.mxu0 %v2430
    %2822 = vmatprep.subr.bf16.mxu0 0
    %2823 = vmatpush1.bf16.msra.mxu0 %v2431
    %2824 = vmatprep.subr.bf16.mxu0 0
    %2825 = vmatpush1.bf16.msra.mxu0 %v2432
    %2826 = vmatprep.subr.bf16.mxu0 0
    %2827 = vmatpush1.bf16.msra.mxu0 %v2433
    %2828 = vmatprep.subr.bf16.mxu0 0
    %2829 = vmatpush1.bf16.msra.mxu0 %v2434
    %2830 = vmatprep.subr.bf16.mxu0 0
    %2831 = vmatpush1.bf16.msra.mxu0 %v2435
    %2832 = vmatprep.subr.bf16.mxu0 0
    %2833 = vmatpush1.bf16.msra.mxu0 %v2436
    %2834 = vmatprep.subr.bf16.mxu0 0
    %2835 = vmatpush1.bf16.msra.mxu0 %v2437
    %2836 = vmatprep.subr.bf16.mxu0 0
    %2837 = vmatpush1.bf16.msra.mxu0 %v2438
    %2838 = vmatprep.subr.bf16.mxu0 0
    %2839 = vmatpush1.bf16.msra.mxu0 %v2439
    %2840 = vmatprep.subr.bf16.mxu0 0
    %2841 = vmatpush1.bf16.msra.mxu0 %v2440
    %2842 = vmatprep.mubr.bf16.mxu0 %v1620
    %2843 = vmatmul.mubr.bf16.gmra.mrb[0].mxu0 %v1619
    %v2844 = vpop.f32.mrb[0].mxu0
    %v2845 = vadd.f32 %v2588, %v2844
    %v2846 = vpop.f32.mrb[0].mxu0
    %v2847 = vpop.f32.mrb[0].mxu0
    %v2848 = vadd.f32 %v2591, %v2847
    %v2849 = vpop.f32.mrb[0].mxu0
    %2850 = vmatprep.mubr.bf16.mxu0 %v1629
    %2851 = vmatmul.mubr.bf16.gmra.mrb[0].mxu0 %v1628
    %v2852 = vpop.f32.mrb[0].mxu0
    %v2853 = vadd.f32 %v2596, %v2852
    %v2854 = vpop.f32.mrb[0].mxu0
    %v2855 = vpop.f32.mrb[0].mxu0
    %v2856 = vadd.f32 %v2599, %v2855
    %v2857 = vpop.f32.mrb[0].mxu0
    %2858 = vmatprep.mubr.bf16.mxu0 %v1638
    %2859 = vmatmul.mubr.bf16.gmra.mrb[0].mxu0 %v1637
    %v2860 = vpop.f32.mrb[0].mxu0
    %v2861 = vadd.f32 %v2604, %v2860
    %v2862 = vpop.f32.mrb[0].mxu0
    %v2863 = vpop.f32.mrb[0].mxu0
    %v2864 = vadd.f32 %v2607, %v2863
    %v2865 = vpop.f32.mrb[0].mxu0
    %2866 = vmatprep.mubr.bf16.mxu0 %v1647
    %2867 = vmatmul.mubr.bf16.gmra.mrb[0].mxu0 %v1646
    %v2868 = vpop.f32.mrb[0].mxu0
    %v2869 = vadd.f32 %v2612, %v2868
    %v2870 = vpop.f32.mrb[0].mxu0
    %v2871 = vpop.f32.mrb[0].mxu0
    %v2872 = vadd.f32 %v2615, %v2871
    %v2873 = vpop.f32.mrb[0].mxu0
    %2874 = vmatprep.mubr.bf16.mxu0 %v1656
    %2875 = vmatmul.mubr.bf16.gmra.mrb[0].mxu0 %v1655
    %v2876 = vpop.f32.mrb[0].mxu0
    %v2877 = vadd.f32 %v2620, %v2876
    %v2878 = vpop.f32.mrb[0].mxu0
    %v2879 = vpop.f32.mrb[0].mxu0
    %v2880 = vadd.f32 %v2623, %v2879
    %v2881 = vpop.f32.mrb[0].mxu0
    %2882 = vmatprep.mubr.bf16.mxu0 %v1665
    %2883 = vmatmul.mubr.bf16.gmra.mrb[0].mxu0 %v1664
    %v2884 = vpop.f32.mrb[0].mxu0
    %v2885 = vadd.f32 %v2628, %v2884
    %v2886 = vpop.f32.mrb[0].mxu0
    %v2887 = vpop.f32.mrb[0].mxu0
    %v2888 = vadd.f32 %v2631, %v2887
    %v2889 = vpop.f32.mrb[0].mxu0
    %2890 = vmatprep.mubr.bf16.mxu0 %v1674
    %2891 = vmatmul.mubr.bf16.gmra.mrb[0].mxu0 %v1673
    %v2892 = vpop.f32.mrb[0].mxu0
    %v2893 = vadd.f32 %v2636, %v2892
    %v2894 = vpop.f32.mrb[0].mxu0
    %v2895 = vpop.f32.mrb[0].mxu0
    %v2896 = vadd.f32 %v2639, %v2895
    %v2897 = vpop.f32.mrb[0].mxu0
    %2898 = vmatprep.mubr.bf16.mxu0 %v1683
    %2899 = vmatmul.mubr.bf16.gmra.mrb[0].mxu0 %v1682
    %v2900 = vpop.f32.mrb[0].mxu0
    %v2901 = vadd.f32 %v2644, %v2900
    %v2902 = vpop.f32.mrb[0].mxu0
    %v2903 = vpop.f32.mrb[0].mxu0
    %v2904 = vadd.f32 %v2647, %v2903
    %v2905 = vpop.f32.mrb[0].mxu0
    %2906 = vmatprep.mubr.bf16.mxu0 %v1692
    %2907 = vmatmul.mubr.bf16.gmra.mrb[0].mxu0 %v1691
    %v2908 = vpop.f32.mrb[0].mxu0
    %v2909 = vadd.f32 %v2652, %v2908
    %v2910 = vpop.f32.mrb[0].mxu0
    %v2911 = vpop.f32.mrb[0].mxu0
    %v2912 = vadd.f32 %v2655, %v2911
    %v2913 = vpop.f32.mrb[0].mxu0
    %2914 = vmatprep.mubr.bf16.mxu0 %v1701
    %2915 = vmatmul.mubr.bf16.gmra.mrb[0].mxu0 %v1700
    %v2916 = vpop.f32.mrb[0].mxu0
    %v2917 = vadd.f32 %v2660, %v2916
    %v2918 = vpop.f32.mrb[0].mxu0
    %v2919 = vpop.f32.mrb[0].mxu0
    %v2920 = vadd.f32 %v2663, %v2919
    %v2921 = vpop.f32.mrb[0].mxu0
    %2922 = vmatprep.mubr.bf16.mxu0 %v1710
    %2923 = vmatmul.mubr.bf16.gmra.mrb[0].mxu0 %v1709
    %v2924 = vpop.f32.mrb[0].mxu0
    %v2925 = vadd.f32 %v2668, %v2924
    %v2926 = vpop.f32.mrb[0].mxu0
    %v2927 = vpop.f32.mrb[0].mxu0
    %v2928 = vadd.f32 %v2671, %v2927
    %v2929 = vpop.f32.mrb[0].mxu0
    %2930 = vmatprep.mubr.bf16.mxu0 %v1719
    %2931 = vmatmul.mubr.bf16.gmra.mrb[0].mxu0 %v1718
    %v2932 = vpop.f32.mrb[0].mxu0
    %v2933 = vadd.f32 %v2676, %v2932
    %v2934 = vpop.f32.mrb[0].mxu0
    %v2935 = vpop.f32.mrb[0].mxu0
    %v2936 = vadd.f32 %v2679, %v2935
    %v2937 = vpop.f32.mrb[0].mxu0
    %2938 = vmatprep.mubr.bf16.mxu0 %v1728
    %2939 = vmatmul.mubr.bf16.gmra.mrb[0].mxu0 %v1727
    %v2940 = vpop.f32.mrb[0].mxu0
    %v2941 = vadd.f32 %v2684, %v2940
    %v2942 = vpop.f32.mrb[0].mxu0
    %v2943 = vpop.f32.mrb[0].mxu0
    %v2944 = vadd.f32 %v2687, %v2943
    %v2945 = vpop.f32.mrb[0].mxu0
    %2946 = vmatprep.mubr.bf16.mxu0 %v1737
    %2947 = vmatmul.mubr.bf16.gmra.mrb[0].mxu0 %v1736
    %v2948 = vpop.f32.mrb[0].mxu0
    %v2949 = vadd.f32 %v2692, %v2948
    %v2950 = vpop.f32.mrb[0].mxu0
    %v2951 = vpop.f32.mrb[0].mxu0
    %v2952 = vadd.f32 %v2695, %v2951
    %v2953 = vpop.f32.mrb[0].mxu0
    %2954 = vmatprep.mubr.bf16.mxu0 %v1746
    %2955 = vmatmul.mubr.bf16.gmra.mrb[0].mxu0 %v1745
    %v2956 = vpop.f32.mrb[0].mxu0
    %v2957 = vadd.f32 %v2700, %v2956
    %v2958 = vpop.f32.mrb[0].mxu0
    %v2959 = vpop.f32.mrb[0].mxu0
    %v2960 = vadd.f32 %v2703, %v2959
    %v2961 = vpop.f32.mrb[0].mxu0
    %2962 = vmatprep.mubr.bf16.mxu0 %v1755
    %2963 = vmatmul.mubr.bf16.gmra.mrb[0].mxu0 %v1754
    %v2964 = vpop.f32.mrb[0].mxu0
    %v2965 = vadd.f32 %v2708, %v2964
    %v2966 = vpop.f32.mrb[0].mxu0
    %v2967 = vpop.f32.mrb[0].mxu0
    %v2968 = vadd.f32 %v2711, %v2967
    %v2969 = vpop.f32.mrb[0].mxu0
    %2970 = vmatprep.mubr.bf16.mxu0 %v1764
    %2971 = vmatmul.mubr.bf16.gmra.mrb[0].mxu0 %v1763
    %v2972 = vpop.f32.mrb[0].mxu0
    %v2973 = vadd.f32 %v2716, %v2972
    %v2974 = vpop.f32.mrb[0].mxu0
    %v2975 = vpop.f32.mrb[0].mxu0
    %v2976 = vadd.f32 %v2719, %v2975
    %v2977 = vpop.f32.mrb[0].mxu0
    %2978 = vmatprep.mubr.bf16.mxu0 %v1773
    %2979 = vmatmul.mubr.bf16.gmra.mrb[0].mxu0 %v1772
    %v2980 = vpop.f32.mrb[0].mxu0
    %v2981 = vadd.f32 %v2724, %v2980
    %v2982 = vpop.f32.mrb[0].mxu0
    %v2983 = vpop.f32.mrb[0].mxu0
    %v2984 = vadd.f32 %v2727, %v2983
    %v2985 = vpop.f32.mrb[0].mxu0
    %2986 = vmatprep.mubr.bf16.mxu0 %v1782
    %2987 = vmatmul.mubr.bf16.gmra.mrb[0].mxu0 %v1781
    %v2988 = vpop.f32.mrb[0].mxu0
    %v2989 = vadd.f32 %v2732, %v2988
    %v2990 = vpop.f32.mrb[0].mxu0
    %v2991 = vpop.f32.mrb[0].mxu0
    %v2992 = vadd.f32 %v2735, %v2991
    %v2993 = vpop.f32.mrb[0].mxu0
    %2994 = vmatprep.mubr.bf16.mxu0 %v1791
    %2995 = vmatmul.mubr.bf16.gmra.mrb[0].mxu0 %v1790
    %v2996 = vpop.f32.mrb[0].mxu0
    %v2997 = vadd.f32 %v2740, %v2996
    %v2998 = vpop.f32.mrb[0].mxu0
    %v2999 = vpop.f32.mrb[0].mxu0
    %v3000 = vadd.f32 %v2743, %v2999
    %v3001 = vpop.f32.mrb[0].mxu0
    %3002 = vmatprep.mubr.bf16.mxu0 %v1800
    %3003 = vmatmul.mubr.bf16.gmra.mrb[0].mxu0 %v1799
    %v3004 = vpop.f32.mrb[0].mxu0
    %v3005 = vadd.f32 %v2748, %v3004
    %v3006 = vpop.f32.mrb[0].mxu0
    %v3007 = vpop.f32.mrb[0].mxu0
    %v3008 = vadd.f32 %v2751, %v3007
    %v3009 = vpop.f32.mrb[0].mxu0
    %3010 = vmatprep.mubr.bf16.mxu0 %v1809
    %3011 = vmatmul.mubr.bf16.gmra.mrb[0].mxu0 %v1808
    %v3012 = vpop.f32.mrb[0].mxu0
    %v3013 = vadd.f32 %v2756, %v3012
    %v3014 = vpop.f32.mrb[0].mxu0
    %v3015 = vpop.f32.mrb[0].mxu0
    %v3016 = vadd.f32 %v2759, %v3015
    %v3017 = vpop.f32.mrb[0].mxu0
    %3018 = vmatprep.mubr.bf16.mxu0 %v1818
    %3019 = vmatmul.mubr.bf16.gmra.mrb[0].mxu0 %v1817
    %v3020 = vpop.f32.mrb[0].mxu0
    %v3021 = vadd.f32 %v2764, %v3020
    %v3022 = vpop.f32.mrb[0].mxu0
    %v3023 = vpop.f32.mrb[0].mxu0
    %v3024 = vadd.f32 %v2767, %v3023
    %v3025 = vpop.f32.mrb[0].mxu0
    %3026 = vmatprep.mubr.bf16.mxu0 %v1827
    %3027 = vmatmul.mubr.bf16.gmra.mrb[0].mxu0 %v1826
    %v3028 = vpop.f32.mrb[0].mxu0
    %v3029 = vadd.f32 %v2772, %v3028
    %v3030 = vpop.f32.mrb[0].mxu0
    %v3031 = vpop.f32.mrb[0].mxu0
    %v3032 = vadd.f32 %v2775, %v3031
    %v3033 = vpop.f32.mrb[0].mxu0
    %3034 = vmatprep.mubr.bf16.mxu0 %v1836
    %3035 = vmatmul.mubr.bf16.gmra.mrb[0].mxu0 %v1835
    %v3036 = vpop.f32.mrb[0].mxu0
    %v3037 = vadd.f32 %v2780, %v3036
    %v3038 = vpop.f32.mrb[0].mxu0
    %v3039 = vpop.f32.mrb[0].mxu0
    %v3040 = vadd.f32 %v2783, %v3039
    %v3041 = vpop.f32.mrb[0].mxu0
    %3042 = vmatprep.mubr.bf16.mxu0 %v1845
    %3043 = vmatmul.mubr.bf16.gmra.mrb[0].mxu0 %v1844
    %v3044 = vpop.f32.mrb[0].mxu0
    %v3045 = vadd.f32 %v2788, %v3044
    %v3046 = vpop.f32.mrb[0].mxu0
    %v3047 = vpop.f32.mrb[0].mxu0
    %v3048 = vadd.f32 %v2791, %v3047
    %v3049 = vpop.f32.mrb[0].mxu0
    %3050 = vmatprep.mubr.bf16.mxu0 %v1854
    %3051 = vmatmul.mubr.bf16.gmra.mrb[0].mxu0 %v1853
    %v3052 = vpop.f32.mrb[0].mxu0
    %v3053 = vadd.f32 %v2796, %v3052
    %v3054 = vpop.f32.mrb[0].mxu0
    %v3055 = vpop.f32.mrb[0].mxu0
    %v3056 = vadd.f32 %v2799, %v3055
    %v3057 = vpop.f32.mrb[0].mxu0
    %3058 = vmatprep.mubr.bf16.mxu0 %v1863
    %3059 = vmatmul.mubr.bf16.gmra.mrb[0].mxu0 %v1862
    %v3060 = vpop.f32.mrb[0].mxu0
    %v3061 = vadd.f32 %v2804, %v3060
    %v3062 = vpop.f32.mrb[0].mxu0
    %v3063 = vpop.f32.mrb[0].mxu0
    %v3064 = vadd.f32 %v2807, %v3063
    %v3065 = vpop.f32.mrb[0].mxu0
    %3066 = vdwg.mxu0
    %3067 = vmatprep.subr.bf16.mxu0 0
    %3068 = vmatpush1.bf16.msra.mxu0 %v2441
    %3069 = vmatprep.subr.bf16.mxu0 0
    %3070 = vmatpush1.bf16.msra.mxu0 %v2442
    %3071 = vmatprep.subr.bf16.mxu0 0
    %3072 = vmatpush1.bf16.msra.mxu0 %v2443
    %3073 = vmatprep.subr.bf16.mxu0 0
    %3074 = vmatpush1.bf16.msra.mxu0 %v2444
    %3075 = vmatprep.subr.bf16.mxu0 0
    %3076 = vmatpush1.bf16.msra.mxu0 %v2445
    %3077 = vmatprep.subr.bf16.mxu0 0
    %3078 = vmatpush1.bf16.msra.mxu0 %v2446
    %3079 = vmatprep.subr.bf16.mxu0 0
    %3080 = vmatpush1.bf16.msra.mxu0 %v2447
    %3081 = vmatprep.subr.bf16.mxu0 0
    %3082 = vmatpush1.bf16.msra.mxu0 %v2448
    %3083 = vmatprep.subr.bf16.mxu0 0
    %3084 = vmatpush1.bf16.msra.mxu0 %v2449
    %3085 = vmatprep.subr.bf16.mxu0 0
    %3086 = vmatpush1.bf16.msra.mxu0 %v2450
    %3087 = vmatprep.subr.bf16.mxu0 0
    %3088 = vmatpush1.bf16.msra.mxu0 %v2451
    %3089 = vmatprep.subr.bf16.mxu0 0
    %3090 = vmatpush1.bf16.msra.mxu0 %v2452
    %3091 = vmatprep.subr.bf16.mxu0 0
    %3092 = vmatpush1.bf16.msra.mxu0 %v2453
    %3093 = vmatprep.subr.bf16.mxu0 0
    %3094 = vmatpush1.bf16.msra.mxu0 %v2454
    %3095 = vmatprep.subr.bf16.mxu0 0
    %3096 = vmatpush1.bf16.msra.mxu0 %v2455
    %3097 = vmatprep.subr.bf16.mxu0 0
    %3098 = vmatpush1.bf16.msra.mxu0 %v2456
    %3099 = vmatprep.mubr.bf16.mxu0 %v1622
    %3100 = vmatmul.mubr.bf16.gmra.mrb[0].mxu0 %v1621
    %v3101 = vpop.f32.mrb[0].mxu0
    %v3102 = vadd.f32 %v2845, %v3101
    %v3103 = vpop.f32.mrb[0].mxu0
    %v3104 = vpop.f32.mrb[0].mxu0
    %v3105 = vadd.f32 %v2848, %v3104
    %v3106 = vpop.f32.mrb[0].mxu0
    %3107 = vmatprep.mubr.bf16.mxu0 %v1631
    %3108 = vmatmul.mubr.bf16.gmra.mrb[0].mxu0 %v1630
    %v3109 = vpop.f32.mrb[0].mxu0
    %v3110 = vadd.f32 %v2853, %v3109
    %v3111 = vpop.f32.mrb[0].mxu0
    %v3112 = vpop.f32.mrb[0].mxu0
    %v3113 = vadd.f32 %v2856, %v3112
    %v3114 = vpop.f32.mrb[0].mxu0
    %3115 = vmatprep.mubr.bf16.mxu0 %v1640
    %3116 = vmatmul.mubr.bf16.gmra.mrb[0].mxu0 %v1639
    %v3117 = vpop.f32.mrb[0].mxu0
    %v3118 = vadd.f32 %v2861, %v3117
    %v3119 = vpop.f32.mrb[0].mxu0
    %v3120 = vpop.f32.mrb[0].mxu0
    %v3121 = vadd.f32 %v2864, %v3120
    %v3122 = vpop.f32.mrb[0].mxu0
    %3123 = vmatprep.mubr.bf16.mxu0 %v1649
    %3124 = vmatmul.mubr.bf16.gmra.mrb[0].mxu0 %v1648
    %v3125 = vpop.f32.mrb[0].mxu0
    %v3126 = vadd.f32 %v2869, %v3125
    %v3127 = vpop.f32.mrb[0].mxu0
    %v3128 = vpop.f32.mrb[0].mxu0
    %v3129 = vadd.f32 %v2872, %v3128
    %v3130 = vpop.f32.mrb[0].mxu0
    %3131 = vmatprep.mubr.bf16.mxu0 %v1658
    %3132 = vmatmul.mubr.bf16.gmra.mrb[0].mxu0 %v1657
    %v3133 = vpop.f32.mrb[0].mxu0
    %v3134 = vadd.f32 %v2877, %v3133
    %v3135 = vpop.f32.mrb[0].mxu0
    %v3136 = vpop.f32.mrb[0].mxu0
    %v3137 = vadd.f32 %v2880, %v3136
    %v3138 = vpop.f32.mrb[0].mxu0
    %3139 = vmatprep.mubr.bf16.mxu0 %v1667
    %3140 = vmatmul.mubr.bf16.gmra.mrb[0].mxu0 %v1666
    %v3141 = vpop.f32.mrb[0].mxu0
    %v3142 = vadd.f32 %v2885, %v3141
    %v3143 = vpop.f32.mrb[0].mxu0
    %v3144 = vpop.f32.mrb[0].mxu0
    %v3145 = vadd.f32 %v2888, %v3144
    %v3146 = vpop.f32.mrb[0].mxu0
    %3147 = vmatprep.mubr.bf16.mxu0 %v1676
    %3148 = vmatmul.mubr.bf16.gmra.mrb[0].mxu0 %v1675
    %v3149 = vpop.f32.mrb[0].mxu0
    %v3150 = vadd.f32 %v2893, %v3149
    %v3151 = vpop.f32.mrb[0].mxu0
    %v3152 = vpop.f32.mrb[0].mxu0
    %v3153 = vadd.f32 %v2896, %v3152
    %v3154 = vpop.f32.mrb[0].mxu0
    %3155 = vmatprep.mubr.bf16.mxu0 %v1685
    %3156 = vmatmul.mubr.bf16.gmra.mrb[0].mxu0 %v1684
    %v3157 = vpop.f32.mrb[0].mxu0
    %v3158 = vadd.f32 %v2901, %v3157
    %v3159 = vpop.f32.mrb[0].mxu0
    %v3160 = vpop.f32.mrb[0].mxu0
    %v3161 = vadd.f32 %v2904, %v3160
    %v3162 = vpop.f32.mrb[0].mxu0
    %3163 = vmatprep.mubr.bf16.mxu0 %v1694
    %3164 = vmatmul.mubr.bf16.gmra.mrb[0].mxu0 %v1693
    %v3165 = vpop.f32.mrb[0].mxu0
    %v3166 = vadd.f32 %v2909, %v3165
    %v3167 = vpop.f32.mrb[0].mxu0
    %v3168 = vpop.f32.mrb[0].mxu0
    %v3169 = vadd.f32 %v2912, %v3168
    %v3170 = vpop.f32.mrb[0].mxu0
    %3171 = vmatprep.mubr.bf16.mxu0 %v1703
    %3172 = vmatmul.mubr.bf16.gmra.mrb[0].mxu0 %v1702
    %v3173 = vpop.f32.mrb[0].mxu0
    %v3174 = vadd.f32 %v2917, %v3173
    %v3175 = vpop.f32.mrb[0].mxu0
    %v3176 = vpop.f32.mrb[0].mxu0
    %v3177 = vadd.f32 %v2920, %v3176
    %v3178 = vpop.f32.mrb[0].mxu0
    %3179 = vmatprep.mubr.bf16.mxu0 %v1712
    %3180 = vmatmul.mubr.bf16.gmra.mrb[0].mxu0 %v1711
    %v3181 = vpop.f32.mrb[0].mxu0
    %v3182 = vadd.f32 %v2925, %v3181
    %v3183 = vpop.f32.mrb[0].mxu0
    %v3184 = vpop.f32.mrb[0].mxu0
    %v3185 = vadd.f32 %v2928, %v3184
    %v3186 = vpop.f32.mrb[0].mxu0
    %3187 = vmatprep.mubr.bf16.mxu0 %v1721
    %3188 = vmatmul.mubr.bf16.gmra.mrb[0].mxu0 %v1720
    %v3189 = vpop.f32.mrb[0].mxu0
    %v3190 = vadd.f32 %v2933, %v3189
    %v3191 = vpop.f32.mrb[0].mxu0
    %v3192 = vpop.f32.mrb[0].mxu0
    %v3193 = vadd.f32 %v2936, %v3192
    %v3194 = vpop.f32.mrb[0].mxu0
    %3195 = vmatprep.mubr.bf16.mxu0 %v1730
    %3196 = vmatmul.mubr.bf16.gmra.mrb[0].mxu0 %v1729
    %v3197 = vpop.f32.mrb[0].mxu0
    %v3198 = vadd.f32 %v2941, %v3197
    %v3199 = vpop.f32.mrb[0].mxu0
    %v3200 = vpop.f32.mrb[0].mxu0
    %v3201 = vadd.f32 %v2944, %v3200
    %v3202 = vpop.f32.mrb[0].mxu0
    %3203 = vmatprep.mubr.bf16.mxu0 %v1739
    %3204 = vmatmul.mubr.bf16.gmra.mrb[0].mxu0 %v1738
    %v3205 = vpop.f32.mrb[0].mxu0
    %v3206 = vadd.f32 %v2949, %v3205
    %v3207 = vpop.f32.mrb[0].mxu0
    %v3208 = vpop.f32.mrb[0].mxu0
    %v3209 = vadd.f32 %v2952, %v3208
    %v3210 = vpop.f32.mrb[0].mxu0
    %3211 = vmatprep.mubr.bf16.mxu0 %v1748
    %3212 = vmatmul.mubr.bf16.gmra.mrb[0].mxu0 %v1747
    %v3213 = vpop.f32.mrb[0].mxu0
    %v3214 = vadd.f32 %v2957, %v3213
    %v3215 = vpop.f32.mrb[0].mxu0
    %v3216 = vpop.f32.mrb[0].mxu0
    %v3217 = vadd.f32 %v2960, %v3216
    %v3218 = vpop.f32.mrb[0].mxu0
    %3219 = vmatprep.mubr.bf16.mxu0 %v1757
    %3220 = vmatmul.mubr.bf16.gmra.mrb[0].mxu0 %v1756
    %v3221 = vpop.f32.mrb[0].mxu0
    %v3222 = vadd.f32 %v2965, %v3221
    %v3223 = vpop.f32.mrb[0].mxu0
    %v3224 = vpop.f32.mrb[0].mxu0
    %v3225 = vadd.f32 %v2968, %v3224
    %v3226 = vpop.f32.mrb[0].mxu0
    %3227 = vmatprep.mubr.bf16.mxu0 %v1766
    %3228 = vmatmul.mubr.bf16.gmra.mrb[0].mxu0 %v1765
    %v3229 = vpop.f32.mrb[0].mxu0
    %v3230 = vadd.f32 %v2973, %v3229
    %v3231 = vpop.f32.mrb[0].mxu0
    %v3232 = vpop.f32.mrb[0].mxu0
    %v3233 = vadd.f32 %v2976, %v3232
    %v3234 = vpop.f32.mrb[0].mxu0
    %3235 = vmatprep.mubr.bf16.mxu0 %v1775
    %3236 = vmatmul.mubr.bf16.gmra.mrb[0].mxu0 %v1774
    %v3237 = vpop.f32.mrb[0].mxu0
    %v3238 = vadd.f32 %v2981, %v3237
    %v3239 = vpop.f32.mrb[0].mxu0
    %v3240 = vpop.f32.mrb[0].mxu0
    %v3241 = vadd.f32 %v2984, %v3240
    %v3242 = vpop.f32.mrb[0].mxu0
    %3243 = vmatprep.mubr.bf16.mxu0 %v1784
    %3244 = vmatmul.mubr.bf16.gmra.mrb[0].mxu0 %v1783
    %v3245 = vpop.f32.mrb[0].mxu0
    %v3246 = vadd.f32 %v2989, %v3245
    %v3247 = vpop.f32.mrb[0].mxu0
    %v3248 = vpop.f32.mrb[0].mxu0
    %v3249 = vadd.f32 %v2992, %v3248
    %v3250 = vpop.f32.mrb[0].mxu0
    %3251 = vmatprep.mubr.bf16.mxu0 %v1793
    %3252 = vmatmul.mubr.bf16.gmra.mrb[0].mxu0 %v1792
    %v3253 = vpop.f32.mrb[0].mxu0
    %v3254 = vadd.f32 %v2997, %v3253
    %v3255 = vpop.f32.mrb[0].mxu0
    %v3256 = vpop.f32.mrb[0].mxu0
    %v3257 = vadd.f32 %v3000, %v3256
    %v3258 = vpop.f32.mrb[0].mxu0
    %3259 = vmatprep.mubr.bf16.mxu0 %v1802
    %3260 = vmatmul.mubr.bf16.gmra.mrb[0].mxu0 %v1801
    %v3261 = vpop.f32.mrb[0].mxu0
    %v3262 = vadd.f32 %v3005, %v3261
    %v3263 = vpop.f32.mrb[0].mxu0
    %v3264 = vpop.f32.mrb[0].mxu0
    %v3265 = vadd.f32 %v3008, %v3264
    %v3266 = vpop.f32.mrb[0].mxu0
    %3267 = vmatprep.mubr.bf16.mxu0 %v1811
    %3268 = vmatmul.mubr.bf16.gmra.mrb[0].mxu0 %v1810
    %v3269 = vpop.f32.mrb[0].mxu0
    %v3270 = vadd.f32 %v3013, %v3269
    %v3271 = vpop.f32.mrb[0].mxu0
    %v3272 = vpop.f32.mrb[0].mxu0
    %v3273 = vadd.f32 %v3016, %v3272
    %v3274 = vpop.f32.mrb[0].mxu0
    %3275 = vmatprep.mubr.bf16.mxu0 %v1820
    %3276 = vmatmul.mubr.bf16.gmra.mrb[0].mxu0 %v1819
    %v3277 = vpop.f32.mrb[0].mxu0
    %v3278 = vadd.f32 %v3021, %v3277
    %v3279 = vpop.f32.mrb[0].mxu0
    %v3280 = vpop.f32.mrb[0].mxu0
    %v3281 = vadd.f32 %v3024, %v3280
    %v3282 = vpop.f32.mrb[0].mxu0
    %3283 = vmatprep.mubr.bf16.mxu0 %v1829
    %3284 = vmatmul.mubr.bf16.gmra.mrb[0].mxu0 %v1828
    %v3285 = vpop.f32.mrb[0].mxu0
    %v3286 = vadd.f32 %v3029, %v3285
    %v3287 = vpop.f32.mrb[0].mxu0
    %v3288 = vpop.f32.mrb[0].mxu0
    %v3289 = vadd.f32 %v3032, %v3288
    %v3290 = vpop.f32.mrb[0].mxu0
    %3291 = vmatprep.mubr.bf16.mxu0 %v1838
    %3292 = vmatmul.mubr.bf16.gmra.mrb[0].mxu0 %v1837
    %v3293 = vpop.f32.mrb[0].mxu0
    %v3294 = vadd.f32 %v3037, %v3293
    %v3295 = vpop.f32.mrb[0].mxu0
    %v3296 = vpop.f32.mrb[0].mxu0
    %v3297 = vadd.f32 %v3040, %v3296
    %v3298 = vpop.f32.mrb[0].mxu0
    %3299 = vmatprep.mubr.bf16.mxu0 %v1847
    %3300 = vmatmul.mubr.bf16.gmra.mrb[0].mxu0 %v1846
    %v3301 = vpop.f32.mrb[0].mxu0
    %v3302 = vadd.f32 %v3045, %v3301
    %v3303 = vpop.f32.mrb[0].mxu0
    %v3304 = vpop.f32.mrb[0].mxu0
    %v3305 = vadd.f32 %v3048, %v3304
    %v3306 = vpop.f32.mrb[0].mxu0
    %3307 = vmatprep.mubr.bf16.mxu0 %v1856
    %3308 = vmatmul.mubr.bf16.gmra.mrb[0].mxu0 %v1855
    %v3309 = vpop.f32.mrb[0].mxu0
    %v3310 = vadd.f32 %v3053, %v3309
    %v3311 = vpop.f32.mrb[0].mxu0
    %v3312 = vpop.f32.mrb[0].mxu0
    %v3313 = vadd.f32 %v3056, %v3312
    %v3314 = vpop.f32.mrb[0].mxu0
    %3315 = vmatprep.mubr.bf16.mxu0 %v1865
    %3316 = vmatmul.mubr.bf16.gmra.mrb[0].mxu0 %v1864
    %v3317 = vpop.f32.mrb[0].mxu0
    %v3318 = vadd.f32 %v3061, %v3317
    %v3319 = vpop.f32.mrb[0].mxu0
    %v3320 = vpop.f32.mrb[0].mxu0
    %v3321 = vadd.f32 %v3064, %v3320
    %v3322 = vpop.f32.mrb[0].mxu0
    %3323 = vdwg.mxu0
    %3324 = vmatprep.subr.bf16.mxu0 0
    %3325 = vmatpush1.bf16.msra.mxu0 %v2457
    %3326 = vmatprep.subr.bf16.mxu0 0
    %3327 = vmatpush1.bf16.msra.mxu0 %v2458
    %3328 = vmatprep.subr.bf16.mxu0 0
    %3329 = vmatpush1.bf16.msra.mxu0 %v2459
    %3330 = vmatprep.subr.bf16.mxu0 0
    %3331 = vmatpush1.bf16.msra.mxu0 %v2460
    %3332 = vmatprep.subr.bf16.mxu0 0
    %3333 = vmatpush1.bf16.msra.mxu0 %v2461
    %3334 = vmatprep.subr.bf16.mxu0 0
    %3335 = vmatpush1.bf16.msra.mxu0 %v2462
    %3336 = vmatprep.subr.bf16.mxu0 0
    %3337 = vmatpush1.bf16.msra.mxu0 %v2463
    %3338 = vmatprep.subr.bf16.mxu0 0
    %3339 = vmatpush1.bf16.msra.mxu0 %v2464
    %3340 = vmatprep.subr.bf16.mxu0 0
    %3341 = vmatpush1.bf16.msra.mxu0 %v2465
    %3342 = vmatprep.subr.bf16.mxu0 0
    %3343 = vmatpush1.bf16.msra.mxu0 %v2466
    %3344 = vmatprep.subr.bf16.mxu0 0
    %3345 = vmatpush1.bf16.msra.mxu0 %v2467
    %3346 = vmatprep.subr.bf16.mxu0 0
    %3347 = vmatpush1.bf16.msra.mxu0 %v2468
    %3348 = vmatprep.subr.bf16.mxu0 0
    %3349 = vmatpush1.bf16.msra.mxu0 %v2469
    %3350 = vmatprep.subr.bf16.mxu0 0
    %3351 = vmatpush1.bf16.msra.mxu0 %v2470
    %3352 = vmatprep.subr.bf16.mxu0 0
    %3353 = vmatpush1.bf16.msra.mxu0 %v2471
    %3354 = vmatprep.subr.bf16.mxu0 0
    %3355 = vmatpush1.bf16.msra.mxu0 %v2472
    %3356 = vmatprep.mubr.bf16.mxu0 %v1624
    %3357 = vmatmul.mubr.bf16.gmra.mrb[0].mxu0 %v1623
    %v3358 = vpop.f32.mrb[0].mxu0
    %v3359 = vadd.f32 %v3102, %v3358
    %v3360 = vpop.f32.mrb[0].mxu0
    %v3361 = vpop.f32.mrb[0].mxu0
    %v3362 = vadd.f32 %v3105, %v3361
    %v3363 = vpop.f32.mrb[0].mxu0
    %3364 = vmatprep.mubr.bf16.mxu0 %v1633
    %3365 = vmatmul.mubr.bf16.gmra.mrb[0].mxu0 %v1632
    %v3366 = vpop.f32.mrb[0].mxu0
    %v3367 = vadd.f32 %v3110, %v3366
    %v3368 = vpop.f32.mrb[0].mxu0
    %v3369 = vpop.f32.mrb[0].mxu0
    %v3370 = vadd.f32 %v3113, %v3369
    %v3371 = vpop.f32.mrb[0].mxu0
    %3372 = vmatprep.mubr.bf16.mxu0 %v1642
    %3373 = vmatmul.mubr.bf16.gmra.mrb[0].mxu0 %v1641
    %v3374 = vpop.f32.mrb[0].mxu0
    %v3375 = vadd.f32 %v3118, %v3374
    %v3376 = vpop.f32.mrb[0].mxu0
    %v3377 = vpop.f32.mrb[0].mxu0
    %v3378 = vadd.f32 %v3121, %v3377
    %v3379 = vpop.f32.mrb[0].mxu0
    %3380 = vmatprep.mubr.bf16.mxu0 %v1651
    %3381 = vmatmul.mubr.bf16.gmra.mrb[0].mxu0 %v1650
    %v3382 = vpop.f32.mrb[0].mxu0
    %v3383 = vadd.f32 %v3126, %v3382
    %v3384 = vpop.f32.mrb[0].mxu0
    %v3385 = vpop.f32.mrb[0].mxu0
    %v3386 = vadd.f32 %v3129, %v3385
    %v3387 = vpop.f32.mrb[0].mxu0
    %3388 = vmatprep.mubr.bf16.mxu0 %v1660
    %3389 = vmatmul.mubr.bf16.gmra.mrb[0].mxu0 %v1659
    %v3390 = vpop.f32.mrb[0].mxu0
    %v3391 = vadd.f32 %v3134, %v3390
    %v3392 = vpop.f32.mrb[0].mxu0
    %v3393 = vpop.f32.mrb[0].mxu0
    %v3394 = vadd.f32 %v3137, %v3393
    %v3395 = vpop.f32.mrb[0].mxu0
    %3396 = vmatprep.mubr.bf16.mxu0 %v1669
    %3397 = vmatmul.mubr.bf16.gmra.mrb[0].mxu0 %v1668
    %v3398 = vpop.f32.mrb[0].mxu0
    %v3399 = vadd.f32 %v3142, %v3398
    %v3400 = vpop.f32.mrb[0].mxu0
    %v3401 = vpop.f32.mrb[0].mxu0
    %v3402 = vadd.f32 %v3145, %v3401
    %v3403 = vpop.f32.mrb[0].mxu0
    %3404 = vmatprep.mubr.bf16.mxu0 %v1678
    %3405 = vmatmul.mubr.bf16.gmra.mrb[0].mxu0 %v1677
    %v3406 = vpop.f32.mrb[0].mxu0
    %v3407 = vadd.f32 %v3150, %v3406
    %v3408 = vpop.f32.mrb[0].mxu0
    %v3409 = vpop.f32.mrb[0].mxu0
    %v3410 = vadd.f32 %v3153, %v3409
    %v3411 = vpop.f32.mrb[0].mxu0
    %3412 = vmatprep.mubr.bf16.mxu0 %v1687
    %3413 = vmatmul.mubr.bf16.gmra.mrb[0].mxu0 %v1686
    %v3414 = vpop.f32.mrb[0].mxu0
    %v3415 = vadd.f32 %v3158, %v3414
    %v3416 = vpop.f32.mrb[0].mxu0
    %v3417 = vpop.f32.mrb[0].mxu0
    %v3418 = vadd.f32 %v3161, %v3417
    %v3419 = vpop.f32.mrb[0].mxu0
    %3420 = vmatprep.mubr.bf16.mxu0 %v1696
    %3421 = vmatmul.mubr.bf16.gmra.mrb[0].mxu0 %v1695
    %v3422 = vpop.f32.mrb[0].mxu0
    %v3423 = vadd.f32 %v3166, %v3422
    %v3424 = vpop.f32.mrb[0].mxu0
    %v3425 = vpop.f32.mrb[0].mxu0
    %v3426 = vadd.f32 %v3169, %v3425
    %v3427 = vpop.f32.mrb[0].mxu0
    %3428 = vmatprep.mubr.bf16.mxu0 %v1705
    %3429 = vmatmul.mubr.bf16.gmra.mrb[0].mxu0 %v1704
    %v3430 = vpop.f32.mrb[0].mxu0
    %v3431 = vadd.f32 %v3174, %v3430
    %v3432 = vpop.f32.mrb[0].mxu0
    %v3433 = vpop.f32.mrb[0].mxu0
    %v3434 = vadd.f32 %v3177, %v3433
    %v3435 = vpop.f32.mrb[0].mxu0
    %3436 = vmatprep.mubr.bf16.mxu0 %v1714
    %3437 = vmatmul.mubr.bf16.gmra.mrb[0].mxu0 %v1713
    %v3438 = vpop.f32.mrb[0].mxu0
    %v3439 = vadd.f32 %v3182, %v3438
    %v3440 = vpop.f32.mrb[0].mxu0
    %v3441 = vpop.f32.mrb[0].mxu0
    %v3442 = vadd.f32 %v3185, %v3441
    %v3443 = vpop.f32.mrb[0].mxu0
    %3444 = vmatprep.mubr.bf16.mxu0 %v1723
    %3445 = vmatmul.mubr.bf16.gmra.mrb[0].mxu0 %v1722
    %v3446 = vpop.f32.mrb[0].mxu0
    %v3447 = vadd.f32 %v3190, %v3446
    %v3448 = vpop.f32.mrb[0].mxu0
    %v3449 = vpop.f32.mrb[0].mxu0
    %v3450 = vadd.f32 %v3193, %v3449
    %v3451 = vpop.f32.mrb[0].mxu0
    %3452 = vmatprep.mubr.bf16.mxu0 %v1732
    %3453 = vmatmul.mubr.bf16.gmra.mrb[0].mxu0 %v1731
    %v3454 = vpop.f32.mrb[0].mxu0
    %v3455 = vadd.f32 %v3198, %v3454
    %v3456 = vpop.f32.mrb[0].mxu0
    %v3457 = vpop.f32.mrb[0].mxu0
    %v3458 = vadd.f32 %v3201, %v3457
    %v3459 = vpop.f32.mrb[0].mxu0
    %3460 = vmatprep.mubr.bf16.mxu0 %v1741
    %3461 = vmatmul.mubr.bf16.gmra.mrb[0].mxu0 %v1740
    %v3462 = vpop.f32.mrb[0].mxu0
    %v3463 = vadd.f32 %v3206, %v3462
    %v3464 = vpop.f32.mrb[0].mxu0
    %v3465 = vpop.f32.mrb[0].mxu0
    %v3466 = vadd.f32 %v3209, %v3465
    %v3467 = vpop.f32.mrb[0].mxu0
    %3468 = vmatprep.mubr.bf16.mxu0 %v1750
    %3469 = vmatmul.mubr.bf16.gmra.mrb[0].mxu0 %v1749
    %v3470 = vpop.f32.mrb[0].mxu0
    %v3471 = vadd.f32 %v3214, %v3470
    %v3472 = vpop.f32.mrb[0].mxu0
    %v3473 = vpop.f32.mrb[0].mxu0
    %v3474 = vadd.f32 %v3217, %v3473
    %v3475 = vpop.f32.mrb[0].mxu0
    %3476 = vmatprep.mubr.bf16.mxu0 %v1759
    %3477 = vmatmul.mubr.bf16.gmra.mrb[0].mxu0 %v1758
    %v3478 = vpop.f32.mrb[0].mxu0
    %v3479 = vadd.f32 %v3222, %v3478
    %v3480 = vpop.f32.mrb[0].mxu0
    %v3481 = vpop.f32.mrb[0].mxu0
    %v3482 = vadd.f32 %v3225, %v3481
    %v3483 = vpop.f32.mrb[0].mxu0
    %3484 = vmatprep.mubr.bf16.mxu0 %v1768
    %3485 = vmatmul.mubr.bf16.gmra.mrb[0].mxu0 %v1767
    %v3486 = vpop.f32.mrb[0].mxu0
    %v3487 = vadd.f32 %v3230, %v3486
    %v3488 = vpop.f32.mrb[0].mxu0
    %v3489 = vpop.f32.mrb[0].mxu0
    %v3490 = vadd.f32 %v3233, %v3489
    %v3491 = vpop.f32.mrb[0].mxu0
    %3492 = vmatprep.mubr.bf16.mxu0 %v1777
    %3493 = vmatmul.mubr.bf16.gmra.mrb[0].mxu0 %v1776
    %v3494 = vpop.f32.mrb[0].mxu0
    %v3495 = vadd.f32 %v3238, %v3494
    %v3496 = vpop.f32.mrb[0].mxu0
    %v3497 = vpop.f32.mrb[0].mxu0
    %v3498 = vadd.f32 %v3241, %v3497
    %v3499 = vpop.f32.mrb[0].mxu0
    %3500 = vmatprep.mubr.bf16.mxu0 %v1786
    %3501 = vmatmul.mubr.bf16.gmra.mrb[0].mxu0 %v1785
    %v3502 = vpop.f32.mrb[0].mxu0
    %v3503 = vadd.f32 %v3246, %v3502
    %v3504 = vpop.f32.mrb[0].mxu0
    %v3505 = vpop.f32.mrb[0].mxu0
    %v3506 = vadd.f32 %v3249, %v3505
    %v3507 = vpop.f32.mrb[0].mxu0
    %3508 = vmatprep.mubr.bf16.mxu0 %v1795
    %3509 = vmatmul.mubr.bf16.gmra.mrb[0].mxu0 %v1794
    %v3510 = vpop.f32.mrb[0].mxu0
    %v3511 = vadd.f32 %v3254, %v3510
    %v3512 = vpop.f32.mrb[0].mxu0
    %v3513 = vpop.f32.mrb[0].mxu0
    %v3514 = vadd.f32 %v3257, %v3513
    %v3515 = vpop.f32.mrb[0].mxu0
    %3516 = vmatprep.mubr.bf16.mxu0 %v1804
    %3517 = vmatmul.mubr.bf16.gmra.mrb[0].mxu0 %v1803
    %v3518 = vpop.f32.mrb[0].mxu0
    %v3519 = vadd.f32 %v3262, %v3518
    %v3520 = vpop.f32.mrb[0].mxu0
    %v3521 = vpop.f32.mrb[0].mxu0
    %v3522 = vadd.f32 %v3265, %v3521
    %v3523 = vpop.f32.mrb[0].mxu0
    %3524 = vmatprep.mubr.bf16.mxu0 %v1813
    %3525 = vmatmul.mubr.bf16.gmra.mrb[0].mxu0 %v1812
    %v3526 = vpop.f32.mrb[0].mxu0
    %v3527 = vadd.f32 %v3270, %v3526
    %v3528 = vpop.f32.mrb[0].mxu0
    %v3529 = vpop.f32.mrb[0].mxu0
    %v3530 = vadd.f32 %v3273, %v3529
    %v3531 = vpop.f32.mrb[0].mxu0
    %3532 = vmatprep.mubr.bf16.mxu0 %v1822
    %3533 = vmatmul.mubr.bf16.gmra.mrb[0].mxu0 %v1821
    %v3534 = vpop.f32.mrb[0].mxu0
    %v3535 = vadd.f32 %v3278, %v3534
    %v3536 = vpop.f32.mrb[0].mxu0
    %v3537 = vpop.f32.mrb[0].mxu0
    %v3538 = vadd.f32 %v3281, %v3537
    %v3539 = vpop.f32.mrb[0].mxu0
    %3540 = vmatprep.mubr.bf16.mxu0 %v1831
    %3541 = vmatmul.mubr.bf16.gmra.mrb[0].mxu0 %v1830
    %v3542 = vpop.f32.mrb[0].mxu0
    %v3543 = vadd.f32 %v3286, %v3542
    %v3544 = vpop.f32.mrb[0].mxu0
    %v3545 = vpop.f32.mrb[0].mxu0
    %v3546 = vadd.f32 %v3289, %v3545
    %v3547 = vpop.f32.mrb[0].mxu0
    %3548 = vmatprep.mubr.bf16.mxu0 %v1840
    %3549 = vmatmul.mubr.bf16.gmra.mrb[0].mxu0 %v1839
    %v3550 = vpop.f32.mrb[0].mxu0
    %v3551 = vadd.f32 %v3294, %v3550
    %v3552 = vpop.f32.mrb[0].mxu0
    %v3553 = vpop.f32.mrb[0].mxu0
    %v3554 = vadd.f32 %v3297, %v3553
    %v3555 = vpop.f32.mrb[0].mxu0
    %3556 = vmatprep.mubr.bf16.mxu0 %v1849
    %3557 = vmatmul.mubr.bf16.gmra.mrb[0].mxu0 %v1848
    %v3558 = vpop.f32.mrb[0].mxu0
    %v3559 = vadd.f32 %v3302, %v3558
    %v3560 = vpop.f32.mrb[0].mxu0
    %v3561 = vpop.f32.mrb[0].mxu0
    %v3562 = vadd.f32 %v3305, %v3561
    %v3563 = vpop.f32.mrb[0].mxu0
    %3564 = vmatprep.mubr.bf16.mxu0 %v1858
    %3565 = vmatmul.mubr.bf16.gmra.mrb[0].mxu0 %v1857
    %v3566 = vpop.f32.mrb[0].mxu0
    %v3567 = vadd.f32 %v3310, %v3566
    %v3568 = vpop.f32.mrb[0].mxu0
    %v3569 = vpop.f32.mrb[0].mxu0
    %v3570 = vadd.f32 %v3313, %v3569
    %v3571 = vpop.f32.mrb[0].mxu0
    %3572 = vmatprep.mubr.bf16.mxu0 %v1867
    %3573 = vmatmul.mubr.bf16.gmra.mrb[0].mxu0 %v1866
    %v3574 = vpop.f32.mrb[0].mxu0
    %v3575 = vadd.f32 %v3318, %v3574
    %v3576 = vpop.f32.mrb[0].mxu0
    %v3577 = vpop.f32.mrb[0].mxu0
    %v3578 = vadd.f32 %v3321, %v3577
    %v3579 = vpop.f32.mrb[0].mxu0
    %3580 = vdwg.mxu0
    %3581 = vmatprep.subr.bf16.mxu0 0
    %3582 = vmatpush1.bf16.msra.mxu0 %v2473
    %3583 = vmatprep.subr.bf16.mxu0 0
    %3584 = vmatpush1.bf16.msra.mxu0 %v2474
    %3585 = vmatprep.subr.bf16.mxu0 0
    %3586 = vmatpush1.bf16.msra.mxu0 %v2475
    %3587 = vmatprep.subr.bf16.mxu0 0
    %3588 = vmatpush1.bf16.msra.mxu0 %v2476
    %3589 = vmatprep.subr.bf16.mxu0 0
    %3590 = vmatpush1.bf16.msra.mxu0 %v2477
    %3591 = vmatprep.subr.bf16.mxu0 0
    %3592 = vmatpush1.bf16.msra.mxu0 %v2478
    %3593 = vmatprep.subr.bf16.mxu0 0
    %3594 = vmatpush1.bf16.msra.mxu0 %v2479
    %3595 = vmatprep.subr.bf16.mxu0 0
    %3596 = vmatpush1.bf16.msra.mxu0 %v2480
    %3597 = vmatprep.subr.bf16.mxu0 0
    %3598 = vmatpush1.bf16.msra.mxu0 0
    %3599 = vmatprep.subr.bf16.mxu0 0
    %3600 = vmatpush1.bf16.msra.mxu0 0
    %3601 = vmatprep.subr.bf16.mxu0 0
    %3602 = vmatpush1.bf16.msra.mxu0 0
    %3603 = vmatprep.subr.bf16.mxu0 0
    %3604 = vmatpush1.bf16.msra.mxu0 0
    %3605 = vmatprep.subr.bf16.mxu0 0
    %3606 = vmatpush1.bf16.msra.mxu0 0
    %3607 = vmatprep.subr.bf16.mxu0 0
    %3608 = vmatpush1.bf16.msra.mxu0 0
    %3609 = vmatprep.subr.bf16.mxu0 0
    %3610 = vmatpush1.bf16.msra.mxu0 0
    %3611 = vmatprep.subr.bf16.mxu0 0
    %3612 = vmatpush1.bf16.msra.mxu0 0
    %3613 = vmatprep.mubr.bf16.mxu0 0
    %3614 = vmatmul.mubr.bf16.gmra.mrb[0].mxu0 %v1625
    %v3615 = vpop.f32.mrb[0].mxu0
    %v3616 = vadd.f32 %v3359, %v3615
    %v3617 = vpop.f32.mrb[0].mxu0
    %v3618 = vpop.f32.mrb[0].mxu0
    %v3619 = vadd.f32 %v3362, %v3618
    %v3620 = vpop.f32.mrb[0].mxu0
    %3621 = vmatprep.mubr.bf16.mxu0 0
    %3622 = vmatmul.mubr.bf16.gmra.mrb[0].mxu0 %v1634
    %v3623 = vpop.f32.mrb[0].mxu0
    %v3624 = vadd.f32 %v3367, %v3623
    %v3625 = vpop.f32.mrb[0].mxu0
    %v3626 = vpop.f32.mrb[0].mxu0
    %v3627 = vadd.f32 %v3370, %v3626
    %v3628 = vpop.f32.mrb[0].mxu0
    %3629 = vmatprep.mubr.bf16.mxu0 0
    %3630 = vmatmul.mubr.bf16.gmra.mrb[0].mxu0 %v1643
    %v3631 = vpop.f32.mrb[0].mxu0
    %v3632 = vadd.f32 %v3375, %v3631
    %v3633 = vpop.f32.mrb[0].mxu0
    %v3634 = vpop.f32.mrb[0].mxu0
    %v3635 = vadd.f32 %v3378, %v3634
    %v3636 = vpop.f32.mrb[0].mxu0
    %3637 = vmatprep.mubr.bf16.mxu0 0
    %3638 = vmatmul.mubr.bf16.gmra.mrb[0].mxu0 %v1652
    %v3639 = vpop.f32.mrb[0].mxu0
    %v3640 = vadd.f32 %v3383, %v3639
    %v3641 = vpop.f32.mrb[0].mxu0
    %v3642 = vpop.f32.mrb[0].mxu0
    %v3643 = vadd.f32 %v3386, %v3642
    %v3644 = vpop.f32.mrb[0].mxu0
    %3645 = vmatprep.mubr.bf16.mxu0 0
    %3646 = vmatmul.mubr.bf16.gmra.mrb[0].mxu0 %v1661
    %v3647 = vpop.f32.mrb[0].mxu0
    %v3648 = vadd.f32 %v3391, %v3647
    %v3649 = vpop.f32.mrb[0].mxu0
    %v3650 = vpop.f32.mrb[0].mxu0
    %v3651 = vadd.f32 %v3394, %v3650
    %v3652 = vpop.f32.mrb[0].mxu0
    %3653 = vmatprep.mubr.bf16.mxu0 0
    %3654 = vmatmul.mubr.bf16.gmra.mrb[0].mxu0 %v1670
    %v3655 = vpop.f32.mrb[0].mxu0
    %v3656 = vadd.f32 %v3399, %v3655
    %v3657 = vpop.f32.mrb[0].mxu0
    %v3658 = vpop.f32.mrb[0].mxu0
    %v3659 = vadd.f32 %v3402, %v3658
    %v3660 = vpop.f32.mrb[0].mxu0
    %3661 = vmatprep.mubr.bf16.mxu0 0
    %3662 = vmatmul.mubr.bf16.gmra.mrb[0].mxu0 %v1679
    %v3663 = vpop.f32.mrb[0].mxu0
    %v3664 = vadd.f32 %v3407, %v3663
    %v3665 = vpop.f32.mrb[0].mxu0
    %v3666 = vpop.f32.mrb[0].mxu0
    %v3667 = vadd.f32 %v3410, %v3666
    %v3668 = vpop.f32.mrb[0].mxu0
    %3669 = vmatprep.mubr.bf16.mxu0 0
    %3670 = vmatmul.mubr.bf16.gmra.mrb[0].mxu0 %v1688
    %v3671 = vpop.f32.mrb[0].mxu0
    %v3672 = vadd.f32 %v3415, %v3671
    %v3673 = vpop.f32.mrb[0].mxu0
    %v3674 = vpop.f32.mrb[0].mxu0
    %v3675 = vadd.f32 %v3418, %v3674
    %v3676 = vpop.f32.mrb[0].mxu0
    %3677 = vmatprep.mubr.bf16.mxu0 0
    %3678 = vmatmul.mubr.bf16.gmra.mrb[0].mxu0 %v1697
    %v3679 = vpop.f32.mrb[0].mxu0
    %v3680 = vadd.f32 %v3423, %v3679
    %v3681 = vpop.f32.mrb[0].mxu0
    %v3682 = vpop.f32.mrb[0].mxu0
    %v3683 = vadd.f32 %v3426, %v3682
    %v3684 = vpop.f32.mrb[0].mxu0
    %3685 = vmatprep.mubr.bf16.mxu0 0
    %3686 = vmatmul.mubr.bf16.gmra.mrb[0].mxu0 %v1706
    %v3687 = vpop.f32.mrb[0].mxu0
    %v3688 = vadd.f32 %v3431, %v3687
    %v3689 = vpop.f32.mrb[0].mxu0
    %v3690 = vpop.f32.mrb[0].mxu0
    %v3691 = vadd.f32 %v3434, %v3690
    %v3692 = vpop.f32.mrb[0].mxu0
    %3693 = vmatprep.mubr.bf16.mxu0 0
    %3694 = vmatmul.mubr.bf16.gmra.mrb[0].mxu0 %v1715
    %v3695 = vpop.f32.mrb[0].mxu0
    %v3696 = vadd.f32 %v3439, %v3695
    %v3697 = vpop.f32.mrb[0].mxu0
    %v3698 = vpop.f32.mrb[0].mxu0
    %v3699 = vadd.f32 %v3442, %v3698
    %v3700 = vpop.f32.mrb[0].mxu0
    %3701 = vmatprep.mubr.bf16.mxu0 0
    %3702 = vmatmul.mubr.bf16.gmra.mrb[0].mxu0 %v1724
    %v3703 = vpop.f32.mrb[0].mxu0
    %v3704 = vadd.f32 %v3447, %v3703
    %v3705 = vpop.f32.mrb[0].mxu0
    %v3706 = vpop.f32.mrb[0].mxu0
    %v3707 = vadd.f32 %v3450, %v3706
    %v3708 = vpop.f32.mrb[0].mxu0
    %3709 = vmatprep.mubr.bf16.mxu0 0
    %3710 = vmatmul.mubr.bf16.gmra.mrb[0].mxu0 %v1733
    %v3711 = vpop.f32.mrb[0].mxu0
    %v3712 = vadd.f32 %v3455, %v3711
    %v3713 = vpop.f32.mrb[0].mxu0
    %v3714 = vpop.f32.mrb[0].mxu0
    %v3715 = vadd.f32 %v3458, %v3714
    %v3716 = vpop.f32.mrb[0].mxu0
    %3717 = vmatprep.mubr.bf16.mxu0 0
    %3718 = vmatmul.mubr.bf16.gmra.mrb[0].mxu0 %v1742
    %v3719 = vpop.f32.mrb[0].mxu0
    %v3720 = vadd.f32 %v3463, %v3719
    %v3721 = vpop.f32.mrb[0].mxu0
    %v3722 = vpop.f32.mrb[0].mxu0
    %v3723 = vadd.f32 %v3466, %v3722
    %v3724 = vpop.f32.mrb[0].mxu0
    %3725 = vmatprep.mubr.bf16.mxu0 0
    %3726 = vmatmul.mubr.bf16.gmra.mrb[0].mxu0 %v1751
    %v3727 = vpop.f32.mrb[0].mxu0
    %v3728 = vadd.f32 %v3471, %v3727
    %v3729 = vpop.f32.mrb[0].mxu0
    %v3730 = vpop.f32.mrb[0].mxu0
    %v3731 = vadd.f32 %v3474, %v3730
    %v3732 = vpop.f32.mrb[0].mxu0
    %3733 = vmatprep.mubr.bf16.mxu0 0
    %3734 = vmatmul.mubr.bf16.gmra.mrb[0].mxu0 %v1760
    %v3735 = vpop.f32.mrb[0].mxu0
    %v3736 = vadd.f32 %v3479, %v3735
    %v3737 = vpop.f32.mrb[0].mxu0
    %v3738 = vpop.f32.mrb[0].mxu0
    %v3739 = vadd.f32 %v3482, %v3738
    %v3740 = vpop.f32.mrb[0].mxu0
    %3741 = vmatprep.mubr.bf16.mxu0 0
    %3742 = vmatmul.mubr.bf16.gmra.mrb[0].mxu0 %v1769
    %v3743 = vpop.f32.mrb[0].mxu0
    %v3744 = vadd.f32 %v3487, %v3743
    %v3745 = vpop.f32.mrb[0].mxu0
    %v3746 = vpop.f32.mrb[0].mxu0
    %v3747 = vadd.f32 %v3490, %v3746
    %v3748 = vpop.f32.mrb[0].mxu0
    %3749 = vmatprep.mubr.bf16.mxu0 0
    %3750 = vmatmul.mubr.bf16.gmra.mrb[0].mxu0 %v1778
    %v3751 = vpop.f32.mrb[0].mxu0
    %v3752 = vadd.f32 %v3495, %v3751
    %v3753 = vpop.f32.mrb[0].mxu0
    %v3754 = vpop.f32.mrb[0].mxu0
    %v3755 = vadd.f32 %v3498, %v3754
    %v3756 = vpop.f32.mrb[0].mxu0
    %3757 = vmatprep.mubr.bf16.mxu0 0
    %3758 = vmatmul.mubr.bf16.gmra.mrb[0].mxu0 %v1787
    %v3759 = vpop.f32.mrb[0].mxu0
    %v3760 = vadd.f32 %v3503, %v3759
    %v3761 = vpop.f32.mrb[0].mxu0
    %v3762 = vpop.f32.mrb[0].mxu0
    %v3763 = vadd.f32 %v3506, %v3762
    %v3764 = vpop.f32.mrb[0].mxu0
    %3765 = vmatprep.mubr.bf16.mxu0 0
    %3766 = vmatmul.mubr.bf16.gmra.mrb[0].mxu0 %v1796
    %v3767 = vpop.f32.mrb[0].mxu0
    %v3768 = vadd.f32 %v3511, %v3767
    %v3769 = vpop.f32.mrb[0].mxu0
    %v3770 = vpop.f32.mrb[0].mxu0
    %v3771 = vadd.f32 %v3514, %v3770
    %v3772 = vpop.f32.mrb[0].mxu0
    %3773 = vmatprep.mubr.bf16.mxu0 0
    %3774 = vmatmul.mubr.bf16.gmra.mrb[0].mxu0 %v1805
    %v3775 = vpop.f32.mrb[0].mxu0
    %v3776 = vadd.f32 %v3519, %v3775
    %v3777 = vpop.f32.mrb[0].mxu0
    %v3778 = vpop.f32.mrb[0].mxu0
    %v3779 = vadd.f32 %v3522, %v3778
    %v3780 = vpop.f32.mrb[0].mxu0
    %3781 = vmatprep.mubr.bf16.mxu0 0
    %3782 = vmatmul.mubr.bf16.gmra.mrb[0].mxu0 %v1814
    %v3783 = vpop.f32.mrb[0].mxu0
    %v3784 = vadd.f32 %v3527, %v3783
    %v3785 = vpop.f32.mrb[0].mxu0
    %v3786 = vpop.f32.mrb[0].mxu0
    %v3787 = vadd.f32 %v3530, %v3786
    %v3788 = vpop.f32.mrb[0].mxu0
    %3789 = vmatprep.mubr.bf16.mxu0 0
    %3790 = vmatmul.mubr.bf16.gmra.mrb[0].mxu0 %v1823
    %v3791 = vpop.f32.mrb[0].mxu0
    %v3792 = vadd.f32 %v3535, %v3791
    %v3793 = vpop.f32.mrb[0].mxu0
    %v3794 = vpop.f32.mrb[0].mxu0
    %v3795 = vadd.f32 %v3538, %v3794
    %v3796 = vpop.f32.mrb[0].mxu0
    %3797 = vmatprep.mubr.bf16.mxu0 0
    %3798 = vmatmul.mubr.bf16.gmra.mrb[0].mxu0 %v1832
    %v3799 = vpop.f32.mrb[0].mxu0
    %v3800 = vadd.f32 %v3543, %v3799
    %v3801 = vpop.f32.mrb[0].mxu0
    %v3802 = vpop.f32.mrb[0].mxu0
    %v3803 = vadd.f32 %v3546, %v3802
    %v3804 = vpop.f32.mrb[0].mxu0
    %3805 = vmatprep.mubr.bf16.mxu0 0
    %3806 = vmatmul.mubr.bf16.gmra.mrb[0].mxu0 %v1841
    %v3807 = vpop.f32.mrb[0].mxu0
    %v3808 = vadd.f32 %v3551, %v3807
    %v3809 = vpop.f32.mrb[0].mxu0
    %v3810 = vpop.f32.mrb[0].mxu0
    %v3811 = vadd.f32 %v3554, %v3810
    %v3812 = vpop.f32.mrb[0].mxu0
    %3813 = vmatprep.mubr.bf16.mxu0 0
    %3814 = vmatmul.mubr.bf16.gmra.mrb[0].mxu0 %v1850
    %v3815 = vpop.f32.mrb[0].mxu0
    %v3816 = vadd.f32 %v3559, %v3815
    %v3817 = vpop.f32.mrb[0].mxu0
    %v3818 = vpop.f32.mrb[0].mxu0
    %v3819 = vadd.f32 %v3562, %v3818
    %v3820 = vpop.f32.mrb[0].mxu0
    %3821 = vmatprep.mubr.bf16.mxu0 0
    %3822 = vmatmul.mubr.bf16.gmra.mrb[0].mxu0 %v1859
    %v3823 = vpop.f32.mrb[0].mxu0
    %v3824 = vadd.f32 %v3567, %v3823
    %v3825 = vpop.f32.mrb[0].mxu0
    %v3826 = vpop.f32.mrb[0].mxu0
    %v3827 = vadd.f32 %v3570, %v3826
    %v3828 = vpop.f32.mrb[0].mxu0
    %3829 = vmatprep.mubr.bf16.mxu0 0
    %3830 = vmatmul.mubr.bf16.gmra.mrb[0].mxu0 %v1868
    %v3831 = vpop.f32.mrb[0].mxu0
    %v3832 = vadd.f32 %v3575, %v3831
    %v3833 = vpop.f32.mrb[0].mxu0
    %v3834 = vpop.f32.mrb[0].mxu0
    %v3835 = vadd.f32 %v3578, %v3834
    %v3836 = vpop.f32.mrb[0].mxu0
    %3837 = vdwg.mxu0
    %vm3838 = vcmask 523264
    %v3840 = vsel %vm3838, %v123, 0
    %3842 = vmatprep.subr.mxu0 0.0
    %3843 = vmatpush1.msra.mxu0 %v3616
    %3844 = vmatprep.subr.mxu0 0.0
    %3845 = vmatpush1.msra.mxu0 %v3619
    %3846 = vmatprep.subr.mxu0 0.0
    %3847 = vmatpush1.msra.mxu0 %v3624
    %3848 = vmatprep.subr.mxu0 0.0
    %3849 = vmatpush1.msra.mxu0 %v3627
    %3850 = vmatprep.subr.mxu0 0.0
    %3851 = vmatpush1.msra.mxu0 %v3632
    %3852 = vmatprep.subr.mxu0 0.0
    %3853 = vmatpush1.msra.mxu0 %v3635
    %3854 = vmatprep.subr.mxu0 0.0
    %3855 = vmatpush1.msra.mxu0 %v3640
    %3856 = vmatprep.subr.mxu0 0.0
    %3857 = vmatpush1.msra.mxu0 %v3643
    %3858 = vmatprep.subr.mxu0 0.0
    %3859 = vmatpush1.msra.mxu0 %v3648
    %3860 = vmatprep.subr.mxu0 0.0
    %3861 = vmatpush1.msra.mxu0 %v3651
    %3862 = vmatprep.subr.mxu0 0.0
    %3863 = vmatpush1.msra.mxu0 %v3656
    %3864 = vmatprep.subr.mxu0 0.0
    %3865 = vmatpush1.msra.mxu0 %v3659
    %3866 = vmatprep.subr.mxu0 0.0
    %3867 = vmatpush1.msra.mxu0 %v3664
    %3868 = vmatprep.subr.mxu0 0.0
    %3869 = vmatpush1.msra.mxu0 %v3667
    %3870 = vmatprep.subr.mxu0 0.0
    %3871 = vmatpush1.msra.mxu0 %v3672
    %3872 = vmatprep.subr.mxu0 0.0
    %3873 = vmatpush1.msra.mxu0 %v3675
    %3874 = vmatprep.subr.mxu0 0.0
    %3875 = vmatpush1.msra.mxu0 %v3680
    %3876 = vmatprep.subr.mxu0 0.0
    %3877 = vmatpush1.msra.mxu0 %v3683
    %3878 = vmatprep.subr.mxu0 0.0
    %3879 = vmatpush1.msra.mxu0 %v3688
    %3880 = vmatprep.subr.mxu0 0.0
    %3881 = vmatpush1.msra.mxu0 %v3691
    %3882 = vmatprep.subr.mxu0 0.0
    %3883 = vmatpush1.msra.mxu0 %v3696
    %3884 = vmatprep.subr.mxu0 0.0
    %3885 = vmatpush1.msra.mxu0 %v3699
    %3886 = vmatprep.subr.mxu0 0.0
    %3887 = vmatpush1.msra.mxu0 %v3704
    %3888 = vmatprep.subr.mxu0 0.0
    %3889 = vmatpush1.msra.mxu0 %v3707
    %3890 = vmatprep.subr.mxu0 0.0
    %3891 = vmatpush1.msra.mxu0 %v3712
    %3892 = vmatprep.subr.mxu0 0.0
    %3893 = vmatpush1.msra.mxu0 %v3715
    %3894 = vmatprep.subr.mxu0 0.0
    %3895 = vmatpush1.msra.mxu0 %v3720
    %3896 = vmatprep.subr.mxu0 0.0
    %3897 = vmatpush1.msra.mxu0 %v3723
    %3898 = vmatprep.subr.mxu0 0.0
    %3899 = vmatpush1.msra.mxu0 %v3728
    %3900 = vmatprep.subr.mxu0 0.0
    %3901 = vmatpush1.msra.mxu0 %v3731
    %3902 = vmatprep.subr.mxu0 0.0
    %3903 = vmatpush1.msra.mxu0 %v3736
    %3904 = vmatprep.subr.mxu0 0.0
    %3905 = vmatpush1.msra.mxu0 %v3739
    %3906 = vmatprep.mubr.f32.mxu0 %v121
    %3907 = vmatmul.mubr.f32.gmra.mrb[0].mxu0 %v120
    %v3908 = vpop.f32.mrb[0].mxu0
    %v3909 = vadd.f32 0.0, %v3908
    %v3910 = vpop.f32.mrb[0].mxu0
    %3911 = vdwg.mxu0
    %3912 = vmatprep.subr.mxu0 0.0
    %3913 = vmatpush1.msra.mxu0 %v3744
    %3914 = vmatprep.subr.mxu0 0.0
    %3915 = vmatpush1.msra.mxu0 %v3747
    %3916 = vmatprep.subr.mxu0 0.0
    %3917 = vmatpush1.msra.mxu0 %v3752
    %3918 = vmatprep.subr.mxu0 0.0
    %3919 = vmatpush1.msra.mxu0 %v3755
    %3920 = vmatprep.subr.mxu0 0.0
    %3921 = vmatpush1.msra.mxu0 %v3760
    %3922 = vmatprep.subr.mxu0 0.0
    %3923 = vmatpush1.msra.mxu0 %v3763
    %3924 = vmatprep.subr.mxu0 0.0
    %3925 = vmatpush1.msra.mxu0 %v3768
    %3926 = vmatprep.subr.mxu0 0.0
    %3927 = vmatpush1.msra.mxu0 %v3771
    %3928 = vmatprep.subr.mxu0 0.0
    %3929 = vmatpush1.msra.mxu0 %v3776
    %3930 = vmatprep.subr.mxu0 0.0
    %3931 = vmatpush1.msra.mxu0 %v3779
    %3932 = vmatprep.subr.mxu0 0.0
    %3933 = vmatpush1.msra.mxu0 %v3784
    %3934 = vmatprep.subr.mxu0 0.0
    %3935 = vmatpush1.msra.mxu0 %v3787
    %3936 = vmatprep.subr.mxu0 0.0
    %3937 = vmatpush1.msra.mxu0 %v3792
    %3938 = vmatprep.subr.mxu0 0.0
    %3939 = vmatpush1.msra.mxu0 %v3795
    %3940 = vmatprep.subr.mxu0 0.0
    %3941 = vmatpush1.msra.mxu0 %v3800
    %3942 = vmatprep.subr.mxu0 0.0
    %3943 = vmatpush1.msra.mxu0 %v3803
    %3944 = vmatprep.subr.mxu0 0.0
    %3945 = vmatpush1.msra.mxu0 %v3808
    %3946 = vmatprep.subr.mxu0 0.0
    %3947 = vmatpush1.msra.mxu0 %v3811
    %3948 = vmatprep.subr.mxu0 0.0
    %3949 = vmatpush1.msra.mxu0 %v3816
    %3950 = vmatprep.subr.mxu0 0.0
    %3951 = vmatpush1.msra.mxu0 %v3819
    %3952 = vmatprep.subr.mxu0 0.0
    %3953 = vmatpush1.msra.mxu0 %v3824
    %3954 = vmatprep.subr.mxu0 0.0
    %3955 = vmatpush1.msra.mxu0 %v3827
    %3956 = vmatprep.subr.mxu0 0.0
    %3957 = vmatpush1.msra.mxu0 %v3832
    %3958 = vmatprep.subr.mxu0 0.0
    %3959 = vmatpush1.msra.mxu0 %v3835
    %3960 = vmatprep.subr.mxu0 0.0
    %3961 = vmatpush1.msra.mxu0 0.0
    %3962 = vmatprep.subr.mxu0 0.0
    %3963 = vmatpush1.msra.mxu0 0.0
    %3964 = vmatprep.subr.mxu0 0.0
    %3965 = vmatpush1.msra.mxu0 0.0
    %3966 = vmatprep.subr.mxu0 0.0
    %3967 = vmatpush1.msra.mxu0 0.0
    %3968 = vmatprep.subr.mxu0 0.0
    %3969 = vmatpush1.msra.mxu0 0.0
    %3970 = vmatprep.subr.mxu0 0.0
    %3971 = vmatpush1.msra.mxu0 0.0
    %3972 = vmatprep.subr.mxu0 0.0
    %3973 = vmatpush1.msra.mxu0 0.0
    %3974 = vmatprep.subr.mxu0 0.0
    %3975 = vmatpush1.msra.mxu0 0.0
    %3976 = vmatprep.mubr.f32.mxu0 %v3840
    %3977 = vmatmul.mubr.f32.gmra.mrb[0].mxu0 %v122
    %v3978 = vpop.f32.mrb[0].mxu0
    %v3979 = vadd.f32 %v3909, %v3978
    %v3980 = vpop.f32.mrb[0].mxu0
    %3981 = vdwg.mxu0
    %v3982 = vmul.f32 %v3616, %v3616
    %v3983 = vmul.f32 %v3619, %v3619
    %v3984 = vmul.f32 %v3624, %v3624
    %v3985 = vmul.f32 %v3627, %v3627
    %v3986 = vmul.f32 %v3632, %v3632
    %v3987 = vmul.f32 %v3635, %v3635
    %v3988 = vmul.f32 %v3640, %v3640
    %v3989 = vmul.f32 %v3643, %v3643
    %v3990 = vmul.f32 %v3648, %v3648
    %v3991 = vmul.f32 %v3651, %v3651
    %v3992 = vmul.f32 %v3656, %v3656
    %v3993 = vmul.f32 %v3659, %v3659
    %v3994 = vmul.f32 %v3664, %v3664
    %v3995 = vmul.f32 %v3667, %v3667
    %v3996 = vmul.f32 %v3672, %v3672
    %v3997 = vmul.f32 %v3675, %v3675
    %v3998 = vmul.f32 %v3680, %v3680
    %v3999 = vmul.f32 %v3683, %v3683
    %v4000 = vmul.f32 %v3688, %v3688
    %v4001 = vmul.f32 %v3691, %v3691
    %v4002 = vmul.f32 %v3696, %v3696
    %v4003 = vmul.f32 %v3699, %v3699
    %v4004 = vmul.f32 %v3704, %v3704
    %v4005 = vmul.f32 %v3707, %v3707
    %v4006 = vmul.f32 %v3712, %v3712
    %v4007 = vmul.f32 %v3715, %v3715
    %v4008 = vmul.f32 %v3720, %v3720
    %v4009 = vmul.f32 %v3723, %v3723
    %v4010 = vmul.f32 %v3728, %v3728
    %v4011 = vmul.f32 %v3731, %v3731
    %v4012 = vmul.f32 %v3736, %v3736
    %v4013 = vmul.f32 %v3739, %v3739
    %v4014 = vmul.f32 %v3744, %v3744
    %v4015 = vmul.f32 %v3747, %v3747
    %v4016 = vmul.f32 %v3752, %v3752
    %v4017 = vmul.f32 %v3755, %v3755
    %v4018 = vmul.f32 %v3760, %v3760
    %v4019 = vmul.f32 %v3763, %v3763
    %v4020 = vmul.f32 %v3768, %v3768
    %v4021 = vmul.f32 %v3771, %v3771
    %v4022 = vmul.f32 %v3776, %v3776
    %v4023 = vmul.f32 %v3779, %v3779
    %v4024 = vmul.f32 %v3784, %v3784
    %v4025 = vmul.f32 %v3787, %v3787
    %v4026 = vmul.f32 %v3792, %v3792
    %v4027 = vmul.f32 %v3795, %v3795
    %v4028 = vmul.f32 %v3800, %v3800
    %v4029 = vmul.f32 %v3803, %v3803
    %v4030 = vmul.f32 %v3808, %v3808
    %v4031 = vmul.f32 %v3811, %v3811
    %v4032 = vmul.f32 %v3816, %v3816
    %v4033 = vmul.f32 %v3819, %v3819
    %v4034 = vmul.f32 %v3824, %v3824
    %v4035 = vmul.f32 %v3827, %v3827
    %v4036 = vmul.f32 %v3832, %v3832
    %v4037 = vmul.f32 %v3835, %v3835
    %4038 = vmatprep.subr.mxu0 0.0
    %4039 = vmatpush1.msra.mxu0 %v3982
    %4040 = vmatprep.subr.mxu0 0.0
    %4041 = vmatpush1.msra.mxu0 %v3983
    %4042 = vmatprep.subr.mxu0 0.0
    %4043 = vmatpush1.msra.mxu0 %v3984
    %4044 = vmatprep.subr.mxu0 0.0
    %4045 = vmatpush1.msra.mxu0 %v3985
    %4046 = vmatprep.subr.mxu0 0.0
    %4047 = vmatpush1.msra.mxu0 %v3986
    %4048 = vmatprep.subr.mxu0 0.0
    %4049 = vmatpush1.msra.mxu0 %v3987
    %4050 = vmatprep.subr.mxu0 0.0
    %4051 = vmatpush1.msra.mxu0 %v3988
    %4052 = vmatprep.subr.mxu0 0.0
    %4053 = vmatpush1.msra.mxu0 %v3989
    %4054 = vmatprep.subr.mxu0 0.0
    %4055 = vmatpush1.msra.mxu0 %v3990
    %4056 = vmatprep.subr.mxu0 0.0
    %4057 = vmatpush1.msra.mxu0 %v3991
    %4058 = vmatprep.subr.mxu0 0.0
    %4059 = vmatpush1.msra.mxu0 %v3992
    %4060 = vmatprep.subr.mxu0 0.0
    %4061 = vmatpush1.msra.mxu0 %v3993
    %4062 = vmatprep.subr.mxu0 0.0
    %4063 = vmatpush1.msra.mxu0 %v3994
    %4064 = vmatprep.subr.mxu0 0.0
    %4065 = vmatpush1.msra.mxu0 %v3995
    %4066 = vmatprep.subr.mxu0 0.0
    %4067 = vmatpush1.msra.mxu0 %v3996
    %4068 = vmatprep.subr.mxu0 0.0
    %4069 = vmatpush1.msra.mxu0 %v3997
    %4070 = vmatprep.subr.mxu0 0.0
    %4071 = vmatpush1.msra.mxu0 %v3998
    %4072 = vmatprep.subr.mxu0 0.0
    %4073 = vmatpush1.msra.mxu0 %v3999
    %4074 = vmatprep.subr.mxu0 0.0
    %4075 = vmatpush1.msra.mxu0 %v4000
    %4076 = vmatprep.subr.mxu0 0.0
    %4077 = vmatpush1.msra.mxu0 %v4001
    %4078 = vmatprep.subr.mxu0 0.0
    %4079 = vmatpush1.msra.mxu0 %v4002
    %4080 = vmatprep.subr.mxu0 0.0
    %4081 = vmatpush1.msra.mxu0 %v4003
    %4082 = vmatprep.subr.mxu0 0.0
    %4083 = vmatpush1.msra.mxu0 %v4004
    %4084 = vmatprep.subr.mxu0 0.0
    %4085 = vmatpush1.msra.mxu0 %v4005
    %4086 = vmatprep.subr.mxu0 0.0
    %4087 = vmatpush1.msra.mxu0 %v4006
    %4088 = vmatprep.subr.mxu0 0.0
    %4089 = vmatpush1.msra.mxu0 %v4007
    %4090 = vmatprep.subr.mxu0 0.0
    %4091 = vmatpush1.msra.mxu0 %v4008
    %4092 = vmatprep.subr.mxu0 0.0
    %4093 = vmatpush1.msra.mxu0 %v4009
    %4094 = vmatprep.subr.mxu0 0.0
    %4095 = vmatpush1.msra.mxu0 %v4010
    %4096 = vmatprep.subr.mxu0 0.0
    %4097 = vmatpush1.msra.mxu0 %v4011
    %4098 = vmatprep.subr.mxu0 0.0
    %4099 = vmatpush1.msra.mxu0 %v4012
    %4100 = vmatprep.subr.mxu0 0.0
    %4101 = vmatpush1.msra.mxu0 %v4013
    %4102 = vmatprep.mubr.f32.mxu0 %v121
    %4103 = vmatmul.mubr.f32.gmra.mrb[0].mxu0 %v120
    %v4104 = vpop.f32.mrb[0].mxu0
    %v4105 = vadd.f32 0.0, %v4104
    %v4106 = vpop.f32.mrb[0].mxu0
    %4107 = vdwg.mxu0
    %4108 = vmatprep.subr.mxu0 0.0
    %4109 = vmatpush1.msra.mxu0 %v4014
    %4110 = vmatprep.subr.mxu0 0.0
    %4111 = vmatpush1.msra.mxu0 %v4015
    %4112 = vmatprep.subr.mxu0 0.0
    %4113 = vmatpush1.msra.mxu0 %v4016
    %4114 = vmatprep.subr.mxu0 0.0
    %4115 = vmatpush1.msra.mxu0 %v4017
    %4116 = vmatprep.subr.mxu0 0.0
    %4117 = vmatpush1.msra.mxu0 %v4018
    %4118 = vmatprep.subr.mxu0 0.0
    %4119 = vmatpush1.msra.mxu0 %v4019
    %4120 = vmatprep.subr.mxu0 0.0
    %4121 = vmatpush1.msra.mxu0 %v4020
    %4122 = vmatprep.subr.mxu0 0.0
    %4123 = vmatpush1.msra.mxu0 %v4021
    %4124 = vmatprep.subr.mxu0 0.0
    %4125 = vmatpush1.msra.mxu0 %v4022
    %4126 = vmatprep.subr.mxu0 0.0
    %4127 = vmatpush1.msra.mxu0 %v4023
    %4128 = vmatprep.subr.mxu0 0.0
    %4129 = vmatpush1.msra.mxu0 %v4024
    %4130 = vmatprep.subr.mxu0 0.0
    %4131 = vmatpush1.msra.mxu0 %v4025
    %4132 = vmatprep.subr.mxu0 0.0
    %4133 = vmatpush1.msra.mxu0 %v4026
    %4134 = vmatprep.subr.mxu0 0.0
    %4135 = vmatpush1.msra.mxu0 %v4027
    %4136 = vmatprep.subr.mxu0 0.0
    %4137 = vmatpush1.msra.mxu0 %v4028
    %4138 = vmatprep.subr.mxu0 0.0
    %4139 = vmatpush1.msra.mxu0 %v4029
    %4140 = vmatprep.subr.mxu0 0.0
    %4141 = vmatpush1.msra.mxu0 %v4030
    %4142 = vmatprep.subr.mxu0 0.0
    %4143 = vmatpush1.msra.mxu0 %v4031
    %4144 = vmatprep.subr.mxu0 0.0
    %4145 = vmatpush1.msra.mxu0 %v4032
    %4146 = vmatprep.subr.mxu0 0.0
    %4147 = vmatpush1.msra.mxu0 %v4033
    %4148 = vmatprep.subr.mxu0 0.0
    %4149 = vmatpush1.msra.mxu0 %v4034
    %4150 = vmatprep.subr.mxu0 0.0
    %4151 = vmatpush1.msra.mxu0 %v4035
    %4152 = vmatprep.subr.mxu0 0.0
    %4153 = vmatpush1.msra.mxu0 %v4036
    %4154 = vmatprep.subr.mxu0 0.0
    %4155 = vmatpush1.msra.mxu0 %v4037
    %4156 = vmatprep.subr.mxu0 0.0
    %4157 = vmatpush1.msra.mxu0 0.0
    %4158 = vmatprep.subr.mxu0 0.0
    %4159 = vmatpush1.msra.mxu0 0.0
    %4160 = vmatprep.subr.mxu0 0.0
    %4161 = vmatpush1.msra.mxu0 0.0
    %4162 = vmatprep.subr.mxu0 0.0
    %4163 = vmatpush1.msra.mxu0 0.0
    %4164 = vmatprep.subr.mxu0 0.0
    %4165 = vmatpush1.msra.mxu0 0.0
    %4166 = vmatprep.subr.mxu0 0.0
    %4167 = vmatpush1.msra.mxu0 0.0
    %4168 = vmatprep.subr.mxu0 0.0
    %4169 = vmatpush1.msra.mxu0 0.0
    %4170 = vmatprep.subr.mxu0 0.0
    %4171 = vmatpush1.msra.mxu0 0.0
    %4172 = vmatprep.mubr.f32.mxu0 %v3840
    %4173 = vmatmul.mubr.f32.gmra.mrb[0].mxu0 %v122
    %v4174 = vpop.f32.mrb[0].mxu0
    %v4175 = vadd.f32 %v4105, %v4174
    %v4176 = vpop.f32.mrb[0].mxu0
    %4177 = vdwg.mxu0
    %4178 = vmatprep.subr.mxu0 0.0
    %4179 = vmatpush1.msra.mxu0 %v79
    %4180 = vmatprep.subr.mxu0 0.0
    %4181 = vmatpush1.msra.mxu0 %v80
    %4182 = vmatprep.subr.mxu0 0.0
    %4183 = vmatpush1.msra.mxu0 %v81
    %4184 = vmatprep.subr.mxu0 0.0
    %4185 = vmatpush1.msra.mxu0 %v82
    %4186 = vmatprep.subr.mxu0 0.0
    %4187 = vmatpush1.msra.mxu0 %v83
    %4188 = vmatprep.subr.mxu0 0.0
    %4189 = vmatpush1.msra.mxu0 %v84
    %4190 = vmatprep.subr.mxu0 0.0
    %4191 = vmatpush1.msra.mxu0 %v85
    %4192 = vmatprep.subr.mxu0 0.0
    %4193 = vmatpush1.msra.mxu0 %v86
    %4194 = vmatprep.subr.mxu0 0.0
    %4195 = vmatpush1.msra.mxu0 %v87
    %4196 = vmatprep.subr.mxu0 0.0
    %4197 = vmatpush1.msra.mxu0 %v88
    %4198 = vmatprep.subr.mxu0 0.0
    %4199 = vmatpush1.msra.mxu0 %v89
    %4200 = vmatprep.subr.mxu0 0.0
    %4201 = vmatpush1.msra.mxu0 %v90
    %4202 = vmatprep.subr.mxu0 0.0
    %4203 = vmatpush1.msra.mxu0 %v91
    %4204 = vmatprep.subr.mxu0 0.0
    %4205 = vmatpush1.msra.mxu0 %v92
    %4206 = vmatprep.subr.mxu0 0.0
    %4207 = vmatpush1.msra.mxu0 %v93
    %4208 = vmatprep.subr.mxu0 0.0
    %4209 = vmatpush1.msra.mxu0 %v94
    %4210 = vmatprep.subr.mxu0 0.0
    %4211 = vmatpush1.msra.mxu0 0.0
    %4212 = vmatprep.subr.mxu0 0.0
    %4213 = vmatpush1.msra.mxu0 0.0
    %4214 = vmatprep.subr.mxu0 0.0
    %4215 = vmatpush1.msra.mxu0 0.0
    %4216 = vmatprep.subr.mxu0 0.0
    %4217 = vmatpush1.msra.mxu0 0.0
    %4218 = vmatprep.subr.mxu0 0.0
    %4219 = vmatpush1.msra.mxu0 0.0
    %4220 = vmatprep.subr.mxu0 0.0
    %4221 = vmatpush1.msra.mxu0 0.0
    %4222 = vmatprep.subr.mxu0 0.0
    %4223 = vmatpush1.msra.mxu0 0.0
    %4224 = vmatprep.subr.mxu0 0.0
    %4225 = vmatpush1.msra.mxu0 0.0
    %4226 = vmatprep.subr.mxu0 0.0
    %4227 = vmatpush1.msra.mxu0 0.0
    %4228 = vmatprep.subr.mxu0 0.0
    %4229 = vmatpush1.msra.mxu0 0.0
    %4230 = vmatprep.subr.mxu0 0.0
    %4231 = vmatpush1.msra.mxu0 0.0
    %4232 = vmatprep.subr.mxu0 0.0
    %4233 = vmatpush1.msra.mxu0 0.0
    %4234 = vmatprep.subr.mxu0 0.0
    %4235 = vmatpush1.msra.mxu0 0.0
    %4236 = vmatprep.subr.mxu0 0.0
    %4237 = vmatpush1.msra.mxu0 0.0
    %4238 = vmatprep.subr.mxu0 0.0
    %4239 = vmatpush1.msra.mxu0 0.0
    %4240 = vmatprep.subr.mxu0 0.0
    %4241 = vmatpush1.msra.mxu0 0.0
    %4242 = vmatprep.mubr.f32.mxu0 0.0
    %4243 = vmatmul.mubr.f32.gmra.mrb[0].mxu0 %v3979
    %v4244 = vpop.f32.mrb[0].mxu0
    %v4245 = vadd.f32 0.0, %v4244
    %v4246 = vpop.f32.mrb[0].mxu0
    %4247 = vmatprep.mubr.f32.mxu0 0.0
    %4248 = vmatmul.mubr.f32.gmra.mrb[0].mxu0 %v4175
    %v4249 = vpop.f32.mrb[0].mxu0
    %v4250 = vadd.f32 0.0, %v4249
    %v4251 = vpop.f32.mrb[0].mxu0
    %4252 = vdwg.mxu0
    %v4253 = vmul.f32 %v4245, 0.0051020407
    %v4254 = vmul.f32 %v4250, 0.0051020407
    %v4255 = vmul.f32 %v4253, %v4253
    %v4256 = vsub.f32 %v4254, %v4255
    %v4257 = vmax.f32 %v4256, 0.0
    %v4258 = vadd.f32 %v4257, 1e-05
    %v4259 = vrsqrt.pop %v4258
    %vm4260 = vcmask 261120
    %v4262 = vsel %vm4260, %v4253, 0
    %v4265 = vsel %vm4260, %v4259, 0
    %4267 = vmatprep.subr.mxu0 0.0
    %4268 = vmatpush1.msra.mxu0 %v70
    %4269 = vmatprep.subr.mxu0 0.0
    %4270 = vmatpush1.msra.mxu0 %v71
    %4271 = vmatprep.subr.mxu0 0.0
    %4272 = vmatpush1.msra.mxu0 %v72
    %4273 = vmatprep.subr.mxu0 0.0
    %4274 = vmatpush1.msra.mxu0 %v73
    %4275 = vmatprep.subr.mxu0 0.0
    %4276 = vmatpush1.msra.mxu0 0.0
    %4277 = vmatprep.subr.mxu0 0.0
    %4278 = vmatpush1.msra.mxu0 0.0
    %4279 = vmatprep.subr.mxu0 0.0
    %4280 = vmatpush1.msra.mxu0 0.0
    %4281 = vmatprep.subr.mxu0 0.0
    %4282 = vmatpush1.msra.mxu0 0.0
    %4283 = vmatprep.subr.mxu0 0.0
    %4284 = vmatpush1.msra.mxu0 0.0
    %4285 = vmatprep.subr.mxu0 0.0
    %4286 = vmatpush1.msra.mxu0 0.0
    %4287 = vmatprep.subr.mxu0 0.0
    %4288 = vmatpush1.msra.mxu0 0.0
    %4289 = vmatprep.subr.mxu0 0.0
    %4290 = vmatpush1.msra.mxu0 0.0
    %4291 = vmatprep.subr.mxu0 0.0
    %4292 = vmatpush1.msra.mxu0 0.0
    %4293 = vmatprep.subr.mxu0 0.0
    %4294 = vmatpush1.msra.mxu0 0.0
    %4295 = vmatprep.subr.mxu0 0.0
    %4296 = vmatpush1.msra.mxu0 0.0
    %4297 = vmatprep.subr.mxu0 0.0
    %4298 = vmatpush1.msra.mxu0 0.0
    %4299 = vmatprep.subr.mxu0 0.0
    %4300 = vmatpush1.msra.mxu0 0.0
    %4301 = vmatprep.subr.mxu0 0.0
    %4302 = vmatpush1.msra.mxu0 0.0
    %4303 = vmatprep.subr.mxu0 0.0
    %4304 = vmatpush1.msra.mxu0 0.0
    %4305 = vmatprep.subr.mxu0 0.0
    %4306 = vmatpush1.msra.mxu0 0.0
    %4307 = vmatprep.subr.mxu0 0.0
    %4308 = vmatpush1.msra.mxu0 0.0
    %4309 = vmatprep.subr.mxu0 0.0
    %4310 = vmatpush1.msra.mxu0 0.0
    %4311 = vmatprep.subr.mxu0 0.0
    %4312 = vmatpush1.msra.mxu0 0.0
    %4313 = vmatprep.subr.mxu0 0.0
    %4314 = vmatpush1.msra.mxu0 0.0
    %4315 = vmatprep.subr.mxu0 0.0
    %4316 = vmatpush1.msra.mxu0 0.0
    %4317 = vmatprep.subr.mxu0 0.0
    %4318 = vmatpush1.msra.mxu0 0.0
    %4319 = vmatprep.subr.mxu0 0.0
    %4320 = vmatpush1.msra.mxu0 0.0
    %4321 = vmatprep.subr.mxu0 0.0
    %4322 = vmatpush1.msra.mxu0 0.0
    %4323 = vmatprep.subr.mxu0 0.0
    %4324 = vmatpush1.msra.mxu0 0.0
    %4325 = vmatprep.subr.mxu0 0.0
    %4326 = vmatpush1.msra.mxu0 0.0
    %4327 = vmatprep.subr.mxu0 0.0
    %4328 = vmatpush1.msra.mxu0 0.0
    %4329 = vmatprep.subr.mxu0 0.0
    %4330 = vmatpush1.msra.mxu0 0.0
    %4331 = vmatprep.mubr.f32.mxu0 0.0
    %4332 = vmatmul.mubr.f32.gmra.mrb[0].mxu0 %v4262
    %v4333 = vpop.f32.mrb[0].mxu0
    %v4334 = vadd.f32 0.0, %v4333
    %v4335 = vpop.f32.mrb[0].mxu0
    %4336 = vmatprep.mubr.f32.mxu0 0.0
    %4337 = vmatmul.mubr.f32.gmra.mrb[0].mxu0 %v4265
    %v4338 = vpop.f32.mrb[0].mxu0
    %v4339 = vadd.f32 0.0, %v4338
    %v4340 = vpop.f32.mrb[0].mxu0
    %4341 = vdwg.mxu0
    %vm4342 = vcmask 64512
    %v4344 = vsel %vm4342, %v349, 0
    %v4347 = vsel %vm4342, %v350, 0
    %v4350 = vsel %vm4342, %v351, 0
    %v4353 = vsel %vm4342, %v352, 0
    %v4356 = vsel %vm4342, %v353, 0
    %v4359 = vsel %vm4342, %v354, 0
    %v4362 = vsel %vm4342, %v355, 0
    %v4365 = vsel %vm4342, %v356, 0
    %v4368 = vsel %vm4342, %v357, 0
    %v4371 = vsel %vm4342, %v358, 0
    %v4374 = vsel %vm4342, %v359, 0
    %v4377 = vsel %vm4342, %v360, 0
    %v4380 = vsel %vm4342, %v361, 0
    %v4383 = vsel %vm4342, %v362, 0
    %v4386 = vsel %vm4342, %v363, 0
    %v4389 = vsel %vm4342, %v364, 0
    %v4392 = vsel %vm4342, %v365, 0
    %v4395 = vsel %vm4342, %v366, 0
    %v4398 = vsel %vm4342, %v367, 0
    %v4401 = vsel %vm4342, %v368, 0
    %v4404 = vsel %vm4342, %v369, 0
    %v4407 = vsel %vm4342, %v370, 0
    %v4410 = vsel %vm4342, %v371, 0
    %v4413 = vsel %vm4342, %v372, 0
    %v4416 = vsel %vm4342, %v373, 0
    %v4419 = vsel %vm4342, %v374, 0
    %v4422 = vsel %vm4342, %v375, 0
    %v4425 = vsel %vm4342, %v376, 0
    %v4428 = vsel %vm4342, %v377, 0
    %v4431 = vsel %vm4342, %v378, 0
    %v4434 = vsel %vm4342, %v379, 0
    %v4437 = vsel %vm4342, %v380, 0
    %v4440 = vsel %vm4342, %v381, 0
    %v4443 = vsel %vm4342, %v382, 0
    %v4446 = vsel %vm4342, %v383, 0
    %v4449 = vsel %vm4342, %v384, 0
    %v4452 = vsel %vm4342, %v385, 0
    %v4455 = vsel %vm4342, %v386, 0
    %v4458 = vsel %vm4342, %v387, 0
    %v4461 = vsel %vm4342, %v388, 0
    %v4464 = vsel %vm4342, %v389, 0
    %v4467 = vsel %vm4342, %v390, 0
    %v4470 = vsel %vm4342, %v391, 0
    %v4473 = vsel %vm4342, %v392, 0
    %v4476 = vsel %vm4342, %v393, 0
    %v4479 = vsel %vm4342, %v394, 0
    %v4482 = vsel %vm4342, %v395, 0
    %v4485 = vsel %vm4342, %v396, 0
    %v4488 = vsel %vm4342, %v397, 0
    %v4491 = vsel %vm4342, %v398, 0
    %v4494 = vsel %vm4342, %v399, 0
    %v4497 = vsel %vm4342, %v400, 0
    %v4500 = vsel %vm4342, %v401, 0
    %v4503 = vsel %vm4342, %v402, 0
    %v4506 = vsel %vm4342, %v403, 0
    %v4509 = vsel %vm4342, %v404, 0
    %4511 = vmatprep.subr.mxu0 0.0
    %4512 = vmatpush1.msra.mxu0 %v4334
    %4513 = vmatprep.subr.mxu0 0.0
    %4514 = vmatpush1.msra.mxu0 0.0
    %4515 = vmatprep.subr.mxu0 0.0
    %4516 = vmatpush1.msra.mxu0 0.0
    %4517 = vmatprep.subr.mxu0 0.0
    %4518 = vmatpush1.msra.mxu0 0.0
    %4519 = vmatprep.subr.mxu0 0.0
    %4520 = vmatpush1.msra.mxu0 0.0
    %4521 = vmatprep.subr.mxu0 0.0
    %4522 = vmatpush1.msra.mxu0 0.0
    %4523 = vmatprep.subr.mxu0 0.0
    %4524 = vmatpush1.msra.mxu0 0.0
    %4525 = vmatprep.subr.mxu0 0.0
    %4526 = vmatpush1.msra.mxu0 0.0
    %4527 = vmatprep.subr.mxu0 0.0
    %4528 = vmatpush1.msra.mxu0 0.0
    %4529 = vmatprep.subr.mxu0 0.0
    %4530 = vmatpush1.msra.mxu0 0.0
    %4531 = vmatprep.subr.mxu0 0.0
    %4532 = vmatpush1.msra.mxu0 0.0
    %4533 = vmatprep.subr.mxu0 0.0
    %4534 = vmatpush1.msra.mxu0 0.0
    %4535 = vmatprep.subr.mxu0 0.0
    %4536 = vmatpush1.msra.mxu0 0.0
    %4537 = vmatprep.subr.mxu0 0.0
    %4538 = vmatpush1.msra.mxu0 0.0
    %4539 = vmatprep.subr.mxu0 0.0
    %4540 = vmatpush1.msra.mxu0 0.0
    %4541 = vmatprep.subr.mxu0 0.0
    %4542 = vmatpush1.msra.mxu0 0.0
    %4543 = vmatprep.subr.mxu0 0.0
    %4544 = vmatpush1.msra.mxu0 0.0
    %4545 = vmatprep.subr.mxu0 0.0
    %4546 = vmatpush1.msra.mxu0 0.0
    %4547 = vmatprep.subr.mxu0 0.0
    %4548 = vmatpush1.msra.mxu0 0.0
    %4549 = vmatprep.subr.mxu0 0.0
    %4550 = vmatpush1.msra.mxu0 0.0
    %4551 = vmatprep.subr.mxu0 0.0
    %4552 = vmatpush1.msra.mxu0 0.0
    %4553 = vmatprep.subr.mxu0 0.0
    %4554 = vmatpush1.msra.mxu0 0.0
    %4555 = vmatprep.subr.mxu0 0.0
    %4556 = vmatpush1.msra.mxu0 0.0
    %4557 = vmatprep.subr.mxu0 0.0
    %4558 = vmatpush1.msra.mxu0 0.0
    %4559 = vmatprep.subr.mxu0 0.0
    %4560 = vmatpush1.msra.mxu0 0.0
    %4561 = vmatprep.subr.mxu0 0.0
    %4562 = vmatpush1.msra.mxu0 0.0
    %4563 = vmatprep.subr.mxu0 0.0
    %4564 = vmatpush1.msra.mxu0 0.0
    %4565 = vmatprep.subr.mxu0 0.0
    %4566 = vmatpush1.msra.mxu0 0.0
    %4567 = vmatprep.subr.mxu0 0.0
    %4568 = vmatpush1.msra.mxu0 0.0
    %4569 = vmatprep.subr.mxu0 0.0
    %4570 = vmatpush1.msra.mxu0 0.0
    %4571 = vmatprep.subr.mxu0 0.0
    %4572 = vmatpush1.msra.mxu0 0.0
    %4573 = vmatprep.subr.mxu0 0.0
    %4574 = vmatpush1.msra.mxu0 0.0
    %4575 = vmatprep.mubr.f32.mxu0 0.0
    %4576 = vmatmul.mubr.f32.gmra.mrb[0].mxu0 %v4344
    %v4577 = vpop.f32.mrb[0].mxu0
    %v4578 = vadd.f32 0.0, %v4577
    %v4579 = vpop.f32.mrb[0].mxu0
    %4580 = vmatprep.mubr.f32.mxu0 0.0
    %4581 = vmatmul.mubr.f32.gmra.mrb[0].mxu0 %v4347
    %v4582 = vpop.f32.mrb[0].mxu0
    %v4583 = vadd.f32 0.0, %v4582
    %v4584 = vpop.f32.mrb[0].mxu0
    %4585 = vmatprep.mubr.f32.mxu0 0.0
    %4586 = vmatmul.mubr.f32.gmra.mrb[0].mxu0 %v4350
    %v4587 = vpop.f32.mrb[0].mxu0
    %v4588 = vadd.f32 0.0, %v4587
    %v4589 = vpop.f32.mrb[0].mxu0
    %4590 = vmatprep.mubr.f32.mxu0 0.0
    %4591 = vmatmul.mubr.f32.gmra.mrb[0].mxu0 %v4353
    %v4592 = vpop.f32.mrb[0].mxu0
    %v4593 = vadd.f32 0.0, %v4592
    %v4594 = vpop.f32.mrb[0].mxu0
    %4595 = vmatprep.mubr.f32.mxu0 0.0
    %4596 = vmatmul.mubr.f32.gmra.mrb[0].mxu0 %v4356
    %v4597 = vpop.f32.mrb[0].mxu0
    %v4598 = vadd.f32 0.0, %v4597
    %v4599 = vpop.f32.mrb[0].mxu0
    %4600 = vmatprep.mubr.f32.mxu0 0.0
    %4601 = vmatmul.mubr.f32.gmra.mrb[0].mxu0 %v4359
    %v4602 = vpop.f32.mrb[0].mxu0
    %v4603 = vadd.f32 0.0, %v4602
    %v4604 = vpop.f32.mrb[0].mxu0
    %4605 = vmatprep.mubr.f32.mxu0 0.0
    %4606 = vmatmul.mubr.f32.gmra.mrb[0].mxu0 %v4362
    %v4607 = vpop.f32.mrb[0].mxu0
    %v4608 = vadd.f32 0.0, %v4607
    %v4609 = vpop.f32.mrb[0].mxu0
    %4610 = vmatprep.mubr.f32.mxu0 0.0
    %4611 = vmatmul.mubr.f32.gmra.mrb[0].mxu0 %v4365
    %v4612 = vpop.f32.mrb[0].mxu0
    %v4613 = vadd.f32 0.0, %v4612
    %v4614 = vpop.f32.mrb[0].mxu0
    %4615 = vmatprep.mubr.f32.mxu0 0.0
    %4616 = vmatmul.mubr.f32.gmra.mrb[0].mxu0 %v4368
    %v4617 = vpop.f32.mrb[0].mxu0
    %v4618 = vadd.f32 0.0, %v4617
    %v4619 = vpop.f32.mrb[0].mxu0
    %4620 = vmatprep.mubr.f32.mxu0 0.0
    %4621 = vmatmul.mubr.f32.gmra.mrb[0].mxu0 %v4371
    %v4622 = vpop.f32.mrb[0].mxu0
    %v4623 = vadd.f32 0.0, %v4622
    %v4624 = vpop.f32.mrb[0].mxu0
    %4625 = vmatprep.mubr.f32.mxu0 0.0
    %4626 = vmatmul.mubr.f32.gmra.mrb[0].mxu0 %v4374
    %v4627 = vpop.f32.mrb[0].mxu0
    %v4628 = vadd.f32 0.0, %v4627
    %v4629 = vpop.f32.mrb[0].mxu0
    %4630 = vmatprep.mubr.f32.mxu0 0.0
    %4631 = vmatmul.mubr.f32.gmra.mrb[0].mxu0 %v4377
    %v4632 = vpop.f32.mrb[0].mxu0
    %v4633 = vadd.f32 0.0, %v4632
    %v4634 = vpop.f32.mrb[0].mxu0
    %4635 = vmatprep.mubr.f32.mxu0 0.0
    %4636 = vmatmul.mubr.f32.gmra.mrb[0].mxu0 %v4380
    %v4637 = vpop.f32.mrb[0].mxu0
    %v4638 = vadd.f32 0.0, %v4637
    %v4639 = vpop.f32.mrb[0].mxu0
    %4640 = vmatprep.mubr.f32.mxu0 0.0
    %4641 = vmatmul.mubr.f32.gmra.mrb[0].mxu0 %v4383
    %v4642 = vpop.f32.mrb[0].mxu0
    %v4643 = vadd.f32 0.0, %v4642
    %v4644 = vpop.f32.mrb[0].mxu0
    %4645 = vmatprep.mubr.f32.mxu0 0.0
    %4646 = vmatmul.mubr.f32.gmra.mrb[0].mxu0 %v4386
    %v4647 = vpop.f32.mrb[0].mxu0
    %v4648 = vadd.f32 0.0, %v4647
    %v4649 = vpop.f32.mrb[0].mxu0
    %4650 = vmatprep.mubr.f32.mxu0 0.0
    %4651 = vmatmul.mubr.f32.gmra.mrb[0].mxu0 %v4389
    %v4652 = vpop.f32.mrb[0].mxu0
    %v4653 = vadd.f32 0.0, %v4652
    %v4654 = vpop.f32.mrb[0].mxu0
    %4655 = vmatprep.mubr.f32.mxu0 0.0
    %4656 = vmatmul.mubr.f32.gmra.mrb[0].mxu0 %v4392
    %v4657 = vpop.f32.mrb[0].mxu0
    %v4658 = vadd.f32 0.0, %v4657
    %v4659 = vpop.f32.mrb[0].mxu0
    %4660 = vmatprep.mubr.f32.mxu0 0.0
    %4661 = vmatmul.mubr.f32.gmra.mrb[0].mxu0 %v4395
    %v4662 = vpop.f32.mrb[0].mxu0
    %v4663 = vadd.f32 0.0, %v4662
    %v4664 = vpop.f32.mrb[0].mxu0
    %4665 = vmatprep.mubr.f32.mxu0 0.0
    %4666 = vmatmul.mubr.f32.gmra.mrb[0].mxu0 %v4398
    %v4667 = vpop.f32.mrb[0].mxu0
    %v4668 = vadd.f32 0.0, %v4667
    %v4669 = vpop.f32.mrb[0].mxu0
    %4670 = vmatprep.mubr.f32.mxu0 0.0
    %4671 = vmatmul.mubr.f32.gmra.mrb[0].mxu0 %v4401
    %v4672 = vpop.f32.mrb[0].mxu0
    %v4673 = vadd.f32 0.0, %v4672
    %v4674 = vpop.f32.mrb[0].mxu0
    %4675 = vmatprep.mubr.f32.mxu0 0.0
    %4676 = vmatmul.mubr.f32.gmra.mrb[0].mxu0 %v4404
    %v4677 = vpop.f32.mrb[0].mxu0
    %v4678 = vadd.f32 0.0, %v4677
    %v4679 = vpop.f32.mrb[0].mxu0
    %4680 = vmatprep.mubr.f32.mxu0 0.0
    %4681 = vmatmul.mubr.f32.gmra.mrb[0].mxu0 %v4407
    %v4682 = vpop.f32.mrb[0].mxu0
    %v4683 = vadd.f32 0.0, %v4682
    %v4684 = vpop.f32.mrb[0].mxu0
    %4685 = vmatprep.mubr.f32.mxu0 0.0
    %4686 = vmatmul.mubr.f32.gmra.mrb[0].mxu0 %v4410
    %v4687 = vpop.f32.mrb[0].mxu0
    %v4688 = vadd.f32 0.0, %v4687
    %v4689 = vpop.f32.mrb[0].mxu0
    %4690 = vmatprep.mubr.f32.mxu0 0.0
    %4691 = vmatmul.mubr.f32.gmra.mrb[0].mxu0 %v4413
    %v4692 = vpop.f32.mrb[0].mxu0
    %v4693 = vadd.f32 0.0, %v4692
    %v4694 = vpop.f32.mrb[0].mxu0
    %4695 = vmatprep.mubr.f32.mxu0 0.0
    %4696 = vmatmul.mubr.f32.gmra.mrb[0].mxu0 %v4416
    %v4697 = vpop.f32.mrb[0].mxu0
    %v4698 = vadd.f32 0.0, %v4697
    %v4699 = vpop.f32.mrb[0].mxu0
    %4700 = vmatprep.mubr.f32.mxu0 0.0
    %4701 = vmatmul.mubr.f32.gmra.mrb[0].mxu0 %v4419
    %v4702 = vpop.f32.mrb[0].mxu0
    %v4703 = vadd.f32 0.0, %v4702
    %v4704 = vpop.f32.mrb[0].mxu0
    %4705 = vmatprep.mubr.f32.mxu0 0.0
    %4706 = vmatmul.mubr.f32.gmra.mrb[0].mxu0 %v4422
    %v4707 = vpop.f32.mrb[0].mxu0
    %v4708 = vadd.f32 0.0, %v4707
    %v4709 = vpop.f32.mrb[0].mxu0
    %4710 = vmatprep.mubr.f32.mxu0 0.0
    %4711 = vmatmul.mubr.f32.gmra.mrb[0].mxu0 %v4425
    %v4712 = vpop.f32.mrb[0].mxu0
    %v4713 = vadd.f32 0.0, %v4712
    %v4714 = vpop.f32.mrb[0].mxu0
    %4715 = vmatprep.mubr.f32.mxu0 0.0
    %4716 = vmatmul.mubr.f32.gmra.mrb[0].mxu0 %v4428
    %v4717 = vpop.f32.mrb[0].mxu0
    %v4718 = vadd.f32 0.0, %v4717
    %v4719 = vpop.f32.mrb[0].mxu0
    %4720 = vmatprep.mubr.f32.mxu0 0.0
    %4721 = vmatmul.mubr.f32.gmra.mrb[0].mxu0 %v4431
    %v4722 = vpop.f32.mrb[0].mxu0
    %v4723 = vadd.f32 0.0, %v4722
    %v4724 = vpop.f32.mrb[0].mxu0
    %4725 = vmatprep.mubr.f32.mxu0 0.0
    %4726 = vmatmul.mubr.f32.gmra.mrb[0].mxu0 %v4434
    %v4727 = vpop.f32.mrb[0].mxu0
    %v4728 = vadd.f32 0.0, %v4727
    %v4729 = vpop.f32.mrb[0].mxu0
    %4730 = vmatprep.mubr.f32.mxu0 0.0
    %4731 = vmatmul.mubr.f32.gmra.mrb[0].mxu0 %v4437
    %v4732 = vpop.f32.mrb[0].mxu0
    %v4733 = vadd.f32 0.0, %v4732
    %v4734 = vpop.f32.mrb[0].mxu0
    %4735 = vmatprep.mubr.f32.mxu0 0.0
    %4736 = vmatmul.mubr.f32.gmra.mrb[0].mxu0 %v4440
    %v4737 = vpop.f32.mrb[0].mxu0
    %v4738 = vadd.f32 0.0, %v4737
    %v4739 = vpop.f32.mrb[0].mxu0
    %4740 = vmatprep.mubr.f32.mxu0 0.0
    %4741 = vmatmul.mubr.f32.gmra.mrb[0].mxu0 %v4443
    %v4742 = vpop.f32.mrb[0].mxu0
    %v4743 = vadd.f32 0.0, %v4742
    %v4744 = vpop.f32.mrb[0].mxu0
    %4745 = vmatprep.mubr.f32.mxu0 0.0
    %4746 = vmatmul.mubr.f32.gmra.mrb[0].mxu0 %v4446
    %v4747 = vpop.f32.mrb[0].mxu0
    %v4748 = vadd.f32 0.0, %v4747
    %v4749 = vpop.f32.mrb[0].mxu0
    %4750 = vmatprep.mubr.f32.mxu0 0.0
    %4751 = vmatmul.mubr.f32.gmra.mrb[0].mxu0 %v4449
    %v4752 = vpop.f32.mrb[0].mxu0
    %v4753 = vadd.f32 0.0, %v4752
    %v4754 = vpop.f32.mrb[0].mxu0
    %4755 = vmatprep.mubr.f32.mxu0 0.0
    %4756 = vmatmul.mubr.f32.gmra.mrb[0].mxu0 %v4452
    %v4757 = vpop.f32.mrb[0].mxu0
    %v4758 = vadd.f32 0.0, %v4757
    %v4759 = vpop.f32.mrb[0].mxu0
    %4760 = vmatprep.mubr.f32.mxu0 0.0
    %4761 = vmatmul.mubr.f32.gmra.mrb[0].mxu0 %v4455
    %v4762 = vpop.f32.mrb[0].mxu0
    %v4763 = vadd.f32 0.0, %v4762
    %v4764 = vpop.f32.mrb[0].mxu0
    %4765 = vmatprep.mubr.f32.mxu0 0.0
    %4766 = vmatmul.mubr.f32.gmra.mrb[0].mxu0 %v4458
    %v4767 = vpop.f32.mrb[0].mxu0
    %v4768 = vadd.f32 0.0, %v4767
    %v4769 = vpop.f32.mrb[0].mxu0
    %4770 = vmatprep.mubr.f32.mxu0 0.0
    %4771 = vmatmul.mubr.f32.gmra.mrb[0].mxu0 %v4461
    %v4772 = vpop.f32.mrb[0].mxu0
    %v4773 = vadd.f32 0.0, %v4772
    %v4774 = vpop.f32.mrb[0].mxu0
    %4775 = vmatprep.mubr.f32.mxu0 0.0
    %4776 = vmatmul.mubr.f32.gmra.mrb[0].mxu0 %v4464
    %v4777 = vpop.f32.mrb[0].mxu0
    %v4778 = vadd.f32 0.0, %v4777
    %v4779 = vpop.f32.mrb[0].mxu0
    %4780 = vmatprep.mubr.f32.mxu0 0.0
    %4781 = vmatmul.mubr.f32.gmra.mrb[0].mxu0 %v4467
    %v4782 = vpop.f32.mrb[0].mxu0
    %v4783 = vadd.f32 0.0, %v4782
    %v4784 = vpop.f32.mrb[0].mxu0
    %4785 = vmatprep.mubr.f32.mxu0 0.0
    %4786 = vmatmul.mubr.f32.gmra.mrb[0].mxu0 %v4470
    %v4787 = vpop.f32.mrb[0].mxu0
    %v4788 = vadd.f32 0.0, %v4787
    %v4789 = vpop.f32.mrb[0].mxu0
    %4790 = vmatprep.mubr.f32.mxu0 0.0
    %4791 = vmatmul.mubr.f32.gmra.mrb[0].mxu0 %v4473
    %v4792 = vpop.f32.mrb[0].mxu0
    %v4793 = vadd.f32 0.0, %v4792
    %v4794 = vpop.f32.mrb[0].mxu0
    %4795 = vmatprep.mubr.f32.mxu0 0.0
    %4796 = vmatmul.mubr.f32.gmra.mrb[0].mxu0 %v4476
    %v4797 = vpop.f32.mrb[0].mxu0
    %v4798 = vadd.f32 0.0, %v4797
    %v4799 = vpop.f32.mrb[0].mxu0
    %4800 = vmatprep.mubr.f32.mxu0 0.0
    %4801 = vmatmul.mubr.f32.gmra.mrb[0].mxu0 %v4479
    %v4802 = vpop.f32.mrb[0].mxu0
    %v4803 = vadd.f32 0.0, %v4802
    %v4804 = vpop.f32.mrb[0].mxu0
    %4805 = vmatprep.mubr.f32.mxu0 0.0
    %4806 = vmatmul.mubr.f32.gmra.mrb[0].mxu0 %v4482
    %v4807 = vpop.f32.mrb[0].mxu0
    %v4808 = vadd.f32 0.0, %v4807
    %v4809 = vpop.f32.mrb[0].mxu0
    %4810 = vmatprep.mubr.f32.mxu0 0.0
    %4811 = vmatmul.mubr.f32.gmra.mrb[0].mxu0 %v4485
    %v4812 = vpop.f32.mrb[0].mxu0
    %v4813 = vadd.f32 0.0, %v4812
    %v4814 = vpop.f32.mrb[0].mxu0
    %4815 = vmatprep.mubr.f32.mxu0 0.0
    %4816 = vmatmul.mubr.f32.gmra.mrb[0].mxu0 %v4488
    %v4817 = vpop.f32.mrb[0].mxu0
    %v4818 = vadd.f32 0.0, %v4817
    %v4819 = vpop.f32.mrb[0].mxu0
    %4820 = vmatprep.mubr.f32.mxu0 0.0
    %4821 = vmatmul.mubr.f32.gmra.mrb[0].mxu0 %v4491
    %v4822 = vpop.f32.mrb[0].mxu0
    %v4823 = vadd.f32 0.0, %v4822
    %v4824 = vpop.f32.mrb[0].mxu0
    %4825 = vmatprep.mubr.f32.mxu0 0.0
    %4826 = vmatmul.mubr.f32.gmra.mrb[0].mxu0 %v4494
    %v4827 = vpop.f32.mrb[0].mxu0
    %v4828 = vadd.f32 0.0, %v4827
    %v4829 = vpop.f32.mrb[0].mxu0
    %4830 = vmatprep.mubr.f32.mxu0 0.0
    %4831 = vmatmul.mubr.f32.gmra.mrb[0].mxu0 %v4497
    %v4832 = vpop.f32.mrb[0].mxu0
    %v4833 = vadd.f32 0.0, %v4832
    %v4834 = vpop.f32.mrb[0].mxu0
    %4835 = vmatprep.mubr.f32.mxu0 0.0
    %4836 = vmatmul.mubr.f32.gmra.mrb[0].mxu0 %v4500
    %v4837 = vpop.f32.mrb[0].mxu0
    %v4838 = vadd.f32 0.0, %v4837
    %v4839 = vpop.f32.mrb[0].mxu0
    %4840 = vmatprep.mubr.f32.mxu0 0.0
    %4841 = vmatmul.mubr.f32.gmra.mrb[0].mxu0 %v4503
    %v4842 = vpop.f32.mrb[0].mxu0
    %v4843 = vadd.f32 0.0, %v4842
    %v4844 = vpop.f32.mrb[0].mxu0
    %4845 = vmatprep.mubr.f32.mxu0 0.0
    %4846 = vmatmul.mubr.f32.gmra.mrb[0].mxu0 %v4506
    %v4847 = vpop.f32.mrb[0].mxu0
    %v4848 = vadd.f32 0.0, %v4847
    %v4849 = vpop.f32.mrb[0].mxu0
    %4850 = vmatprep.mubr.f32.mxu0 0.0
    %4851 = vmatmul.mubr.f32.gmra.mrb[0].mxu0 %v4509
    %v4852 = vpop.f32.mrb[0].mxu0
    %v4853 = vadd.f32 0.0, %v4852
    %v4854 = vpop.f32.mrb[0].mxu0
    %4855 = vdwg.mxu0
    %4856 = vmatprep.subr.mxu0 0.0
    %4857 = vmatpush1.msra.mxu0 %v4339
    %4858 = vmatprep.subr.mxu0 0.0
    %4859 = vmatpush1.msra.mxu0 0.0
    %4860 = vmatprep.subr.mxu0 0.0
    %4861 = vmatpush1.msra.mxu0 0.0
    %4862 = vmatprep.subr.mxu0 0.0
    %4863 = vmatpush1.msra.mxu0 0.0
    %4864 = vmatprep.subr.mxu0 0.0
    %4865 = vmatpush1.msra.mxu0 0.0
    %4866 = vmatprep.subr.mxu0 0.0
    %4867 = vmatpush1.msra.mxu0 0.0
    %4868 = vmatprep.subr.mxu0 0.0
    %4869 = vmatpush1.msra.mxu0 0.0
    %4870 = vmatprep.subr.mxu0 0.0
    %4871 = vmatpush1.msra.mxu0 0.0
    %4872 = vmatprep.subr.mxu0 0.0
    %4873 = vmatpush1.msra.mxu0 0.0
    %4874 = vmatprep.subr.mxu0 0.0
    %4875 = vmatpush1.msra.mxu0 0.0
    %4876 = vmatprep.subr.mxu0 0.0
    %4877 = vmatpush1.msra.mxu0 0.0
    %4878 = vmatprep.subr.mxu0 0.0
    %4879 = vmatpush1.msra.mxu0 0.0
    %4880 = vmatprep.subr.mxu0 0.0
    %4881 = vmatpush1.msra.mxu0 0.0
    %4882 = vmatprep.subr.mxu0 0.0
    %4883 = vmatpush1.msra.mxu0 0.0
    %4884 = vmatprep.subr.mxu0 0.0
    %4885 = vmatpush1.msra.mxu0 0.0
    %4886 = vmatprep.subr.mxu0 0.0
    %4887 = vmatpush1.msra.mxu0 0.0
    %4888 = vmatprep.subr.mxu0 0.0
    %4889 = vmatpush1.msra.mxu0 0.0
    %4890 = vmatprep.subr.mxu0 0.0
    %4891 = vmatpush1.msra.mxu0 0.0
    %4892 = vmatprep.subr.mxu0 0.0
    %4893 = vmatpush1.msra.mxu0 0.0
    %4894 = vmatprep.subr.mxu0 0.0
    %4895 = vmatpush1.msra.mxu0 0.0
    %4896 = vmatprep.subr.mxu0 0.0
    %4897 = vmatpush1.msra.mxu0 0.0
    %4898 = vmatprep.subr.mxu0 0.0
    %4899 = vmatpush1.msra.mxu0 0.0
    %4900 = vmatprep.subr.mxu0 0.0
    %4901 = vmatpush1.msra.mxu0 0.0
    %4902 = vmatprep.subr.mxu0 0.0
    %4903 = vmatpush1.msra.mxu0 0.0
    %4904 = vmatprep.subr.mxu0 0.0
    %4905 = vmatpush1.msra.mxu0 0.0
    %4906 = vmatprep.subr.mxu0 0.0
    %4907 = vmatpush1.msra.mxu0 0.0
    %4908 = vmatprep.subr.mxu0 0.0
    %4909 = vmatpush1.msra.mxu0 0.0
    %4910 = vmatprep.subr.mxu0 0.0
    %4911 = vmatpush1.msra.mxu0 0.0
    %4912 = vmatprep.subr.mxu0 0.0
    %4913 = vmatpush1.msra.mxu0 0.0
    %4914 = vmatprep.subr.mxu0 0.0
    %4915 = vmatpush1.msra.mxu0 0.0
    %4916 = vmatprep.subr.mxu0 0.0
    %4917 = vmatpush1.msra.mxu0 0.0
    %4918 = vmatprep.subr.mxu0 0.0
    %4919 = vmatpush1.msra.mxu0 0.0
    %4920 = vmatprep.mubr.f32.mxu0 0.0
    %4921 = vmatmul.mubr.f32.gmra.mrb[0].mxu0 %v4344
    %v4922 = vpop.f32.mrb[0].mxu0
    %v4923 = vadd.f32 0.0, %v4922
    %v4924 = vpop.f32.mrb[0].mxu0
    %4925 = vmatprep.mubr.f32.mxu0 0.0
    %4926 = vmatmul.mubr.f32.gmra.mrb[0].mxu0 %v4347
    %v4927 = vpop.f32.mrb[0].mxu0
    %v4928 = vadd.f32 0.0, %v4927
    %v4929 = vpop.f32.mrb[0].mxu0
    %4930 = vmatprep.mubr.f32.mxu0 0.0
    %4931 = vmatmul.mubr.f32.gmra.mrb[0].mxu0 %v4350
    %v4932 = vpop.f32.mrb[0].mxu0
    %v4933 = vadd.f32 0.0, %v4932
    %v4934 = vpop.f32.mrb[0].mxu0
    %4935 = vmatprep.mubr.f32.mxu0 0.0
    %4936 = vmatmul.mubr.f32.gmra.mrb[0].mxu0 %v4353
    %v4937 = vpop.f32.mrb[0].mxu0
    %v4938 = vadd.f32 0.0, %v4937
    %v4939 = vpop.f32.mrb[0].mxu0
    %4940 = vmatprep.mubr.f32.mxu0 0.0
    %4941 = vmatmul.mubr.f32.gmra.mrb[0].mxu0 %v4356
    %v4942 = vpop.f32.mrb[0].mxu0
    %v4943 = vadd.f32 0.0, %v4942
    %v4944 = vpop.f32.mrb[0].mxu0
    %4945 = vmatprep.mubr.f32.mxu0 0.0
    %4946 = vmatmul.mubr.f32.gmra.mrb[0].mxu0 %v4359
    %v4947 = vpop.f32.mrb[0].mxu0
    %v4948 = vadd.f32 0.0, %v4947
    %v4949 = vpop.f32.mrb[0].mxu0
    %4950 = vmatprep.mubr.f32.mxu0 0.0
    %4951 = vmatmul.mubr.f32.gmra.mrb[0].mxu0 %v4362
    %v4952 = vpop.f32.mrb[0].mxu0
    %v4953 = vadd.f32 0.0, %v4952
    %v4954 = vpop.f32.mrb[0].mxu0
    %4955 = vmatprep.mubr.f32.mxu0 0.0
    %4956 = vmatmul.mubr.f32.gmra.mrb[0].mxu0 %v4365
    %v4957 = vpop.f32.mrb[0].mxu0
    %v4958 = vadd.f32 0.0, %v4957
    %v4959 = vpop.f32.mrb[0].mxu0
    %4960 = vmatprep.mubr.f32.mxu0 0.0
    %4961 = vmatmul.mubr.f32.gmra.mrb[0].mxu0 %v4368
    %v4962 = vpop.f32.mrb[0].mxu0
    %v4963 = vadd.f32 0.0, %v4962
    %v4964 = vpop.f32.mrb[0].mxu0
    %4965 = vmatprep.mubr.f32.mxu0 0.0
    %4966 = vmatmul.mubr.f32.gmra.mrb[0].mxu0 %v4371
    %v4967 = vpop.f32.mrb[0].mxu0
    %v4968 = vadd.f32 0.0, %v4967
    %v4969 = vpop.f32.mrb[0].mxu0
    %4970 = vmatprep.mubr.f32.mxu0 0.0
    %4971 = vmatmul.mubr.f32.gmra.mrb[0].mxu0 %v4374
    %v4972 = vpop.f32.mrb[0].mxu0
    %v4973 = vadd.f32 0.0, %v4972
    %v4974 = vpop.f32.mrb[0].mxu0
    %4975 = vmatprep.mubr.f32.mxu0 0.0
    %4976 = vmatmul.mubr.f32.gmra.mrb[0].mxu0 %v4377
    %v4977 = vpop.f32.mrb[0].mxu0
    %v4978 = vadd.f32 0.0, %v4977
    %v4979 = vpop.f32.mrb[0].mxu0
    %4980 = vmatprep.mubr.f32.mxu0 0.0
    %4981 = vmatmul.mubr.f32.gmra.mrb[0].mxu0 %v4380
    %v4982 = vpop.f32.mrb[0].mxu0
    %v4983 = vadd.f32 0.0, %v4982
    %v4984 = vpop.f32.mrb[0].mxu0
    %4985 = vmatprep.mubr.f32.mxu0 0.0
    %4986 = vmatmul.mubr.f32.gmra.mrb[0].mxu0 %v4383
    %v4987 = vpop.f32.mrb[0].mxu0
    %v4988 = vadd.f32 0.0, %v4987
    %v4989 = vpop.f32.mrb[0].mxu0
    %4990 = vmatprep.mubr.f32.mxu0 0.0
    %4991 = vmatmul.mubr.f32.gmra.mrb[0].mxu0 %v4386
    %v4992 = vpop.f32.mrb[0].mxu0
    %v4993 = vadd.f32 0.0, %v4992
    %v4994 = vpop.f32.mrb[0].mxu0
    %4995 = vmatprep.mubr.f32.mxu0 0.0
    %4996 = vmatmul.mubr.f32.gmra.mrb[0].mxu0 %v4389
    %v4997 = vpop.f32.mrb[0].mxu0
    %v4998 = vadd.f32 0.0, %v4997
    %v4999 = vpop.f32.mrb[0].mxu0
    %5000 = vmatprep.mubr.f32.mxu0 0.0
    %5001 = vmatmul.mubr.f32.gmra.mrb[0].mxu0 %v4392
    %v5002 = vpop.f32.mrb[0].mxu0
    %v5003 = vadd.f32 0.0, %v5002
    %v5004 = vpop.f32.mrb[0].mxu0
    %5005 = vmatprep.mubr.f32.mxu0 0.0
    %5006 = vmatmul.mubr.f32.gmra.mrb[0].mxu0 %v4395
    %v5007 = vpop.f32.mrb[0].mxu0
    %v5008 = vadd.f32 0.0, %v5007
    %v5009 = vpop.f32.mrb[0].mxu0
    %5010 = vmatprep.mubr.f32.mxu0 0.0
    %5011 = vmatmul.mubr.f32.gmra.mrb[0].mxu0 %v4398
    %v5012 = vpop.f32.mrb[0].mxu0
    %v5013 = vadd.f32 0.0, %v5012
    %v5014 = vpop.f32.mrb[0].mxu0
    %5015 = vmatprep.mubr.f32.mxu0 0.0
    %5016 = vmatmul.mubr.f32.gmra.mrb[0].mxu0 %v4401
    %v5017 = vpop.f32.mrb[0].mxu0
    %v5018 = vadd.f32 0.0, %v5017
    %v5019 = vpop.f32.mrb[0].mxu0
    %5020 = vmatprep.mubr.f32.mxu0 0.0
    %5021 = vmatmul.mubr.f32.gmra.mrb[0].mxu0 %v4404
    %v5022 = vpop.f32.mrb[0].mxu0
    %v5023 = vadd.f32 0.0, %v5022
    %v5024 = vpop.f32.mrb[0].mxu0
    %5025 = vmatprep.mubr.f32.mxu0 0.0
    %5026 = vmatmul.mubr.f32.gmra.mrb[0].mxu0 %v4407
    %v5027 = vpop.f32.mrb[0].mxu0
    %v5028 = vadd.f32 0.0, %v5027
    %v5029 = vpop.f32.mrb[0].mxu0
    %5030 = vmatprep.mubr.f32.mxu0 0.0
    %5031 = vmatmul.mubr.f32.gmra.mrb[0].mxu0 %v4410
    %v5032 = vpop.f32.mrb[0].mxu0
    %v5033 = vadd.f32 0.0, %v5032
    %v5034 = vpop.f32.mrb[0].mxu0
    %5035 = vmatprep.mubr.f32.mxu0 0.0
    %5036 = vmatmul.mubr.f32.gmra.mrb[0].mxu0 %v4413
    %v5037 = vpop.f32.mrb[0].mxu0
    %v5038 = vadd.f32 0.0, %v5037
    %v5039 = vpop.f32.mrb[0].mxu0
    %5040 = vmatprep.mubr.f32.mxu0 0.0
    %5041 = vmatmul.mubr.f32.gmra.mrb[0].mxu0 %v4416
    %v5042 = vpop.f32.mrb[0].mxu0
    %v5043 = vadd.f32 0.0, %v5042
    %v5044 = vpop.f32.mrb[0].mxu0
    %5045 = vmatprep.mubr.f32.mxu0 0.0
    %5046 = vmatmul.mubr.f32.gmra.mrb[0].mxu0 %v4419
    %v5047 = vpop.f32.mrb[0].mxu0
    %v5048 = vadd.f32 0.0, %v5047
    %v5049 = vpop.f32.mrb[0].mxu0
    %5050 = vmatprep.mubr.f32.mxu0 0.0
    %5051 = vmatmul.mubr.f32.gmra.mrb[0].mxu0 %v4422
    %v5052 = vpop.f32.mrb[0].mxu0
    %v5053 = vadd.f32 0.0, %v5052
    %v5054 = vpop.f32.mrb[0].mxu0
    %5055 = vmatprep.mubr.f32.mxu0 0.0
    %5056 = vmatmul.mubr.f32.gmra.mrb[0].mxu0 %v4425
    %v5057 = vpop.f32.mrb[0].mxu0
    %v5058 = vadd.f32 0.0, %v5057
    %v5059 = vpop.f32.mrb[0].mxu0
    %5060 = vmatprep.mubr.f32.mxu0 0.0
    %5061 = vmatmul.mubr.f32.gmra.mrb[0].mxu0 %v4428
    %v5062 = vpop.f32.mrb[0].mxu0
    %v5063 = vadd.f32 0.0, %v5062
    %v5064 = vpop.f32.mrb[0].mxu0
    %5065 = vmatprep.mubr.f32.mxu0 0.0
    %5066 = vmatmul.mubr.f32.gmra.mrb[0].mxu0 %v4431
    %v5067 = vpop.f32.mrb[0].mxu0
    %v5068 = vadd.f32 0.0, %v5067
    %v5069 = vpop.f32.mrb[0].mxu0
    %5070 = vmatprep.mubr.f32.mxu0 0.0
    %5071 = vmatmul.mubr.f32.gmra.mrb[0].mxu0 %v4434
    %v5072 = vpop.f32.mrb[0].mxu0
    %v5073 = vadd.f32 0.0, %v5072
    %v5074 = vpop.f32.mrb[0].mxu0
    %5075 = vmatprep.mubr.f32.mxu0 0.0
    %5076 = vmatmul.mubr.f32.gmra.mrb[0].mxu0 %v4437
    %v5077 = vpop.f32.mrb[0].mxu0
    %v5078 = vadd.f32 0.0, %v5077
    %v5079 = vpop.f32.mrb[0].mxu0
    %5080 = vmatprep.mubr.f32.mxu0 0.0
    %5081 = vmatmul.mubr.f32.gmra.mrb[0].mxu0 %v4440
    %v5082 = vpop.f32.mrb[0].mxu0
    %v5083 = vadd.f32 0.0, %v5082
    %v5084 = vpop.f32.mrb[0].mxu0
    %5085 = vmatprep.mubr.f32.mxu0 0.0
    %5086 = vmatmul.mubr.f32.gmra.mrb[0].mxu0 %v4443
    %v5087 = vpop.f32.mrb[0].mxu0
    %v5088 = vadd.f32 0.0, %v5087
    %v5089 = vpop.f32.mrb[0].mxu0
    %5090 = vmatprep.mubr.f32.mxu0 0.0
    %5091 = vmatmul.mubr.f32.gmra.mrb[0].mxu0 %v4446
    %v5092 = vpop.f32.mrb[0].mxu0
    %v5093 = vadd.f32 0.0, %v5092
    %v5094 = vpop.f32.mrb[0].mxu0
    %5095 = vmatprep.mubr.f32.mxu0 0.0
    %5096 = vmatmul.mubr.f32.gmra.mrb[0].mxu0 %v4449
    %v5097 = vpop.f32.mrb[0].mxu0
    %v5098 = vadd.f32 0.0, %v5097
    %v5099 = vpop.f32.mrb[0].mxu0
    %5100 = vmatprep.mubr.f32.mxu0 0.0
    %5101 = vmatmul.mubr.f32.gmra.mrb[0].mxu0 %v4452
    %v5102 = vpop.f32.mrb[0].mxu0
    %v5103 = vadd.f32 0.0, %v5102
    %v5104 = vpop.f32.mrb[0].mxu0
    %5105 = vmatprep.mubr.f32.mxu0 0.0
    %5106 = vmatmul.mubr.f32.gmra.mrb[0].mxu0 %v4455
    %v5107 = vpop.f32.mrb[0].mxu0
    %v5108 = vadd.f32 0.0, %v5107
    %v5109 = vpop.f32.mrb[0].mxu0
    %5110 = vmatprep.mubr.f32.mxu0 0.0
    %5111 = vmatmul.mubr.f32.gmra.mrb[0].mxu0 %v4458
    %v5112 = vpop.f32.mrb[0].mxu0
    %v5113 = vadd.f32 0.0, %v5112
    %v5114 = vpop.f32.mrb[0].mxu0
    %5115 = vmatprep.mubr.f32.mxu0 0.0
    %5116 = vmatmul.mubr.f32.gmra.mrb[0].mxu0 %v4461
    %v5117 = vpop.f32.mrb[0].mxu0
    %v5118 = vadd.f32 0.0, %v5117
    %v5119 = vpop.f32.mrb[0].mxu0
    %5120 = vmatprep.mubr.f32.mxu0 0.0
    %5121 = vmatmul.mubr.f32.gmra.mrb[0].mxu0 %v4464
    %v5122 = vpop.f32.mrb[0].mxu0
    %v5123 = vadd.f32 0.0, %v5122
    %v5124 = vpop.f32.mrb[0].mxu0
    %5125 = vmatprep.mubr.f32.mxu0 0.0
    %5126 = vmatmul.mubr.f32.gmra.mrb[0].mxu0 %v4467
    %v5127 = vpop.f32.mrb[0].mxu0
    %v5128 = vadd.f32 0.0, %v5127
    %v5129 = vpop.f32.mrb[0].mxu0
    %5130 = vmatprep.mubr.f32.mxu0 0.0
    %5131 = vmatmul.mubr.f32.gmra.mrb[0].mxu0 %v4470
    %v5132 = vpop.f32.mrb[0].mxu0
    %v5133 = vadd.f32 0.0, %v5132
    %v5134 = vpop.f32.mrb[0].mxu0
    %5135 = vmatprep.mubr.f32.mxu0 0.0
    %5136 = vmatmul.mubr.f32.gmra.mrb[0].mxu0 %v4473
    %v5137 = vpop.f32.mrb[0].mxu0
    %v5138 = vadd.f32 0.0, %v5137
    %v5139 = vpop.f32.mrb[0].mxu0
    %5140 = vmatprep.mubr.f32.mxu0 0.0
    %5141 = vmatmul.mubr.f32.gmra.mrb[0].mxu0 %v4476
    %v5142 = vpop.f32.mrb[0].mxu0
    %v5143 = vadd.f32 0.0, %v5142
    %v5144 = vpop.f32.mrb[0].mxu0
    %5145 = vmatprep.mubr.f32.mxu0 0.0
    %5146 = vmatmul.mubr.f32.gmra.mrb[0].mxu0 %v4479
    %v5147 = vpop.f32.mrb[0].mxu0
    %v5148 = vadd.f32 0.0, %v5147
    %v5149 = vpop.f32.mrb[0].mxu0
    %5150 = vmatprep.mubr.f32.mxu0 0.0
    %5151 = vmatmul.mubr.f32.gmra.mrb[0].mxu0 %v4482
    %v5152 = vpop.f32.mrb[0].mxu0
    %v5153 = vadd.f32 0.0, %v5152
    %v5154 = vpop.f32.mrb[0].mxu0
    %5155 = vmatprep.mubr.f32.mxu0 0.0
    %5156 = vmatmul.mubr.f32.gmra.mrb[0].mxu0 %v4485
    %v5157 = vpop.f32.mrb[0].mxu0
    %v5158 = vadd.f32 0.0, %v5157
    %v5159 = vpop.f32.mrb[0].mxu0
    %5160 = vmatprep.mubr.f32.mxu0 0.0
    %5161 = vmatmul.mubr.f32.gmra.mrb[0].mxu0 %v4488
    %v5162 = vpop.f32.mrb[0].mxu0
    %v5163 = vadd.f32 0.0, %v5162
    %v5164 = vpop.f32.mrb[0].mxu0
    %5165 = vmatprep.mubr.f32.mxu0 0.0
    %5166 = vmatmul.mubr.f32.gmra.mrb[0].mxu0 %v4491
    %v5167 = vpop.f32.mrb[0].mxu0
    %v5168 = vadd.f32 0.0, %v5167
    %v5169 = vpop.f32.mrb[0].mxu0
    %5170 = vmatprep.mubr.f32.mxu0 0.0
    %5171 = vmatmul.mubr.f32.gmra.mrb[0].mxu0 %v4494
    %v5172 = vpop.f32.mrb[0].mxu0
    %v5173 = vadd.f32 0.0, %v5172
    %v5174 = vpop.f32.mrb[0].mxu0
    %5175 = vmatprep.mubr.f32.mxu0 0.0
    %5176 = vmatmul.mubr.f32.gmra.mrb[0].mxu0 %v4497
    %v5177 = vpop.f32.mrb[0].mxu0
    %v5178 = vadd.f32 0.0, %v5177
    %v5179 = vpop.f32.mrb[0].mxu0
    %5180 = vmatprep.mubr.f32.mxu0 0.0
    %5181 = vmatmul.mubr.f32.gmra.mrb[0].mxu0 %v4500
    %v5182 = vpop.f32.mrb[0].mxu0
    %v5183 = vadd.f32 0.0, %v5182
    %v5184 = vpop.f32.mrb[0].mxu0
    %5185 = vmatprep.mubr.f32.mxu0 0.0
    %5186 = vmatmul.mubr.f32.gmra.mrb[0].mxu0 %v4503
    %v5187 = vpop.f32.mrb[0].mxu0
    %v5188 = vadd.f32 0.0, %v5187
    %v5189 = vpop.f32.mrb[0].mxu0
    %5190 = vmatprep.mubr.f32.mxu0 0.0
    %5191 = vmatmul.mubr.f32.gmra.mrb[0].mxu0 %v4506
    %v5192 = vpop.f32.mrb[0].mxu0
    %v5193 = vadd.f32 0.0, %v5192
    %v5194 = vpop.f32.mrb[0].mxu0
    %5195 = vmatprep.mubr.f32.mxu0 0.0
    %5196 = vmatmul.mubr.f32.gmra.mrb[0].mxu0 %v4509
    %v5197 = vpop.f32.mrb[0].mxu0
    %v5198 = vadd.f32 0.0, %v5197
    %v5199 = vpop.f32.mrb[0].mxu0
    %5200 = vdwg.mxu0
    %v5201 = vsub.f32 %v3616, %v4578
    %v5202 = vsub.f32 %v3619, %v4583
    %v5203 = vsub.f32 %v3624, %v4588
    %v5204 = vsub.f32 %v3627, %v4593
    %v5205 = vsub.f32 %v3632, %v4598
    %v5206 = vsub.f32 %v3635, %v4603
    %v5207 = vsub.f32 %v3640, %v4608
    %v5208 = vsub.f32 %v3643, %v4613
    %v5209 = vsub.f32 %v3648, %v4618
    %v5210 = vsub.f32 %v3651, %v4623
    %v5211 = vsub.f32 %v3656, %v4628
    %v5212 = vsub.f32 %v3659, %v4633
    %v5213 = vsub.f32 %v3664, %v4638
    %v5214 = vsub.f32 %v3667, %v4643
    %v5215 = vsub.f32 %v3672, %v4648
    %v5216 = vsub.f32 %v3675, %v4653
    %v5217 = vsub.f32 %v3680, %v4658
    %v5218 = vsub.f32 %v3683, %v4663
    %v5219 = vsub.f32 %v3688, %v4668
    %v5220 = vsub.f32 %v3691, %v4673
    %v5221 = vsub.f32 %v3696, %v4678
    %v5222 = vsub.f32 %v3699, %v4683
    %v5223 = vsub.f32 %v3704, %v4688
    %v5224 = vsub.f32 %v3707, %v4693
    %v5225 = vsub.f32 %v3712, %v4698
    %v5226 = vsub.f32 %v3715, %v4703
    %v5227 = vsub.f32 %v3720, %v4708
    %v5228 = vsub.f32 %v3723, %v4713
    %v5229 = vsub.f32 %v3728, %v4718
    %v5230 = vsub.f32 %v3731, %v4723
    %v5231 = vsub.f32 %v3736, %v4728
    %v5232 = vsub.f32 %v3739, %v4733
    %v5233 = vsub.f32 %v3744, %v4738
    %v5234 = vsub.f32 %v3747, %v4743
    %v5235 = vsub.f32 %v3752, %v4748
    %v5236 = vsub.f32 %v3755, %v4753
    %v5237 = vsub.f32 %v3760, %v4758
    %v5238 = vsub.f32 %v3763, %v4763
    %v5239 = vsub.f32 %v3768, %v4768
    %v5240 = vsub.f32 %v3771, %v4773
    %v5241 = vsub.f32 %v3776, %v4778
    %v5242 = vsub.f32 %v3779, %v4783
    %v5243 = vsub.f32 %v3784, %v4788
    %v5244 = vsub.f32 %v3787, %v4793
    %v5245 = vsub.f32 %v3792, %v4798
    %v5246 = vsub.f32 %v3795, %v4803
    %v5247 = vsub.f32 %v3800, %v4808
    %v5248 = vsub.f32 %v3803, %v4813
    %v5249 = vsub.f32 %v3808, %v4818
    %v5250 = vsub.f32 %v3811, %v4823
    %v5251 = vsub.f32 %v3816, %v4828
    %v5252 = vsub.f32 %v3819, %v4833
    %v5253 = vsub.f32 %v3824, %v4838
    %v5254 = vsub.f32 %v3827, %v4843
    %v5255 = vsub.f32 %v3832, %v4848
    %v5256 = vsub.f32 %v3835, %v4853
    %v5257 = vmul.f32 %v5201, %v4923
    %v5258 = vmul.f32 %v5202, %v4928
    %v5259 = vmul.f32 %v5203, %v4933
    %v5260 = vmul.f32 %v5204, %v4938
    %v5261 = vmul.f32 %v5205, %v4943
    %v5262 = vmul.f32 %v5206, %v4948
    %v5263 = vmul.f32 %v5207, %v4953
    %v5264 = vmul.f32 %v5208, %v4958
    %v5265 = vmul.f32 %v5209, %v4963
    %v5266 = vmul.f32 %v5210, %v4968
    %v5267 = vmul.f32 %v5211, %v4973
    %v5268 = vmul.f32 %v5212, %v4978
    %v5269 = vmul.f32 %v5213, %v4983
    %v5270 = vmul.f32 %v5214, %v4988
    %v5271 = vmul.f32 %v5215, %v4993
    %v5272 = vmul.f32 %v5216, %v4998
    %v5273 = vmul.f32 %v5217, %v5003
    %v5274 = vmul.f32 %v5218, %v5008
    %v5275 = vmul.f32 %v5219, %v5013
    %v5276 = vmul.f32 %v5220, %v5018
    %v5277 = vmul.f32 %v5221, %v5023
    %v5278 = vmul.f32 %v5222, %v5028
    %v5279 = vmul.f32 %v5223, %v5033
    %v5280 = vmul.f32 %v5224, %v5038
    %v5281 = vmul.f32 %v5225, %v5043
    %v5282 = vmul.f32 %v5226, %v5048
    %v5283 = vmul.f32 %v5227, %v5053
    %v5284 = vmul.f32 %v5228, %v5058
    %v5285 = vmul.f32 %v5229, %v5063
    %v5286 = vmul.f32 %v5230, %v5068
    %v5287 = vmul.f32 %v5231, %v5073
    %v5288 = vmul.f32 %v5232, %v5078
    %v5289 = vmul.f32 %v5233, %v5083
    %v5290 = vmul.f32 %v5234, %v5088
    %v5291 = vmul.f32 %v5235, %v5093
    %v5292 = vmul.f32 %v5236, %v5098
    %v5293 = vmul.f32 %v5237, %v5103
    %v5294 = vmul.f32 %v5238, %v5108
    %v5295 = vmul.f32 %v5239, %v5113
    %v5296 = vmul.f32 %v5240, %v5118
    %v5297 = vmul.f32 %v5241, %v5123
    %v5298 = vmul.f32 %v5242, %v5128
    %v5299 = vmul.f32 %v5243, %v5133
    %v5300 = vmul.f32 %v5244, %v5138
    %v5301 = vmul.f32 %v5245, %v5143
    %v5302 = vmul.f32 %v5246, %v5148
    %v5303 = vmul.f32 %v5247, %v5153
    %v5304 = vmul.f32 %v5248, %v5158
    %v5305 = vmul.f32 %v5249, %v5163
    %v5306 = vmul.f32 %v5250, %v5168
    %v5307 = vmul.f32 %v5251, %v5173
    %v5308 = vmul.f32 %v5252, %v5178
    %v5309 = vmul.f32 %v5253, %v5183
    %v5310 = vmul.f32 %v5254, %v5188
    %v5311 = vmul.f32 %v5255, %v5193
    %v5312 = vmul.f32 %v5256, %v5198
    %v5313 = vlaneseq
    %v5314 = vshrl.u32 %v5313, 7
    %v5315 = vsub.s32 1, %v5314
    %v5316 = vrot.slane %v68, %v5315
    %v5317 = vmul.f32 %v5257, %v5316
    %v5318 = vmul.f32 %v5258, %v5316
    %v5319 = vmul.f32 %v5259, %v5316
    %v5320 = vmul.f32 %v5260, %v5316
    %v5321 = vmul.f32 %v5261, %v5316
    %v5322 = vmul.f32 %v5262, %v5316
    %v5323 = vmul.f32 %v5263, %v5316
    %v5324 = vmul.f32 %v5264, %v5316
    %v5325 = vmul.f32 %v5265, %v5316
    %v5326 = vmul.f32 %v5266, %v5316
    %v5327 = vmul.f32 %v5267, %v5316
    %v5328 = vmul.f32 %v5268, %v5316
    %v5329 = vmul.f32 %v5269, %v5316
    %v5330 = vmul.f32 %v5270, %v5316
    %v5331 = vmul.f32 %v5271, %v5316
    %v5332 = vmul.f32 %v5272, %v5316
    %v5333 = vmul.f32 %v5273, %v5316
    %v5334 = vmul.f32 %v5274, %v5316
    %v5335 = vmul.f32 %v5275, %v5316
    %v5336 = vmul.f32 %v5276, %v5316
    %v5337 = vmul.f32 %v5277, %v5316
    %v5338 = vmul.f32 %v5278, %v5316
    %v5339 = vmul.f32 %v5279, %v5316
    %v5340 = vmul.f32 %v5280, %v5316
    %v5341 = vmul.f32 %v5281, %v5316
    %v5342 = vmul.f32 %v5282, %v5316
    %v5343 = vmul.f32 %v5283, %v5316
    %v5344 = vmul.f32 %v5284, %v5316
    %v5345 = vmul.f32 %v5285, %v5316
    %v5346 = vmul.f32 %v5286, %v5316
    %v5347 = vmul.f32 %v5287, %v5316
    %v5348 = vmul.f32 %v5288, %v5316
    %v5349 = vmul.f32 %v5289, %v5316
    %v5350 = vmul.f32 %v5290, %v5316
    %v5351 = vmul.f32 %v5291, %v5316
    %v5352 = vmul.f32 %v5292, %v5316
    %v5353 = vmul.f32 %v5293, %v5316
    %v5354 = vmul.f32 %v5294, %v5316
    %v5355 = vmul.f32 %v5295, %v5316
    %v5356 = vmul.f32 %v5296, %v5316
    %v5357 = vmul.f32 %v5297, %v5316
    %v5358 = vmul.f32 %v5298, %v5316
    %v5359 = vmul.f32 %v5299, %v5316
    %v5360 = vmul.f32 %v5300, %v5316
    %v5361 = vmul.f32 %v5301, %v5316
    %v5362 = vmul.f32 %v5302, %v5316
    %v5363 = vmul.f32 %v5303, %v5316
    %v5364 = vmul.f32 %v5304, %v5316
    %v5365 = vmul.f32 %v5305, %v5316
    %v5366 = vmul.f32 %v5306, %v5316
    %v5367 = vmul.f32 %v5307, %v5316
    %v5368 = vmul.f32 %v5308, %v5316
    %v5369 = vmul.f32 %v5309, %v5316
    %v5370 = vmul.f32 %v5310, %v5316
    %v5371 = vmul.f32 %v5311, %v5316
    %v5372 = vmul.f32 %v5312, %v5316
    %v5373 = vlaneseq
    %v5374 = vshrl.u32 %v5373, 7
    %v5375 = vsub.s32 2, %v5374
    %v5376 = vrot.slane %v68, %v5375
    %v5377 = vadd.f32 %v5317, %v5376
    %v5378 = vadd.f32 %v5318, %v5376
    %v5379 = vadd.f32 %v5319, %v5376
    %v5380 = vadd.f32 %v5320, %v5376
    %v5381 = vadd.f32 %v5321, %v5376
    %v5382 = vadd.f32 %v5322, %v5376
    %v5383 = vadd.f32 %v5323, %v5376
    %v5384 = vadd.f32 %v5324, %v5376
    %v5385 = vadd.f32 %v5325, %v5376
    %v5386 = vadd.f32 %v5326, %v5376
    %v5387 = vadd.f32 %v5327, %v5376
    %v5388 = vadd.f32 %v5328, %v5376
    %v5389 = vadd.f32 %v5329, %v5376
    %v5390 = vadd.f32 %v5330, %v5376
    %v5391 = vadd.f32 %v5331, %v5376
    %v5392 = vadd.f32 %v5332, %v5376
    %v5393 = vadd.f32 %v5333, %v5376
    %v5394 = vadd.f32 %v5334, %v5376
    %v5395 = vadd.f32 %v5335, %v5376
    %v5396 = vadd.f32 %v5336, %v5376
    %v5397 = vadd.f32 %v5337, %v5376
    %v5398 = vadd.f32 %v5338, %v5376
    %v5399 = vadd.f32 %v5339, %v5376
    %v5400 = vadd.f32 %v5340, %v5376
    %v5401 = vadd.f32 %v5341, %v5376
    %v5402 = vadd.f32 %v5342, %v5376
    %v5403 = vadd.f32 %v5343, %v5376
    %v5404 = vadd.f32 %v5344, %v5376
    %v5405 = vadd.f32 %v5345, %v5376
    %v5406 = vadd.f32 %v5346, %v5376
    %v5407 = vadd.f32 %v5347, %v5376
    %v5408 = vadd.f32 %v5348, %v5376
    %v5409 = vadd.f32 %v5349, %v5376
    %v5410 = vadd.f32 %v5350, %v5376
    %v5411 = vadd.f32 %v5351, %v5376
    %v5412 = vadd.f32 %v5352, %v5376
    %v5413 = vadd.f32 %v5353, %v5376
    %v5414 = vadd.f32 %v5354, %v5376
    %v5415 = vadd.f32 %v5355, %v5376
    %v5416 = vadd.f32 %v5356, %v5376
    %v5417 = vadd.f32 %v5357, %v5376
    %v5418 = vadd.f32 %v5358, %v5376
    %v5419 = vadd.f32 %v5359, %v5376
    %v5420 = vadd.f32 %v5360, %v5376
    %v5421 = vadd.f32 %v5361, %v5376
    %v5422 = vadd.f32 %v5362, %v5376
    %v5423 = vadd.f32 %v5363, %v5376
    %v5424 = vadd.f32 %v5364, %v5376
    %v5425 = vadd.f32 %v5365, %v5376
    %v5426 = vadd.f32 %v5366, %v5376
    %v5427 = vadd.f32 %v5367, %v5376
    %v5428 = vadd.f32 %v5368, %v5376
    %v5429 = vadd.f32 %v5369, %v5376
    %v5430 = vadd.f32 %v5370, %v5376
    %v5431 = vadd.f32 %v5371, %v5376
    %v5432 = vadd.f32 %v5372, %v5376
    %v5433 = vmax.f32 %v5377, 0.0
    %v5434 = vmax.f32 %v5378, 0.0
    %v5435 = vmax.f32 %v5379, 0.0
    %v5436 = vmax.f32 %v5380, 0.0
    %v5437 = vmax.f32 %v5381, 0.0
    %v5438 = vmax.f32 %v5382, 0.0
    %v5439 = vmax.f32 %v5383, 0.0
    %v5440 = vmax.f32 %v5384, 0.0
    %v5441 = vmax.f32 %v5385, 0.0
    %v5442 = vmax.f32 %v5386, 0.0
    %v5443 = vmax.f32 %v5387, 0.0
    %v5444 = vmax.f32 %v5388, 0.0
    %v5445 = vmax.f32 %v5389, 0.0
    %v5446 = vmax.f32 %v5390, 0.0
    %v5447 = vmax.f32 %v5391, 0.0
    %v5448 = vmax.f32 %v5392, 0.0
    %v5449 = vmax.f32 %v5393, 0.0
    %v5450 = vmax.f32 %v5394, 0.0
    %v5451 = vmax.f32 %v5395, 0.0
    %v5452 = vmax.f32 %v5396, 0.0
    %v5453 = vmax.f32 %v5397, 0.0
    %v5454 = vmax.f32 %v5398, 0.0
    %v5455 = vmax.f32 %v5399, 0.0
    %v5456 = vmax.f32 %v5400, 0.0
    %v5457 = vmax.f32 %v5401, 0.0
    %v5458 = vmax.f32 %v5402, 0.0
    %v5459 = vmax.f32 %v5403, 0.0
    %v5460 = vmax.f32 %v5404, 0.0
    %v5461 = vmax.f32 %v5405, 0.0
    %v5462 = vmax.f32 %v5406, 0.0
    %v5463 = vmax.f32 %v5407, 0.0
    %v5464 = vmax.f32 %v5408, 0.0
    %v5465 = vmax.f32 %v5409, 0.0
    %v5466 = vmax.f32 %v5410, 0.0
    %v5467 = vmax.f32 %v5411, 0.0
    %v5468 = vmax.f32 %v5412, 0.0
    %v5469 = vmax.f32 %v5413, 0.0
    %v5470 = vmax.f32 %v5414, 0.0
    %v5471 = vmax.f32 %v5415, 0.0
    %v5472 = vmax.f32 %v5416, 0.0
    %v5473 = vmax.f32 %v5417, 0.0
    %v5474 = vmax.f32 %v5418, 0.0
    %v5475 = vmax.f32 %v5419, 0.0
    %v5476 = vmax.f32 %v5420, 0.0
    %v5477 = vmax.f32 %v5421, 0.0
    %v5478 = vmax.f32 %v5422, 0.0
    %v5479 = vmax.f32 %v5423, 0.0
    %v5480 = vmax.f32 %v5424, 0.0
    %v5481 = vmax.f32 %v5425, 0.0
    %v5482 = vmax.f32 %v5426, 0.0
    %v5483 = vmax.f32 %v5427, 0.0
    %v5484 = vmax.f32 %v5428, 0.0
    %v5485 = vmax.f32 %v5429, 0.0
    %v5486 = vmax.f32 %v5430, 0.0
    %v5487 = vmax.f32 %v5431, 0.0
    %v5488 = vmax.f32 %v5432, 0.0
    %v5489 = vld [vmem:[%s1] sm:$0xf]
    %v5490 = vld [vmem:[%s1 + $0x4] sm:$0xf]
    %v5491 = vld [vmem:[%s1 + $0x8] sm:$0xf]
    %v5492 = vld [vmem:[%s1 + $0xc] sm:$0xf]
    %v5493 = vld [vmem:[%s1 + $0x10] sm:$0xf]
    %v5494 = vld [vmem:[%s1 + $0x14] sm:$0xf]
    %v5495 = vld [vmem:[%s1 + $0x18] sm:$0xf]
    %v5496 = vld [vmem:[%s1 + $0x1c] sm:$0xf]
    %v5497 = vld [vmem:[%s1 + $0x20] sm:$0xf]
    %v5498 = vld [vmem:[%s1 + $0x24] sm:$0xf]
    %v5499 = vld [vmem:[%s1 + $0x28] sm:$0xf]
    %v5500 = vld [vmem:[%s1 + $0x2c] sm:$0xf]
    %v5501 = vld [vmem:[%s1 + $0x30] sm:$0xf]
    %v5502 = vld [vmem:[%s1 + $0x34] sm:$0xf]
    %v5503 = vld [vmem:[%s1 + $0x38] sm:$0xf]
    %v5504 = vld [vmem:[%s1 + $0x3c] sm:$0xf]
    %v5505 = vld [vmem:[%s1 + $0x40] sm:$0xf]
    %v5506 = vld [vmem:[%s1 + $0x44] sm:$0xf]
    %v5507 = vld [vmem:[%s1 + $0x48] sm:$0xf]
    %v5508 = vld [vmem:[%s1 + $0x4c] sm:$0xf]
    %v5509 = vld [vmem:[%s1 + $0x50] sm:$0xf]
    %v5510 = vld [vmem:[%s1 + $0x54] sm:$0xf]
    %v5511 = vld [vmem:[%s1 + $0x58] sm:$0xf]
    %v5512 = vld [vmem:[%s1 + $0x5c] sm:$0xf]
    %v5513 = vld [vmem:[%s1 + $0x60] sm:$0xf]
    %v5514 = vld [vmem:[%s1 + $0x64] sm:$0xf]
    %v5515 = vld [vmem:[%s1 + $0x68] sm:$0xf]
    %v5516 = vld [vmem:[%s1 + $0x6c] sm:$0xf]
    %v5517 = vld [vmem:[%s1 + $0x70] sm:$0xf]
    %v5518 = vld [vmem:[%s1 + $0x74] sm:$0xf]
    %v5519 = vld [vmem:[%s1 + $0x78] sm:$0xf]
    %v5520 = vld [vmem:[%s1 + $0x7c] sm:$0xf]
    %v5521 = vld [vmem:[%s1 + $0x80] sm:$0xf]
    %v5522 = vld [vmem:[%s1 + $0x84] sm:$0xf]
    %v5523 = vld [vmem:[%s1 + $0x88] sm:$0xf]
    %v5524 = vld [vmem:[%s1 + $0x8c] sm:$0xf]
    %v5525 = vld [vmem:[%s1 + $0x90] sm:$0xf]
    %v5526 = vld [vmem:[%s1 + $0x94] sm:$0xf]
    %v5527 = vld [vmem:[%s1 + $0x98] sm:$0xf]
    %v5528 = vld [vmem:[%s1 + $0x9c] sm:$0xf]
    %v5529 = vld [vmem:[%s1 + $0xa0] sm:$0xf]
    %v5530 = vld [vmem:[%s1 + $0xa4] sm:$0xf]
    %v5531 = vld [vmem:[%s1 + $0xa8] sm:$0xf]
    %v5532 = vld [vmem:[%s1 + $0xac] sm:$0xf]
    %v5533 = vld [vmem:[%s1 + $0xb0] sm:$0xf]
    %v5534 = vld [vmem:[%s1 + $0xb4] sm:$0xf]
    %v5535 = vld [vmem:[%s1 + $0xb8] sm:$0xf]
    %v5536 = vld [vmem:[%s1 + $0xbc] sm:$0xf]
    %v5537 = vld [vmem:[%s1 + $0xc0] sm:$0xf]
    %v5538 = vld [vmem:[%s1 + $0xc4] sm:$0xf]
    %v5539 = vld [vmem:[%s1 + $0xc8] sm:$0xf]
    %v5540 = vld [vmem:[%s1 + $0xcc] sm:$0xf]
    %v5541 = vld [vmem:[%s1 + $0xd0] sm:$0xf]
    %v5542 = vld [vmem:[%s1 + $0xd4] sm:$0xf]
    %v5543 = vld [vmem:[%s1 + $0xd8] sm:$0xf]
    %v5544 = vld [vmem:[%s1 + $0xdc] sm:$0xf]
    %v5545 = vld [vmem:[%s3] sm:$0xf]
    %v5546 = vld [vmem:[%s3 + $0x4] sm:$0xf]
    %v5547 = vld [vmem:[%s3 + $0x8] sm:$0xf]
    %v5548 = vld [vmem:[%s3 + $0xc] sm:$0xf]
    %v5549 = vld [vmem:[%s3 + $0x10] sm:$0xf]
    %v5550 = vld [vmem:[%s3 + $0x14] sm:$0xf]
    %v5551 = vld [vmem:[%s3 + $0x18] sm:$0xf]
    %v5552 = vld [vmem:[%s3 + $0x1c] sm:$0xf]
    %v5553 = vld [vmem:[%s3 + $0x20] sm:$0xf]
    %v5554 = vld [vmem:[%s3 + $0x24] sm:$0xf]
    %v5555 = vld [vmem:[%s3 + $0x28] sm:$0xf]
    %v5556 = vld [vmem:[%s3 + $0x2c] sm:$0xf]
    %v5557 = vld [vmem:[%s3 + $0x30] sm:$0xf]
    %v5558 = vld [vmem:[%s3 + $0x34] sm:$0xf]
    %v5559 = vld [vmem:[%s3 + $0x38] sm:$0xf]
    %v5560 = vld [vmem:[%s3 + $0x3c] sm:$0xf]
    %v5561 = vlaneseq
    %v5562 = vshrl.u32 %v5561, 7
    %v5563 = vsub.s32 0, %v5562
    %v5564 = vrot.slane %v74, %v5563
    %v5621 = vunpack.c.l.b16 %v5489
    %v5622 = vunpack.c.l.b16 %v5490
    %v5623 = vunpack.c.l.b16 %v5491
    %v5624 = vunpack.c.l.b16 %v5492
    %v5625 = vunpack.c.l.b16 %v5493
    %v5626 = vunpack.c.l.b16 %v5494
    %v5627 = vunpack.c.l.b16 %v5495
    %v5628 = vunpack.c.l.b16 %v5496
    %v5629 = vunpack.c.l.b16 %v5497
    %v5630 = vunpack.c.l.b16 %v5498
    %v5631 = vunpack.c.l.b16 %v5499
    %v5632 = vunpack.c.l.b16 %v5500
    %v5633 = vunpack.c.l.b16 %v5501
    %v5634 = vunpack.c.l.b16 %v5502
    %v5635 = vunpack.c.l.b16 %v5503
    %v5636 = vunpack.c.l.b16 %v5504
    %v5637 = vunpack.c.l.b16 %v5505
    %v5638 = vunpack.c.l.b16 %v5506
    %v5639 = vunpack.c.l.b16 %v5507
    %v5640 = vunpack.c.l.b16 %v5508
    %v5641 = vunpack.c.l.b16 %v5509
    %v5642 = vunpack.c.l.b16 %v5510
    %v5643 = vunpack.c.l.b16 %v5511
    %v5644 = vunpack.c.l.b16 %v5512
    %v5645 = vunpack.c.l.b16 %v5513
    %v5646 = vunpack.c.l.b16 %v5514
    %v5647 = vunpack.c.l.b16 %v5515
    %v5648 = vunpack.c.l.b16 %v5516
    %v5649 = vunpack.c.l.b16 %v5517
    %v5650 = vunpack.c.l.b16 %v5518
    %v5651 = vunpack.c.l.b16 %v5519
    %v5652 = vunpack.c.l.b16 %v5520
    %v5653 = vunpack.c.l.b16 %v5521
    %v5654 = vunpack.c.l.b16 %v5522
    %v5655 = vunpack.c.l.b16 %v5523
    %v5656 = vunpack.c.l.b16 %v5524
    %v5657 = vunpack.c.l.b16 %v5525
    %v5658 = vunpack.c.l.b16 %v5526
    %v5659 = vunpack.c.l.b16 %v5527
    %v5660 = vunpack.c.l.b16 %v5528
    %v5661 = vunpack.c.l.b16 %v5529
    %v5662 = vunpack.c.l.b16 %v5530
    %v5663 = vunpack.c.l.b16 %v5531
    %v5664 = vunpack.c.l.b16 %v5532
    %v5665 = vunpack.c.l.b16 %v5533
    %v5666 = vunpack.c.l.b16 %v5534
    %v5667 = vunpack.c.l.b16 %v5535
    %v5668 = vunpack.c.l.b16 %v5536
    %v5669 = vunpack.c.l.b16 %v5537
    %v5670 = vunpack.c.l.b16 %v5538
    %v5671 = vunpack.c.l.b16 %v5539
    %v5672 = vunpack.c.l.b16 %v5540
    %v5673 = vunpack.c.l.b16 %v5541
    %v5674 = vunpack.c.l.b16 %v5542
    %v5675 = vunpack.c.l.b16 %v5543
    %v5676 = vunpack.c.l.b16 %v5544
    %v5677 = vpack.c.b16 %v5622, %v5621
    %v5678 = vpack.c.b16 %v5624, %v5623
    %v5679 = vpack.c.b16 %v5626, %v5625
    %v5680 = vpack.c.b16 %v5628, %v5627
    %v5681 = vpack.c.b16 %v5630, %v5629
    %v5682 = vpack.c.b16 %v5632, %v5631
    %v5683 = vpack.c.b16 %v5634, %v5633
    %v5684 = vpack.c.b16 %v5636, %v5635
    %v5685 = vpack.c.b16 %v5638, %v5637
    %v5686 = vpack.c.b16 %v5640, %v5639
    %v5687 = vpack.c.b16 %v5642, %v5641
    %v5688 = vpack.c.b16 %v5644, %v5643
    %v5689 = vpack.c.b16 %v5646, %v5645
    %v5690 = vpack.c.b16 %v5648, %v5647
    %v5691 = vpack.c.b16 %v5650, %v5649
    %v5692 = vpack.c.b16 %v5652, %v5651
    %v5693 = vpack.c.b16 %v5654, %v5653
    %v5694 = vpack.c.b16 %v5656, %v5655
    %v5695 = vpack.c.b16 %v5658, %v5657
    %v5696 = vpack.c.b16 %v5660, %v5659
    %v5697 = vpack.c.b16 %v5662, %v5661
    %v5698 = vpack.c.b16 %v5664, %v5663
    %v5699 = vpack.c.b16 %v5666, %v5665
    %v5700 = vpack.c.b16 %v5668, %v5667
    %v5701 = vpack.c.b16 %v5670, %v5669
    %v5702 = vpack.c.b16 %v5672, %v5671
    %v5703 = vpack.c.b16 %v5674, %v5673
    %v5704 = vpack.c.b16 %v5676, %v5675
    %v5749 = vunpack.c.l.b16 %v5545
    %v5750 = vunpack.c.l.b16 %v5546
    %v5751 = vunpack.c.l.b16 %v5547
    %v5752 = vunpack.c.l.b16 %v5548
    %v5753 = vunpack.c.l.b16 %v5549
    %v5754 = vunpack.c.l.b16 %v5550
    %v5755 = vunpack.c.l.b16 %v5551
    %v5756 = vunpack.c.l.b16 %v5552
    %v5757 = vunpack.c.l.b16 %v5553
    %v5758 = vunpack.c.l.b16 %v5554
    %v5759 = vunpack.c.l.b16 %v5555
    %v5760 = vunpack.c.l.b16 %v5556
    %v5761 = vunpack.c.l.b16 %v5557
    %v5762 = vunpack.c.l.b16 %v5558
    %v5763 = vunpack.c.l.b16 %v5559
    %v5764 = vunpack.c.l.b16 %v5560
    %v5765 = vpack.c.b16 %v5750, %v5749
    %v5766 = vpack.c.b16 %v5752, %v5751
    %v5767 = vpack.c.b16 %v5754, %v5753
    %v5768 = vpack.c.b16 %v5756, %v5755
    %v5769 = vpack.c.b16 %v5758, %v5757
    %v5770 = vpack.c.b16 %v5760, %v5759
    %v5771 = vpack.c.b16 %v5762, %v5761
    %v5772 = vpack.c.b16 %v5764, %v5763
    %5781 = vmatprep.subr.bf16.mxu0 0
    %5782 = vmatpush1.bf16.msra.mxu0 %v5765
    %5783 = vmatprep.subr.bf16.mxu0 0
    %5784 = vmatpush1.bf16.msra.mxu0 %v5766
    %5785 = vmatprep.subr.bf16.mxu0 0
    %5786 = vmatpush1.bf16.msra.mxu0 %v5767
    %5787 = vmatprep.subr.bf16.mxu0 0
    %5788 = vmatpush1.bf16.msra.mxu0 %v5768
    %5789 = vmatprep.subr.bf16.mxu0 0
    %5790 = vmatpush1.bf16.msra.mxu0 %v5769
    %5791 = vmatprep.subr.bf16.mxu0 0
    %5792 = vmatpush1.bf16.msra.mxu0 %v5770
    %5793 = vmatprep.subr.bf16.mxu0 0
    %5794 = vmatpush1.bf16.msra.mxu0 %v5771
    %5795 = vmatprep.subr.bf16.mxu0 0
    %5796 = vmatpush1.bf16.msra.mxu0 %v5772
    %5797 = vmatprep.subr.bf16.mxu0 0
    %5798 = vmatpush1.bf16.msra.mxu0 0
    %5799 = vmatprep.subr.bf16.mxu0 0
    %5800 = vmatpush1.bf16.msra.mxu0 0
    %5801 = vmatprep.subr.bf16.mxu0 0
    %5802 = vmatpush1.bf16.msra.mxu0 0
    %5803 = vmatprep.subr.bf16.mxu0 0
    %5804 = vmatpush1.bf16.msra.mxu0 0
    %5805 = vmatprep.subr.bf16.mxu0 0
    %5806 = vmatpush1.bf16.msra.mxu0 0
    %5807 = vmatprep.subr.bf16.mxu0 0
    %5808 = vmatpush1.bf16.msra.mxu0 0
    %5809 = vmatprep.subr.bf16.mxu0 0
    %5810 = vmatpush1.bf16.msra.mxu0 0
    %5811 = vmatprep.subr.bf16.mxu0 0
    %5812 = vmatpush1.bf16.msra.mxu0 0
    %5813 = vmatprep.mubr.bf16.mxu0 0
    %5814 = vmatmul.mubr.bf16.gmra.mrb[0].mxu0 %v5677
    %v5815 = vpop.f32.mrb[0].mxu0
    %v5816 = vadd.f32 %v5564, %v5815
    %v5817 = vpop.f32.mrb[0].mxu0
    %v5818 = vpop.f32.mrb[0].mxu0
    %v5819 = vadd.f32 %v5564, %v5818
    %v5820 = vpop.f32.mrb[0].mxu0
    %5821 = vmatprep.mubr.bf16.mxu0 0
    %5822 = vmatmul.mubr.bf16.gmra.mrb[0].mxu0 %v5678
    %v5823 = vpop.f32.mrb[0].mxu0
    %v5824 = vadd.f32 %v5564, %v5823
    %v5825 = vpop.f32.mrb[0].mxu0
    %v5826 = vpop.f32.mrb[0].mxu0
    %v5827 = vadd.f32 %v5564, %v5826
    %v5828 = vpop.f32.mrb[0].mxu0
    %5829 = vmatprep.mubr.bf16.mxu0 0
    %5830 = vmatmul.mubr.bf16.gmra.mrb[0].mxu0 %v5679
    %v5831 = vpop.f32.mrb[0].mxu0
    %v5832 = vadd.f32 %v5564, %v5831
    %v5833 = vpop.f32.mrb[0].mxu0
    %v5834 = vpop.f32.mrb[0].mxu0
    %v5835 = vadd.f32 %v5564, %v5834
    %v5836 = vpop.f32.mrb[0].mxu0
    %5837 = vmatprep.mubr.bf16.mxu0 0
    %5838 = vmatmul.mubr.bf16.gmra.mrb[0].mxu0 %v5680
    %v5839 = vpop.f32.mrb[0].mxu0
    %v5840 = vadd.f32 %v5564, %v5839
    %v5841 = vpop.f32.mrb[0].mxu0
    %v5842 = vpop.f32.mrb[0].mxu0
    %v5843 = vadd.f32 %v5564, %v5842
    %v5844 = vpop.f32.mrb[0].mxu0
    %5845 = vmatprep.mubr.bf16.mxu0 0
    %5846 = vmatmul.mubr.bf16.gmra.mrb[0].mxu0 %v5681
    %v5847 = vpop.f32.mrb[0].mxu0
    %v5848 = vadd.f32 %v5564, %v5847
    %v5849 = vpop.f32.mrb[0].mxu0
    %v5850 = vpop.f32.mrb[0].mxu0
    %v5851 = vadd.f32 %v5564, %v5850
    %v5852 = vpop.f32.mrb[0].mxu0
    %5853 = vmatprep.mubr.bf16.mxu0 0
    %5854 = vmatmul.mubr.bf16.gmra.mrb[0].mxu0 %v5682
    %v5855 = vpop.f32.mrb[0].mxu0
    %v5856 = vadd.f32 %v5564, %v5855
    %v5857 = vpop.f32.mrb[0].mxu0
    %v5858 = vpop.f32.mrb[0].mxu0
    %v5859 = vadd.f32 %v5564, %v5858
    %v5860 = vpop.f32.mrb[0].mxu0
    %5861 = vmatprep.mubr.bf16.mxu0 0
    %5862 = vmatmul.mubr.bf16.gmra.mrb[0].mxu0 %v5683
    %v5863 = vpop.f32.mrb[0].mxu0
    %v5864 = vadd.f32 %v5564, %v5863
    %v5865 = vpop.f32.mrb[0].mxu0
    %v5866 = vpop.f32.mrb[0].mxu0
    %v5867 = vadd.f32 %v5564, %v5866
    %v5868 = vpop.f32.mrb[0].mxu0
    %5869 = vmatprep.mubr.bf16.mxu0 0
    %5870 = vmatmul.mubr.bf16.gmra.mrb[0].mxu0 %v5684
    %v5871 = vpop.f32.mrb[0].mxu0
    %v5872 = vadd.f32 %v5564, %v5871
    %v5873 = vpop.f32.mrb[0].mxu0
    %v5874 = vpop.f32.mrb[0].mxu0
    %v5875 = vadd.f32 %v5564, %v5874
    %v5876 = vpop.f32.mrb[0].mxu0
    %5877 = vmatprep.mubr.bf16.mxu0 0
    %5878 = vmatmul.mubr.bf16.gmra.mrb[0].mxu0 %v5685
    %v5879 = vpop.f32.mrb[0].mxu0
    %v5880 = vadd.f32 %v5564, %v5879
    %v5881 = vpop.f32.mrb[0].mxu0
    %v5882 = vpop.f32.mrb[0].mxu0
    %v5883 = vadd.f32 %v5564, %v5882
    %v5884 = vpop.f32.mrb[0].mxu0
    %5885 = vmatprep.mubr.bf16.mxu0 0
    %5886 = vmatmul.mubr.bf16.gmra.mrb[0].mxu0 %v5686
    %v5887 = vpop.f32.mrb[0].mxu0
    %v5888 = vadd.f32 %v5564, %v5887
    %v5889 = vpop.f32.mrb[0].mxu0
    %v5890 = vpop.f32.mrb[0].mxu0
    %v5891 = vadd.f32 %v5564, %v5890
    %v5892 = vpop.f32.mrb[0].mxu0
    %5893 = vmatprep.mubr.bf16.mxu0 0
    %5894 = vmatmul.mubr.bf16.gmra.mrb[0].mxu0 %v5687
    %v5895 = vpop.f32.mrb[0].mxu0
    %v5896 = vadd.f32 %v5564, %v5895
    %v5897 = vpop.f32.mrb[0].mxu0
    %v5898 = vpop.f32.mrb[0].mxu0
    %v5899 = vadd.f32 %v5564, %v5898
    %v5900 = vpop.f32.mrb[0].mxu0
    %5901 = vmatprep.mubr.bf16.mxu0 0
    %5902 = vmatmul.mubr.bf16.gmra.mrb[0].mxu0 %v5688
    %v5903 = vpop.f32.mrb[0].mxu0
    %v5904 = vadd.f32 %v5564, %v5903
    %v5905 = vpop.f32.mrb[0].mxu0
    %v5906 = vpop.f32.mrb[0].mxu0
    %v5907 = vadd.f32 %v5564, %v5906
    %v5908 = vpop.f32.mrb[0].mxu0
    %5909 = vmatprep.mubr.bf16.mxu0 0
    %5910 = vmatmul.mubr.bf16.gmra.mrb[0].mxu0 %v5689
    %v5911 = vpop.f32.mrb[0].mxu0
    %v5912 = vadd.f32 %v5564, %v5911
    %v5913 = vpop.f32.mrb[0].mxu0
    %v5914 = vpop.f32.mrb[0].mxu0
    %v5915 = vadd.f32 %v5564, %v5914
    %v5916 = vpop.f32.mrb[0].mxu0
    %5917 = vmatprep.mubr.bf16.mxu0 0
    %5918 = vmatmul.mubr.bf16.gmra.mrb[0].mxu0 %v5690
    %v5919 = vpop.f32.mrb[0].mxu0
    %v5920 = vadd.f32 %v5564, %v5919
    %v5921 = vpop.f32.mrb[0].mxu0
    %v5922 = vpop.f32.mrb[0].mxu0
    %v5923 = vadd.f32 %v5564, %v5922
    %v5924 = vpop.f32.mrb[0].mxu0
    %5925 = vmatprep.mubr.bf16.mxu0 0
    %5926 = vmatmul.mubr.bf16.gmra.mrb[0].mxu0 %v5691
    %v5927 = vpop.f32.mrb[0].mxu0
    %v5928 = vadd.f32 %v5564, %v5927
    %v5929 = vpop.f32.mrb[0].mxu0
    %v5930 = vpop.f32.mrb[0].mxu0
    %v5931 = vadd.f32 %v5564, %v5930
    %v5932 = vpop.f32.mrb[0].mxu0
    %5933 = vmatprep.mubr.bf16.mxu0 0
    %5934 = vmatmul.mubr.bf16.gmra.mrb[0].mxu0 %v5692
    %v5935 = vpop.f32.mrb[0].mxu0
    %v5936 = vadd.f32 %v5564, %v5935
    %v5937 = vpop.f32.mrb[0].mxu0
    %v5938 = vpop.f32.mrb[0].mxu0
    %v5939 = vadd.f32 %v5564, %v5938
    %v5940 = vpop.f32.mrb[0].mxu0
    %5941 = vmatprep.mubr.bf16.mxu0 0
    %5942 = vmatmul.mubr.bf16.gmra.mrb[0].mxu0 %v5693
    %v5943 = vpop.f32.mrb[0].mxu0
    %v5944 = vadd.f32 %v5564, %v5943
    %v5945 = vpop.f32.mrb[0].mxu0
    %v5946 = vpop.f32.mrb[0].mxu0
    %v5947 = vadd.f32 %v5564, %v5946
    %v5948 = vpop.f32.mrb[0].mxu0
    %5949 = vmatprep.mubr.bf16.mxu0 0
    %5950 = vmatmul.mubr.bf16.gmra.mrb[0].mxu0 %v5694
    %v5951 = vpop.f32.mrb[0].mxu0
    %v5952 = vadd.f32 %v5564, %v5951
    %v5953 = vpop.f32.mrb[0].mxu0
    %v5954 = vpop.f32.mrb[0].mxu0
    %v5955 = vadd.f32 %v5564, %v5954
    %v5956 = vpop.f32.mrb[0].mxu0
    %5957 = vmatprep.mubr.bf16.mxu0 0
    %5958 = vmatmul.mubr.bf16.gmra.mrb[0].mxu0 %v5695
    %v5959 = vpop.f32.mrb[0].mxu0
    %v5960 = vadd.f32 %v5564, %v5959
    %v5961 = vpop.f32.mrb[0].mxu0
    %v5962 = vpop.f32.mrb[0].mxu0
    %v5963 = vadd.f32 %v5564, %v5962
    %v5964 = vpop.f32.mrb[0].mxu0
    %5965 = vmatprep.mubr.bf16.mxu0 0
    %5966 = vmatmul.mubr.bf16.gmra.mrb[0].mxu0 %v5696
    %v5967 = vpop.f32.mrb[0].mxu0
    %v5968 = vadd.f32 %v5564, %v5967
    %v5969 = vpop.f32.mrb[0].mxu0
    %v5970 = vpop.f32.mrb[0].mxu0
    %v5971 = vadd.f32 %v5564, %v5970
    %v5972 = vpop.f32.mrb[0].mxu0
    %5973 = vmatprep.mubr.bf16.mxu0 0
    %5974 = vmatmul.mubr.bf16.gmra.mrb[0].mxu0 %v5697
    %v5975 = vpop.f32.mrb[0].mxu0
    %v5976 = vadd.f32 %v5564, %v5975
    %v5977 = vpop.f32.mrb[0].mxu0
    %v5978 = vpop.f32.mrb[0].mxu0
    %v5979 = vadd.f32 %v5564, %v5978
    %v5980 = vpop.f32.mrb[0].mxu0
    %5981 = vmatprep.mubr.bf16.mxu0 0
    %5982 = vmatmul.mubr.bf16.gmra.mrb[0].mxu0 %v5698
    %v5983 = vpop.f32.mrb[0].mxu0
    %v5984 = vadd.f32 %v5564, %v5983
    %v5985 = vpop.f32.mrb[0].mxu0
    %v5986 = vpop.f32.mrb[0].mxu0
    %v5987 = vadd.f32 %v5564, %v5986
    %v5988 = vpop.f32.mrb[0].mxu0
    %5989 = vmatprep.mubr.bf16.mxu0 0
    %5990 = vmatmul.mubr.bf16.gmra.mrb[0].mxu0 %v5699
    %v5991 = vpop.f32.mrb[0].mxu0
    %v5992 = vadd.f32 %v5564, %v5991
    %v5993 = vpop.f32.mrb[0].mxu0
    %v5994 = vpop.f32.mrb[0].mxu0
    %v5995 = vadd.f32 %v5564, %v5994
    %v5996 = vpop.f32.mrb[0].mxu0
    %5997 = vmatprep.mubr.bf16.mxu0 0
    %5998 = vmatmul.mubr.bf16.gmra.mrb[0].mxu0 %v5700
    %v5999 = vpop.f32.mrb[0].mxu0
    %v6000 = vadd.f32 %v5564, %v5999
    %v6001 = vpop.f32.mrb[0].mxu0
    %v6002 = vpop.f32.mrb[0].mxu0
    %v6003 = vadd.f32 %v5564, %v6002
    %v6004 = vpop.f32.mrb[0].mxu0
    %6005 = vmatprep.mubr.bf16.mxu0 0
    %6006 = vmatmul.mubr.bf16.gmra.mrb[0].mxu0 %v5701
    %v6007 = vpop.f32.mrb[0].mxu0
    %v6008 = vadd.f32 %v5564, %v6007
    %v6009 = vpop.f32.mrb[0].mxu0
    %v6010 = vpop.f32.mrb[0].mxu0
    %v6011 = vadd.f32 %v5564, %v6010
    %v6012 = vpop.f32.mrb[0].mxu0
    %6013 = vmatprep.mubr.bf16.mxu0 0
    %6014 = vmatmul.mubr.bf16.gmra.mrb[0].mxu0 %v5702
    %v6015 = vpop.f32.mrb[0].mxu0
    %v6016 = vadd.f32 %v5564, %v6015
    %v6017 = vpop.f32.mrb[0].mxu0
    %v6018 = vpop.f32.mrb[0].mxu0
    %v6019 = vadd.f32 %v5564, %v6018
    %v6020 = vpop.f32.mrb[0].mxu0
    %6021 = vmatprep.mubr.bf16.mxu0 0
    %6022 = vmatmul.mubr.bf16.gmra.mrb[0].mxu0 %v5703
    %v6023 = vpop.f32.mrb[0].mxu0
    %v6024 = vadd.f32 %v5564, %v6023
    %v6025 = vpop.f32.mrb[0].mxu0
    %v6026 = vpop.f32.mrb[0].mxu0
    %v6027 = vadd.f32 %v5564, %v6026
    %v6028 = vpop.f32.mrb[0].mxu0
    %6029 = vmatprep.mubr.bf16.mxu0 0
    %6030 = vmatmul.mubr.bf16.gmra.mrb[0].mxu0 %v5704
    %v6031 = vpop.f32.mrb[0].mxu0
    %v6032 = vadd.f32 %v5564, %v6031
    %v6033 = vpop.f32.mrb[0].mxu0
    %v6034 = vpop.f32.mrb[0].mxu0
    %v6035 = vadd.f32 %v5564, %v6034
    %v6036 = vpop.f32.mrb[0].mxu0
    %6037 = vdwg.mxu0
    %6038 = vmatprep.subr.mxu0 0.0
    %6039 = vmatpush1.msra.mxu0 %v5816
    %6040 = vmatprep.subr.mxu0 0.0
    %6041 = vmatpush1.msra.mxu0 %v5819
    %6042 = vmatprep.subr.mxu0 0.0
    %6043 = vmatpush1.msra.mxu0 %v5824
    %6044 = vmatprep.subr.mxu0 0.0
    %6045 = vmatpush1.msra.mxu0 %v5827
    %6046 = vmatprep.subr.mxu0 0.0
    %6047 = vmatpush1.msra.mxu0 %v5832
    %6048 = vmatprep.subr.mxu0 0.0
    %6049 = vmatpush1.msra.mxu0 %v5835
    %6050 = vmatprep.subr.mxu0 0.0
    %6051 = vmatpush1.msra.mxu0 %v5840
    %6052 = vmatprep.subr.mxu0 0.0
    %6053 = vmatpush1.msra.mxu0 %v5843
    %6054 = vmatprep.subr.mxu0 0.0
    %6055 = vmatpush1.msra.mxu0 %v5848
    %6056 = vmatprep.subr.mxu0 0.0
    %6057 = vmatpush1.msra.mxu0 %v5851
    %6058 = vmatprep.subr.mxu0 0.0
    %6059 = vmatpush1.msra.mxu0 %v5856
    %6060 = vmatprep.subr.mxu0 0.0
    %6061 = vmatpush1.msra.mxu0 %v5859
    %6062 = vmatprep.subr.mxu0 0.0
    %6063 = vmatpush1.msra.mxu0 %v5864
    %6064 = vmatprep.subr.mxu0 0.0
    %6065 = vmatpush1.msra.mxu0 %v5867
    %6066 = vmatprep.subr.mxu0 0.0
    %6067 = vmatpush1.msra.mxu0 %v5872
    %6068 = vmatprep.subr.mxu0 0.0
    %6069 = vmatpush1.msra.mxu0 %v5875
    %6070 = vmatprep.subr.mxu0 0.0
    %6071 = vmatpush1.msra.mxu0 %v5880
    %6072 = vmatprep.subr.mxu0 0.0
    %6073 = vmatpush1.msra.mxu0 %v5883
    %6074 = vmatprep.subr.mxu0 0.0
    %6075 = vmatpush1.msra.mxu0 %v5888
    %6076 = vmatprep.subr.mxu0 0.0
    %6077 = vmatpush1.msra.mxu0 %v5891
    %6078 = vmatprep.subr.mxu0 0.0
    %6079 = vmatpush1.msra.mxu0 %v5896
    %6080 = vmatprep.subr.mxu0 0.0
    %6081 = vmatpush1.msra.mxu0 %v5899
    %6082 = vmatprep.subr.mxu0 0.0
    %6083 = vmatpush1.msra.mxu0 %v5904
    %6084 = vmatprep.subr.mxu0 0.0
    %6085 = vmatpush1.msra.mxu0 %v5907
    %6086 = vmatprep.subr.mxu0 0.0
    %6087 = vmatpush1.msra.mxu0 %v5912
    %6088 = vmatprep.subr.mxu0 0.0
    %6089 = vmatpush1.msra.mxu0 %v5915
    %6090 = vmatprep.subr.mxu0 0.0
    %6091 = vmatpush1.msra.mxu0 %v5920
    %6092 = vmatprep.subr.mxu0 0.0
    %6093 = vmatpush1.msra.mxu0 %v5923
    %6094 = vmatprep.subr.mxu0 0.0
    %6095 = vmatpush1.msra.mxu0 %v5928
    %6096 = vmatprep.subr.mxu0 0.0
    %6097 = vmatpush1.msra.mxu0 %v5931
    %6098 = vmatprep.subr.mxu0 0.0
    %6099 = vmatpush1.msra.mxu0 %v5936
    %6100 = vmatprep.subr.mxu0 0.0
    %6101 = vmatpush1.msra.mxu0 %v5939
    %6102 = vmatprep.mubr.f32.mxu0 %v121
    %6103 = vmatmul.mubr.f32.gmra.mrb[0].mxu0 %v120
    %v6104 = vpop.f32.mrb[0].mxu0
    %v6105 = vadd.f32 0.0, %v6104
    %v6106 = vpop.f32.mrb[0].mxu0
    %6107 = vdwg.mxu0
    %6108 = vmatprep.subr.mxu0 0.0
    %6109 = vmatpush1.msra.mxu0 %v5944
    %6110 = vmatprep.subr.mxu0 0.0
    %6111 = vmatpush1.msra.mxu0 %v5947
    %6112 = vmatprep.subr.mxu0 0.0
    %6113 = vmatpush1.msra.mxu0 %v5952
    %6114 = vmatprep.subr.mxu0 0.0
    %6115 = vmatpush1.msra.mxu0 %v5955
    %6116 = vmatprep.subr.mxu0 0.0
    %6117 = vmatpush1.msra.mxu0 %v5960
    %6118 = vmatprep.subr.mxu0 0.0
    %6119 = vmatpush1.msra.mxu0 %v5963
    %6120 = vmatprep.subr.mxu0 0.0
    %6121 = vmatpush1.msra.mxu0 %v5968
    %6122 = vmatprep.subr.mxu0 0.0
    %6123 = vmatpush1.msra.mxu0 %v5971
    %6124 = vmatprep.subr.mxu0 0.0
    %6125 = vmatpush1.msra.mxu0 %v5976
    %6126 = vmatprep.subr.mxu0 0.0
    %6127 = vmatpush1.msra.mxu0 %v5979
    %6128 = vmatprep.subr.mxu0 0.0
    %6129 = vmatpush1.msra.mxu0 %v5984
    %6130 = vmatprep.subr.mxu0 0.0
    %6131 = vmatpush1.msra.mxu0 %v5987
    %6132 = vmatprep.subr.mxu0 0.0
    %6133 = vmatpush1.msra.mxu0 %v5992
    %6134 = vmatprep.subr.mxu0 0.0
    %6135 = vmatpush1.msra.mxu0 %v5995
    %6136 = vmatprep.subr.mxu0 0.0
    %6137 = vmatpush1.msra.mxu0 %v6000
    %6138 = vmatprep.subr.mxu0 0.0
    %6139 = vmatpush1.msra.mxu0 %v6003
    %6140 = vmatprep.subr.mxu0 0.0
    %6141 = vmatpush1.msra.mxu0 %v6008
    %6142 = vmatprep.subr.mxu0 0.0
    %6143 = vmatpush1.msra.mxu0 %v6011
    %6144 = vmatprep.subr.mxu0 0.0
    %6145 = vmatpush1.msra.mxu0 %v6016
    %6146 = vmatprep.subr.mxu0 0.0
    %6147 = vmatpush1.msra.mxu0 %v6019
    %6148 = vmatprep.subr.mxu0 0.0
    %6149 = vmatpush1.msra.mxu0 %v6024
    %6150 = vmatprep.subr.mxu0 0.0
    %6151 = vmatpush1.msra.mxu0 %v6027
    %6152 = vmatprep.subr.mxu0 0.0
    %6153 = vmatpush1.msra.mxu0 %v6032
    %6154 = vmatprep.subr.mxu0 0.0
    %6155 = vmatpush1.msra.mxu0 %v6035
    %6156 = vmatprep.subr.mxu0 0.0
    %6157 = vmatpush1.msra.mxu0 0.0
    %6158 = vmatprep.subr.mxu0 0.0
    %6159 = vmatpush1.msra.mxu0 0.0
    %6160 = vmatprep.subr.mxu0 0.0
    %6161 = vmatpush1.msra.mxu0 0.0
    %6162 = vmatprep.subr.mxu0 0.0
    %6163 = vmatpush1.msra.mxu0 0.0
    %6164 = vmatprep.subr.mxu0 0.0
    %6165 = vmatpush1.msra.mxu0 0.0
    %6166 = vmatprep.subr.mxu0 0.0
    %6167 = vmatpush1.msra.mxu0 0.0
    %6168 = vmatprep.subr.mxu0 0.0
    %6169 = vmatpush1.msra.mxu0 0.0
    %6170 = vmatprep.subr.mxu0 0.0
    %6171 = vmatpush1.msra.mxu0 0.0
    %6172 = vmatprep.mubr.f32.mxu0 %v3840
    %6173 = vmatmul.mubr.f32.gmra.mrb[0].mxu0 %v122
    %v6174 = vpop.f32.mrb[0].mxu0
    %v6175 = vadd.f32 %v6105, %v6174
    %v6176 = vpop.f32.mrb[0].mxu0
    %6177 = vdwg.mxu0
    %v6178 = vmul.f32 %v5816, %v5816
    %v6179 = vmul.f32 %v5819, %v5819
    %v6180 = vmul.f32 %v5824, %v5824
    %v6181 = vmul.f32 %v5827, %v5827
    %v6182 = vmul.f32 %v5832, %v5832
    %v6183 = vmul.f32 %v5835, %v5835
    %v6184 = vmul.f32 %v5840, %v5840
    %v6185 = vmul.f32 %v5843, %v5843
    %v6186 = vmul.f32 %v5848, %v5848
    %v6187 = vmul.f32 %v5851, %v5851
    %v6188 = vmul.f32 %v5856, %v5856
    %v6189 = vmul.f32 %v5859, %v5859
    %v6190 = vmul.f32 %v5864, %v5864
    %v6191 = vmul.f32 %v5867, %v5867
    %v6192 = vmul.f32 %v5872, %v5872
    %v6193 = vmul.f32 %v5875, %v5875
    %v6194 = vmul.f32 %v5880, %v5880
    %v6195 = vmul.f32 %v5883, %v5883
    %v6196 = vmul.f32 %v5888, %v5888
    %v6197 = vmul.f32 %v5891, %v5891
    %v6198 = vmul.f32 %v5896, %v5896
    %v6199 = vmul.f32 %v5899, %v5899
    %v6200 = vmul.f32 %v5904, %v5904
    %v6201 = vmul.f32 %v5907, %v5907
    %v6202 = vmul.f32 %v5912, %v5912
    %v6203 = vmul.f32 %v5915, %v5915
    %v6204 = vmul.f32 %v5920, %v5920
    %v6205 = vmul.f32 %v5923, %v5923
    %v6206 = vmul.f32 %v5928, %v5928
    %v6207 = vmul.f32 %v5931, %v5931
    %v6208 = vmul.f32 %v5936, %v5936
    %v6209 = vmul.f32 %v5939, %v5939
    %v6210 = vmul.f32 %v5944, %v5944
    %v6211 = vmul.f32 %v5947, %v5947
    %v6212 = vmul.f32 %v5952, %v5952
    %v6213 = vmul.f32 %v5955, %v5955
    %v6214 = vmul.f32 %v5960, %v5960
    %v6215 = vmul.f32 %v5963, %v5963
    %v6216 = vmul.f32 %v5968, %v5968
    %v6217 = vmul.f32 %v5971, %v5971
    %v6218 = vmul.f32 %v5976, %v5976
    %v6219 = vmul.f32 %v5979, %v5979
    %v6220 = vmul.f32 %v5984, %v5984
    %v6221 = vmul.f32 %v5987, %v5987
    %v6222 = vmul.f32 %v5992, %v5992
    %v6223 = vmul.f32 %v5995, %v5995
    %v6224 = vmul.f32 %v6000, %v6000
    %v6225 = vmul.f32 %v6003, %v6003
    %v6226 = vmul.f32 %v6008, %v6008
    %v6227 = vmul.f32 %v6011, %v6011
    %v6228 = vmul.f32 %v6016, %v6016
    %v6229 = vmul.f32 %v6019, %v6019
    %v6230 = vmul.f32 %v6024, %v6024
    %v6231 = vmul.f32 %v6027, %v6027
    %v6232 = vmul.f32 %v6032, %v6032
    %v6233 = vmul.f32 %v6035, %v6035
    %6234 = vmatprep.subr.mxu0 0.0
    %6235 = vmatpush1.msra.mxu0 %v6178
    %6236 = vmatprep.subr.mxu0 0.0
    %6237 = vmatpush1.msra.mxu0 %v6179
    %6238 = vmatprep.subr.mxu0 0.0
    %6239 = vmatpush1.msra.mxu0 %v6180
    %6240 = vmatprep.subr.mxu0 0.0
    %6241 = vmatpush1.msra.mxu0 %v6181
    %6242 = vmatprep.subr.mxu0 0.0
    %6243 = vmatpush1.msra.mxu0 %v6182
    %6244 = vmatprep.subr.mxu0 0.0
    %6245 = vmatpush1.msra.mxu0 %v6183
    %6246 = vmatprep.subr.mxu0 0.0
    %6247 = vmatpush1.msra.mxu0 %v6184
    %6248 = vmatprep.subr.mxu0 0.0
    %6249 = vmatpush1.msra.mxu0 %v6185
    %6250 = vmatprep.subr.mxu0 0.0
    %6251 = vmatpush1.msra.mxu0 %v6186
    %6252 = vmatprep.subr.mxu0 0.0
    %6253 = vmatpush1.msra.mxu0 %v6187
    %6254 = vmatprep.subr.mxu0 0.0
    %6255 = vmatpush1.msra.mxu0 %v6188
    %6256 = vmatprep.subr.mxu0 0.0
    %6257 = vmatpush1.msra.mxu0 %v6189
    %6258 = vmatprep.subr.mxu0 0.0
    %6259 = vmatpush1.msra.mxu0 %v6190
    %6260 = vmatprep.subr.mxu0 0.0
    %6261 = vmatpush1.msra.mxu0 %v6191
    %6262 = vmatprep.subr.mxu0 0.0
    %6263 = vmatpush1.msra.mxu0 %v6192
    %6264 = vmatprep.subr.mxu0 0.0
    %6265 = vmatpush1.msra.mxu0 %v6193
    %6266 = vmatprep.subr.mxu0 0.0
    %6267 = vmatpush1.msra.mxu0 %v6194
    %6268 = vmatprep.subr.mxu0 0.0
    %6269 = vmatpush1.msra.mxu0 %v6195
    %6270 = vmatprep.subr.mxu0 0.0
    %6271 = vmatpush1.msra.mxu0 %v6196
    %6272 = vmatprep.subr.mxu0 0.0
    %6273 = vmatpush1.msra.mxu0 %v6197
    %6274 = vmatprep.subr.mxu0 0.0
    %6275 = vmatpush1.msra.mxu0 %v6198
    %6276 = vmatprep.subr.mxu0 0.0
    %6277 = vmatpush1.msra.mxu0 %v6199
    %6278 = vmatprep.subr.mxu0 0.0
    %6279 = vmatpush1.msra.mxu0 %v6200
    %6280 = vmatprep.subr.mxu0 0.0
    %6281 = vmatpush1.msra.mxu0 %v6201
    %6282 = vmatprep.subr.mxu0 0.0
    %6283 = vmatpush1.msra.mxu0 %v6202
    %6284 = vmatprep.subr.mxu0 0.0
    %6285 = vmatpush1.msra.mxu0 %v6203
    %6286 = vmatprep.subr.mxu0 0.0
    %6287 = vmatpush1.msra.mxu0 %v6204
    %6288 = vmatprep.subr.mxu0 0.0
    %6289 = vmatpush1.msra.mxu0 %v6205
    %6290 = vmatprep.subr.mxu0 0.0
    %6291 = vmatpush1.msra.mxu0 %v6206
    %6292 = vmatprep.subr.mxu0 0.0
    %6293 = vmatpush1.msra.mxu0 %v6207
    %6294 = vmatprep.subr.mxu0 0.0
    %6295 = vmatpush1.msra.mxu0 %v6208
    %6296 = vmatprep.subr.mxu0 0.0
    %6297 = vmatpush1.msra.mxu0 %v6209
    %6298 = vmatprep.mubr.f32.mxu0 %v121
    %6299 = vmatmul.mubr.f32.gmra.mrb[0].mxu0 %v120
    %v6300 = vpop.f32.mrb[0].mxu0
    %v6301 = vadd.f32 0.0, %v6300
    %v6302 = vpop.f32.mrb[0].mxu0
    %6303 = vdwg.mxu0
    %6304 = vmatprep.subr.mxu0 0.0
    %6305 = vmatpush1.msra.mxu0 %v6210
    %6306 = vmatprep.subr.mxu0 0.0
    %6307 = vmatpush1.msra.mxu0 %v6211
    %6308 = vmatprep.subr.mxu0 0.0
    %6309 = vmatpush1.msra.mxu0 %v6212
    %6310 = vmatprep.subr.mxu0 0.0
    %6311 = vmatpush1.msra.mxu0 %v6213
    %6312 = vmatprep.subr.mxu0 0.0
    %6313 = vmatpush1.msra.mxu0 %v6214
    %6314 = vmatprep.subr.mxu0 0.0
    %6315 = vmatpush1.msra.mxu0 %v6215
    %6316 = vmatprep.subr.mxu0 0.0
    %6317 = vmatpush1.msra.mxu0 %v6216
    %6318 = vmatprep.subr.mxu0 0.0
    %6319 = vmatpush1.msra.mxu0 %v6217
    %6320 = vmatprep.subr.mxu0 0.0
    %6321 = vmatpush1.msra.mxu0 %v6218
    %6322 = vmatprep.subr.mxu0 0.0
    %6323 = vmatpush1.msra.mxu0 %v6219
    %6324 = vmatprep.subr.mxu0 0.0
    %6325 = vmatpush1.msra.mxu0 %v6220
    %6326 = vmatprep.subr.mxu0 0.0
    %6327 = vmatpush1.msra.mxu0 %v6221
    %6328 = vmatprep.subr.mxu0 0.0
    %6329 = vmatpush1.msra.mxu0 %v6222
    %6330 = vmatprep.subr.mxu0 0.0
    %6331 = vmatpush1.msra.mxu0 %v6223
    %6332 = vmatprep.subr.mxu0 0.0
    %6333 = vmatpush1.msra.mxu0 %v6224
    %6334 = vmatprep.subr.mxu0 0.0
    %6335 = vmatpush1.msra.mxu0 %v6225
    %6336 = vmatprep.subr.mxu0 0.0
    %6337 = vmatpush1.msra.mxu0 %v6226
    %6338 = vmatprep.subr.mxu0 0.0
    %6339 = vmatpush1.msra.mxu0 %v6227
    %6340 = vmatprep.subr.mxu0 0.0
    %6341 = vmatpush1.msra.mxu0 %v6228
    %6342 = vmatprep.subr.mxu0 0.0
    %6343 = vmatpush1.msra.mxu0 %v6229
    %6344 = vmatprep.subr.mxu0 0.0
    %6345 = vmatpush1.msra.mxu0 %v6230
    %6346 = vmatprep.subr.mxu0 0.0
    %6347 = vmatpush1.msra.mxu0 %v6231
    %6348 = vmatprep.subr.mxu0 0.0
    %6349 = vmatpush1.msra.mxu0 %v6232
    %6350 = vmatprep.subr.mxu0 0.0
    %6351 = vmatpush1.msra.mxu0 %v6233
    %6352 = vmatprep.subr.mxu0 0.0
    %6353 = vmatpush1.msra.mxu0 0.0
    %6354 = vmatprep.subr.mxu0 0.0
    %6355 = vmatpush1.msra.mxu0 0.0
    %6356 = vmatprep.subr.mxu0 0.0
    %6357 = vmatpush1.msra.mxu0 0.0
    %6358 = vmatprep.subr.mxu0 0.0
    %6359 = vmatpush1.msra.mxu0 0.0
    %6360 = vmatprep.subr.mxu0 0.0
    %6361 = vmatpush1.msra.mxu0 0.0
    %6362 = vmatprep.subr.mxu0 0.0
    %6363 = vmatpush1.msra.mxu0 0.0
    %6364 = vmatprep.subr.mxu0 0.0
    %6365 = vmatpush1.msra.mxu0 0.0
    %6366 = vmatprep.subr.mxu0 0.0
    %6367 = vmatpush1.msra.mxu0 0.0
    %6368 = vmatprep.mubr.f32.mxu0 %v3840
    %6369 = vmatmul.mubr.f32.gmra.mrb[0].mxu0 %v122
    %v6370 = vpop.f32.mrb[0].mxu0
    %v6371 = vadd.f32 %v6301, %v6370
    %v6372 = vpop.f32.mrb[0].mxu0
    %6373 = vdwg.mxu0
    %v6375 = vsel %vm4260, %v6175, 0
    %v6378 = vsel %vm4260, %v6371, 0
    %6380 = vmatprep.subr.mxu0 0.0
    %6381 = vmatpush1.msra.mxu0 %v95
    %6382 = vmatprep.subr.mxu0 0.0
    %6383 = vmatpush1.msra.mxu0 %v96
    %6384 = vmatprep.subr.mxu0 0.0
    %6385 = vmatpush1.msra.mxu0 %v97
    %6386 = vmatprep.subr.mxu0 0.0
    %6387 = vmatpush1.msra.mxu0 %v98
    %6388 = vmatprep.subr.mxu0 0.0
    %6389 = vmatpush1.msra.mxu0 0.0
    %6390 = vmatprep.subr.mxu0 0.0
    %6391 = vmatpush1.msra.mxu0 0.0
    %6392 = vmatprep.subr.mxu0 0.0
    %6393 = vmatpush1.msra.mxu0 0.0
    %6394 = vmatprep.subr.mxu0 0.0
    %6395 = vmatpush1.msra.mxu0 0.0
    %6396 = vmatprep.subr.mxu0 0.0
    %6397 = vmatpush1.msra.mxu0 0.0
    %6398 = vmatprep.subr.mxu0 0.0
    %6399 = vmatpush1.msra.mxu0 0.0
    %6400 = vmatprep.subr.mxu0 0.0
    %6401 = vmatpush1.msra.mxu0 0.0
    %6402 = vmatprep.subr.mxu0 0.0
    %6403 = vmatpush1.msra.mxu0 0.0
    %6404 = vmatprep.subr.mxu0 0.0
    %6405 = vmatpush1.msra.mxu0 0.0
    %6406 = vmatprep.subr.mxu0 0.0
    %6407 = vmatpush1.msra.mxu0 0.0
    %6408 = vmatprep.subr.mxu0 0.0
    %6409 = vmatpush1.msra.mxu0 0.0
    %6410 = vmatprep.subr.mxu0 0.0
    %6411 = vmatpush1.msra.mxu0 0.0
    %6412 = vmatprep.subr.mxu0 0.0
    %6413 = vmatpush1.msra.mxu0 0.0
    %6414 = vmatprep.subr.mxu0 0.0
    %6415 = vmatpush1.msra.mxu0 0.0
    %6416 = vmatprep.subr.mxu0 0.0
    %6417 = vmatpush1.msra.mxu0 0.0
    %6418 = vmatprep.subr.mxu0 0.0
    %6419 = vmatpush1.msra.mxu0 0.0
    %6420 = vmatprep.subr.mxu0 0.0
    %6421 = vmatpush1.msra.mxu0 0.0
    %6422 = vmatprep.subr.mxu0 0.0
    %6423 = vmatpush1.msra.mxu0 0.0
    %6424 = vmatprep.subr.mxu0 0.0
    %6425 = vmatpush1.msra.mxu0 0.0
    %6426 = vmatprep.subr.mxu0 0.0
    %6427 = vmatpush1.msra.mxu0 0.0
    %6428 = vmatprep.subr.mxu0 0.0
    %6429 = vmatpush1.msra.mxu0 0.0
    %6430 = vmatprep.subr.mxu0 0.0
    %6431 = vmatpush1.msra.mxu0 0.0
    %6432 = vmatprep.subr.mxu0 0.0
    %6433 = vmatpush1.msra.mxu0 0.0
    %6434 = vmatprep.subr.mxu0 0.0
    %6435 = vmatpush1.msra.mxu0 0.0
    %6436 = vmatprep.subr.mxu0 0.0
    %6437 = vmatpush1.msra.mxu0 0.0
    %6438 = vmatprep.subr.mxu0 0.0
    %6439 = vmatpush1.msra.mxu0 0.0
    %6440 = vmatprep.subr.mxu0 0.0
    %6441 = vmatpush1.msra.mxu0 0.0
    %6442 = vmatprep.subr.mxu0 0.0
    %6443 = vmatpush1.msra.mxu0 0.0
    %6444 = vmatprep.mubr.f32.mxu0 0.0
    %6445 = vmatmul.mubr.f32.gmra.mrb[0].mxu0 %v6375
    %v6446 = vpop.f32.mrb[0].mxu0
    %v6447 = vadd.f32 0.0, %v6446
    %v6448 = vpop.f32.mrb[0].mxu0
    %6449 = vmatprep.mubr.f32.mxu0 0.0
    %6450 = vmatmul.mubr.f32.gmra.mrb[0].mxu0 %v6378
    %v6451 = vpop.f32.mrb[0].mxu0
    %v6452 = vadd.f32 0.0, %v6451
    %v6453 = vpop.f32.mrb[0].mxu0
    %6454 = vdwg.mxu0
    %v6455 = vmul.f32 %v6447, 0.020408163
    %v6456 = vmul.f32 %v6452, 0.020408163
    %v6457 = vmul.f32 %v6455, %v6455
    %v6458 = vsub.f32 %v6456, %v6457
    %v6459 = vmax.f32 %v6458, 0.0
    %v6460 = vadd.f32 %v6459, 1e-05
    %v6461 = vrsqrt.pop %v6460
    %v6463 = vsel %vm4260, %v6455, 0
    %v6466 = vsel %vm4260, %v6461, 0
    %6468 = vmatprep.subr.mxu0 0.0
    %6469 = vmatpush1.msra.mxu0 %v75
    %6470 = vmatprep.subr.mxu0 0.0
    %6471 = vmatpush1.msra.mxu0 %v76
    %6472 = vmatprep.subr.mxu0 0.0
    %6473 = vmatpush1.msra.mxu0 %v77
    %6474 = vmatprep.subr.mxu0 0.0
    %6475 = vmatpush1.msra.mxu0 %v78
    %6476 = vmatprep.subr.mxu0 0.0
    %6477 = vmatpush1.msra.mxu0 0.0
    %6478 = vmatprep.subr.mxu0 0.0
    %6479 = vmatpush1.msra.mxu0 0.0
    %6480 = vmatprep.subr.mxu0 0.0
    %6481 = vmatpush1.msra.mxu0 0.0
    %6482 = vmatprep.subr.mxu0 0.0
    %6483 = vmatpush1.msra.mxu0 0.0
    %6484 = vmatprep.subr.mxu0 0.0
    %6485 = vmatpush1.msra.mxu0 0.0
    %6486 = vmatprep.subr.mxu0 0.0
    %6487 = vmatpush1.msra.mxu0 0.0
    %6488 = vmatprep.subr.mxu0 0.0
    %6489 = vmatpush1.msra.mxu0 0.0
    %6490 = vmatprep.subr.mxu0 0.0
    %6491 = vmatpush1.msra.mxu0 0.0
    %6492 = vmatprep.subr.mxu0 0.0
    %6493 = vmatpush1.msra.mxu0 0.0
    %6494 = vmatprep.subr.mxu0 0.0
    %6495 = vmatpush1.msra.mxu0 0.0
    %6496 = vmatprep.subr.mxu0 0.0
    %6497 = vmatpush1.msra.mxu0 0.0
    %6498 = vmatprep.subr.mxu0 0.0
    %6499 = vmatpush1.msra.mxu0 0.0
    %6500 = vmatprep.subr.mxu0 0.0
    %6501 = vmatpush1.msra.mxu0 0.0
    %6502 = vmatprep.subr.mxu0 0.0
    %6503 = vmatpush1.msra.mxu0 0.0
    %6504 = vmatprep.subr.mxu0 0.0
    %6505 = vmatpush1.msra.mxu0 0.0
    %6506 = vmatprep.subr.mxu0 0.0
    %6507 = vmatpush1.msra.mxu0 0.0
    %6508 = vmatprep.subr.mxu0 0.0
    %6509 = vmatpush1.msra.mxu0 0.0
    %6510 = vmatprep.subr.mxu0 0.0
    %6511 = vmatpush1.msra.mxu0 0.0
    %6512 = vmatprep.subr.mxu0 0.0
    %6513 = vmatpush1.msra.mxu0 0.0
    %6514 = vmatprep.subr.mxu0 0.0
    %6515 = vmatpush1.msra.mxu0 0.0
    %6516 = vmatprep.subr.mxu0 0.0
    %6517 = vmatpush1.msra.mxu0 0.0
    %6518 = vmatprep.subr.mxu0 0.0
    %6519 = vmatpush1.msra.mxu0 0.0
    %6520 = vmatprep.subr.mxu0 0.0
    %6521 = vmatpush1.msra.mxu0 0.0
    %6522 = vmatprep.subr.mxu0 0.0
    %6523 = vmatpush1.msra.mxu0 0.0
    %6524 = vmatprep.subr.mxu0 0.0
    %6525 = vmatpush1.msra.mxu0 0.0
    %6526 = vmatprep.subr.mxu0 0.0
    %6527 = vmatpush1.msra.mxu0 0.0
    %6528 = vmatprep.subr.mxu0 0.0
    %6529 = vmatpush1.msra.mxu0 0.0
    %6530 = vmatprep.subr.mxu0 0.0
    %6531 = vmatpush1.msra.mxu0 0.0
    %6532 = vmatprep.mubr.f32.mxu0 0.0
    %6533 = vmatmul.mubr.f32.gmra.mrb[0].mxu0 %v6463
    %v6534 = vpop.f32.mrb[0].mxu0
    %v6535 = vadd.f32 0.0, %v6534
    %v6536 = vpop.f32.mrb[0].mxu0
    %6537 = vmatprep.mubr.f32.mxu0 0.0
    %6538 = vmatmul.mubr.f32.gmra.mrb[0].mxu0 %v6466
    %v6539 = vpop.f32.mrb[0].mxu0
    %v6540 = vadd.f32 0.0, %v6539
    %v6541 = vpop.f32.mrb[0].mxu0
    %6542 = vdwg.mxu0
    %6543 = vmatprep.subr.mxu0 0.0
    %6544 = vmatpush1.msra.mxu0 %v6535
    %6545 = vmatprep.subr.mxu0 0.0
    %6546 = vmatpush1.msra.mxu0 0.0
    %6547 = vmatprep.subr.mxu0 0.0
    %6548 = vmatpush1.msra.mxu0 0.0
    %6549 = vmatprep.subr.mxu0 0.0
    %6550 = vmatpush1.msra.mxu0 0.0
    %6551 = vmatprep.subr.mxu0 0.0
    %6552 = vmatpush1.msra.mxu0 0.0
    %6553 = vmatprep.subr.mxu0 0.0
    %6554 = vmatpush1.msra.mxu0 0.0
    %6555 = vmatprep.subr.mxu0 0.0
    %6556 = vmatpush1.msra.mxu0 0.0
    %6557 = vmatprep.subr.mxu0 0.0
    %6558 = vmatpush1.msra.mxu0 0.0
    %6559 = vmatprep.subr.mxu0 0.0
    %6560 = vmatpush1.msra.mxu0 0.0
    %6561 = vmatprep.subr.mxu0 0.0
    %6562 = vmatpush1.msra.mxu0 0.0
    %6563 = vmatprep.subr.mxu0 0.0
    %6564 = vmatpush1.msra.mxu0 0.0
    %6565 = vmatprep.subr.mxu0 0.0
    %6566 = vmatpush1.msra.mxu0 0.0
    %6567 = vmatprep.subr.mxu0 0.0
    %6568 = vmatpush1.msra.mxu0 0.0
    %6569 = vmatprep.subr.mxu0 0.0
    %6570 = vmatpush1.msra.mxu0 0.0
    %6571 = vmatprep.subr.mxu0 0.0
    %6572 = vmatpush1.msra.mxu0 0.0
    %6573 = vmatprep.subr.mxu0 0.0
    %6574 = vmatpush1.msra.mxu0 0.0
    %6575 = vmatprep.subr.mxu0 0.0
    %6576 = vmatpush1.msra.mxu0 0.0
    %6577 = vmatprep.subr.mxu0 0.0
    %6578 = vmatpush1.msra.mxu0 0.0
    %6579 = vmatprep.subr.mxu0 0.0
    %6580 = vmatpush1.msra.mxu0 0.0
    %6581 = vmatprep.subr.mxu0 0.0
    %6582 = vmatpush1.msra.mxu0 0.0
    %6583 = vmatprep.subr.mxu0 0.0
    %6584 = vmatpush1.msra.mxu0 0.0
    %6585 = vmatprep.subr.mxu0 0.0
    %6586 = vmatpush1.msra.mxu0 0.0
    %6587 = vmatprep.subr.mxu0 0.0
    %6588 = vmatpush1.msra.mxu0 0.0
    %6589 = vmatprep.subr.mxu0 0.0
    %6590 = vmatpush1.msra.mxu0 0.0
    %6591 = vmatprep.subr.mxu0 0.0
    %6592 = vmatpush1.msra.mxu0 0.0
    %6593 = vmatprep.subr.mxu0 0.0
    %6594 = vmatpush1.msra.mxu0 0.0
    %6595 = vmatprep.subr.mxu0 0.0
    %6596 = vmatpush1.msra.mxu0 0.0
    %6597 = vmatprep.subr.mxu0 0.0
    %6598 = vmatpush1.msra.mxu0 0.0
    %6599 = vmatprep.subr.mxu0 0.0
    %6600 = vmatpush1.msra.mxu0 0.0
    %6601 = vmatprep.subr.mxu0 0.0
    %6602 = vmatpush1.msra.mxu0 0.0
    %6603 = vmatprep.subr.mxu0 0.0
    %6604 = vmatpush1.msra.mxu0 0.0
    %6605 = vmatprep.subr.mxu0 0.0
    %6606 = vmatpush1.msra.mxu0 0.0
    %6607 = vmatprep.mubr.f32.mxu0 0.0
    %6608 = vmatmul.mubr.f32.gmra.mrb[0].mxu0 %v4344
    %v6609 = vpop.f32.mrb[0].mxu0
    %v6610 = vadd.f32 0.0, %v6609
    %v6611 = vpop.f32.mrb[0].mxu0
    %6612 = vmatprep.mubr.f32.mxu0 0.0
    %6613 = vmatmul.mubr.f32.gmra.mrb[0].mxu0 %v4347
    %v6614 = vpop.f32.mrb[0].mxu0
    %v6615 = vadd.f32 0.0, %v6614
    %v6616 = vpop.f32.mrb[0].mxu0
    %6617 = vmatprep.mubr.f32.mxu0 0.0
    %6618 = vmatmul.mubr.f32.gmra.mrb[0].mxu0 %v4350
    %v6619 = vpop.f32.mrb[0].mxu0
    %v6620 = vadd.f32 0.0, %v6619
    %v6621 = vpop.f32.mrb[0].mxu0
    %6622 = vmatprep.mubr.f32.mxu0 0.0
    %6623 = vmatmul.mubr.f32.gmra.mrb[0].mxu0 %v4353
    %v6624 = vpop.f32.mrb[0].mxu0
    %v6625 = vadd.f32 0.0, %v6624
    %v6626 = vpop.f32.mrb[0].mxu0
    %6627 = vmatprep.mubr.f32.mxu0 0.0
    %6628 = vmatmul.mubr.f32.gmra.mrb[0].mxu0 %v4356
    %v6629 = vpop.f32.mrb[0].mxu0
    %v6630 = vadd.f32 0.0, %v6629
    %v6631 = vpop.f32.mrb[0].mxu0
    %6632 = vmatprep.mubr.f32.mxu0 0.0
    %6633 = vmatmul.mubr.f32.gmra.mrb[0].mxu0 %v4359
    %v6634 = vpop.f32.mrb[0].mxu0
    %v6635 = vadd.f32 0.0, %v6634
    %v6636 = vpop.f32.mrb[0].mxu0
    %6637 = vmatprep.mubr.f32.mxu0 0.0
    %6638 = vmatmul.mubr.f32.gmra.mrb[0].mxu0 %v4362
    %v6639 = vpop.f32.mrb[0].mxu0
    %v6640 = vadd.f32 0.0, %v6639
    %v6641 = vpop.f32.mrb[0].mxu0
    %6642 = vmatprep.mubr.f32.mxu0 0.0
    %6643 = vmatmul.mubr.f32.gmra.mrb[0].mxu0 %v4365
    %v6644 = vpop.f32.mrb[0].mxu0
    %v6645 = vadd.f32 0.0, %v6644
    %v6646 = vpop.f32.mrb[0].mxu0
    %6647 = vmatprep.mubr.f32.mxu0 0.0
    %6648 = vmatmul.mubr.f32.gmra.mrb[0].mxu0 %v4368
    %v6649 = vpop.f32.mrb[0].mxu0
    %v6650 = vadd.f32 0.0, %v6649
    %v6651 = vpop.f32.mrb[0].mxu0
    %6652 = vmatprep.mubr.f32.mxu0 0.0
    %6653 = vmatmul.mubr.f32.gmra.mrb[0].mxu0 %v4371
    %v6654 = vpop.f32.mrb[0].mxu0
    %v6655 = vadd.f32 0.0, %v6654
    %v6656 = vpop.f32.mrb[0].mxu0
    %6657 = vmatprep.mubr.f32.mxu0 0.0
    %6658 = vmatmul.mubr.f32.gmra.mrb[0].mxu0 %v4374
    %v6659 = vpop.f32.mrb[0].mxu0
    %v6660 = vadd.f32 0.0, %v6659
    %v6661 = vpop.f32.mrb[0].mxu0
    %6662 = vmatprep.mubr.f32.mxu0 0.0
    %6663 = vmatmul.mubr.f32.gmra.mrb[0].mxu0 %v4377
    %v6664 = vpop.f32.mrb[0].mxu0
    %v6665 = vadd.f32 0.0, %v6664
    %v6666 = vpop.f32.mrb[0].mxu0
    %6667 = vmatprep.mubr.f32.mxu0 0.0
    %6668 = vmatmul.mubr.f32.gmra.mrb[0].mxu0 %v4380
    %v6669 = vpop.f32.mrb[0].mxu0
    %v6670 = vadd.f32 0.0, %v6669
    %v6671 = vpop.f32.mrb[0].mxu0
    %6672 = vmatprep.mubr.f32.mxu0 0.0
    %6673 = vmatmul.mubr.f32.gmra.mrb[0].mxu0 %v4383
    %v6674 = vpop.f32.mrb[0].mxu0
    %v6675 = vadd.f32 0.0, %v6674
    %v6676 = vpop.f32.mrb[0].mxu0
    %6677 = vmatprep.mubr.f32.mxu0 0.0
    %6678 = vmatmul.mubr.f32.gmra.mrb[0].mxu0 %v4386
    %v6679 = vpop.f32.mrb[0].mxu0
    %v6680 = vadd.f32 0.0, %v6679
    %v6681 = vpop.f32.mrb[0].mxu0
    %6682 = vmatprep.mubr.f32.mxu0 0.0
    %6683 = vmatmul.mubr.f32.gmra.mrb[0].mxu0 %v4389
    %v6684 = vpop.f32.mrb[0].mxu0
    %v6685 = vadd.f32 0.0, %v6684
    %v6686 = vpop.f32.mrb[0].mxu0
    %6687 = vmatprep.mubr.f32.mxu0 0.0
    %6688 = vmatmul.mubr.f32.gmra.mrb[0].mxu0 %v4392
    %v6689 = vpop.f32.mrb[0].mxu0
    %v6690 = vadd.f32 0.0, %v6689
    %v6691 = vpop.f32.mrb[0].mxu0
    %6692 = vmatprep.mubr.f32.mxu0 0.0
    %6693 = vmatmul.mubr.f32.gmra.mrb[0].mxu0 %v4395
    %v6694 = vpop.f32.mrb[0].mxu0
    %v6695 = vadd.f32 0.0, %v6694
    %v6696 = vpop.f32.mrb[0].mxu0
    %6697 = vmatprep.mubr.f32.mxu0 0.0
    %6698 = vmatmul.mubr.f32.gmra.mrb[0].mxu0 %v4398
    %v6699 = vpop.f32.mrb[0].mxu0
    %v6700 = vadd.f32 0.0, %v6699
    %v6701 = vpop.f32.mrb[0].mxu0
    %6702 = vmatprep.mubr.f32.mxu0 0.0
    %6703 = vmatmul.mubr.f32.gmra.mrb[0].mxu0 %v4401
    %v6704 = vpop.f32.mrb[0].mxu0
    %v6705 = vadd.f32 0.0, %v6704
    %v6706 = vpop.f32.mrb[0].mxu0
    %6707 = vmatprep.mubr.f32.mxu0 0.0
    %6708 = vmatmul.mubr.f32.gmra.mrb[0].mxu0 %v4404
    %v6709 = vpop.f32.mrb[0].mxu0
    %v6710 = vadd.f32 0.0, %v6709
    %v6711 = vpop.f32.mrb[0].mxu0
    %6712 = vmatprep.mubr.f32.mxu0 0.0
    %6713 = vmatmul.mubr.f32.gmra.mrb[0].mxu0 %v4407
    %v6714 = vpop.f32.mrb[0].mxu0
    %v6715 = vadd.f32 0.0, %v6714
    %v6716 = vpop.f32.mrb[0].mxu0
    %6717 = vmatprep.mubr.f32.mxu0 0.0
    %6718 = vmatmul.mubr.f32.gmra.mrb[0].mxu0 %v4410
    %v6719 = vpop.f32.mrb[0].mxu0
    %v6720 = vadd.f32 0.0, %v6719
    %v6721 = vpop.f32.mrb[0].mxu0
    %6722 = vmatprep.mubr.f32.mxu0 0.0
    %6723 = vmatmul.mubr.f32.gmra.mrb[0].mxu0 %v4413
    %v6724 = vpop.f32.mrb[0].mxu0
    %v6725 = vadd.f32 0.0, %v6724
    %v6726 = vpop.f32.mrb[0].mxu0
    %6727 = vmatprep.mubr.f32.mxu0 0.0
    %6728 = vmatmul.mubr.f32.gmra.mrb[0].mxu0 %v4416
    %v6729 = vpop.f32.mrb[0].mxu0
    %v6730 = vadd.f32 0.0, %v6729
    %v6731 = vpop.f32.mrb[0].mxu0
    %6732 = vmatprep.mubr.f32.mxu0 0.0
    %6733 = vmatmul.mubr.f32.gmra.mrb[0].mxu0 %v4419
    %v6734 = vpop.f32.mrb[0].mxu0
    %v6735 = vadd.f32 0.0, %v6734
    %v6736 = vpop.f32.mrb[0].mxu0
    %6737 = vmatprep.mubr.f32.mxu0 0.0
    %6738 = vmatmul.mubr.f32.gmra.mrb[0].mxu0 %v4422
    %v6739 = vpop.f32.mrb[0].mxu0
    %v6740 = vadd.f32 0.0, %v6739
    %v6741 = vpop.f32.mrb[0].mxu0
    %6742 = vmatprep.mubr.f32.mxu0 0.0
    %6743 = vmatmul.mubr.f32.gmra.mrb[0].mxu0 %v4425
    %v6744 = vpop.f32.mrb[0].mxu0
    %v6745 = vadd.f32 0.0, %v6744
    %v6746 = vpop.f32.mrb[0].mxu0
    %6747 = vmatprep.mubr.f32.mxu0 0.0
    %6748 = vmatmul.mubr.f32.gmra.mrb[0].mxu0 %v4428
    %v6749 = vpop.f32.mrb[0].mxu0
    %v6750 = vadd.f32 0.0, %v6749
    %v6751 = vpop.f32.mrb[0].mxu0
    %6752 = vmatprep.mubr.f32.mxu0 0.0
    %6753 = vmatmul.mubr.f32.gmra.mrb[0].mxu0 %v4431
    %v6754 = vpop.f32.mrb[0].mxu0
    %v6755 = vadd.f32 0.0, %v6754
    %v6756 = vpop.f32.mrb[0].mxu0
    %6757 = vmatprep.mubr.f32.mxu0 0.0
    %6758 = vmatmul.mubr.f32.gmra.mrb[0].mxu0 %v4434
    %v6759 = vpop.f32.mrb[0].mxu0
    %v6760 = vadd.f32 0.0, %v6759
    %v6761 = vpop.f32.mrb[0].mxu0
    %6762 = vmatprep.mubr.f32.mxu0 0.0
    %6763 = vmatmul.mubr.f32.gmra.mrb[0].mxu0 %v4437
    %v6764 = vpop.f32.mrb[0].mxu0
    %v6765 = vadd.f32 0.0, %v6764
    %v6766 = vpop.f32.mrb[0].mxu0
    %6767 = vmatprep.mubr.f32.mxu0 0.0
    %6768 = vmatmul.mubr.f32.gmra.mrb[0].mxu0 %v4440
    %v6769 = vpop.f32.mrb[0].mxu0
    %v6770 = vadd.f32 0.0, %v6769
    %v6771 = vpop.f32.mrb[0].mxu0
    %6772 = vmatprep.mubr.f32.mxu0 0.0
    %6773 = vmatmul.mubr.f32.gmra.mrb[0].mxu0 %v4443
    %v6774 = vpop.f32.mrb[0].mxu0
    %v6775 = vadd.f32 0.0, %v6774
    %v6776 = vpop.f32.mrb[0].mxu0
    %6777 = vmatprep.mubr.f32.mxu0 0.0
    %6778 = vmatmul.mubr.f32.gmra.mrb[0].mxu0 %v4446
    %v6779 = vpop.f32.mrb[0].mxu0
    %v6780 = vadd.f32 0.0, %v6779
    %v6781 = vpop.f32.mrb[0].mxu0
    %6782 = vmatprep.mubr.f32.mxu0 0.0
    %6783 = vmatmul.mubr.f32.gmra.mrb[0].mxu0 %v4449
    %v6784 = vpop.f32.mrb[0].mxu0
    %v6785 = vadd.f32 0.0, %v6784
    %v6786 = vpop.f32.mrb[0].mxu0
    %6787 = vmatprep.mubr.f32.mxu0 0.0
    %6788 = vmatmul.mubr.f32.gmra.mrb[0].mxu0 %v4452
    %v6789 = vpop.f32.mrb[0].mxu0
    %v6790 = vadd.f32 0.0, %v6789
    %v6791 = vpop.f32.mrb[0].mxu0
    %6792 = vmatprep.mubr.f32.mxu0 0.0
    %6793 = vmatmul.mubr.f32.gmra.mrb[0].mxu0 %v4455
    %v6794 = vpop.f32.mrb[0].mxu0
    %v6795 = vadd.f32 0.0, %v6794
    %v6796 = vpop.f32.mrb[0].mxu0
    %6797 = vmatprep.mubr.f32.mxu0 0.0
    %6798 = vmatmul.mubr.f32.gmra.mrb[0].mxu0 %v4458
    %v6799 = vpop.f32.mrb[0].mxu0
    %v6800 = vadd.f32 0.0, %v6799
    %v6801 = vpop.f32.mrb[0].mxu0
    %6802 = vmatprep.mubr.f32.mxu0 0.0
    %6803 = vmatmul.mubr.f32.gmra.mrb[0].mxu0 %v4461
    %v6804 = vpop.f32.mrb[0].mxu0
    %v6805 = vadd.f32 0.0, %v6804
    %v6806 = vpop.f32.mrb[0].mxu0
    %6807 = vmatprep.mubr.f32.mxu0 0.0
    %6808 = vmatmul.mubr.f32.gmra.mrb[0].mxu0 %v4464
    %v6809 = vpop.f32.mrb[0].mxu0
    %v6810 = vadd.f32 0.0, %v6809
    %v6811 = vpop.f32.mrb[0].mxu0
    %6812 = vmatprep.mubr.f32.mxu0 0.0
    %6813 = vmatmul.mubr.f32.gmra.mrb[0].mxu0 %v4467
    %v6814 = vpop.f32.mrb[0].mxu0
    %v6815 = vadd.f32 0.0, %v6814
    %v6816 = vpop.f32.mrb[0].mxu0
    %6817 = vmatprep.mubr.f32.mxu0 0.0
    %6818 = vmatmul.mubr.f32.gmra.mrb[0].mxu0 %v4470
    %v6819 = vpop.f32.mrb[0].mxu0
    %v6820 = vadd.f32 0.0, %v6819
    %v6821 = vpop.f32.mrb[0].mxu0
    %6822 = vmatprep.mubr.f32.mxu0 0.0
    %6823 = vmatmul.mubr.f32.gmra.mrb[0].mxu0 %v4473
    %v6824 = vpop.f32.mrb[0].mxu0
    %v6825 = vadd.f32 0.0, %v6824
    %v6826 = vpop.f32.mrb[0].mxu0
    %6827 = vmatprep.mubr.f32.mxu0 0.0
    %6828 = vmatmul.mubr.f32.gmra.mrb[0].mxu0 %v4476
    %v6829 = vpop.f32.mrb[0].mxu0
    %v6830 = vadd.f32 0.0, %v6829
    %v6831 = vpop.f32.mrb[0].mxu0
    %6832 = vmatprep.mubr.f32.mxu0 0.0
    %6833 = vmatmul.mubr.f32.gmra.mrb[0].mxu0 %v4479
    %v6834 = vpop.f32.mrb[0].mxu0
    %v6835 = vadd.f32 0.0, %v6834
    %v6836 = vpop.f32.mrb[0].mxu0
    %6837 = vmatprep.mubr.f32.mxu0 0.0
    %6838 = vmatmul.mubr.f32.gmra.mrb[0].mxu0 %v4482
    %v6839 = vpop.f32.mrb[0].mxu0
    %v6840 = vadd.f32 0.0, %v6839
    %v6841 = vpop.f32.mrb[0].mxu0
    %6842 = vmatprep.mubr.f32.mxu0 0.0
    %6843 = vmatmul.mubr.f32.gmra.mrb[0].mxu0 %v4485
    %v6844 = vpop.f32.mrb[0].mxu0
    %v6845 = vadd.f32 0.0, %v6844
    %v6846 = vpop.f32.mrb[0].mxu0
    %6847 = vmatprep.mubr.f32.mxu0 0.0
    %6848 = vmatmul.mubr.f32.gmra.mrb[0].mxu0 %v4488
    %v6849 = vpop.f32.mrb[0].mxu0
    %v6850 = vadd.f32 0.0, %v6849
    %v6851 = vpop.f32.mrb[0].mxu0
    %6852 = vmatprep.mubr.f32.mxu0 0.0
    %6853 = vmatmul.mubr.f32.gmra.mrb[0].mxu0 %v4491
    %v6854 = vpop.f32.mrb[0].mxu0
    %v6855 = vadd.f32 0.0, %v6854
    %v6856 = vpop.f32.mrb[0].mxu0
    %6857 = vmatprep.mubr.f32.mxu0 0.0
    %6858 = vmatmul.mubr.f32.gmra.mrb[0].mxu0 %v4494
    %v6859 = vpop.f32.mrb[0].mxu0
    %v6860 = vadd.f32 0.0, %v6859
    %v6861 = vpop.f32.mrb[0].mxu0
    %6862 = vmatprep.mubr.f32.mxu0 0.0
    %6863 = vmatmul.mubr.f32.gmra.mrb[0].mxu0 %v4497
    %v6864 = vpop.f32.mrb[0].mxu0
    %v6865 = vadd.f32 0.0, %v6864
    %v6866 = vpop.f32.mrb[0].mxu0
    %6867 = vmatprep.mubr.f32.mxu0 0.0
    %6868 = vmatmul.mubr.f32.gmra.mrb[0].mxu0 %v4500
    %v6869 = vpop.f32.mrb[0].mxu0
    %v6870 = vadd.f32 0.0, %v6869
    %v6871 = vpop.f32.mrb[0].mxu0
    %6872 = vmatprep.mubr.f32.mxu0 0.0
    %6873 = vmatmul.mubr.f32.gmra.mrb[0].mxu0 %v4503
    %v6874 = vpop.f32.mrb[0].mxu0
    %v6875 = vadd.f32 0.0, %v6874
    %v6876 = vpop.f32.mrb[0].mxu0
    %6877 = vmatprep.mubr.f32.mxu0 0.0
    %6878 = vmatmul.mubr.f32.gmra.mrb[0].mxu0 %v4506
    %v6879 = vpop.f32.mrb[0].mxu0
    %v6880 = vadd.f32 0.0, %v6879
    %v6881 = vpop.f32.mrb[0].mxu0
    %6882 = vmatprep.mubr.f32.mxu0 0.0
    %6883 = vmatmul.mubr.f32.gmra.mrb[0].mxu0 %v4509
    %v6884 = vpop.f32.mrb[0].mxu0
    %v6885 = vadd.f32 0.0, %v6884
    %v6886 = vpop.f32.mrb[0].mxu0
    %6887 = vdwg.mxu0
    %6888 = vmatprep.subr.mxu0 0.0
    %6889 = vmatpush1.msra.mxu0 %v6540
    %6890 = vmatprep.subr.mxu0 0.0
    %6891 = vmatpush1.msra.mxu0 0.0
    %6892 = vmatprep.subr.mxu0 0.0
    %6893 = vmatpush1.msra.mxu0 0.0
    %6894 = vmatprep.subr.mxu0 0.0
    %6895 = vmatpush1.msra.mxu0 0.0
    %6896 = vmatprep.subr.mxu0 0.0
    %6897 = vmatpush1.msra.mxu0 0.0
    %6898 = vmatprep.subr.mxu0 0.0
    %6899 = vmatpush1.msra.mxu0 0.0
    %6900 = vmatprep.subr.mxu0 0.0
    %6901 = vmatpush1.msra.mxu0 0.0
    %6902 = vmatprep.subr.mxu0 0.0
    %6903 = vmatpush1.msra.mxu0 0.0
    %6904 = vmatprep.subr.mxu0 0.0
    %6905 = vmatpush1.msra.mxu0 0.0
    %6906 = vmatprep.subr.mxu0 0.0
    %6907 = vmatpush1.msra.mxu0 0.0
    %6908 = vmatprep.subr.mxu0 0.0
    %6909 = vmatpush1.msra.mxu0 0.0
    %6910 = vmatprep.subr.mxu0 0.0
    %6911 = vmatpush1.msra.mxu0 0.0
    %6912 = vmatprep.subr.mxu0 0.0
    %6913 = vmatpush1.msra.mxu0 0.0
    %6914 = vmatprep.subr.mxu0 0.0
    %6915 = vmatpush1.msra.mxu0 0.0
    %6916 = vmatprep.subr.mxu0 0.0
    %6917 = vmatpush1.msra.mxu0 0.0
    %6918 = vmatprep.subr.mxu0 0.0
    %6919 = vmatpush1.msra.mxu0 0.0
    %6920 = vmatprep.subr.mxu0 0.0
    %6921 = vmatpush1.msra.mxu0 0.0
    %6922 = vmatprep.subr.mxu0 0.0
    %6923 = vmatpush1.msra.mxu0 0.0
    %6924 = vmatprep.subr.mxu0 0.0
    %6925 = vmatpush1.msra.mxu0 0.0
    %6926 = vmatprep.subr.mxu0 0.0
    %6927 = vmatpush1.msra.mxu0 0.0
    %6928 = vmatprep.subr.mxu0 0.0
    %6929 = vmatpush1.msra.mxu0 0.0
    %6930 = vmatprep.subr.mxu0 0.0
    %6931 = vmatpush1.msra.mxu0 0.0
    %6932 = vmatprep.subr.mxu0 0.0
    %6933 = vmatpush1.msra.mxu0 0.0
    %6934 = vmatprep.subr.mxu0 0.0
    %6935 = vmatpush1.msra.mxu0 0.0
    %6936 = vmatprep.subr.mxu0 0.0
    %6937 = vmatpush1.msra.mxu0 0.0
    %6938 = vmatprep.subr.mxu0 0.0
    %6939 = vmatpush1.msra.mxu0 0.0
    %6940 = vmatprep.subr.mxu0 0.0
    %6941 = vmatpush1.msra.mxu0 0.0
    %6942 = vmatprep.subr.mxu0 0.0
    %6943 = vmatpush1.msra.mxu0 0.0
    %6944 = vmatprep.subr.mxu0 0.0
    %6945 = vmatpush1.msra.mxu0 0.0
    %6946 = vmatprep.subr.mxu0 0.0
    %6947 = vmatpush1.msra.mxu0 0.0
    %6948 = vmatprep.subr.mxu0 0.0
    %6949 = vmatpush1.msra.mxu0 0.0
    %6950 = vmatprep.subr.mxu0 0.0
    %6951 = vmatpush1.msra.mxu0 0.0
    %6952 = vmatprep.mubr.f32.mxu0 0.0
    %6953 = vmatmul.mubr.f32.gmra.mrb[0].mxu0 %v4344
    %v6954 = vpop.f32.mrb[0].mxu0
    %v6955 = vadd.f32 0.0, %v6954
    %v6956 = vpop.f32.mrb[0].mxu0
    %6957 = vmatprep.mubr.f32.mxu0 0.0
    %6958 = vmatmul.mubr.f32.gmra.mrb[0].mxu0 %v4347
    %v6959 = vpop.f32.mrb[0].mxu0
    %v6960 = vadd.f32 0.0, %v6959
    %v6961 = vpop.f32.mrb[0].mxu0
    %6962 = vmatprep.mubr.f32.mxu0 0.0
    %6963 = vmatmul.mubr.f32.gmra.mrb[0].mxu0 %v4350
    %v6964 = vpop.f32.mrb[0].mxu0
    %v6965 = vadd.f32 0.0, %v6964
    %v6966 = vpop.f32.mrb[0].mxu0
    %6967 = vmatprep.mubr.f32.mxu0 0.0
    %6968 = vmatmul.mubr.f32.gmra.mrb[0].mxu0 %v4353
    %v6969 = vpop.f32.mrb[0].mxu0
    %v6970 = vadd.f32 0.0, %v6969
    %v6971 = vpop.f32.mrb[0].mxu0
    %6972 = vmatprep.mubr.f32.mxu0 0.0
    %6973 = vmatmul.mubr.f32.gmra.mrb[0].mxu0 %v4356
    %v6974 = vpop.f32.mrb[0].mxu0
    %v6975 = vadd.f32 0.0, %v6974
    %v6976 = vpop.f32.mrb[0].mxu0
    %6977 = vmatprep.mubr.f32.mxu0 0.0
    %6978 = vmatmul.mubr.f32.gmra.mrb[0].mxu0 %v4359
    %v6979 = vpop.f32.mrb[0].mxu0
    %v6980 = vadd.f32 0.0, %v6979
    %v6981 = vpop.f32.mrb[0].mxu0
    %6982 = vmatprep.mubr.f32.mxu0 0.0
    %6983 = vmatmul.mubr.f32.gmra.mrb[0].mxu0 %v4362
    %v6984 = vpop.f32.mrb[0].mxu0
    %v6985 = vadd.f32 0.0, %v6984
    %v6986 = vpop.f32.mrb[0].mxu0
    %6987 = vmatprep.mubr.f32.mxu0 0.0
    %6988 = vmatmul.mubr.f32.gmra.mrb[0].mxu0 %v4365
    %v6989 = vpop.f32.mrb[0].mxu0
    %v6990 = vadd.f32 0.0, %v6989
    %v6991 = vpop.f32.mrb[0].mxu0
    %6992 = vmatprep.mubr.f32.mxu0 0.0
    %6993 = vmatmul.mubr.f32.gmra.mrb[0].mxu0 %v4368
    %v6994 = vpop.f32.mrb[0].mxu0
    %v6995 = vadd.f32 0.0, %v6994
    %v6996 = vpop.f32.mrb[0].mxu0
    %6997 = vmatprep.mubr.f32.mxu0 0.0
    %6998 = vmatmul.mubr.f32.gmra.mrb[0].mxu0 %v4371
    %v6999 = vpop.f32.mrb[0].mxu0
    %v7000 = vadd.f32 0.0, %v6999
    %v7001 = vpop.f32.mrb[0].mxu0
    %7002 = vmatprep.mubr.f32.mxu0 0.0
    %7003 = vmatmul.mubr.f32.gmra.mrb[0].mxu0 %v4374
    %v7004 = vpop.f32.mrb[0].mxu0
    %v7005 = vadd.f32 0.0, %v7004
    %v7006 = vpop.f32.mrb[0].mxu0
    %7007 = vmatprep.mubr.f32.mxu0 0.0
    %7008 = vmatmul.mubr.f32.gmra.mrb[0].mxu0 %v4377
    %v7009 = vpop.f32.mrb[0].mxu0
    %v7010 = vadd.f32 0.0, %v7009
    %v7011 = vpop.f32.mrb[0].mxu0
    %7012 = vmatprep.mubr.f32.mxu0 0.0
    %7013 = vmatmul.mubr.f32.gmra.mrb[0].mxu0 %v4380
    %v7014 = vpop.f32.mrb[0].mxu0
    %v7015 = vadd.f32 0.0, %v7014
    %v7016 = vpop.f32.mrb[0].mxu0
    %7017 = vmatprep.mubr.f32.mxu0 0.0
    %7018 = vmatmul.mubr.f32.gmra.mrb[0].mxu0 %v4383
    %v7019 = vpop.f32.mrb[0].mxu0
    %v7020 = vadd.f32 0.0, %v7019
    %v7021 = vpop.f32.mrb[0].mxu0
    %7022 = vmatprep.mubr.f32.mxu0 0.0
    %7023 = vmatmul.mubr.f32.gmra.mrb[0].mxu0 %v4386
    %v7024 = vpop.f32.mrb[0].mxu0
    %v7025 = vadd.f32 0.0, %v7024
    %v7026 = vpop.f32.mrb[0].mxu0
    %7027 = vmatprep.mubr.f32.mxu0 0.0
    %7028 = vmatmul.mubr.f32.gmra.mrb[0].mxu0 %v4389
    %v7029 = vpop.f32.mrb[0].mxu0
    %v7030 = vadd.f32 0.0, %v7029
    %v7031 = vpop.f32.mrb[0].mxu0
    %7032 = vmatprep.mubr.f32.mxu0 0.0
    %7033 = vmatmul.mubr.f32.gmra.mrb[0].mxu0 %v4392
    %v7034 = vpop.f32.mrb[0].mxu0
    %v7035 = vadd.f32 0.0, %v7034
    %v7036 = vpop.f32.mrb[0].mxu0
    %7037 = vmatprep.mubr.f32.mxu0 0.0
    %7038 = vmatmul.mubr.f32.gmra.mrb[0].mxu0 %v4395
    %v7039 = vpop.f32.mrb[0].mxu0
    %v7040 = vadd.f32 0.0, %v7039
    %v7041 = vpop.f32.mrb[0].mxu0
    %7042 = vmatprep.mubr.f32.mxu0 0.0
    %7043 = vmatmul.mubr.f32.gmra.mrb[0].mxu0 %v4398
    %v7044 = vpop.f32.mrb[0].mxu0
    %v7045 = vadd.f32 0.0, %v7044
    %v7046 = vpop.f32.mrb[0].mxu0
    %7047 = vmatprep.mubr.f32.mxu0 0.0
    %7048 = vmatmul.mubr.f32.gmra.mrb[0].mxu0 %v4401
    %v7049 = vpop.f32.mrb[0].mxu0
    %v7050 = vadd.f32 0.0, %v7049
    %v7051 = vpop.f32.mrb[0].mxu0
    %7052 = vmatprep.mubr.f32.mxu0 0.0
    %7053 = vmatmul.mubr.f32.gmra.mrb[0].mxu0 %v4404
    %v7054 = vpop.f32.mrb[0].mxu0
    %v7055 = vadd.f32 0.0, %v7054
    %v7056 = vpop.f32.mrb[0].mxu0
    %7057 = vmatprep.mubr.f32.mxu0 0.0
    %7058 = vmatmul.mubr.f32.gmra.mrb[0].mxu0 %v4407
    %v7059 = vpop.f32.mrb[0].mxu0
    %v7060 = vadd.f32 0.0, %v7059
    %v7061 = vpop.f32.mrb[0].mxu0
    %7062 = vmatprep.mubr.f32.mxu0 0.0
    %7063 = vmatmul.mubr.f32.gmra.mrb[0].mxu0 %v4410
    %v7064 = vpop.f32.mrb[0].mxu0
    %v7065 = vadd.f32 0.0, %v7064
    %v7066 = vpop.f32.mrb[0].mxu0
    %7067 = vmatprep.mubr.f32.mxu0 0.0
    %7068 = vmatmul.mubr.f32.gmra.mrb[0].mxu0 %v4413
    %v7069 = vpop.f32.mrb[0].mxu0
    %v7070 = vadd.f32 0.0, %v7069
    %v7071 = vpop.f32.mrb[0].mxu0
    %7072 = vmatprep.mubr.f32.mxu0 0.0
    %7073 = vmatmul.mubr.f32.gmra.mrb[0].mxu0 %v4416
    %v7074 = vpop.f32.mrb[0].mxu0
    %v7075 = vadd.f32 0.0, %v7074
    %v7076 = vpop.f32.mrb[0].mxu0
    %7077 = vmatprep.mubr.f32.mxu0 0.0
    %7078 = vmatmul.mubr.f32.gmra.mrb[0].mxu0 %v4419
    %v7079 = vpop.f32.mrb[0].mxu0
    %v7080 = vadd.f32 0.0, %v7079
    %v7081 = vpop.f32.mrb[0].mxu0
    %7082 = vmatprep.mubr.f32.mxu0 0.0
    %7083 = vmatmul.mubr.f32.gmra.mrb[0].mxu0 %v4422
    %v7084 = vpop.f32.mrb[0].mxu0
    %v7085 = vadd.f32 0.0, %v7084
    %v7086 = vpop.f32.mrb[0].mxu0
    %7087 = vmatprep.mubr.f32.mxu0 0.0
    %7088 = vmatmul.mubr.f32.gmra.mrb[0].mxu0 %v4425
    %v7089 = vpop.f32.mrb[0].mxu0
    %v7090 = vadd.f32 0.0, %v7089
    %v7091 = vpop.f32.mrb[0].mxu0
    %7092 = vmatprep.mubr.f32.mxu0 0.0
    %7093 = vmatmul.mubr.f32.gmra.mrb[0].mxu0 %v4428
    %v7094 = vpop.f32.mrb[0].mxu0
    %v7095 = vadd.f32 0.0, %v7094
    %v7096 = vpop.f32.mrb[0].mxu0
    %7097 = vmatprep.mubr.f32.mxu0 0.0
    %7098 = vmatmul.mubr.f32.gmra.mrb[0].mxu0 %v4431
    %v7099 = vpop.f32.mrb[0].mxu0
    %v7100 = vadd.f32 0.0, %v7099
    %v7101 = vpop.f32.mrb[0].mxu0
    %7102 = vmatprep.mubr.f32.mxu0 0.0
    %7103 = vmatmul.mubr.f32.gmra.mrb[0].mxu0 %v4434
    %v7104 = vpop.f32.mrb[0].mxu0
    %v7105 = vadd.f32 0.0, %v7104
    %v7106 = vpop.f32.mrb[0].mxu0
    %7107 = vmatprep.mubr.f32.mxu0 0.0
    %7108 = vmatmul.mubr.f32.gmra.mrb[0].mxu0 %v4437
    %v7109 = vpop.f32.mrb[0].mxu0
    %v7110 = vadd.f32 0.0, %v7109
    %v7111 = vpop.f32.mrb[0].mxu0
    %7112 = vmatprep.mubr.f32.mxu0 0.0
    %7113 = vmatmul.mubr.f32.gmra.mrb[0].mxu0 %v4440
    %v7114 = vpop.f32.mrb[0].mxu0
    %v7115 = vadd.f32 0.0, %v7114
    %v7116 = vpop.f32.mrb[0].mxu0
    %7117 = vmatprep.mubr.f32.mxu0 0.0
    %7118 = vmatmul.mubr.f32.gmra.mrb[0].mxu0 %v4443
    %v7119 = vpop.f32.mrb[0].mxu0
    %v7120 = vadd.f32 0.0, %v7119
    %v7121 = vpop.f32.mrb[0].mxu0
    %7122 = vmatprep.mubr.f32.mxu0 0.0
    %7123 = vmatmul.mubr.f32.gmra.mrb[0].mxu0 %v4446
    %v7124 = vpop.f32.mrb[0].mxu0
    %v7125 = vadd.f32 0.0, %v7124
    %v7126 = vpop.f32.mrb[0].mxu0
    %7127 = vmatprep.mubr.f32.mxu0 0.0
    %7128 = vmatmul.mubr.f32.gmra.mrb[0].mxu0 %v4449
    %v7129 = vpop.f32.mrb[0].mxu0
    %v7130 = vadd.f32 0.0, %v7129
    %v7131 = vpop.f32.mrb[0].mxu0
    %7132 = vmatprep.mubr.f32.mxu0 0.0
    %7133 = vmatmul.mubr.f32.gmra.mrb[0].mxu0 %v4452
    %v7134 = vpop.f32.mrb[0].mxu0
    %v7135 = vadd.f32 0.0, %v7134
    %v7136 = vpop.f32.mrb[0].mxu0
    %7137 = vmatprep.mubr.f32.mxu0 0.0
    %7138 = vmatmul.mubr.f32.gmra.mrb[0].mxu0 %v4455
    %v7139 = vpop.f32.mrb[0].mxu0
    %v7140 = vadd.f32 0.0, %v7139
    %v7141 = vpop.f32.mrb[0].mxu0
    %7142 = vmatprep.mubr.f32.mxu0 0.0
    %7143 = vmatmul.mubr.f32.gmra.mrb[0].mxu0 %v4458
    %v7144 = vpop.f32.mrb[0].mxu0
    %v7145 = vadd.f32 0.0, %v7144
    %v7146 = vpop.f32.mrb[0].mxu0
    %7147 = vmatprep.mubr.f32.mxu0 0.0
    %7148 = vmatmul.mubr.f32.gmra.mrb[0].mxu0 %v4461
    %v7149 = vpop.f32.mrb[0].mxu0
    %v7150 = vadd.f32 0.0, %v7149
    %v7151 = vpop.f32.mrb[0].mxu0
    %7152 = vmatprep.mubr.f32.mxu0 0.0
    %7153 = vmatmul.mubr.f32.gmra.mrb[0].mxu0 %v4464
    %v7154 = vpop.f32.mrb[0].mxu0
    %v7155 = vadd.f32 0.0, %v7154
    %v7156 = vpop.f32.mrb[0].mxu0
    %7157 = vmatprep.mubr.f32.mxu0 0.0
    %7158 = vmatmul.mubr.f32.gmra.mrb[0].mxu0 %v4467
    %v7159 = vpop.f32.mrb[0].mxu0
    %v7160 = vadd.f32 0.0, %v7159
    %v7161 = vpop.f32.mrb[0].mxu0
    %7162 = vmatprep.mubr.f32.mxu0 0.0
    %7163 = vmatmul.mubr.f32.gmra.mrb[0].mxu0 %v4470
    %v7164 = vpop.f32.mrb[0].mxu0
    %v7165 = vadd.f32 0.0, %v7164
    %v7166 = vpop.f32.mrb[0].mxu0
    %7167 = vmatprep.mubr.f32.mxu0 0.0
    %7168 = vmatmul.mubr.f32.gmra.mrb[0].mxu0 %v4473
    %v7169 = vpop.f32.mrb[0].mxu0
    %v7170 = vadd.f32 0.0, %v7169
    %v7171 = vpop.f32.mrb[0].mxu0
    %7172 = vmatprep.mubr.f32.mxu0 0.0
    %7173 = vmatmul.mubr.f32.gmra.mrb[0].mxu0 %v4476
    %v7174 = vpop.f32.mrb[0].mxu0
    %v7175 = vadd.f32 0.0, %v7174
    %v7176 = vpop.f32.mrb[0].mxu0
    %7177 = vmatprep.mubr.f32.mxu0 0.0
    %7178 = vmatmul.mubr.f32.gmra.mrb[0].mxu0 %v4479
    %v7179 = vpop.f32.mrb[0].mxu0
    %v7180 = vadd.f32 0.0, %v7179
    %v7181 = vpop.f32.mrb[0].mxu0
    %7182 = vmatprep.mubr.f32.mxu0 0.0
    %7183 = vmatmul.mubr.f32.gmra.mrb[0].mxu0 %v4482
    %v7184 = vpop.f32.mrb[0].mxu0
    %v7185 = vadd.f32 0.0, %v7184
    %v7186 = vpop.f32.mrb[0].mxu0
    %7187 = vmatprep.mubr.f32.mxu0 0.0
    %7188 = vmatmul.mubr.f32.gmra.mrb[0].mxu0 %v4485
    %v7189 = vpop.f32.mrb[0].mxu0
    %v7190 = vadd.f32 0.0, %v7189
    %v7191 = vpop.f32.mrb[0].mxu0
    %7192 = vmatprep.mubr.f32.mxu0 0.0
    %7193 = vmatmul.mubr.f32.gmra.mrb[0].mxu0 %v4488
    %v7194 = vpop.f32.mrb[0].mxu0
    %v7195 = vadd.f32 0.0, %v7194
    %v7196 = vpop.f32.mrb[0].mxu0
    %7197 = vmatprep.mubr.f32.mxu0 0.0
    %7198 = vmatmul.mubr.f32.gmra.mrb[0].mxu0 %v4491
    %v7199 = vpop.f32.mrb[0].mxu0
    %v7200 = vadd.f32 0.0, %v7199
    %v7201 = vpop.f32.mrb[0].mxu0
    %7202 = vmatprep.mubr.f32.mxu0 0.0
    %7203 = vmatmul.mubr.f32.gmra.mrb[0].mxu0 %v4494
    %v7204 = vpop.f32.mrb[0].mxu0
    %v7205 = vadd.f32 0.0, %v7204
    %v7206 = vpop.f32.mrb[0].mxu0
    %7207 = vmatprep.mubr.f32.mxu0 0.0
    %7208 = vmatmul.mubr.f32.gmra.mrb[0].mxu0 %v4497
    %v7209 = vpop.f32.mrb[0].mxu0
    %v7210 = vadd.f32 0.0, %v7209
    %v7211 = vpop.f32.mrb[0].mxu0
    %7212 = vmatprep.mubr.f32.mxu0 0.0
    %7213 = vmatmul.mubr.f32.gmra.mrb[0].mxu0 %v4500
    %v7214 = vpop.f32.mrb[0].mxu0
    %v7215 = vadd.f32 0.0, %v7214
    %v7216 = vpop.f32.mrb[0].mxu0
    %7217 = vmatprep.mubr.f32.mxu0 0.0
    %7218 = vmatmul.mubr.f32.gmra.mrb[0].mxu0 %v4503
    %v7219 = vpop.f32.mrb[0].mxu0
    %v7220 = vadd.f32 0.0, %v7219
    %v7221 = vpop.f32.mrb[0].mxu0
    %7222 = vmatprep.mubr.f32.mxu0 0.0
    %7223 = vmatmul.mubr.f32.gmra.mrb[0].mxu0 %v4506
    %v7224 = vpop.f32.mrb[0].mxu0
    %v7225 = vadd.f32 0.0, %v7224
    %v7226 = vpop.f32.mrb[0].mxu0
    %7227 = vmatprep.mubr.f32.mxu0 0.0
    %7228 = vmatmul.mubr.f32.gmra.mrb[0].mxu0 %v4509
    %v7229 = vpop.f32.mrb[0].mxu0
    %v7230 = vadd.f32 0.0, %v7229
    %v7231 = vpop.f32.mrb[0].mxu0
    %7232 = vdwg.mxu0
    %v7233 = vsub.f32 %v5816, %v6610
    %v7234 = vsub.f32 %v5819, %v6615
    %v7235 = vsub.f32 %v5824, %v6620
    %v7236 = vsub.f32 %v5827, %v6625
    %v7237 = vsub.f32 %v5832, %v6630
    %v7238 = vsub.f32 %v5835, %v6635
    %v7239 = vsub.f32 %v5840, %v6640
    %v7240 = vsub.f32 %v5843, %v6645
    %v7241 = vsub.f32 %v5848, %v6650
    %v7242 = vsub.f32 %v5851, %v6655
    %v7243 = vsub.f32 %v5856, %v6660
    %v7244 = vsub.f32 %v5859, %v6665
    %v7245 = vsub.f32 %v5864, %v6670
    %v7246 = vsub.f32 %v5867, %v6675
    %v7247 = vsub.f32 %v5872, %v6680
    %v7248 = vsub.f32 %v5875, %v6685
    %v7249 = vsub.f32 %v5880, %v6690
    %v7250 = vsub.f32 %v5883, %v6695
    %v7251 = vsub.f32 %v5888, %v6700
    %v7252 = vsub.f32 %v5891, %v6705
    %v7253 = vsub.f32 %v5896, %v6710
    %v7254 = vsub.f32 %v5899, %v6715
    %v7255 = vsub.f32 %v5904, %v6720
    %v7256 = vsub.f32 %v5907, %v6725
    %v7257 = vsub.f32 %v5912, %v6730
    %v7258 = vsub.f32 %v5915, %v6735
    %v7259 = vsub.f32 %v5920, %v6740
    %v7260 = vsub.f32 %v5923, %v6745
    %v7261 = vsub.f32 %v5928, %v6750
    %v7262 = vsub.f32 %v5931, %v6755
    %v7263 = vsub.f32 %v5936, %v6760
    %v7264 = vsub.f32 %v5939, %v6765
    %v7265 = vsub.f32 %v5944, %v6770
    %v7266 = vsub.f32 %v5947, %v6775
    %v7267 = vsub.f32 %v5952, %v6780
    %v7268 = vsub.f32 %v5955, %v6785
    %v7269 = vsub.f32 %v5960, %v6790
    %v7270 = vsub.f32 %v5963, %v6795
    %v7271 = vsub.f32 %v5968, %v6800
    %v7272 = vsub.f32 %v5971, %v6805
    %v7273 = vsub.f32 %v5976, %v6810
    %v7274 = vsub.f32 %v5979, %v6815
    %v7275 = vsub.f32 %v5984, %v6820
    %v7276 = vsub.f32 %v5987, %v6825
    %v7277 = vsub.f32 %v5992, %v6830
    %v7278 = vsub.f32 %v5995, %v6835
    %v7279 = vsub.f32 %v6000, %v6840
    %v7280 = vsub.f32 %v6003, %v6845
    %v7281 = vsub.f32 %v6008, %v6850
    %v7282 = vsub.f32 %v6011, %v6855
    %v7283 = vsub.f32 %v6016, %v6860
    %v7284 = vsub.f32 %v6019, %v6865
    %v7285 = vsub.f32 %v6024, %v6870
    %v7286 = vsub.f32 %v6027, %v6875
    %v7287 = vsub.f32 %v6032, %v6880
    %v7288 = vsub.f32 %v6035, %v6885
    %v7289 = vmul.f32 %v7233, %v6955
    %v7290 = vmul.f32 %v7234, %v6960
    %v7291 = vmul.f32 %v7235, %v6965
    %v7292 = vmul.f32 %v7236, %v6970
    %v7293 = vmul.f32 %v7237, %v6975
    %v7294 = vmul.f32 %v7238, %v6980
    %v7295 = vmul.f32 %v7239, %v6985
    %v7296 = vmul.f32 %v7240, %v6990
    %v7297 = vmul.f32 %v7241, %v6995
    %v7298 = vmul.f32 %v7242, %v7000
    %v7299 = vmul.f32 %v7243, %v7005
    %v7300 = vmul.f32 %v7244, %v7010
    %v7301 = vmul.f32 %v7245, %v7015
    %v7302 = vmul.f32 %v7246, %v7020
    %v7303 = vmul.f32 %v7247, %v7025
    %v7304 = vmul.f32 %v7248, %v7030
    %v7305 = vmul.f32 %v7249, %v7035
    %v7306 = vmul.f32 %v7250, %v7040
    %v7307 = vmul.f32 %v7251, %v7045
    %v7308 = vmul.f32 %v7252, %v7050
    %v7309 = vmul.f32 %v7253, %v7055
    %v7310 = vmul.f32 %v7254, %v7060
    %v7311 = vmul.f32 %v7255, %v7065
    %v7312 = vmul.f32 %v7256, %v7070
    %v7313 = vmul.f32 %v7257, %v7075
    %v7314 = vmul.f32 %v7258, %v7080
    %v7315 = vmul.f32 %v7259, %v7085
    %v7316 = vmul.f32 %v7260, %v7090
    %v7317 = vmul.f32 %v7261, %v7095
    %v7318 = vmul.f32 %v7262, %v7100
    %v7319 = vmul.f32 %v7263, %v7105
    %v7320 = vmul.f32 %v7264, %v7110
    %v7321 = vmul.f32 %v7265, %v7115
    %v7322 = vmul.f32 %v7266, %v7120
    %v7323 = vmul.f32 %v7267, %v7125
    %v7324 = vmul.f32 %v7268, %v7130
    %v7325 = vmul.f32 %v7269, %v7135
    %v7326 = vmul.f32 %v7270, %v7140
    %v7327 = vmul.f32 %v7271, %v7145
    %v7328 = vmul.f32 %v7272, %v7150
    %v7329 = vmul.f32 %v7273, %v7155
    %v7330 = vmul.f32 %v7274, %v7160
    %v7331 = vmul.f32 %v7275, %v7165
    %v7332 = vmul.f32 %v7276, %v7170
    %v7333 = vmul.f32 %v7277, %v7175
    %v7334 = vmul.f32 %v7278, %v7180
    %v7335 = vmul.f32 %v7279, %v7185
    %v7336 = vmul.f32 %v7280, %v7190
    %v7337 = vmul.f32 %v7281, %v7195
    %v7338 = vmul.f32 %v7282, %v7200
    %v7339 = vmul.f32 %v7283, %v7205
    %v7340 = vmul.f32 %v7284, %v7210
    %v7341 = vmul.f32 %v7285, %v7215
    %v7342 = vmul.f32 %v7286, %v7220
    %v7343 = vmul.f32 %v7287, %v7225
    %v7344 = vmul.f32 %v7288, %v7230
    %v7345 = vlaneseq
    %v7346 = vshrl.u32 %v7345, 7
    %v7347 = vsub.s32 1, %v7346
    %v7348 = vrot.slane %v74, %v7347
    %v7349 = vmul.f32 %v7289, %v7348
    %v7350 = vmul.f32 %v7290, %v7348
    %v7351 = vmul.f32 %v7291, %v7348
    %v7352 = vmul.f32 %v7292, %v7348
    %v7353 = vmul.f32 %v7293, %v7348
    %v7354 = vmul.f32 %v7294, %v7348
    %v7355 = vmul.f32 %v7295, %v7348
    %v7356 = vmul.f32 %v7296, %v7348
    %v7357 = vmul.f32 %v7297, %v7348
    %v7358 = vmul.f32 %v7298, %v7348
    %v7359 = vmul.f32 %v7299, %v7348
    %v7360 = vmul.f32 %v7300, %v7348
    %v7361 = vmul.f32 %v7301, %v7348
    %v7362 = vmul.f32 %v7302, %v7348
    %v7363 = vmul.f32 %v7303, %v7348
    %v7364 = vmul.f32 %v7304, %v7348
    %v7365 = vmul.f32 %v7305, %v7348
    %v7366 = vmul.f32 %v7306, %v7348
    %v7367 = vmul.f32 %v7307, %v7348
    %v7368 = vmul.f32 %v7308, %v7348
    %v7369 = vmul.f32 %v7309, %v7348
    %v7370 = vmul.f32 %v7310, %v7348
    %v7371 = vmul.f32 %v7311, %v7348
    %v7372 = vmul.f32 %v7312, %v7348
    %v7373 = vmul.f32 %v7313, %v7348
    %v7374 = vmul.f32 %v7314, %v7348
    %v7375 = vmul.f32 %v7315, %v7348
    %v7376 = vmul.f32 %v7316, %v7348
    %v7377 = vmul.f32 %v7317, %v7348
    %v7378 = vmul.f32 %v7318, %v7348
    %v7379 = vmul.f32 %v7319, %v7348
    %v7380 = vmul.f32 %v7320, %v7348
    %v7381 = vmul.f32 %v7321, %v7348
    %v7382 = vmul.f32 %v7322, %v7348
    %v7383 = vmul.f32 %v7323, %v7348
    %v7384 = vmul.f32 %v7324, %v7348
    %v7385 = vmul.f32 %v7325, %v7348
    %v7386 = vmul.f32 %v7326, %v7348
    %v7387 = vmul.f32 %v7327, %v7348
    %v7388 = vmul.f32 %v7328, %v7348
    %v7389 = vmul.f32 %v7329, %v7348
    %v7390 = vmul.f32 %v7330, %v7348
    %v7391 = vmul.f32 %v7331, %v7348
    %v7392 = vmul.f32 %v7332, %v7348
    %v7393 = vmul.f32 %v7333, %v7348
    %v7394 = vmul.f32 %v7334, %v7348
    %v7395 = vmul.f32 %v7335, %v7348
    %v7396 = vmul.f32 %v7336, %v7348
    %v7397 = vmul.f32 %v7337, %v7348
    %v7398 = vmul.f32 %v7338, %v7348
    %v7399 = vmul.f32 %v7339, %v7348
    %v7400 = vmul.f32 %v7340, %v7348
    %v7401 = vmul.f32 %v7341, %v7348
    %v7402 = vmul.f32 %v7342, %v7348
    %v7403 = vmul.f32 %v7343, %v7348
    %v7404 = vmul.f32 %v7344, %v7348
    %v7405 = vlaneseq
    %v7406 = vshrl.u32 %v7405, 7
    %v7407 = vsub.s32 2, %v7406
    %v7408 = vrot.slane %v74, %v7407
    %v7409 = vadd.f32 %v7349, %v7408
    %v7410 = vadd.f32 %v7350, %v7408
    %v7411 = vadd.f32 %v7351, %v7408
    %v7412 = vadd.f32 %v7352, %v7408
    %v7413 = vadd.f32 %v7353, %v7408
    %v7414 = vadd.f32 %v7354, %v7408
    %v7415 = vadd.f32 %v7355, %v7408
    %v7416 = vadd.f32 %v7356, %v7408
    %v7417 = vadd.f32 %v7357, %v7408
    %v7418 = vadd.f32 %v7358, %v7408
    %v7419 = vadd.f32 %v7359, %v7408
    %v7420 = vadd.f32 %v7360, %v7408
    %v7421 = vadd.f32 %v7361, %v7408
    %v7422 = vadd.f32 %v7362, %v7408
    %v7423 = vadd.f32 %v7363, %v7408
    %v7424 = vadd.f32 %v7364, %v7408
    %v7425 = vadd.f32 %v7365, %v7408
    %v7426 = vadd.f32 %v7366, %v7408
    %v7427 = vadd.f32 %v7367, %v7408
    %v7428 = vadd.f32 %v7368, %v7408
    %v7429 = vadd.f32 %v7369, %v7408
    %v7430 = vadd.f32 %v7370, %v7408
    %v7431 = vadd.f32 %v7371, %v7408
    %v7432 = vadd.f32 %v7372, %v7408
    %v7433 = vadd.f32 %v7373, %v7408
    %v7434 = vadd.f32 %v7374, %v7408
    %v7435 = vadd.f32 %v7375, %v7408
    %v7436 = vadd.f32 %v7376, %v7408
    %v7437 = vadd.f32 %v7377, %v7408
    %v7438 = vadd.f32 %v7378, %v7408
    %v7439 = vadd.f32 %v7379, %v7408
    %v7440 = vadd.f32 %v7380, %v7408
    %v7441 = vadd.f32 %v7381, %v7408
    %v7442 = vadd.f32 %v7382, %v7408
    %v7443 = vadd.f32 %v7383, %v7408
    %v7444 = vadd.f32 %v7384, %v7408
    %v7445 = vadd.f32 %v7385, %v7408
    %v7446 = vadd.f32 %v7386, %v7408
    %v7447 = vadd.f32 %v7387, %v7408
    %v7448 = vadd.f32 %v7388, %v7408
    %v7449 = vadd.f32 %v7389, %v7408
    %v7450 = vadd.f32 %v7390, %v7408
    %v7451 = vadd.f32 %v7391, %v7408
    %v7452 = vadd.f32 %v7392, %v7408
    %v7453 = vadd.f32 %v7393, %v7408
    %v7454 = vadd.f32 %v7394, %v7408
    %v7455 = vadd.f32 %v7395, %v7408
    %v7456 = vadd.f32 %v7396, %v7408
    %v7457 = vadd.f32 %v7397, %v7408
    %v7458 = vadd.f32 %v7398, %v7408
    %v7459 = vadd.f32 %v7399, %v7408
    %v7460 = vadd.f32 %v7400, %v7408
    %v7461 = vadd.f32 %v7401, %v7408
    %v7462 = vadd.f32 %v7402, %v7408
    %v7463 = vadd.f32 %v7403, %v7408
    %v7464 = vadd.f32 %v7404, %v7408
    %v7465 = vmax.f32 %v7409, 0.0
    %v7466 = vmax.f32 %v7410, 0.0
    %v7467 = vmax.f32 %v7411, 0.0
    %v7468 = vmax.f32 %v7412, 0.0
    %v7469 = vmax.f32 %v7413, 0.0
    %v7470 = vmax.f32 %v7414, 0.0
    %v7471 = vmax.f32 %v7415, 0.0
    %v7472 = vmax.f32 %v7416, 0.0
    %v7473 = vmax.f32 %v7417, 0.0
    %v7474 = vmax.f32 %v7418, 0.0
    %v7475 = vmax.f32 %v7419, 0.0
    %v7476 = vmax.f32 %v7420, 0.0
    %v7477 = vmax.f32 %v7421, 0.0
    %v7478 = vmax.f32 %v7422, 0.0
    %v7479 = vmax.f32 %v7423, 0.0
    %v7480 = vmax.f32 %v7424, 0.0
    %v7481 = vmax.f32 %v7425, 0.0
    %v7482 = vmax.f32 %v7426, 0.0
    %v7483 = vmax.f32 %v7427, 0.0
    %v7484 = vmax.f32 %v7428, 0.0
    %v7485 = vmax.f32 %v7429, 0.0
    %v7486 = vmax.f32 %v7430, 0.0
    %v7487 = vmax.f32 %v7431, 0.0
    %v7488 = vmax.f32 %v7432, 0.0
    %v7489 = vmax.f32 %v7433, 0.0
    %v7490 = vmax.f32 %v7434, 0.0
    %v7491 = vmax.f32 %v7435, 0.0
    %v7492 = vmax.f32 %v7436, 0.0
    %v7493 = vmax.f32 %v7437, 0.0
    %v7494 = vmax.f32 %v7438, 0.0
    %v7495 = vmax.f32 %v7439, 0.0
    %v7496 = vmax.f32 %v7440, 0.0
    %v7497 = vmax.f32 %v7441, 0.0
    %v7498 = vmax.f32 %v7442, 0.0
    %v7499 = vmax.f32 %v7443, 0.0
    %v7500 = vmax.f32 %v7444, 0.0
    %v7501 = vmax.f32 %v7445, 0.0
    %v7502 = vmax.f32 %v7446, 0.0
    %v7503 = vmax.f32 %v7447, 0.0
    %v7504 = vmax.f32 %v7448, 0.0
    %v7505 = vmax.f32 %v7449, 0.0
    %v7506 = vmax.f32 %v7450, 0.0
    %v7507 = vmax.f32 %v7451, 0.0
    %v7508 = vmax.f32 %v7452, 0.0
    %v7509 = vmax.f32 %v7453, 0.0
    %v7510 = vmax.f32 %v7454, 0.0
    %v7511 = vmax.f32 %v7455, 0.0
    %v7512 = vmax.f32 %v7456, 0.0
    %v7513 = vmax.f32 %v7457, 0.0
    %v7514 = vmax.f32 %v7458, 0.0
    %v7515 = vmax.f32 %v7459, 0.0
    %v7516 = vmax.f32 %v7460, 0.0
    %v7517 = vmax.f32 %v7461, 0.0
    %v7518 = vmax.f32 %v7462, 0.0
    %v7519 = vmax.f32 %v7463, 0.0
    %v7520 = vmax.f32 %v7464, 0.0
    %v7521 = vpack.c.bf16 %v7466, %v7465
    %v7522 = vpack.c.bf16 %v7468, %v7467
    %v7523 = vpack.c.bf16 %v7470, %v7469
    %v7524 = vpack.c.bf16 %v7472, %v7471
    %v7525 = vpack.c.bf16 %v7474, %v7473
    %v7526 = vpack.c.bf16 %v7476, %v7475
    %v7527 = vpack.c.bf16 %v7478, %v7477
    %v7528 = vpack.c.bf16 %v7480, %v7479
    %v7529 = vpack.c.bf16 %v7482, %v7481
    %v7530 = vpack.c.bf16 %v7484, %v7483
    %v7531 = vpack.c.bf16 %v7486, %v7485
    %v7532 = vpack.c.bf16 %v7488, %v7487
    %v7533 = vpack.c.bf16 %v7490, %v7489
    %v7534 = vpack.c.bf16 %v7492, %v7491
    %v7535 = vpack.c.bf16 %v7494, %v7493
    %v7536 = vpack.c.bf16 %v7496, %v7495
    %v7537 = vpack.c.bf16 %v7498, %v7497
    %v7538 = vpack.c.bf16 %v7500, %v7499
    %v7539 = vpack.c.bf16 %v7502, %v7501
    %v7540 = vpack.c.bf16 %v7504, %v7503
    %v7541 = vpack.c.bf16 %v7506, %v7505
    %v7542 = vpack.c.bf16 %v7508, %v7507
    %v7543 = vpack.c.bf16 %v7510, %v7509
    %v7544 = vpack.c.bf16 %v7512, %v7511
    %v7545 = vpack.c.bf16 %v7514, %v7513
    %v7546 = vpack.c.bf16 %v7516, %v7515
    %v7547 = vpack.c.bf16 %v7518, %v7517
    %v7548 = vpack.c.bf16 %v7520, %v7519
    %v7549 = vld [vmem:[%s4] sm:$0xf]
    %v7550 = vld [vmem:[%s4 + $0x4] sm:$0xf]
    %v7551 = vld [vmem:[%s4 + $0x8] sm:$0xf]
    %v7552 = vld [vmem:[%s4 + $0xc] sm:$0xf]
    %v7553 = vlaneseq
    %v7554 = vshrl.u32 %v7553, 7
    %v7555 = vsub.s32 3, %v7554
    %v7556 = vrot.slane %v68, %v7555
    %v7561 = vunpack.c.l.b16 %v7549
    %v7562 = vunpack.c.l.b16 %v7550
    %v7563 = vunpack.c.l.b16 %v7551
    %v7564 = vunpack.c.l.b16 %v7552
    %v7565 = vpack.c.b16 %v7562, %v7561
    %v7566 = vpack.c.b16 %v7564, %v7563
    %v7570 = vsel %vm4260, %v7521, 0
    %v7573 = vsel %vm4260, %v7522, 0
    %v7576 = vsel %vm4260, %v7523, 0
    %v7579 = vsel %vm4260, %v7524, 0
    %v7582 = vsel %vm4260, %v7525, 0
    %v7585 = vsel %vm4260, %v7526, 0
    %v7588 = vsel %vm4260, %v7527, 0
    %v7591 = vsel %vm4260, %v7528, 0
    %v7594 = vsel %vm4260, %v7529, 0
    %v7597 = vsel %vm4260, %v7530, 0
    %v7600 = vsel %vm4260, %v7531, 0
    %v7603 = vsel %vm4260, %v7532, 0
    %v7606 = vsel %vm4260, %v7533, 0
    %v7609 = vsel %vm4260, %v7534, 0
    %v7612 = vsel %vm4260, %v7535, 0
    %v7615 = vsel %vm4260, %v7536, 0
    %v7618 = vsel %vm4260, %v7537, 0
    %v7621 = vsel %vm4260, %v7538, 0
    %v7624 = vsel %vm4260, %v7539, 0
    %v7627 = vsel %vm4260, %v7540, 0
    %v7630 = vsel %vm4260, %v7541, 0
    %v7633 = vsel %vm4260, %v7542, 0
    %v7636 = vsel %vm4260, %v7543, 0
    %v7639 = vsel %vm4260, %v7544, 0
    %v7642 = vsel %vm4260, %v7545, 0
    %v7645 = vsel %vm4260, %v7546, 0
    %v7648 = vsel %vm4260, %v7547, 0
    %v7651 = vsel %vm4260, %v7548, 0
    %7653 = vmatprep.subr.bf16.mxu0 0
    %7654 = vmatpush1.bf16.msra.mxu0 %v7565
    %7655 = vmatprep.subr.bf16.mxu0 0
    %7656 = vmatpush1.bf16.msra.mxu0 %v7566
    %7657 = vmatprep.subr.bf16.mxu0 0
    %7658 = vmatpush1.bf16.msra.mxu0 0
    %7659 = vmatprep.subr.bf16.mxu0 0
    %7660 = vmatpush1.bf16.msra.mxu0 0
    %7661 = vmatprep.subr.bf16.mxu0 0
    %7662 = vmatpush1.bf16.msra.mxu0 0
    %7663 = vmatprep.subr.bf16.mxu0 0
    %7664 = vmatpush1.bf16.msra.mxu0 0
    %7665 = vmatprep.subr.bf16.mxu0 0
    %7666 = vmatpush1.bf16.msra.mxu0 0
    %7667 = vmatprep.subr.bf16.mxu0 0
    %7668 = vmatpush1.bf16.msra.mxu0 0
    %7669 = vmatprep.subr.bf16.mxu0 0
    %7670 = vmatpush1.bf16.msra.mxu0 0
    %7671 = vmatprep.subr.bf16.mxu0 0
    %7672 = vmatpush1.bf16.msra.mxu0 0
    %7673 = vmatprep.subr.bf16.mxu0 0
    %7674 = vmatpush1.bf16.msra.mxu0 0
    %7675 = vmatprep.subr.bf16.mxu0 0
    %7676 = vmatpush1.bf16.msra.mxu0 0
    %7677 = vmatprep.subr.bf16.mxu0 0
    %7678 = vmatpush1.bf16.msra.mxu0 0
    %7679 = vmatprep.subr.bf16.mxu0 0
    %7680 = vmatpush1.bf16.msra.mxu0 0
    %7681 = vmatprep.subr.bf16.mxu0 0
    %7682 = vmatpush1.bf16.msra.mxu0 0
    %7683 = vmatprep.subr.bf16.mxu0 0
    %7684 = vmatpush1.bf16.msra.mxu0 0
    %7685 = vmatprep.mubr.bf16.mxu0 0
    %7686 = vmatmul.mubr.bf16.gmra.mrb[0].mxu0 %v7570
    %v7687 = vpop.f32.mrb[0].mxu0
    %v7688 = vadd.f32 %v7556, %v7687
    %v7689 = vpop.f32.mrb[0].mxu0
    %v7690 = vpop.f32.mrb[0].mxu0
    %v7691 = vadd.f32 %v7556, %v7690
    %v7692 = vpop.f32.mrb[0].mxu0
    %7693 = vmatprep.mubr.bf16.mxu0 0
    %7694 = vmatmul.mubr.bf16.gmra.mrb[0].mxu0 %v7573
    %v7695 = vpop.f32.mrb[0].mxu0
    %v7696 = vadd.f32 %v7556, %v7695
    %v7697 = vpop.f32.mrb[0].mxu0
    %v7698 = vpop.f32.mrb[0].mxu0
    %v7699 = vadd.f32 %v7556, %v7698
    %v7700 = vpop.f32.mrb[0].mxu0
    %7701 = vmatprep.mubr.bf16.mxu0 0
    %7702 = vmatmul.mubr.bf16.gmra.mrb[0].mxu0 %v7576
    %v7703 = vpop.f32.mrb[0].mxu0
    %v7704 = vadd.f32 %v7556, %v7703
    %v7705 = vpop.f32.mrb[0].mxu0
    %v7706 = vpop.f32.mrb[0].mxu0
    %v7707 = vadd.f32 %v7556, %v7706
    %v7708 = vpop.f32.mrb[0].mxu0
    %7709 = vmatprep.mubr.bf16.mxu0 0
    %7710 = vmatmul.mubr.bf16.gmra.mrb[0].mxu0 %v7579
    %v7711 = vpop.f32.mrb[0].mxu0
    %v7712 = vadd.f32 %v7556, %v7711
    %v7713 = vpop.f32.mrb[0].mxu0
    %v7714 = vpop.f32.mrb[0].mxu0
    %v7715 = vadd.f32 %v7556, %v7714
    %v7716 = vpop.f32.mrb[0].mxu0
    %7717 = vmatprep.mubr.bf16.mxu0 0
    %7718 = vmatmul.mubr.bf16.gmra.mrb[0].mxu0 %v7582
    %v7719 = vpop.f32.mrb[0].mxu0
    %v7720 = vadd.f32 %v7556, %v7719
    %v7721 = vpop.f32.mrb[0].mxu0
    %v7722 = vpop.f32.mrb[0].mxu0
    %v7723 = vadd.f32 %v7556, %v7722
    %v7724 = vpop.f32.mrb[0].mxu0
    %7725 = vmatprep.mubr.bf16.mxu0 0
    %7726 = vmatmul.mubr.bf16.gmra.mrb[0].mxu0 %v7585
    %v7727 = vpop.f32.mrb[0].mxu0
    %v7728 = vadd.f32 %v7556, %v7727
    %v7729 = vpop.f32.mrb[0].mxu0
    %v7730 = vpop.f32.mrb[0].mxu0
    %v7731 = vadd.f32 %v7556, %v7730
    %v7732 = vpop.f32.mrb[0].mxu0
    %7733 = vmatprep.mubr.bf16.mxu0 0
    %7734 = vmatmul.mubr.bf16.gmra.mrb[0].mxu0 %v7588
    %v7735 = vpop.f32.mrb[0].mxu0
    %v7736 = vadd.f32 %v7556, %v7735
    %v7737 = vpop.f32.mrb[0].mxu0
    %v7738 = vpop.f32.mrb[0].mxu0
    %v7739 = vadd.f32 %v7556, %v7738
    %v7740 = vpop.f32.mrb[0].mxu0
    %7741 = vmatprep.mubr.bf16.mxu0 0
    %7742 = vmatmul.mubr.bf16.gmra.mrb[0].mxu0 %v7591
    %v7743 = vpop.f32.mrb[0].mxu0
    %v7744 = vadd.f32 %v7556, %v7743
    %v7745 = vpop.f32.mrb[0].mxu0
    %v7746 = vpop.f32.mrb[0].mxu0
    %v7747 = vadd.f32 %v7556, %v7746
    %v7748 = vpop.f32.mrb[0].mxu0
    %7749 = vmatprep.mubr.bf16.mxu0 0
    %7750 = vmatmul.mubr.bf16.gmra.mrb[0].mxu0 %v7594
    %v7751 = vpop.f32.mrb[0].mxu0
    %v7752 = vadd.f32 %v7556, %v7751
    %v7753 = vpop.f32.mrb[0].mxu0
    %v7754 = vpop.f32.mrb[0].mxu0
    %v7755 = vadd.f32 %v7556, %v7754
    %v7756 = vpop.f32.mrb[0].mxu0
    %7757 = vmatprep.mubr.bf16.mxu0 0
    %7758 = vmatmul.mubr.bf16.gmra.mrb[0].mxu0 %v7597
    %v7759 = vpop.f32.mrb[0].mxu0
    %v7760 = vadd.f32 %v7556, %v7759
    %v7761 = vpop.f32.mrb[0].mxu0
    %v7762 = vpop.f32.mrb[0].mxu0
    %v7763 = vadd.f32 %v7556, %v7762
    %v7764 = vpop.f32.mrb[0].mxu0
    %7765 = vmatprep.mubr.bf16.mxu0 0
    %7766 = vmatmul.mubr.bf16.gmra.mrb[0].mxu0 %v7600
    %v7767 = vpop.f32.mrb[0].mxu0
    %v7768 = vadd.f32 %v7556, %v7767
    %v7769 = vpop.f32.mrb[0].mxu0
    %v7770 = vpop.f32.mrb[0].mxu0
    %v7771 = vadd.f32 %v7556, %v7770
    %v7772 = vpop.f32.mrb[0].mxu0
    %7773 = vmatprep.mubr.bf16.mxu0 0
    %7774 = vmatmul.mubr.bf16.gmra.mrb[0].mxu0 %v7603
    %v7775 = vpop.f32.mrb[0].mxu0
    %v7776 = vadd.f32 %v7556, %v7775
    %v7777 = vpop.f32.mrb[0].mxu0
    %v7778 = vpop.f32.mrb[0].mxu0
    %v7779 = vadd.f32 %v7556, %v7778
    %v7780 = vpop.f32.mrb[0].mxu0
    %7781 = vmatprep.mubr.bf16.mxu0 0
    %7782 = vmatmul.mubr.bf16.gmra.mrb[0].mxu0 %v7606
    %v7783 = vpop.f32.mrb[0].mxu0
    %v7784 = vadd.f32 %v7556, %v7783
    %v7785 = vpop.f32.mrb[0].mxu0
    %v7786 = vpop.f32.mrb[0].mxu0
    %v7787 = vadd.f32 %v7556, %v7786
    %v7788 = vpop.f32.mrb[0].mxu0
    %7789 = vmatprep.mubr.bf16.mxu0 0
    %7790 = vmatmul.mubr.bf16.gmra.mrb[0].mxu0 %v7609
    %v7791 = vpop.f32.mrb[0].mxu0
    %v7792 = vadd.f32 %v7556, %v7791
    %v7793 = vpop.f32.mrb[0].mxu0
    %v7794 = vpop.f32.mrb[0].mxu0
    %v7795 = vadd.f32 %v7556, %v7794
    %v7796 = vpop.f32.mrb[0].mxu0
    %7797 = vmatprep.mubr.bf16.mxu0 0
    %7798 = vmatmul.mubr.bf16.gmra.mrb[0].mxu0 %v7612
    %v7799 = vpop.f32.mrb[0].mxu0
    %v7800 = vadd.f32 %v7556, %v7799
    %v7801 = vpop.f32.mrb[0].mxu0
    %v7802 = vpop.f32.mrb[0].mxu0
    %v7803 = vadd.f32 %v7556, %v7802
    %v7804 = vpop.f32.mrb[0].mxu0
    %7805 = vmatprep.mubr.bf16.mxu0 0
    %7806 = vmatmul.mubr.bf16.gmra.mrb[0].mxu0 %v7615
    %v7807 = vpop.f32.mrb[0].mxu0
    %v7808 = vadd.f32 %v7556, %v7807
    %v7809 = vpop.f32.mrb[0].mxu0
    %v7810 = vpop.f32.mrb[0].mxu0
    %v7811 = vadd.f32 %v7556, %v7810
    %v7812 = vpop.f32.mrb[0].mxu0
    %7813 = vmatprep.mubr.bf16.mxu0 0
    %7814 = vmatmul.mubr.bf16.gmra.mrb[0].mxu0 %v7618
    %v7815 = vpop.f32.mrb[0].mxu0
    %v7816 = vadd.f32 %v7556, %v7815
    %v7817 = vpop.f32.mrb[0].mxu0
    %v7818 = vpop.f32.mrb[0].mxu0
    %v7819 = vadd.f32 %v7556, %v7818
    %v7820 = vpop.f32.mrb[0].mxu0
    %7821 = vmatprep.mubr.bf16.mxu0 0
    %7822 = vmatmul.mubr.bf16.gmra.mrb[0].mxu0 %v7621
    %v7823 = vpop.f32.mrb[0].mxu0
    %v7824 = vadd.f32 %v7556, %v7823
    %v7825 = vpop.f32.mrb[0].mxu0
    %v7826 = vpop.f32.mrb[0].mxu0
    %v7827 = vadd.f32 %v7556, %v7826
    %v7828 = vpop.f32.mrb[0].mxu0
    %7829 = vmatprep.mubr.bf16.mxu0 0
    %7830 = vmatmul.mubr.bf16.gmra.mrb[0].mxu0 %v7624
    %v7831 = vpop.f32.mrb[0].mxu0
    %v7832 = vadd.f32 %v7556, %v7831
    %v7833 = vpop.f32.mrb[0].mxu0
    %v7834 = vpop.f32.mrb[0].mxu0
    %v7835 = vadd.f32 %v7556, %v7834
    %v7836 = vpop.f32.mrb[0].mxu0
    %7837 = vmatprep.mubr.bf16.mxu0 0
    %7838 = vmatmul.mubr.bf16.gmra.mrb[0].mxu0 %v7627
    %v7839 = vpop.f32.mrb[0].mxu0
    %v7840 = vadd.f32 %v7556, %v7839
    %v7841 = vpop.f32.mrb[0].mxu0
    %v7842 = vpop.f32.mrb[0].mxu0
    %v7843 = vadd.f32 %v7556, %v7842
    %v7844 = vpop.f32.mrb[0].mxu0
    %7845 = vmatprep.mubr.bf16.mxu0 0
    %7846 = vmatmul.mubr.bf16.gmra.mrb[0].mxu0 %v7630
    %v7847 = vpop.f32.mrb[0].mxu0
    %v7848 = vadd.f32 %v7556, %v7847
    %v7849 = vpop.f32.mrb[0].mxu0
    %v7850 = vpop.f32.mrb[0].mxu0
    %v7851 = vadd.f32 %v7556, %v7850
    %v7852 = vpop.f32.mrb[0].mxu0
    %7853 = vmatprep.mubr.bf16.mxu0 0
    %7854 = vmatmul.mubr.bf16.gmra.mrb[0].mxu0 %v7633
    %v7855 = vpop.f32.mrb[0].mxu0
    %v7856 = vadd.f32 %v7556, %v7855
    %v7857 = vpop.f32.mrb[0].mxu0
    %v7858 = vpop.f32.mrb[0].mxu0
    %v7859 = vadd.f32 %v7556, %v7858
    %v7860 = vpop.f32.mrb[0].mxu0
    %7861 = vmatprep.mubr.bf16.mxu0 0
    %7862 = vmatmul.mubr.bf16.gmra.mrb[0].mxu0 %v7636
    %v7863 = vpop.f32.mrb[0].mxu0
    %v7864 = vadd.f32 %v7556, %v7863
    %v7865 = vpop.f32.mrb[0].mxu0
    %v7866 = vpop.f32.mrb[0].mxu0
    %v7867 = vadd.f32 %v7556, %v7866
    %v7868 = vpop.f32.mrb[0].mxu0
    %7869 = vmatprep.mubr.bf16.mxu0 0
    %7870 = vmatmul.mubr.bf16.gmra.mrb[0].mxu0 %v7639
    %v7871 = vpop.f32.mrb[0].mxu0
    %v7872 = vadd.f32 %v7556, %v7871
    %v7873 = vpop.f32.mrb[0].mxu0
    %v7874 = vpop.f32.mrb[0].mxu0
    %v7875 = vadd.f32 %v7556, %v7874
    %v7876 = vpop.f32.mrb[0].mxu0
    %7877 = vmatprep.mubr.bf16.mxu0 0
    %7878 = vmatmul.mubr.bf16.gmra.mrb[0].mxu0 %v7642
    %v7879 = vpop.f32.mrb[0].mxu0
    %v7880 = vadd.f32 %v7556, %v7879
    %v7881 = vpop.f32.mrb[0].mxu0
    %v7882 = vpop.f32.mrb[0].mxu0
    %v7883 = vadd.f32 %v7556, %v7882
    %v7884 = vpop.f32.mrb[0].mxu0
    %7885 = vmatprep.mubr.bf16.mxu0 0
    %7886 = vmatmul.mubr.bf16.gmra.mrb[0].mxu0 %v7645
    %v7887 = vpop.f32.mrb[0].mxu0
    %v7888 = vadd.f32 %v7556, %v7887
    %v7889 = vpop.f32.mrb[0].mxu0
    %v7890 = vpop.f32.mrb[0].mxu0
    %v7891 = vadd.f32 %v7556, %v7890
    %v7892 = vpop.f32.mrb[0].mxu0
    %7893 = vmatprep.mubr.bf16.mxu0 0
    %7894 = vmatmul.mubr.bf16.gmra.mrb[0].mxu0 %v7648
    %v7895 = vpop.f32.mrb[0].mxu0
    %v7896 = vadd.f32 %v7556, %v7895
    %v7897 = vpop.f32.mrb[0].mxu0
    %v7898 = vpop.f32.mrb[0].mxu0
    %v7899 = vadd.f32 %v7556, %v7898
    %v7900 = vpop.f32.mrb[0].mxu0
    %7901 = vmatprep.mubr.bf16.mxu0 0
    %7902 = vmatmul.mubr.bf16.gmra.mrb[0].mxu0 %v7651
    %v7903 = vpop.f32.mrb[0].mxu0
    %v7904 = vadd.f32 %v7556, %v7903
    %v7905 = vpop.f32.mrb[0].mxu0
    %v7906 = vpop.f32.mrb[0].mxu0
    %v7907 = vadd.f32 %v7556, %v7906
    %v7908 = vpop.f32.mrb[0].mxu0
    %7909 = vdwg.mxu0
    %7910 = vmatprep.subr.mxu0 0.0
    %7911 = vmatpush1.msra.mxu0 %v7688
    %7912 = vmatprep.subr.mxu0 0.0
    %7913 = vmatpush1.msra.mxu0 %v7691
    %7914 = vmatprep.subr.mxu0 0.0
    %7915 = vmatpush1.msra.mxu0 %v7696
    %7916 = vmatprep.subr.mxu0 0.0
    %7917 = vmatpush1.msra.mxu0 %v7699
    %7918 = vmatprep.subr.mxu0 0.0
    %7919 = vmatpush1.msra.mxu0 %v7704
    %7920 = vmatprep.subr.mxu0 0.0
    %7921 = vmatpush1.msra.mxu0 %v7707
    %7922 = vmatprep.subr.mxu0 0.0
    %7923 = vmatpush1.msra.mxu0 %v7712
    %7924 = vmatprep.subr.mxu0 0.0
    %7925 = vmatpush1.msra.mxu0 %v7715
    %7926 = vmatprep.subr.mxu0 0.0
    %7927 = vmatpush1.msra.mxu0 %v7720
    %7928 = vmatprep.subr.mxu0 0.0
    %7929 = vmatpush1.msra.mxu0 %v7723
    %7930 = vmatprep.subr.mxu0 0.0
    %7931 = vmatpush1.msra.mxu0 %v7728
    %7932 = vmatprep.subr.mxu0 0.0
    %7933 = vmatpush1.msra.mxu0 %v7731
    %7934 = vmatprep.subr.mxu0 0.0
    %7935 = vmatpush1.msra.mxu0 %v7736
    %7936 = vmatprep.subr.mxu0 0.0
    %7937 = vmatpush1.msra.mxu0 %v7739
    %7938 = vmatprep.subr.mxu0 0.0
    %7939 = vmatpush1.msra.mxu0 %v7744
    %7940 = vmatprep.subr.mxu0 0.0
    %7941 = vmatpush1.msra.mxu0 %v7747
    %7942 = vmatprep.subr.mxu0 0.0
    %7943 = vmatpush1.msra.mxu0 %v7752
    %7944 = vmatprep.subr.mxu0 0.0
    %7945 = vmatpush1.msra.mxu0 %v7755
    %7946 = vmatprep.subr.mxu0 0.0
    %7947 = vmatpush1.msra.mxu0 %v7760
    %7948 = vmatprep.subr.mxu0 0.0
    %7949 = vmatpush1.msra.mxu0 %v7763
    %7950 = vmatprep.subr.mxu0 0.0
    %7951 = vmatpush1.msra.mxu0 %v7768
    %7952 = vmatprep.subr.mxu0 0.0
    %7953 = vmatpush1.msra.mxu0 %v7771
    %7954 = vmatprep.subr.mxu0 0.0
    %7955 = vmatpush1.msra.mxu0 %v7776
    %7956 = vmatprep.subr.mxu0 0.0
    %7957 = vmatpush1.msra.mxu0 %v7779
    %7958 = vmatprep.subr.mxu0 0.0
    %7959 = vmatpush1.msra.mxu0 %v7784
    %7960 = vmatprep.subr.mxu0 0.0
    %7961 = vmatpush1.msra.mxu0 %v7787
    %7962 = vmatprep.subr.mxu0 0.0
    %7963 = vmatpush1.msra.mxu0 %v7792
    %7964 = vmatprep.subr.mxu0 0.0
    %7965 = vmatpush1.msra.mxu0 %v7795
    %7966 = vmatprep.subr.mxu0 0.0
    %7967 = vmatpush1.msra.mxu0 %v7800
    %7968 = vmatprep.subr.mxu0 0.0
    %7969 = vmatpush1.msra.mxu0 %v7803
    %7970 = vmatprep.subr.mxu0 0.0
    %7971 = vmatpush1.msra.mxu0 %v7808
    %7972 = vmatprep.subr.mxu0 0.0
    %7973 = vmatpush1.msra.mxu0 %v7811
    %7974 = vmatprep.mubr.f32.mxu0 %v121
    %7975 = vmatmul.mubr.f32.gmra.mrb[0].mxu0 %v120
    %v7976 = vpop.f32.mrb[0].mxu0
    %v7977 = vadd.f32 0.0, %v7976
    %v7978 = vpop.f32.mrb[0].mxu0
    %7979 = vdwg.mxu0
    %7980 = vmatprep.subr.mxu0 0.0
    %7981 = vmatpush1.msra.mxu0 %v7816
    %7982 = vmatprep.subr.mxu0 0.0
    %7983 = vmatpush1.msra.mxu0 %v7819
    %7984 = vmatprep.subr.mxu0 0.0
    %7985 = vmatpush1.msra.mxu0 %v7824
    %7986 = vmatprep.subr.mxu0 0.0
    %7987 = vmatpush1.msra.mxu0 %v7827
    %7988 = vmatprep.subr.mxu0 0.0
    %7989 = vmatpush1.msra.mxu0 %v7832
    %7990 = vmatprep.subr.mxu0 0.0
    %7991 = vmatpush1.msra.mxu0 %v7835
    %7992 = vmatprep.subr.mxu0 0.0
    %7993 = vmatpush1.msra.mxu0 %v7840
    %7994 = vmatprep.subr.mxu0 0.0
    %7995 = vmatpush1.msra.mxu0 %v7843
    %7996 = vmatprep.subr.mxu0 0.0
    %7997 = vmatpush1.msra.mxu0 %v7848
    %7998 = vmatprep.subr.mxu0 0.0
    %7999 = vmatpush1.msra.mxu0 %v7851
    %8000 = vmatprep.subr.mxu0 0.0
    %8001 = vmatpush1.msra.mxu0 %v7856
    %8002 = vmatprep.subr.mxu0 0.0
    %8003 = vmatpush1.msra.mxu0 %v7859
    %8004 = vmatprep.subr.mxu0 0.0
    %8005 = vmatpush1.msra.mxu0 %v7864
    %8006 = vmatprep.subr.mxu0 0.0
    %8007 = vmatpush1.msra.mxu0 %v7867
    %8008 = vmatprep.subr.mxu0 0.0
    %8009 = vmatpush1.msra.mxu0 %v7872
    %8010 = vmatprep.subr.mxu0 0.0
    %8011 = vmatpush1.msra.mxu0 %v7875
    %8012 = vmatprep.subr.mxu0 0.0
    %8013 = vmatpush1.msra.mxu0 %v7880
    %8014 = vmatprep.subr.mxu0 0.0
    %8015 = vmatpush1.msra.mxu0 %v7883
    %8016 = vmatprep.subr.mxu0 0.0
    %8017 = vmatpush1.msra.mxu0 %v7888
    %8018 = vmatprep.subr.mxu0 0.0
    %8019 = vmatpush1.msra.mxu0 %v7891
    %8020 = vmatprep.subr.mxu0 0.0
    %8021 = vmatpush1.msra.mxu0 %v7896
    %8022 = vmatprep.subr.mxu0 0.0
    %8023 = vmatpush1.msra.mxu0 %v7899
    %8024 = vmatprep.subr.mxu0 0.0
    %8025 = vmatpush1.msra.mxu0 %v7904
    %8026 = vmatprep.subr.mxu0 0.0
    %8027 = vmatpush1.msra.mxu0 %v7907
    %8028 = vmatprep.subr.mxu0 0.0
    %8029 = vmatpush1.msra.mxu0 0.0
    %8030 = vmatprep.subr.mxu0 0.0
    %8031 = vmatpush1.msra.mxu0 0.0
    %8032 = vmatprep.subr.mxu0 0.0
    %8033 = vmatpush1.msra.mxu0 0.0
    %8034 = vmatprep.subr.mxu0 0.0
    %8035 = vmatpush1.msra.mxu0 0.0
    %8036 = vmatprep.subr.mxu0 0.0
    %8037 = vmatpush1.msra.mxu0 0.0
    %8038 = vmatprep.subr.mxu0 0.0
    %8039 = vmatpush1.msra.mxu0 0.0
    %8040 = vmatprep.subr.mxu0 0.0
    %8041 = vmatpush1.msra.mxu0 0.0
    %8042 = vmatprep.subr.mxu0 0.0
    %8043 = vmatpush1.msra.mxu0 0.0
    %8044 = vmatprep.mubr.f32.mxu0 %v3840
    %8045 = vmatmul.mubr.f32.gmra.mrb[0].mxu0 %v122
    %v8046 = vpop.f32.mrb[0].mxu0
    %v8047 = vadd.f32 %v7977, %v8046
    %v8048 = vpop.f32.mrb[0].mxu0
    %8049 = vdwg.mxu0
    %v8050 = vmul.f32 %v7688, %v7688
    %v8051 = vmul.f32 %v7691, %v7691
    %v8052 = vmul.f32 %v7696, %v7696
    %v8053 = vmul.f32 %v7699, %v7699
    %v8054 = vmul.f32 %v7704, %v7704
    %v8055 = vmul.f32 %v7707, %v7707
    %v8056 = vmul.f32 %v7712, %v7712
    %v8057 = vmul.f32 %v7715, %v7715
    %v8058 = vmul.f32 %v7720, %v7720
    %v8059 = vmul.f32 %v7723, %v7723
    %v8060 = vmul.f32 %v7728, %v7728
    %v8061 = vmul.f32 %v7731, %v7731
    %v8062 = vmul.f32 %v7736, %v7736
    %v8063 = vmul.f32 %v7739, %v7739
    %v8064 = vmul.f32 %v7744, %v7744
    %v8065 = vmul.f32 %v7747, %v7747
    %v8066 = vmul.f32 %v7752, %v7752
    %v8067 = vmul.f32 %v7755, %v7755
    %v8068 = vmul.f32 %v7760, %v7760
    %v8069 = vmul.f32 %v7763, %v7763
    %v8070 = vmul.f32 %v7768, %v7768
    %v8071 = vmul.f32 %v7771, %v7771
    %v8072 = vmul.f32 %v7776, %v7776
    %v8073 = vmul.f32 %v7779, %v7779
    %v8074 = vmul.f32 %v7784, %v7784
    %v8075 = vmul.f32 %v7787, %v7787
    %v8076 = vmul.f32 %v7792, %v7792
    %v8077 = vmul.f32 %v7795, %v7795
    %v8078 = vmul.f32 %v7800, %v7800
    %v8079 = vmul.f32 %v7803, %v7803
    %v8080 = vmul.f32 %v7808, %v7808
    %v8081 = vmul.f32 %v7811, %v7811
    %v8082 = vmul.f32 %v7816, %v7816
    %v8083 = vmul.f32 %v7819, %v7819
    %v8084 = vmul.f32 %v7824, %v7824
    %v8085 = vmul.f32 %v7827, %v7827
    %v8086 = vmul.f32 %v7832, %v7832
    %v8087 = vmul.f32 %v7835, %v7835
    %v8088 = vmul.f32 %v7840, %v7840
    %v8089 = vmul.f32 %v7843, %v7843
    %v8090 = vmul.f32 %v7848, %v7848
    %v8091 = vmul.f32 %v7851, %v7851
    %v8092 = vmul.f32 %v7856, %v7856
    %v8093 = vmul.f32 %v7859, %v7859
    %v8094 = vmul.f32 %v7864, %v7864
    %v8095 = vmul.f32 %v7867, %v7867
    %v8096 = vmul.f32 %v7872, %v7872
    %v8097 = vmul.f32 %v7875, %v7875
    %v8098 = vmul.f32 %v7880, %v7880
    %v8099 = vmul.f32 %v7883, %v7883
    %v8100 = vmul.f32 %v7888, %v7888
    %v8101 = vmul.f32 %v7891, %v7891
    %v8102 = vmul.f32 %v7896, %v7896
    %v8103 = vmul.f32 %v7899, %v7899
    %v8104 = vmul.f32 %v7904, %v7904
    %v8105 = vmul.f32 %v7907, %v7907
    %8106 = vmatprep.subr.mxu0 0.0
    %8107 = vmatpush1.msra.mxu0 %v8050
    %8108 = vmatprep.subr.mxu0 0.0
    %8109 = vmatpush1.msra.mxu0 %v8051
    %8110 = vmatprep.subr.mxu0 0.0
    %8111 = vmatpush1.msra.mxu0 %v8052
    %8112 = vmatprep.subr.mxu0 0.0
    %8113 = vmatpush1.msra.mxu0 %v8053
    %8114 = vmatprep.subr.mxu0 0.0
    %8115 = vmatpush1.msra.mxu0 %v8054
    %8116 = vmatprep.subr.mxu0 0.0
    %8117 = vmatpush1.msra.mxu0 %v8055
    %8118 = vmatprep.subr.mxu0 0.0
    %8119 = vmatpush1.msra.mxu0 %v8056
    %8120 = vmatprep.subr.mxu0 0.0
    %8121 = vmatpush1.msra.mxu0 %v8057
    %8122 = vmatprep.subr.mxu0 0.0
    %8123 = vmatpush1.msra.mxu0 %v8058
    %8124 = vmatprep.subr.mxu0 0.0
    %8125 = vmatpush1.msra.mxu0 %v8059
    %8126 = vmatprep.subr.mxu0 0.0
    %8127 = vmatpush1.msra.mxu0 %v8060
    %8128 = vmatprep.subr.mxu0 0.0
    %8129 = vmatpush1.msra.mxu0 %v8061
    %8130 = vmatprep.subr.mxu0 0.0
    %8131 = vmatpush1.msra.mxu0 %v8062
    %8132 = vmatprep.subr.mxu0 0.0
    %8133 = vmatpush1.msra.mxu0 %v8063
    %8134 = vmatprep.subr.mxu0 0.0
    %8135 = vmatpush1.msra.mxu0 %v8064
    %8136 = vmatprep.subr.mxu0 0.0
    %8137 = vmatpush1.msra.mxu0 %v8065
    %8138 = vmatprep.subr.mxu0 0.0
    %8139 = vmatpush1.msra.mxu0 %v8066
    %8140 = vmatprep.subr.mxu0 0.0
    %8141 = vmatpush1.msra.mxu0 %v8067
    %8142 = vmatprep.subr.mxu0 0.0
    %8143 = vmatpush1.msra.mxu0 %v8068
    %8144 = vmatprep.subr.mxu0 0.0
    %8145 = vmatpush1.msra.mxu0 %v8069
    %8146 = vmatprep.subr.mxu0 0.0
    %8147 = vmatpush1.msra.mxu0 %v8070
    %8148 = vmatprep.subr.mxu0 0.0
    %8149 = vmatpush1.msra.mxu0 %v8071
    %8150 = vmatprep.subr.mxu0 0.0
    %8151 = vmatpush1.msra.mxu0 %v8072
    %8152 = vmatprep.subr.mxu0 0.0
    %8153 = vmatpush1.msra.mxu0 %v8073
    %8154 = vmatprep.subr.mxu0 0.0
    %8155 = vmatpush1.msra.mxu0 %v8074
    %8156 = vmatprep.subr.mxu0 0.0
    %8157 = vmatpush1.msra.mxu0 %v8075
    %8158 = vmatprep.subr.mxu0 0.0
    %8159 = vmatpush1.msra.mxu0 %v8076
    %8160 = vmatprep.subr.mxu0 0.0
    %8161 = vmatpush1.msra.mxu0 %v8077
    %8162 = vmatprep.subr.mxu0 0.0
    %8163 = vmatpush1.msra.mxu0 %v8078
    %8164 = vmatprep.subr.mxu0 0.0
    %8165 = vmatpush1.msra.mxu0 %v8079
    %8166 = vmatprep.subr.mxu0 0.0
    %8167 = vmatpush1.msra.mxu0 %v8080
    %8168 = vmatprep.subr.mxu0 0.0
    %8169 = vmatpush1.msra.mxu0 %v8081
    %8170 = vmatprep.mubr.f32.mxu0 %v121
    %8171 = vmatmul.mubr.f32.gmra.mrb[0].mxu0 %v120
    %v8172 = vpop.f32.mrb[0].mxu0
    %v8173 = vadd.f32 0.0, %v8172
    %v8174 = vpop.f32.mrb[0].mxu0
    %8175 = vdwg.mxu0
    %8176 = vmatprep.subr.mxu0 0.0
    %8177 = vmatpush1.msra.mxu0 %v8082
    %8178 = vmatprep.subr.mxu0 0.0
    %8179 = vmatpush1.msra.mxu0 %v8083
    %8180 = vmatprep.subr.mxu0 0.0
    %8181 = vmatpush1.msra.mxu0 %v8084
    %8182 = vmatprep.subr.mxu0 0.0
    %8183 = vmatpush1.msra.mxu0 %v8085
    %8184 = vmatprep.subr.mxu0 0.0
    %8185 = vmatpush1.msra.mxu0 %v8086
    %8186 = vmatprep.subr.mxu0 0.0
    %8187 = vmatpush1.msra.mxu0 %v8087
    %8188 = vmatprep.subr.mxu0 0.0
    %8189 = vmatpush1.msra.mxu0 %v8088
    %8190 = vmatprep.subr.mxu0 0.0
    %8191 = vmatpush1.msra.mxu0 %v8089
    %8192 = vmatprep.subr.mxu0 0.0
    %8193 = vmatpush1.msra.mxu0 %v8090
    %8194 = vmatprep.subr.mxu0 0.0
    %8195 = vmatpush1.msra.mxu0 %v8091
    %8196 = vmatprep.subr.mxu0 0.0
    %8197 = vmatpush1.msra.mxu0 %v8092
    %8198 = vmatprep.subr.mxu0 0.0
    %8199 = vmatpush1.msra.mxu0 %v8093
    %8200 = vmatprep.subr.mxu0 0.0
    %8201 = vmatpush1.msra.mxu0 %v8094
    %8202 = vmatprep.subr.mxu0 0.0
    %8203 = vmatpush1.msra.mxu0 %v8095
    %8204 = vmatprep.subr.mxu0 0.0
    %8205 = vmatpush1.msra.mxu0 %v8096
    %8206 = vmatprep.subr.mxu0 0.0
    %8207 = vmatpush1.msra.mxu0 %v8097
    %8208 = vmatprep.subr.mxu0 0.0
    %8209 = vmatpush1.msra.mxu0 %v8098
    %8210 = vmatprep.subr.mxu0 0.0
    %8211 = vmatpush1.msra.mxu0 %v8099
    %8212 = vmatprep.subr.mxu0 0.0
    %8213 = vmatpush1.msra.mxu0 %v8100
    %8214 = vmatprep.subr.mxu0 0.0
    %8215 = vmatpush1.msra.mxu0 %v8101
    %8216 = vmatprep.subr.mxu0 0.0
    %8217 = vmatpush1.msra.mxu0 %v8102
    %8218 = vmatprep.subr.mxu0 0.0
    %8219 = vmatpush1.msra.mxu0 %v8103
    %8220 = vmatprep.subr.mxu0 0.0
    %8221 = vmatpush1.msra.mxu0 %v8104
    %8222 = vmatprep.subr.mxu0 0.0
    %8223 = vmatpush1.msra.mxu0 %v8105
    %8224 = vmatprep.subr.mxu0 0.0
    %8225 = vmatpush1.msra.mxu0 0.0
    %8226 = vmatprep.subr.mxu0 0.0
    %8227 = vmatpush1.msra.mxu0 0.0
    %8228 = vmatprep.subr.mxu0 0.0
    %8229 = vmatpush1.msra.mxu0 0.0
    %8230 = vmatprep.subr.mxu0 0.0
    %8231 = vmatpush1.msra.mxu0 0.0
    %8232 = vmatprep.subr.mxu0 0.0
    %8233 = vmatpush1.msra.mxu0 0.0
    %8234 = vmatprep.subr.mxu0 0.0
    %8235 = vmatpush1.msra.mxu0 0.0
    %8236 = vmatprep.subr.mxu0 0.0
    %8237 = vmatpush1.msra.mxu0 0.0
    %8238 = vmatprep.subr.mxu0 0.0
    %8239 = vmatpush1.msra.mxu0 0.0
    %8240 = vmatprep.mubr.f32.mxu0 %v3840
    %8241 = vmatmul.mubr.f32.gmra.mrb[0].mxu0 %v122
    %v8242 = vpop.f32.mrb[0].mxu0
    %v8243 = vadd.f32 %v8173, %v8242
    %v8244 = vpop.f32.mrb[0].mxu0
    %8245 = vdwg.mxu0
    %8246 = vmatprep.subr.mxu0 0.0
    %8247 = vmatpush1.msra.mxu0 %v79
    %8248 = vmatprep.subr.mxu0 0.0
    %8249 = vmatpush1.msra.mxu0 %v80
    %8250 = vmatprep.subr.mxu0 0.0
    %8251 = vmatpush1.msra.mxu0 %v81
    %8252 = vmatprep.subr.mxu0 0.0
    %8253 = vmatpush1.msra.mxu0 %v82
    %8254 = vmatprep.subr.mxu0 0.0
    %8255 = vmatpush1.msra.mxu0 %v83
    %8256 = vmatprep.subr.mxu0 0.0
    %8257 = vmatpush1.msra.mxu0 %v84
    %8258 = vmatprep.subr.mxu0 0.0
    %8259 = vmatpush1.msra.mxu0 %v85
    %8260 = vmatprep.subr.mxu0 0.0
    %8261 = vmatpush1.msra.mxu0 %v86
    %8262 = vmatprep.subr.mxu0 0.0
    %8263 = vmatpush1.msra.mxu0 %v87
    %8264 = vmatprep.subr.mxu0 0.0
    %8265 = vmatpush1.msra.mxu0 %v88
    %8266 = vmatprep.subr.mxu0 0.0
    %8267 = vmatpush1.msra.mxu0 %v89
    %8268 = vmatprep.subr.mxu0 0.0
    %8269 = vmatpush1.msra.mxu0 %v90
    %8270 = vmatprep.subr.mxu0 0.0
    %8271 = vmatpush1.msra.mxu0 %v91
    %8272 = vmatprep.subr.mxu0 0.0
    %8273 = vmatpush1.msra.mxu0 %v92
    %8274 = vmatprep.subr.mxu0 0.0
    %8275 = vmatpush1.msra.mxu0 %v93
    %8276 = vmatprep.subr.mxu0 0.0
    %8277 = vmatpush1.msra.mxu0 %v94
    %8278 = vmatprep.subr.mxu0 0.0
    %8279 = vmatpush1.msra.mxu0 0.0
    %8280 = vmatprep.subr.mxu0 0.0
    %8281 = vmatpush1.msra.mxu0 0.0
    %8282 = vmatprep.subr.mxu0 0.0
    %8283 = vmatpush1.msra.mxu0 0.0
    %8284 = vmatprep.subr.mxu0 0.0
    %8285 = vmatpush1.msra.mxu0 0.0
    %8286 = vmatprep.subr.mxu0 0.0
    %8287 = vmatpush1.msra.mxu0 0.0
    %8288 = vmatprep.subr.mxu0 0.0
    %8289 = vmatpush1.msra.mxu0 0.0
    %8290 = vmatprep.subr.mxu0 0.0
    %8291 = vmatpush1.msra.mxu0 0.0
    %8292 = vmatprep.subr.mxu0 0.0
    %8293 = vmatpush1.msra.mxu0 0.0
    %8294 = vmatprep.subr.mxu0 0.0
    %8295 = vmatpush1.msra.mxu0 0.0
    %8296 = vmatprep.subr.mxu0 0.0
    %8297 = vmatpush1.msra.mxu0 0.0
    %8298 = vmatprep.subr.mxu0 0.0
    %8299 = vmatpush1.msra.mxu0 0.0
    %8300 = vmatprep.subr.mxu0 0.0
    %8301 = vmatpush1.msra.mxu0 0.0
    %8302 = vmatprep.subr.mxu0 0.0
    %8303 = vmatpush1.msra.mxu0 0.0
    %8304 = vmatprep.subr.mxu0 0.0
    %8305 = vmatpush1.msra.mxu0 0.0
    %8306 = vmatprep.subr.mxu0 0.0
    %8307 = vmatpush1.msra.mxu0 0.0
    %8308 = vmatprep.subr.mxu0 0.0
    %8309 = vmatpush1.msra.mxu0 0.0
    %8310 = vmatprep.mubr.f32.mxu0 0.0
    %8311 = vmatmul.mubr.f32.gmra.mrb[0].mxu0 %v8047
    %v8312 = vpop.f32.mrb[0].mxu0
    %v8313 = vadd.f32 0.0, %v8312
    %v8314 = vpop.f32.mrb[0].mxu0
    %8315 = vmatprep.mubr.f32.mxu0 0.0
    %8316 = vmatmul.mubr.f32.gmra.mrb[0].mxu0 %v8243
    %v8317 = vpop.f32.mrb[0].mxu0
    %v8318 = vadd.f32 0.0, %v8317
    %v8319 = vpop.f32.mrb[0].mxu0
    %8320 = vdwg.mxu0
    %v8321 = vmul.f32 %v8313, 0.0051020407
    %v8322 = vmul.f32 %v8318, 0.0051020407
    %v8323 = vmul.f32 %v8321, %v8321
    %v8324 = vsub.f32 %v8322, %v8323
    %v8325 = vmax.f32 %v8324, 0.0
    %v8326 = vadd.f32 %v8325, 1e-05
    %v8327 = vrsqrt.pop %v8326
    %v8329 = vsel %vm4260, %v8321, 0
    %v8332 = vsel %vm4260, %v8327, 0
    %8334 = vmatprep.subr.mxu0 0.0
    %8335 = vmatpush1.msra.mxu0 %v70
    %8336 = vmatprep.subr.mxu0 0.0
    %8337 = vmatpush1.msra.mxu0 %v71
    %8338 = vmatprep.subr.mxu0 0.0
    %8339 = vmatpush1.msra.mxu0 %v72
    %8340 = vmatprep.subr.mxu0 0.0
    %8341 = vmatpush1.msra.mxu0 %v73
    %8342 = vmatprep.subr.mxu0 0.0
    %8343 = vmatpush1.msra.mxu0 0.0
    %8344 = vmatprep.subr.mxu0 0.0
    %8345 = vmatpush1.msra.mxu0 0.0
    %8346 = vmatprep.subr.mxu0 0.0
    %8347 = vmatpush1.msra.mxu0 0.0
    %8348 = vmatprep.subr.mxu0 0.0
    %8349 = vmatpush1.msra.mxu0 0.0
    %8350 = vmatprep.subr.mxu0 0.0
    %8351 = vmatpush1.msra.mxu0 0.0
    %8352 = vmatprep.subr.mxu0 0.0
    %8353 = vmatpush1.msra.mxu0 0.0
    %8354 = vmatprep.subr.mxu0 0.0
    %8355 = vmatpush1.msra.mxu0 0.0
    %8356 = vmatprep.subr.mxu0 0.0
    %8357 = vmatpush1.msra.mxu0 0.0
    %8358 = vmatprep.subr.mxu0 0.0
    %8359 = vmatpush1.msra.mxu0 0.0
    %8360 = vmatprep.subr.mxu0 0.0
    %8361 = vmatpush1.msra.mxu0 0.0
    %8362 = vmatprep.subr.mxu0 0.0
    %8363 = vmatpush1.msra.mxu0 0.0
    %8364 = vmatprep.subr.mxu0 0.0
    %8365 = vmatpush1.msra.mxu0 0.0
    %8366 = vmatprep.subr.mxu0 0.0
    %8367 = vmatpush1.msra.mxu0 0.0
    %8368 = vmatprep.subr.mxu0 0.0
    %8369 = vmatpush1.msra.mxu0 0.0
    %8370 = vmatprep.subr.mxu0 0.0
    %8371 = vmatpush1.msra.mxu0 0.0
    %8372 = vmatprep.subr.mxu0 0.0
    %8373 = vmatpush1.msra.mxu0 0.0
    %8374 = vmatprep.subr.mxu0 0.0
    %8375 = vmatpush1.msra.mxu0 0.0
    %8376 = vmatprep.subr.mxu0 0.0
    %8377 = vmatpush1.msra.mxu0 0.0
    %8378 = vmatprep.subr.mxu0 0.0
    %8379 = vmatpush1.msra.mxu0 0.0
    %8380 = vmatprep.subr.mxu0 0.0
    %8381 = vmatpush1.msra.mxu0 0.0
    %8382 = vmatprep.subr.mxu0 0.0
    %8383 = vmatpush1.msra.mxu0 0.0
    %8384 = vmatprep.subr.mxu0 0.0
    %8385 = vmatpush1.msra.mxu0 0.0
    %8386 = vmatprep.subr.mxu0 0.0
    %8387 = vmatpush1.msra.mxu0 0.0
    %8388 = vmatprep.subr.mxu0 0.0
    %8389 = vmatpush1.msra.mxu0 0.0
    %8390 = vmatprep.subr.mxu0 0.0
    %8391 = vmatpush1.msra.mxu0 0.0
    %8392 = vmatprep.subr.mxu0 0.0
    %8393 = vmatpush1.msra.mxu0 0.0
    %8394 = vmatprep.subr.mxu0 0.0
    %8395 = vmatpush1.msra.mxu0 0.0
    %8396 = vmatprep.subr.mxu0 0.0
    %8397 = vmatpush1.msra.mxu0 0.0
    %8398 = vmatprep.mubr.f32.mxu0 0.0
    %8399 = vmatmul.mubr.f32.gmra.mrb[0].mxu0 %v8329
    %v8400 = vpop.f32.mrb[0].mxu0
    %v8401 = vadd.f32 0.0, %v8400
    %v8402 = vpop.f32.mrb[0].mxu0
    %8403 = vmatprep.mubr.f32.mxu0 0.0
    %8404 = vmatmul.mubr.f32.gmra.mrb[0].mxu0 %v8332
    %v8405 = vpop.f32.mrb[0].mxu0
    %v8406 = vadd.f32 0.0, %v8405
    %v8407 = vpop.f32.mrb[0].mxu0
    %8408 = vdwg.mxu0
    %8409 = vmatprep.subr.mxu0 0.0
    %8410 = vmatpush1.msra.mxu0 %v8401
    %8411 = vmatprep.subr.mxu0 0.0
    %8412 = vmatpush1.msra.mxu0 0.0
    %8413 = vmatprep.subr.mxu0 0.0
    %8414 = vmatpush1.msra.mxu0 0.0
    %8415 = vmatprep.subr.mxu0 0.0
    %8416 = vmatpush1.msra.mxu0 0.0
    %8417 = vmatprep.subr.mxu0 0.0
    %8418 = vmatpush1.msra.mxu0 0.0
    %8419 = vmatprep.subr.mxu0 0.0
    %8420 = vmatpush1.msra.mxu0 0.0
    %8421 = vmatprep.subr.mxu0 0.0
    %8422 = vmatpush1.msra.mxu0 0.0
    %8423 = vmatprep.subr.mxu0 0.0
    %8424 = vmatpush1.msra.mxu0 0.0
    %8425 = vmatprep.subr.mxu0 0.0
    %8426 = vmatpush1.msra.mxu0 0.0
    %8427 = vmatprep.subr.mxu0 0.0
    %8428 = vmatpush1.msra.mxu0 0.0
    %8429 = vmatprep.subr.mxu0 0.0
    %8430 = vmatpush1.msra.mxu0 0.0
    %8431 = vmatprep.subr.mxu0 0.0
    %8432 = vmatpush1.msra.mxu0 0.0
    %8433 = vmatprep.subr.mxu0 0.0
    %8434 = vmatpush1.msra.mxu0 0.0
    %8435 = vmatprep.subr.mxu0 0.0
    %8436 = vmatpush1.msra.mxu0 0.0
    %8437 = vmatprep.subr.mxu0 0.0
    %8438 = vmatpush1.msra.mxu0 0.0
    %8439 = vmatprep.subr.mxu0 0.0
    %8440 = vmatpush1.msra.mxu0 0.0
    %8441 = vmatprep.subr.mxu0 0.0
    %8442 = vmatpush1.msra.mxu0 0.0
    %8443 = vmatprep.subr.mxu0 0.0
    %8444 = vmatpush1.msra.mxu0 0.0
    %8445 = vmatprep.subr.mxu0 0.0
    %8446 = vmatpush1.msra.mxu0 0.0
    %8447 = vmatprep.subr.mxu0 0.0
    %8448 = vmatpush1.msra.mxu0 0.0
    %8449 = vmatprep.subr.mxu0 0.0
    %8450 = vmatpush1.msra.mxu0 0.0
    %8451 = vmatprep.subr.mxu0 0.0
    %8452 = vmatpush1.msra.mxu0 0.0
    %8453 = vmatprep.subr.mxu0 0.0
    %8454 = vmatpush1.msra.mxu0 0.0
    %8455 = vmatprep.subr.mxu0 0.0
    %8456 = vmatpush1.msra.mxu0 0.0
    %8457 = vmatprep.subr.mxu0 0.0
    %8458 = vmatpush1.msra.mxu0 0.0
    %8459 = vmatprep.subr.mxu0 0.0
    %8460 = vmatpush1.msra.mxu0 0.0
    %8461 = vmatprep.subr.mxu0 0.0
    %8462 = vmatpush1.msra.mxu0 0.0
    %8463 = vmatprep.subr.mxu0 0.0
    %8464 = vmatpush1.msra.mxu0 0.0
    %8465 = vmatprep.subr.mxu0 0.0
    %8466 = vmatpush1.msra.mxu0 0.0
    %8467 = vmatprep.subr.mxu0 0.0
    %8468 = vmatpush1.msra.mxu0 0.0
    %8469 = vmatprep.subr.mxu0 0.0
    %8470 = vmatpush1.msra.mxu0 0.0
    %8471 = vmatprep.subr.mxu0 0.0
    %8472 = vmatpush1.msra.mxu0 0.0
    %8473 = vmatprep.mubr.f32.mxu0 0.0
    %8474 = vmatmul.mubr.f32.gmra.mrb[0].mxu0 %v4344
    %v8475 = vpop.f32.mrb[0].mxu0
    %v8476 = vadd.f32 0.0, %v8475
    %v8477 = vpop.f32.mrb[0].mxu0
    %8478 = vmatprep.mubr.f32.mxu0 0.0
    %8479 = vmatmul.mubr.f32.gmra.mrb[0].mxu0 %v4347
    %v8480 = vpop.f32.mrb[0].mxu0
    %v8481 = vadd.f32 0.0, %v8480
    %v8482 = vpop.f32.mrb[0].mxu0
    %8483 = vmatprep.mubr.f32.mxu0 0.0
    %8484 = vmatmul.mubr.f32.gmra.mrb[0].mxu0 %v4350
    %v8485 = vpop.f32.mrb[0].mxu0
    %v8486 = vadd.f32 0.0, %v8485
    %v8487 = vpop.f32.mrb[0].mxu0
    %8488 = vmatprep.mubr.f32.mxu0 0.0
    %8489 = vmatmul.mubr.f32.gmra.mrb[0].mxu0 %v4353
    %v8490 = vpop.f32.mrb[0].mxu0
    %v8491 = vadd.f32 0.0, %v8490
    %v8492 = vpop.f32.mrb[0].mxu0
    %8493 = vmatprep.mubr.f32.mxu0 0.0
    %8494 = vmatmul.mubr.f32.gmra.mrb[0].mxu0 %v4356
    %v8495 = vpop.f32.mrb[0].mxu0
    %v8496 = vadd.f32 0.0, %v8495
    %v8497 = vpop.f32.mrb[0].mxu0
    %8498 = vmatprep.mubr.f32.mxu0 0.0
    %8499 = vmatmul.mubr.f32.gmra.mrb[0].mxu0 %v4359
    %v8500 = vpop.f32.mrb[0].mxu0
    %v8501 = vadd.f32 0.0, %v8500
    %v8502 = vpop.f32.mrb[0].mxu0
    %8503 = vmatprep.mubr.f32.mxu0 0.0
    %8504 = vmatmul.mubr.f32.gmra.mrb[0].mxu0 %v4362
    %v8505 = vpop.f32.mrb[0].mxu0
    %v8506 = vadd.f32 0.0, %v8505
    %v8507 = vpop.f32.mrb[0].mxu0
    %8508 = vmatprep.mubr.f32.mxu0 0.0
    %8509 = vmatmul.mubr.f32.gmra.mrb[0].mxu0 %v4365
    %v8510 = vpop.f32.mrb[0].mxu0
    %v8511 = vadd.f32 0.0, %v8510
    %v8512 = vpop.f32.mrb[0].mxu0
    %8513 = vmatprep.mubr.f32.mxu0 0.0
    %8514 = vmatmul.mubr.f32.gmra.mrb[0].mxu0 %v4368
    %v8515 = vpop.f32.mrb[0].mxu0
    %v8516 = vadd.f32 0.0, %v8515
    %v8517 = vpop.f32.mrb[0].mxu0
    %8518 = vmatprep.mubr.f32.mxu0 0.0
    %8519 = vmatmul.mubr.f32.gmra.mrb[0].mxu0 %v4371
    %v8520 = vpop.f32.mrb[0].mxu0
    %v8521 = vadd.f32 0.0, %v8520
    %v8522 = vpop.f32.mrb[0].mxu0
    %8523 = vmatprep.mubr.f32.mxu0 0.0
    %8524 = vmatmul.mubr.f32.gmra.mrb[0].mxu0 %v4374
    %v8525 = vpop.f32.mrb[0].mxu0
    %v8526 = vadd.f32 0.0, %v8525
    %v8527 = vpop.f32.mrb[0].mxu0
    %8528 = vmatprep.mubr.f32.mxu0 0.0
    %8529 = vmatmul.mubr.f32.gmra.mrb[0].mxu0 %v4377
    %v8530 = vpop.f32.mrb[0].mxu0
    %v8531 = vadd.f32 0.0, %v8530
    %v8532 = vpop.f32.mrb[0].mxu0
    %8533 = vmatprep.mubr.f32.mxu0 0.0
    %8534 = vmatmul.mubr.f32.gmra.mrb[0].mxu0 %v4380
    %v8535 = vpop.f32.mrb[0].mxu0
    %v8536 = vadd.f32 0.0, %v8535
    %v8537 = vpop.f32.mrb[0].mxu0
    %8538 = vmatprep.mubr.f32.mxu0 0.0
    %8539 = vmatmul.mubr.f32.gmra.mrb[0].mxu0 %v4383
    %v8540 = vpop.f32.mrb[0].mxu0
    %v8541 = vadd.f32 0.0, %v8540
    %v8542 = vpop.f32.mrb[0].mxu0
    %8543 = vmatprep.mubr.f32.mxu0 0.0
    %8544 = vmatmul.mubr.f32.gmra.mrb[0].mxu0 %v4386
    %v8545 = vpop.f32.mrb[0].mxu0
    %v8546 = vadd.f32 0.0, %v8545
    %v8547 = vpop.f32.mrb[0].mxu0
    %8548 = vmatprep.mubr.f32.mxu0 0.0
    %8549 = vmatmul.mubr.f32.gmra.mrb[0].mxu0 %v4389
    %v8550 = vpop.f32.mrb[0].mxu0
    %v8551 = vadd.f32 0.0, %v8550
    %v8552 = vpop.f32.mrb[0].mxu0
    %8553 = vmatprep.mubr.f32.mxu0 0.0
    %8554 = vmatmul.mubr.f32.gmra.mrb[0].mxu0 %v4392
    %v8555 = vpop.f32.mrb[0].mxu0
    %v8556 = vadd.f32 0.0, %v8555
    %v8557 = vpop.f32.mrb[0].mxu0
    %8558 = vmatprep.mubr.f32.mxu0 0.0
    %8559 = vmatmul.mubr.f32.gmra.mrb[0].mxu0 %v4395
    %v8560 = vpop.f32.mrb[0].mxu0
    %v8561 = vadd.f32 0.0, %v8560
    %v8562 = vpop.f32.mrb[0].mxu0
    %8563 = vmatprep.mubr.f32.mxu0 0.0
    %8564 = vmatmul.mubr.f32.gmra.mrb[0].mxu0 %v4398
    %v8565 = vpop.f32.mrb[0].mxu0
    %v8566 = vadd.f32 0.0, %v8565
    %v8567 = vpop.f32.mrb[0].mxu0
    %8568 = vmatprep.mubr.f32.mxu0 0.0
    %8569 = vmatmul.mubr.f32.gmra.mrb[0].mxu0 %v4401
    %v8570 = vpop.f32.mrb[0].mxu0
    %v8571 = vadd.f32 0.0, %v8570
    %v8572 = vpop.f32.mrb[0].mxu0
    %8573 = vmatprep.mubr.f32.mxu0 0.0
    %8574 = vmatmul.mubr.f32.gmra.mrb[0].mxu0 %v4404
    %v8575 = vpop.f32.mrb[0].mxu0
    %v8576 = vadd.f32 0.0, %v8575
    %v8577 = vpop.f32.mrb[0].mxu0
    %8578 = vmatprep.mubr.f32.mxu0 0.0
    %8579 = vmatmul.mubr.f32.gmra.mrb[0].mxu0 %v4407
    %v8580 = vpop.f32.mrb[0].mxu0
    %v8581 = vadd.f32 0.0, %v8580
    %v8582 = vpop.f32.mrb[0].mxu0
    %8583 = vmatprep.mubr.f32.mxu0 0.0
    %8584 = vmatmul.mubr.f32.gmra.mrb[0].mxu0 %v4410
    %v8585 = vpop.f32.mrb[0].mxu0
    %v8586 = vadd.f32 0.0, %v8585
    %v8587 = vpop.f32.mrb[0].mxu0
    %8588 = vmatprep.mubr.f32.mxu0 0.0
    %8589 = vmatmul.mubr.f32.gmra.mrb[0].mxu0 %v4413
    %v8590 = vpop.f32.mrb[0].mxu0
    %v8591 = vadd.f32 0.0, %v8590
    %v8592 = vpop.f32.mrb[0].mxu0
    %8593 = vmatprep.mubr.f32.mxu0 0.0
    %8594 = vmatmul.mubr.f32.gmra.mrb[0].mxu0 %v4416
    %v8595 = vpop.f32.mrb[0].mxu0
    %v8596 = vadd.f32 0.0, %v8595
    %v8597 = vpop.f32.mrb[0].mxu0
    %8598 = vmatprep.mubr.f32.mxu0 0.0
    %8599 = vmatmul.mubr.f32.gmra.mrb[0].mxu0 %v4419
    %v8600 = vpop.f32.mrb[0].mxu0
    %v8601 = vadd.f32 0.0, %v8600
    %v8602 = vpop.f32.mrb[0].mxu0
    %8603 = vmatprep.mubr.f32.mxu0 0.0
    %8604 = vmatmul.mubr.f32.gmra.mrb[0].mxu0 %v4422
    %v8605 = vpop.f32.mrb[0].mxu0
    %v8606 = vadd.f32 0.0, %v8605
    %v8607 = vpop.f32.mrb[0].mxu0
    %8608 = vmatprep.mubr.f32.mxu0 0.0
    %8609 = vmatmul.mubr.f32.gmra.mrb[0].mxu0 %v4425
    %v8610 = vpop.f32.mrb[0].mxu0
    %v8611 = vadd.f32 0.0, %v8610
    %v8612 = vpop.f32.mrb[0].mxu0
    %8613 = vmatprep.mubr.f32.mxu0 0.0
    %8614 = vmatmul.mubr.f32.gmra.mrb[0].mxu0 %v4428
    %v8615 = vpop.f32.mrb[0].mxu0
    %v8616 = vadd.f32 0.0, %v8615
    %v8617 = vpop.f32.mrb[0].mxu0
    %8618 = vmatprep.mubr.f32.mxu0 0.0
    %8619 = vmatmul.mubr.f32.gmra.mrb[0].mxu0 %v4431
    %v8620 = vpop.f32.mrb[0].mxu0
    %v8621 = vadd.f32 0.0, %v8620
    %v8622 = vpop.f32.mrb[0].mxu0
    %8623 = vmatprep.mubr.f32.mxu0 0.0
    %8624 = vmatmul.mubr.f32.gmra.mrb[0].mxu0 %v4434
    %v8625 = vpop.f32.mrb[0].mxu0
    %v8626 = vadd.f32 0.0, %v8625
    %v8627 = vpop.f32.mrb[0].mxu0
    %8628 = vmatprep.mubr.f32.mxu0 0.0
    %8629 = vmatmul.mubr.f32.gmra.mrb[0].mxu0 %v4437
    %v8630 = vpop.f32.mrb[0].mxu0
    %v8631 = vadd.f32 0.0, %v8630
    %v8632 = vpop.f32.mrb[0].mxu0
    %8633 = vmatprep.mubr.f32.mxu0 0.0
    %8634 = vmatmul.mubr.f32.gmra.mrb[0].mxu0 %v4440
    %v8635 = vpop.f32.mrb[0].mxu0
    %v8636 = vadd.f32 0.0, %v8635
    %v8637 = vpop.f32.mrb[0].mxu0
    %8638 = vmatprep.mubr.f32.mxu0 0.0
    %8639 = vmatmul.mubr.f32.gmra.mrb[0].mxu0 %v4443
    %v8640 = vpop.f32.mrb[0].mxu0
    %v8641 = vadd.f32 0.0, %v8640
    %v8642 = vpop.f32.mrb[0].mxu0
    %8643 = vmatprep.mubr.f32.mxu0 0.0
    %8644 = vmatmul.mubr.f32.gmra.mrb[0].mxu0 %v4446
    %v8645 = vpop.f32.mrb[0].mxu0
    %v8646 = vadd.f32 0.0, %v8645
    %v8647 = vpop.f32.mrb[0].mxu0
    %8648 = vmatprep.mubr.f32.mxu0 0.0
    %8649 = vmatmul.mubr.f32.gmra.mrb[0].mxu0 %v4449
    %v8650 = vpop.f32.mrb[0].mxu0
    %v8651 = vadd.f32 0.0, %v8650
    %v8652 = vpop.f32.mrb[0].mxu0
    %8653 = vmatprep.mubr.f32.mxu0 0.0
    %8654 = vmatmul.mubr.f32.gmra.mrb[0].mxu0 %v4452
    %v8655 = vpop.f32.mrb[0].mxu0
    %v8656 = vadd.f32 0.0, %v8655
    %v8657 = vpop.f32.mrb[0].mxu0
    %8658 = vmatprep.mubr.f32.mxu0 0.0
    %8659 = vmatmul.mubr.f32.gmra.mrb[0].mxu0 %v4455
    %v8660 = vpop.f32.mrb[0].mxu0
    %v8661 = vadd.f32 0.0, %v8660
    %v8662 = vpop.f32.mrb[0].mxu0
    %8663 = vmatprep.mubr.f32.mxu0 0.0
    %8664 = vmatmul.mubr.f32.gmra.mrb[0].mxu0 %v4458
    %v8665 = vpop.f32.mrb[0].mxu0
    %v8666 = vadd.f32 0.0, %v8665
    %v8667 = vpop.f32.mrb[0].mxu0
    %8668 = vmatprep.mubr.f32.mxu0 0.0
    %8669 = vmatmul.mubr.f32.gmra.mrb[0].mxu0 %v4461
    %v8670 = vpop.f32.mrb[0].mxu0
    %v8671 = vadd.f32 0.0, %v8670
    %v8672 = vpop.f32.mrb[0].mxu0
    %8673 = vmatprep.mubr.f32.mxu0 0.0
    %8674 = vmatmul.mubr.f32.gmra.mrb[0].mxu0 %v4464
    %v8675 = vpop.f32.mrb[0].mxu0
    %v8676 = vadd.f32 0.0, %v8675
    %v8677 = vpop.f32.mrb[0].mxu0
    %8678 = vmatprep.mubr.f32.mxu0 0.0
    %8679 = vmatmul.mubr.f32.gmra.mrb[0].mxu0 %v4467
    %v8680 = vpop.f32.mrb[0].mxu0
    %v8681 = vadd.f32 0.0, %v8680
    %v8682 = vpop.f32.mrb[0].mxu0
    %8683 = vmatprep.mubr.f32.mxu0 0.0
    %8684 = vmatmul.mubr.f32.gmra.mrb[0].mxu0 %v4470
    %v8685 = vpop.f32.mrb[0].mxu0
    %v8686 = vadd.f32 0.0, %v8685
    %v8687 = vpop.f32.mrb[0].mxu0
    %8688 = vmatprep.mubr.f32.mxu0 0.0
    %8689 = vmatmul.mubr.f32.gmra.mrb[0].mxu0 %v4473
    %v8690 = vpop.f32.mrb[0].mxu0
    %v8691 = vadd.f32 0.0, %v8690
    %v8692 = vpop.f32.mrb[0].mxu0
    %8693 = vmatprep.mubr.f32.mxu0 0.0
    %8694 = vmatmul.mubr.f32.gmra.mrb[0].mxu0 %v4476
    %v8695 = vpop.f32.mrb[0].mxu0
    %v8696 = vadd.f32 0.0, %v8695
    %v8697 = vpop.f32.mrb[0].mxu0
    %8698 = vmatprep.mubr.f32.mxu0 0.0
    %8699 = vmatmul.mubr.f32.gmra.mrb[0].mxu0 %v4479
    %v8700 = vpop.f32.mrb[0].mxu0
    %v8701 = vadd.f32 0.0, %v8700
    %v8702 = vpop.f32.mrb[0].mxu0
    %8703 = vmatprep.mubr.f32.mxu0 0.0
    %8704 = vmatmul.mubr.f32.gmra.mrb[0].mxu0 %v4482
    %v8705 = vpop.f32.mrb[0].mxu0
    %v8706 = vadd.f32 0.0, %v8705
    %v8707 = vpop.f32.mrb[0].mxu0
    %8708 = vmatprep.mubr.f32.mxu0 0.0
    %8709 = vmatmul.mubr.f32.gmra.mrb[0].mxu0 %v4485
    %v8710 = vpop.f32.mrb[0].mxu0
    %v8711 = vadd.f32 0.0, %v8710
    %v8712 = vpop.f32.mrb[0].mxu0
    %8713 = vmatprep.mubr.f32.mxu0 0.0
    %8714 = vmatmul.mubr.f32.gmra.mrb[0].mxu0 %v4488
    %v8715 = vpop.f32.mrb[0].mxu0
    %v8716 = vadd.f32 0.0, %v8715
    %v8717 = vpop.f32.mrb[0].mxu0
    %8718 = vmatprep.mubr.f32.mxu0 0.0
    %8719 = vmatmul.mubr.f32.gmra.mrb[0].mxu0 %v4491
    %v8720 = vpop.f32.mrb[0].mxu0
    %v8721 = vadd.f32 0.0, %v8720
    %v8722 = vpop.f32.mrb[0].mxu0
    %8723 = vmatprep.mubr.f32.mxu0 0.0
    %8724 = vmatmul.mubr.f32.gmra.mrb[0].mxu0 %v4494
    %v8725 = vpop.f32.mrb[0].mxu0
    %v8726 = vadd.f32 0.0, %v8725
    %v8727 = vpop.f32.mrb[0].mxu0
    %8728 = vmatprep.mubr.f32.mxu0 0.0
    %8729 = vmatmul.mubr.f32.gmra.mrb[0].mxu0 %v4497
    %v8730 = vpop.f32.mrb[0].mxu0
    %v8731 = vadd.f32 0.0, %v8730
    %v8732 = vpop.f32.mrb[0].mxu0
    %8733 = vmatprep.mubr.f32.mxu0 0.0
    %8734 = vmatmul.mubr.f32.gmra.mrb[0].mxu0 %v4500
    %v8735 = vpop.f32.mrb[0].mxu0
    %v8736 = vadd.f32 0.0, %v8735
    %v8737 = vpop.f32.mrb[0].mxu0
    %8738 = vmatprep.mubr.f32.mxu0 0.0
    %8739 = vmatmul.mubr.f32.gmra.mrb[0].mxu0 %v4503
    %v8740 = vpop.f32.mrb[0].mxu0
    %v8741 = vadd.f32 0.0, %v8740
    %v8742 = vpop.f32.mrb[0].mxu0
    %8743 = vmatprep.mubr.f32.mxu0 0.0
    %8744 = vmatmul.mubr.f32.gmra.mrb[0].mxu0 %v4506
    %v8745 = vpop.f32.mrb[0].mxu0
    %v8746 = vadd.f32 0.0, %v8745
    %v8747 = vpop.f32.mrb[0].mxu0
    %8748 = vmatprep.mubr.f32.mxu0 0.0
    %8749 = vmatmul.mubr.f32.gmra.mrb[0].mxu0 %v4509
    %v8750 = vpop.f32.mrb[0].mxu0
    %v8751 = vadd.f32 0.0, %v8750
    %v8752 = vpop.f32.mrb[0].mxu0
    %8753 = vdwg.mxu0
    %8754 = vmatprep.subr.mxu0 0.0
    %8755 = vmatpush1.msra.mxu0 %v8406
    %8756 = vmatprep.subr.mxu0 0.0
    %8757 = vmatpush1.msra.mxu0 0.0
    %8758 = vmatprep.subr.mxu0 0.0
    %8759 = vmatpush1.msra.mxu0 0.0
    %8760 = vmatprep.subr.mxu0 0.0
    %8761 = vmatpush1.msra.mxu0 0.0
    %8762 = vmatprep.subr.mxu0 0.0
    %8763 = vmatpush1.msra.mxu0 0.0
    %8764 = vmatprep.subr.mxu0 0.0
    %8765 = vmatpush1.msra.mxu0 0.0
    %8766 = vmatprep.subr.mxu0 0.0
    %8767 = vmatpush1.msra.mxu0 0.0
    %8768 = vmatprep.subr.mxu0 0.0
    %8769 = vmatpush1.msra.mxu0 0.0
    %8770 = vmatprep.subr.mxu0 0.0
    %8771 = vmatpush1.msra.mxu0 0.0
    %8772 = vmatprep.subr.mxu0 0.0
    %8773 = vmatpush1.msra.mxu0 0.0
    %8774 = vmatprep.subr.mxu0 0.0
    %8775 = vmatpush1.msra.mxu0 0.0
    %8776 = vmatprep.subr.mxu0 0.0
    %8777 = vmatpush1.msra.mxu0 0.0
    %8778 = vmatprep.subr.mxu0 0.0
    %8779 = vmatpush1.msra.mxu0 0.0
    %8780 = vmatprep.subr.mxu0 0.0
    %8781 = vmatpush1.msra.mxu0 0.0
    %8782 = vmatprep.subr.mxu0 0.0
    %8783 = vmatpush1.msra.mxu0 0.0
    %8784 = vmatprep.subr.mxu0 0.0
    %8785 = vmatpush1.msra.mxu0 0.0
    %8786 = vmatprep.subr.mxu0 0.0
    %8787 = vmatpush1.msra.mxu0 0.0
    %8788 = vmatprep.subr.mxu0 0.0
    %8789 = vmatpush1.msra.mxu0 0.0
    %8790 = vmatprep.subr.mxu0 0.0
    %8791 = vmatpush1.msra.mxu0 0.0
    %8792 = vmatprep.subr.mxu0 0.0
    %8793 = vmatpush1.msra.mxu0 0.0
    %8794 = vmatprep.subr.mxu0 0.0
    %8795 = vmatpush1.msra.mxu0 0.0
    %8796 = vmatprep.subr.mxu0 0.0
    %8797 = vmatpush1.msra.mxu0 0.0
    %8798 = vmatprep.subr.mxu0 0.0
    %8799 = vmatpush1.msra.mxu0 0.0
    %8800 = vmatprep.subr.mxu0 0.0
    %8801 = vmatpush1.msra.mxu0 0.0
    %8802 = vmatprep.subr.mxu0 0.0
    %8803 = vmatpush1.msra.mxu0 0.0
    %8804 = vmatprep.subr.mxu0 0.0
    %8805 = vmatpush1.msra.mxu0 0.0
    %8806 = vmatprep.subr.mxu0 0.0
    %8807 = vmatpush1.msra.mxu0 0.0
    %8808 = vmatprep.subr.mxu0 0.0
    %8809 = vmatpush1.msra.mxu0 0.0
    %8810 = vmatprep.subr.mxu0 0.0
    %8811 = vmatpush1.msra.mxu0 0.0
    %8812 = vmatprep.subr.mxu0 0.0
    %8813 = vmatpush1.msra.mxu0 0.0
    %8814 = vmatprep.subr.mxu0 0.0
    %8815 = vmatpush1.msra.mxu0 0.0
    %8816 = vmatprep.subr.mxu0 0.0
    %8817 = vmatpush1.msra.mxu0 0.0
    %8818 = vmatprep.mubr.f32.mxu0 0.0
    %8819 = vmatmul.mubr.f32.gmra.mrb[0].mxu0 %v4344
    %v8820 = vpop.f32.mrb[0].mxu0
    %v8821 = vadd.f32 0.0, %v8820
    %v8822 = vpop.f32.mrb[0].mxu0
    %8823 = vmatprep.mubr.f32.mxu0 0.0
    %8824 = vmatmul.mubr.f32.gmra.mrb[0].mxu0 %v4347
    %v8825 = vpop.f32.mrb[0].mxu0
    %v8826 = vadd.f32 0.0, %v8825
    %v8827 = vpop.f32.mrb[0].mxu0
    %8828 = vmatprep.mubr.f32.mxu0 0.0
    %8829 = vmatmul.mubr.f32.gmra.mrb[0].mxu0 %v4350
    %v8830 = vpop.f32.mrb[0].mxu0
    %v8831 = vadd.f32 0.0, %v8830
    %v8832 = vpop.f32.mrb[0].mxu0
    %8833 = vmatprep.mubr.f32.mxu0 0.0
    %8834 = vmatmul.mubr.f32.gmra.mrb[0].mxu0 %v4353
    %v8835 = vpop.f32.mrb[0].mxu0
    %v8836 = vadd.f32 0.0, %v8835
    %v8837 = vpop.f32.mrb[0].mxu0
    %8838 = vmatprep.mubr.f32.mxu0 0.0
    %8839 = vmatmul.mubr.f32.gmra.mrb[0].mxu0 %v4356
    %v8840 = vpop.f32.mrb[0].mxu0
    %v8841 = vadd.f32 0.0, %v8840
    %v8842 = vpop.f32.mrb[0].mxu0
    %8843 = vmatprep.mubr.f32.mxu0 0.0
    %8844 = vmatmul.mubr.f32.gmra.mrb[0].mxu0 %v4359
    %v8845 = vpop.f32.mrb[0].mxu0
    %v8846 = vadd.f32 0.0, %v8845
    %v8847 = vpop.f32.mrb[0].mxu0
    %8848 = vmatprep.mubr.f32.mxu0 0.0
    %8849 = vmatmul.mubr.f32.gmra.mrb[0].mxu0 %v4362
    %v8850 = vpop.f32.mrb[0].mxu0
    %v8851 = vadd.f32 0.0, %v8850
    %v8852 = vpop.f32.mrb[0].mxu0
    %8853 = vmatprep.mubr.f32.mxu0 0.0
    %8854 = vmatmul.mubr.f32.gmra.mrb[0].mxu0 %v4365
    %v8855 = vpop.f32.mrb[0].mxu0
    %v8856 = vadd.f32 0.0, %v8855
    %v8857 = vpop.f32.mrb[0].mxu0
    %8858 = vmatprep.mubr.f32.mxu0 0.0
    %8859 = vmatmul.mubr.f32.gmra.mrb[0].mxu0 %v4368
    %v8860 = vpop.f32.mrb[0].mxu0
    %v8861 = vadd.f32 0.0, %v8860
    %v8862 = vpop.f32.mrb[0].mxu0
    %8863 = vmatprep.mubr.f32.mxu0 0.0
    %8864 = vmatmul.mubr.f32.gmra.mrb[0].mxu0 %v4371
    %v8865 = vpop.f32.mrb[0].mxu0
    %v8866 = vadd.f32 0.0, %v8865
    %v8867 = vpop.f32.mrb[0].mxu0
    %8868 = vmatprep.mubr.f32.mxu0 0.0
    %8869 = vmatmul.mubr.f32.gmra.mrb[0].mxu0 %v4374
    %v8870 = vpop.f32.mrb[0].mxu0
    %v8871 = vadd.f32 0.0, %v8870
    %v8872 = vpop.f32.mrb[0].mxu0
    %8873 = vmatprep.mubr.f32.mxu0 0.0
    %8874 = vmatmul.mubr.f32.gmra.mrb[0].mxu0 %v4377
    %v8875 = vpop.f32.mrb[0].mxu0
    %v8876 = vadd.f32 0.0, %v8875
    %v8877 = vpop.f32.mrb[0].mxu0
    %8878 = vmatprep.mubr.f32.mxu0 0.0
    %8879 = vmatmul.mubr.f32.gmra.mrb[0].mxu0 %v4380
    %v8880 = vpop.f32.mrb[0].mxu0
    %v8881 = vadd.f32 0.0, %v8880
    %v8882 = vpop.f32.mrb[0].mxu0
    %8883 = vmatprep.mubr.f32.mxu0 0.0
    %8884 = vmatmul.mubr.f32.gmra.mrb[0].mxu0 %v4383
    %v8885 = vpop.f32.mrb[0].mxu0
    %v8886 = vadd.f32 0.0, %v8885
    %v8887 = vpop.f32.mrb[0].mxu0
    %8888 = vmatprep.mubr.f32.mxu0 0.0
    %8889 = vmatmul.mubr.f32.gmra.mrb[0].mxu0 %v4386
    %v8890 = vpop.f32.mrb[0].mxu0
    %v8891 = vadd.f32 0.0, %v8890
    %v8892 = vpop.f32.mrb[0].mxu0
    %8893 = vmatprep.mubr.f32.mxu0 0.0
    %8894 = vmatmul.mubr.f32.gmra.mrb[0].mxu0 %v4389
    %v8895 = vpop.f32.mrb[0].mxu0
    %v8896 = vadd.f32 0.0, %v8895
    %v8897 = vpop.f32.mrb[0].mxu0
    %8898 = vmatprep.mubr.f32.mxu0 0.0
    %8899 = vmatmul.mubr.f32.gmra.mrb[0].mxu0 %v4392
    %v8900 = vpop.f32.mrb[0].mxu0
    %v8901 = vadd.f32 0.0, %v8900
    %v8902 = vpop.f32.mrb[0].mxu0
    %8903 = vmatprep.mubr.f32.mxu0 0.0
    %8904 = vmatmul.mubr.f32.gmra.mrb[0].mxu0 %v4395
    %v8905 = vpop.f32.mrb[0].mxu0
    %v8906 = vadd.f32 0.0, %v8905
    %v8907 = vpop.f32.mrb[0].mxu0
    %8908 = vmatprep.mubr.f32.mxu0 0.0
    %8909 = vmatmul.mubr.f32.gmra.mrb[0].mxu0 %v4398
    %v8910 = vpop.f32.mrb[0].mxu0
    %v8911 = vadd.f32 0.0, %v8910
    %v8912 = vpop.f32.mrb[0].mxu0
    %8913 = vmatprep.mubr.f32.mxu0 0.0
    %8914 = vmatmul.mubr.f32.gmra.mrb[0].mxu0 %v4401
    %v8915 = vpop.f32.mrb[0].mxu0
    %v8916 = vadd.f32 0.0, %v8915
    %v8917 = vpop.f32.mrb[0].mxu0
    %8918 = vmatprep.mubr.f32.mxu0 0.0
    %8919 = vmatmul.mubr.f32.gmra.mrb[0].mxu0 %v4404
    %v8920 = vpop.f32.mrb[0].mxu0
    %v8921 = vadd.f32 0.0, %v8920
    %v8922 = vpop.f32.mrb[0].mxu0
    %8923 = vmatprep.mubr.f32.mxu0 0.0
    %8924 = vmatmul.mubr.f32.gmra.mrb[0].mxu0 %v4407
    %v8925 = vpop.f32.mrb[0].mxu0
    %v8926 = vadd.f32 0.0, %v8925
    %v8927 = vpop.f32.mrb[0].mxu0
    %8928 = vmatprep.mubr.f32.mxu0 0.0
    %8929 = vmatmul.mubr.f32.gmra.mrb[0].mxu0 %v4410
    %v8930 = vpop.f32.mrb[0].mxu0
    %v8931 = vadd.f32 0.0, %v8930
    %v8932 = vpop.f32.mrb[0].mxu0
    %8933 = vmatprep.mubr.f32.mxu0 0.0
    %8934 = vmatmul.mubr.f32.gmra.mrb[0].mxu0 %v4413
    %v8935 = vpop.f32.mrb[0].mxu0
    %v8936 = vadd.f32 0.0, %v8935
    %v8937 = vpop.f32.mrb[0].mxu0
    %8938 = vmatprep.mubr.f32.mxu0 0.0
    %8939 = vmatmul.mubr.f32.gmra.mrb[0].mxu0 %v4416
    %v8940 = vpop.f32.mrb[0].mxu0
    %v8941 = vadd.f32 0.0, %v8940
    %v8942 = vpop.f32.mrb[0].mxu0
    %8943 = vmatprep.mubr.f32.mxu0 0.0
    %8944 = vmatmul.mubr.f32.gmra.mrb[0].mxu0 %v4419
    %v8945 = vpop.f32.mrb[0].mxu0
    %v8946 = vadd.f32 0.0, %v8945
    %v8947 = vpop.f32.mrb[0].mxu0
    %8948 = vmatprep.mubr.f32.mxu0 0.0
    %8949 = vmatmul.mubr.f32.gmra.mrb[0].mxu0 %v4422
    %v8950 = vpop.f32.mrb[0].mxu0
    %v8951 = vadd.f32 0.0, %v8950
    %v8952 = vpop.f32.mrb[0].mxu0
    %8953 = vmatprep.mubr.f32.mxu0 0.0
    %8954 = vmatmul.mubr.f32.gmra.mrb[0].mxu0 %v4425
    %v8955 = vpop.f32.mrb[0].mxu0
    %v8956 = vadd.f32 0.0, %v8955
    %v8957 = vpop.f32.mrb[0].mxu0
    %8958 = vmatprep.mubr.f32.mxu0 0.0
    %8959 = vmatmul.mubr.f32.gmra.mrb[0].mxu0 %v4428
    %v8960 = vpop.f32.mrb[0].mxu0
    %v8961 = vadd.f32 0.0, %v8960
    %v8962 = vpop.f32.mrb[0].mxu0
    %8963 = vmatprep.mubr.f32.mxu0 0.0
    %8964 = vmatmul.mubr.f32.gmra.mrb[0].mxu0 %v4431
    %v8965 = vpop.f32.mrb[0].mxu0
    %v8966 = vadd.f32 0.0, %v8965
    %v8967 = vpop.f32.mrb[0].mxu0
    %8968 = vmatprep.mubr.f32.mxu0 0.0
    %8969 = vmatmul.mubr.f32.gmra.mrb[0].mxu0 %v4434
    %v8970 = vpop.f32.mrb[0].mxu0
    %v8971 = vadd.f32 0.0, %v8970
    %v8972 = vpop.f32.mrb[0].mxu0
    %8973 = vmatprep.mubr.f32.mxu0 0.0
    %8974 = vmatmul.mubr.f32.gmra.mrb[0].mxu0 %v4437
    %v8975 = vpop.f32.mrb[0].mxu0
    %v8976 = vadd.f32 0.0, %v8975
    %v8977 = vpop.f32.mrb[0].mxu0
    %8978 = vmatprep.mubr.f32.mxu0 0.0
    %8979 = vmatmul.mubr.f32.gmra.mrb[0].mxu0 %v4440
    %v8980 = vpop.f32.mrb[0].mxu0
    %v8981 = vadd.f32 0.0, %v8980
    %v8982 = vpop.f32.mrb[0].mxu0
    %8983 = vmatprep.mubr.f32.mxu0 0.0
    %8984 = vmatmul.mubr.f32.gmra.mrb[0].mxu0 %v4443
    %v8985 = vpop.f32.mrb[0].mxu0
    %v8986 = vadd.f32 0.0, %v8985
    %v8987 = vpop.f32.mrb[0].mxu0
    %8988 = vmatprep.mubr.f32.mxu0 0.0
    %8989 = vmatmul.mubr.f32.gmra.mrb[0].mxu0 %v4446
    %v8990 = vpop.f32.mrb[0].mxu0
    %v8991 = vadd.f32 0.0, %v8990
    %v8992 = vpop.f32.mrb[0].mxu0
    %8993 = vmatprep.mubr.f32.mxu0 0.0
    %8994 = vmatmul.mubr.f32.gmra.mrb[0].mxu0 %v4449
    %v8995 = vpop.f32.mrb[0].mxu0
    %v8996 = vadd.f32 0.0, %v8995
    %v8997 = vpop.f32.mrb[0].mxu0
    %8998 = vmatprep.mubr.f32.mxu0 0.0
    %8999 = vmatmul.mubr.f32.gmra.mrb[0].mxu0 %v4452
    %v9000 = vpop.f32.mrb[0].mxu0
    %v9001 = vadd.f32 0.0, %v9000
    %v9002 = vpop.f32.mrb[0].mxu0
    %9003 = vmatprep.mubr.f32.mxu0 0.0
    %9004 = vmatmul.mubr.f32.gmra.mrb[0].mxu0 %v4455
    %v9005 = vpop.f32.mrb[0].mxu0
    %v9006 = vadd.f32 0.0, %v9005
    %v9007 = vpop.f32.mrb[0].mxu0
    %9008 = vmatprep.mubr.f32.mxu0 0.0
    %9009 = vmatmul.mubr.f32.gmra.mrb[0].mxu0 %v4458
    %v9010 = vpop.f32.mrb[0].mxu0
    %v9011 = vadd.f32 0.0, %v9010
    %v9012 = vpop.f32.mrb[0].mxu0
    %9013 = vmatprep.mubr.f32.mxu0 0.0
    %9014 = vmatmul.mubr.f32.gmra.mrb[0].mxu0 %v4461
    %v9015 = vpop.f32.mrb[0].mxu0
    %v9016 = vadd.f32 0.0, %v9015
    %v9017 = vpop.f32.mrb[0].mxu0
    %9018 = vmatprep.mubr.f32.mxu0 0.0
    %9019 = vmatmul.mubr.f32.gmra.mrb[0].mxu0 %v4464
    %v9020 = vpop.f32.mrb[0].mxu0
    %v9021 = vadd.f32 0.0, %v9020
    %v9022 = vpop.f32.mrb[0].mxu0
    %9023 = vmatprep.mubr.f32.mxu0 0.0
    %9024 = vmatmul.mubr.f32.gmra.mrb[0].mxu0 %v4467
    %v9025 = vpop.f32.mrb[0].mxu0
    %v9026 = vadd.f32 0.0, %v9025
    %v9027 = vpop.f32.mrb[0].mxu0
    %9028 = vmatprep.mubr.f32.mxu0 0.0
    %9029 = vmatmul.mubr.f32.gmra.mrb[0].mxu0 %v4470
    %v9030 = vpop.f32.mrb[0].mxu0
    %v9031 = vadd.f32 0.0, %v9030
    %v9032 = vpop.f32.mrb[0].mxu0
    %9033 = vmatprep.mubr.f32.mxu0 0.0
    %9034 = vmatmul.mubr.f32.gmra.mrb[0].mxu0 %v4473
    %v9035 = vpop.f32.mrb[0].mxu0
    %v9036 = vadd.f32 0.0, %v9035
    %v9037 = vpop.f32.mrb[0].mxu0
    %9038 = vmatprep.mubr.f32.mxu0 0.0
    %9039 = vmatmul.mubr.f32.gmra.mrb[0].mxu0 %v4476
    %v9040 = vpop.f32.mrb[0].mxu0
    %v9041 = vadd.f32 0.0, %v9040
    %v9042 = vpop.f32.mrb[0].mxu0
    %9043 = vmatprep.mubr.f32.mxu0 0.0
    %9044 = vmatmul.mubr.f32.gmra.mrb[0].mxu0 %v4479
    %v9045 = vpop.f32.mrb[0].mxu0
    %v9046 = vadd.f32 0.0, %v9045
    %v9047 = vpop.f32.mrb[0].mxu0
    %9048 = vmatprep.mubr.f32.mxu0 0.0
    %9049 = vmatmul.mubr.f32.gmra.mrb[0].mxu0 %v4482
    %v9050 = vpop.f32.mrb[0].mxu0
    %v9051 = vadd.f32 0.0, %v9050
    %v9052 = vpop.f32.mrb[0].mxu0
    %9053 = vmatprep.mubr.f32.mxu0 0.0
    %9054 = vmatmul.mubr.f32.gmra.mrb[0].mxu0 %v4485
    %v9055 = vpop.f32.mrb[0].mxu0
    %v9056 = vadd.f32 0.0, %v9055
    %v9057 = vpop.f32.mrb[0].mxu0
    %9058 = vmatprep.mubr.f32.mxu0 0.0
    %9059 = vmatmul.mubr.f32.gmra.mrb[0].mxu0 %v4488
    %v9060 = vpop.f32.mrb[0].mxu0
    %v9061 = vadd.f32 0.0, %v9060
    %v9062 = vpop.f32.mrb[0].mxu0
    %9063 = vmatprep.mubr.f32.mxu0 0.0
    %9064 = vmatmul.mubr.f32.gmra.mrb[0].mxu0 %v4491
    %v9065 = vpop.f32.mrb[0].mxu0
    %v9066 = vadd.f32 0.0, %v9065
    %v9067 = vpop.f32.mrb[0].mxu0
    %9068 = vmatprep.mubr.f32.mxu0 0.0
    %9069 = vmatmul.mubr.f32.gmra.mrb[0].mxu0 %v4494
    %v9070 = vpop.f32.mrb[0].mxu0
    %v9071 = vadd.f32 0.0, %v9070
    %v9072 = vpop.f32.mrb[0].mxu0
    %9073 = vmatprep.mubr.f32.mxu0 0.0
    %9074 = vmatmul.mubr.f32.gmra.mrb[0].mxu0 %v4497
    %v9075 = vpop.f32.mrb[0].mxu0
    %v9076 = vadd.f32 0.0, %v9075
    %v9077 = vpop.f32.mrb[0].mxu0
    %9078 = vmatprep.mubr.f32.mxu0 0.0
    %9079 = vmatmul.mubr.f32.gmra.mrb[0].mxu0 %v4500
    %v9080 = vpop.f32.mrb[0].mxu0
    %v9081 = vadd.f32 0.0, %v9080
    %v9082 = vpop.f32.mrb[0].mxu0
    %9083 = vmatprep.mubr.f32.mxu0 0.0
    %9084 = vmatmul.mubr.f32.gmra.mrb[0].mxu0 %v4503
    %v9085 = vpop.f32.mrb[0].mxu0
    %v9086 = vadd.f32 0.0, %v9085
    %v9087 = vpop.f32.mrb[0].mxu0
    %9088 = vmatprep.mubr.f32.mxu0 0.0
    %9089 = vmatmul.mubr.f32.gmra.mrb[0].mxu0 %v4506
    %v9090 = vpop.f32.mrb[0].mxu0
    %v9091 = vadd.f32 0.0, %v9090
    %v9092 = vpop.f32.mrb[0].mxu0
    %9093 = vmatprep.mubr.f32.mxu0 0.0
    %9094 = vmatmul.mubr.f32.gmra.mrb[0].mxu0 %v4509
    %v9095 = vpop.f32.mrb[0].mxu0
    %v9096 = vadd.f32 0.0, %v9095
    %v9097 = vpop.f32.mrb[0].mxu0
    %9098 = vdwg.mxu0
    %v9099 = vsub.f32 %v7688, %v8476
    %v9100 = vsub.f32 %v7691, %v8481
    %v9101 = vsub.f32 %v7696, %v8486
    %v9102 = vsub.f32 %v7699, %v8491
    %v9103 = vsub.f32 %v7704, %v8496
    %v9104 = vsub.f32 %v7707, %v8501
    %v9105 = vsub.f32 %v7712, %v8506
    %v9106 = vsub.f32 %v7715, %v8511
    %v9107 = vsub.f32 %v7720, %v8516
    %v9108 = vsub.f32 %v7723, %v8521
    %v9109 = vsub.f32 %v7728, %v8526
    %v9110 = vsub.f32 %v7731, %v8531
    %v9111 = vsub.f32 %v7736, %v8536
    %v9112 = vsub.f32 %v7739, %v8541
    %v9113 = vsub.f32 %v7744, %v8546
    %v9114 = vsub.f32 %v7747, %v8551
    %v9115 = vsub.f32 %v7752, %v8556
    %v9116 = vsub.f32 %v7755, %v8561
    %v9117 = vsub.f32 %v7760, %v8566
    %v9118 = vsub.f32 %v7763, %v8571
    %v9119 = vsub.f32 %v7768, %v8576
    %v9120 = vsub.f32 %v7771, %v8581
    %v9121 = vsub.f32 %v7776, %v8586
    %v9122 = vsub.f32 %v7779, %v8591
    %v9123 = vsub.f32 %v7784, %v8596
    %v9124 = vsub.f32 %v7787, %v8601
    %v9125 = vsub.f32 %v7792, %v8606
    %v9126 = vsub.f32 %v7795, %v8611
    %v9127 = vsub.f32 %v7800, %v8616
    %v9128 = vsub.f32 %v7803, %v8621
    %v9129 = vsub.f32 %v7808, %v8626
    %v9130 = vsub.f32 %v7811, %v8631
    %v9131 = vsub.f32 %v7816, %v8636
    %v9132 = vsub.f32 %v7819, %v8641
    %v9133 = vsub.f32 %v7824, %v8646
    %v9134 = vsub.f32 %v7827, %v8651
    %v9135 = vsub.f32 %v7832, %v8656
    %v9136 = vsub.f32 %v7835, %v8661
    %v9137 = vsub.f32 %v7840, %v8666
    %v9138 = vsub.f32 %v7843, %v8671
    %v9139 = vsub.f32 %v7848, %v8676
    %v9140 = vsub.f32 %v7851, %v8681
    %v9141 = vsub.f32 %v7856, %v8686
    %v9142 = vsub.f32 %v7859, %v8691
    %v9143 = vsub.f32 %v7864, %v8696
    %v9144 = vsub.f32 %v7867, %v8701
    %v9145 = vsub.f32 %v7872, %v8706
    %v9146 = vsub.f32 %v7875, %v8711
    %v9147 = vsub.f32 %v7880, %v8716
    %v9148 = vsub.f32 %v7883, %v8721
    %v9149 = vsub.f32 %v7888, %v8726
    %v9150 = vsub.f32 %v7891, %v8731
    %v9151 = vsub.f32 %v7896, %v8736
    %v9152 = vsub.f32 %v7899, %v8741
    %v9153 = vsub.f32 %v7904, %v8746
    %v9154 = vsub.f32 %v7907, %v8751
    %v9155 = vmul.f32 %v9099, %v8821
    %v9156 = vmul.f32 %v9100, %v8826
    %v9157 = vmul.f32 %v9101, %v8831
    %v9158 = vmul.f32 %v9102, %v8836
    %v9159 = vmul.f32 %v9103, %v8841
    %v9160 = vmul.f32 %v9104, %v8846
    %v9161 = vmul.f32 %v9105, %v8851
    %v9162 = vmul.f32 %v9106, %v8856
    %v9163 = vmul.f32 %v9107, %v8861
    %v9164 = vmul.f32 %v9108, %v8866
    %v9165 = vmul.f32 %v9109, %v8871
    %v9166 = vmul.f32 %v9110, %v8876
    %v9167 = vmul.f32 %v9111, %v8881
    %v9168 = vmul.f32 %v9112, %v8886
    %v9169 = vmul.f32 %v9113, %v8891
    %v9170 = vmul.f32 %v9114, %v8896
    %v9171 = vmul.f32 %v9115, %v8901
    %v9172 = vmul.f32 %v9116, %v8906
    %v9173 = vmul.f32 %v9117, %v8911
    %v9174 = vmul.f32 %v9118, %v8916
    %v9175 = vmul.f32 %v9119, %v8921
    %v9176 = vmul.f32 %v9120, %v8926
    %v9177 = vmul.f32 %v9121, %v8931
    %v9178 = vmul.f32 %v9122, %v8936
    %v9179 = vmul.f32 %v9123, %v8941
    %v9180 = vmul.f32 %v9124, %v8946
    %v9181 = vmul.f32 %v9125, %v8951
    %v9182 = vmul.f32 %v9126, %v8956
    %v9183 = vmul.f32 %v9127, %v8961
    %v9184 = vmul.f32 %v9128, %v8966
    %v9185 = vmul.f32 %v9129, %v8971
    %v9186 = vmul.f32 %v9130, %v8976
    %v9187 = vmul.f32 %v9131, %v8981
    %v9188 = vmul.f32 %v9132, %v8986
    %v9189 = vmul.f32 %v9133, %v8991
    %v9190 = vmul.f32 %v9134, %v8996
    %v9191 = vmul.f32 %v9135, %v9001
    %v9192 = vmul.f32 %v9136, %v9006
    %v9193 = vmul.f32 %v9137, %v9011
    %v9194 = vmul.f32 %v9138, %v9016
    %v9195 = vmul.f32 %v9139, %v9021
    %v9196 = vmul.f32 %v9140, %v9026
    %v9197 = vmul.f32 %v9141, %v9031
    %v9198 = vmul.f32 %v9142, %v9036
    %v9199 = vmul.f32 %v9143, %v9041
    %v9200 = vmul.f32 %v9144, %v9046
    %v9201 = vmul.f32 %v9145, %v9051
    %v9202 = vmul.f32 %v9146, %v9056
    %v9203 = vmul.f32 %v9147, %v9061
    %v9204 = vmul.f32 %v9148, %v9066
    %v9205 = vmul.f32 %v9149, %v9071
    %v9206 = vmul.f32 %v9150, %v9076
    %v9207 = vmul.f32 %v9151, %v9081
    %v9208 = vmul.f32 %v9152, %v9086
    %v9209 = vmul.f32 %v9153, %v9091
    %v9210 = vmul.f32 %v9154, %v9096
    %v9211 = vlaneseq
    %v9212 = vshrl.u32 %v9211, 7
    %v9213 = vsub.s32 4, %v9212
    %v9214 = vrot.slane %v68, %v9213
    %v9215 = vmul.f32 %v9155, %v9214
    %v9216 = vmul.f32 %v9156, %v9214
    %v9217 = vmul.f32 %v9157, %v9214
    %v9218 = vmul.f32 %v9158, %v9214
    %v9219 = vmul.f32 %v9159, %v9214
    %v9220 = vmul.f32 %v9160, %v9214
    %v9221 = vmul.f32 %v9161, %v9214
    %v9222 = vmul.f32 %v9162, %v9214
    %v9223 = vmul.f32 %v9163, %v9214
    %v9224 = vmul.f32 %v9164, %v9214
    %v9225 = vmul.f32 %v9165, %v9214
    %v9226 = vmul.f32 %v9166, %v9214
    %v9227 = vmul.f32 %v9167, %v9214
    %v9228 = vmul.f32 %v9168, %v9214
    %v9229 = vmul.f32 %v9169, %v9214
    %v9230 = vmul.f32 %v9170, %v9214
    %v9231 = vmul.f32 %v9171, %v9214
    %v9232 = vmul.f32 %v9172, %v9214
    %v9233 = vmul.f32 %v9173, %v9214
    %v9234 = vmul.f32 %v9174, %v9214
    %v9235 = vmul.f32 %v9175, %v9214
    %v9236 = vmul.f32 %v9176, %v9214
    %v9237 = vmul.f32 %v9177, %v9214
    %v9238 = vmul.f32 %v9178, %v9214
    %v9239 = vmul.f32 %v9179, %v9214
    %v9240 = vmul.f32 %v9180, %v9214
    %v9241 = vmul.f32 %v9181, %v9214
    %v9242 = vmul.f32 %v9182, %v9214
    %v9243 = vmul.f32 %v9183, %v9214
    %v9244 = vmul.f32 %v9184, %v9214
    %v9245 = vmul.f32 %v9185, %v9214
    %v9246 = vmul.f32 %v9186, %v9214
    %v9247 = vmul.f32 %v9187, %v9214
    %v9248 = vmul.f32 %v9188, %v9214
    %v9249 = vmul.f32 %v9189, %v9214
    %v9250 = vmul.f32 %v9190, %v9214
    %v9251 = vmul.f32 %v9191, %v9214
    %v9252 = vmul.f32 %v9192, %v9214
    %v9253 = vmul.f32 %v9193, %v9214
    %v9254 = vmul.f32 %v9194, %v9214
    %v9255 = vmul.f32 %v9195, %v9214
    %v9256 = vmul.f32 %v9196, %v9214
    %v9257 = vmul.f32 %v9197, %v9214
    %v9258 = vmul.f32 %v9198, %v9214
    %v9259 = vmul.f32 %v9199, %v9214
    %v9260 = vmul.f32 %v9200, %v9214
    %v9261 = vmul.f32 %v9201, %v9214
    %v9262 = vmul.f32 %v9202, %v9214
    %v9263 = vmul.f32 %v9203, %v9214
    %v9264 = vmul.f32 %v9204, %v9214
    %v9265 = vmul.f32 %v9205, %v9214
    %v9266 = vmul.f32 %v9206, %v9214
    %v9267 = vmul.f32 %v9207, %v9214
    %v9268 = vmul.f32 %v9208, %v9214
    %v9269 = vmul.f32 %v9209, %v9214
    %v9270 = vmul.f32 %v9210, %v9214
    %v9271 = vlaneseq
    %v9272 = vshrl.u32 %v9271, 7
    %v9273 = vsub.s32 5, %v9272
    %v9274 = vrot.slane %v68, %v9273
    %v9275 = vadd.f32 %v9215, %v9274
    %v9276 = vadd.f32 %v9216, %v9274
    %v9277 = vadd.f32 %v9217, %v9274
    %v9278 = vadd.f32 %v9218, %v9274
    %v9279 = vadd.f32 %v9219, %v9274
    %v9280 = vadd.f32 %v9220, %v9274
    %v9281 = vadd.f32 %v9221, %v9274
    %v9282 = vadd.f32 %v9222, %v9274
    %v9283 = vadd.f32 %v9223, %v9274
    %v9284 = vadd.f32 %v9224, %v9274
    %v9285 = vadd.f32 %v9225, %v9274
    %v9286 = vadd.f32 %v9226, %v9274
    %v9287 = vadd.f32 %v9227, %v9274
    %v9288 = vadd.f32 %v9228, %v9274
    %v9289 = vadd.f32 %v9229, %v9274
    %v9290 = vadd.f32 %v9230, %v9274
    %v9291 = vadd.f32 %v9231, %v9274
    %v9292 = vadd.f32 %v9232, %v9274
    %v9293 = vadd.f32 %v9233, %v9274
    %v9294 = vadd.f32 %v9234, %v9274
    %v9295 = vadd.f32 %v9235, %v9274
    %v9296 = vadd.f32 %v9236, %v9274
    %v9297 = vadd.f32 %v9237, %v9274
    %v9298 = vadd.f32 %v9238, %v9274
    %v9299 = vadd.f32 %v9239, %v9274
    %v9300 = vadd.f32 %v9240, %v9274
    %v9301 = vadd.f32 %v9241, %v9274
    %v9302 = vadd.f32 %v9242, %v9274
    %v9303 = vadd.f32 %v9243, %v9274
    %v9304 = vadd.f32 %v9244, %v9274
    %v9305 = vadd.f32 %v9245, %v9274
    %v9306 = vadd.f32 %v9246, %v9274
    %v9307 = vadd.f32 %v9247, %v9274
    %v9308 = vadd.f32 %v9248, %v9274
    %v9309 = vadd.f32 %v9249, %v9274
    %v9310 = vadd.f32 %v9250, %v9274
    %v9311 = vadd.f32 %v9251, %v9274
    %v9312 = vadd.f32 %v9252, %v9274
    %v9313 = vadd.f32 %v9253, %v9274
    %v9314 = vadd.f32 %v9254, %v9274
    %v9315 = vadd.f32 %v9255, %v9274
    %v9316 = vadd.f32 %v9256, %v9274
    %v9317 = vadd.f32 %v9257, %v9274
    %v9318 = vadd.f32 %v9258, %v9274
    %v9319 = vadd.f32 %v9259, %v9274
    %v9320 = vadd.f32 %v9260, %v9274
    %v9321 = vadd.f32 %v9261, %v9274
    %v9322 = vadd.f32 %v9262, %v9274
    %v9323 = vadd.f32 %v9263, %v9274
    %v9324 = vadd.f32 %v9264, %v9274
    %v9325 = vadd.f32 %v9265, %v9274
    %v9326 = vadd.f32 %v9266, %v9274
    %v9327 = vadd.f32 %v9267, %v9274
    %v9328 = vadd.f32 %v9268, %v9274
    %v9329 = vadd.f32 %v9269, %v9274
    %v9330 = vadd.f32 %v9270, %v9274
    %v9331 = vunpack.c.l.bf16 %v5489
    %v9332 = vunpack.c.l.bf16 %v5490
    %v9333 = vunpack.c.l.bf16 %v5491
    %v9334 = vunpack.c.l.bf16 %v5492
    %v9335 = vunpack.c.l.bf16 %v5493
    %v9336 = vunpack.c.l.bf16 %v5494
    %v9337 = vunpack.c.l.bf16 %v5495
    %v9338 = vunpack.c.l.bf16 %v5496
    %v9339 = vunpack.c.l.bf16 %v5497
    %v9340 = vunpack.c.l.bf16 %v5498
    %v9341 = vunpack.c.l.bf16 %v5499
    %v9342 = vunpack.c.l.bf16 %v5500
    %v9343 = vunpack.c.l.bf16 %v5501
    %v9344 = vunpack.c.l.bf16 %v5502
    %v9345 = vunpack.c.l.bf16 %v5503
    %v9346 = vunpack.c.l.bf16 %v5504
    %v9347 = vunpack.c.l.bf16 %v5505
    %v9348 = vunpack.c.l.bf16 %v5506
    %v9349 = vunpack.c.l.bf16 %v5507
    %v9350 = vunpack.c.l.bf16 %v5508
    %v9351 = vunpack.c.l.bf16 %v5509
    %v9352 = vunpack.c.l.bf16 %v5510
    %v9353 = vunpack.c.l.bf16 %v5511
    %v9354 = vunpack.c.l.bf16 %v5512
    %v9355 = vunpack.c.l.bf16 %v5513
    %v9356 = vunpack.c.l.bf16 %v5514
    %v9357 = vunpack.c.l.bf16 %v5515
    %v9358 = vunpack.c.l.bf16 %v5516
    %v9359 = vunpack.c.l.bf16 %v5517
    %v9360 = vunpack.c.l.bf16 %v5518
    %v9361 = vunpack.c.l.bf16 %v5519
    %v9362 = vunpack.c.l.bf16 %v5520
    %v9363 = vunpack.c.l.bf16 %v5521
    %v9364 = vunpack.c.l.bf16 %v5522
    %v9365 = vunpack.c.l.bf16 %v5523
    %v9366 = vunpack.c.l.bf16 %v5524
    %v9367 = vunpack.c.l.bf16 %v5525
    %v9368 = vunpack.c.l.bf16 %v5526
    %v9369 = vunpack.c.l.bf16 %v5527
    %v9370 = vunpack.c.l.bf16 %v5528
    %v9371 = vunpack.c.l.bf16 %v5529
    %v9372 = vunpack.c.l.bf16 %v5530
    %v9373 = vunpack.c.l.bf16 %v5531
    %v9374 = vunpack.c.l.bf16 %v5532
    %v9375 = vunpack.c.l.bf16 %v5533
    %v9376 = vunpack.c.l.bf16 %v5534
    %v9377 = vunpack.c.l.bf16 %v5535
    %v9378 = vunpack.c.l.bf16 %v5536
    %v9379 = vunpack.c.l.bf16 %v5537
    %v9380 = vunpack.c.l.bf16 %v5538
    %v9381 = vunpack.c.l.bf16 %v5539
    %v9382 = vunpack.c.l.bf16 %v5540
    %v9383 = vunpack.c.l.bf16 %v5541
    %v9384 = vunpack.c.l.bf16 %v5542
    %v9385 = vunpack.c.l.bf16 %v5543
    %v9386 = vunpack.c.l.bf16 %v5544
    %9387 = vmatprep.subr.mxu0 0.0
    %9388 = vmatpush1.msra.mxu0 %v9331
    %9389 = vmatprep.subr.mxu0 0.0
    %9390 = vmatpush1.msra.mxu0 %v9332
    %9391 = vmatprep.subr.mxu0 0.0
    %9392 = vmatpush1.msra.mxu0 %v9333
    %9393 = vmatprep.subr.mxu0 0.0
    %9394 = vmatpush1.msra.mxu0 %v9334
    %9395 = vmatprep.subr.mxu0 0.0
    %9396 = vmatpush1.msra.mxu0 %v9335
    %9397 = vmatprep.subr.mxu0 0.0
    %9398 = vmatpush1.msra.mxu0 %v9336
    %9399 = vmatprep.subr.mxu0 0.0
    %9400 = vmatpush1.msra.mxu0 %v9337
    %9401 = vmatprep.subr.mxu0 0.0
    %9402 = vmatpush1.msra.mxu0 %v9338
    %9403 = vmatprep.subr.mxu0 0.0
    %9404 = vmatpush1.msra.mxu0 %v9339
    %9405 = vmatprep.subr.mxu0 0.0
    %9406 = vmatpush1.msra.mxu0 %v9340
    %9407 = vmatprep.subr.mxu0 0.0
    %9408 = vmatpush1.msra.mxu0 %v9341
    %9409 = vmatprep.subr.mxu0 0.0
    %9410 = vmatpush1.msra.mxu0 %v9342
    %9411 = vmatprep.subr.mxu0 0.0
    %9412 = vmatpush1.msra.mxu0 %v9343
    %9413 = vmatprep.subr.mxu0 0.0
    %9414 = vmatpush1.msra.mxu0 %v9344
    %9415 = vmatprep.subr.mxu0 0.0
    %9416 = vmatpush1.msra.mxu0 %v9345
    %9417 = vmatprep.subr.mxu0 0.0
    %9418 = vmatpush1.msra.mxu0 %v9346
    %9419 = vmatprep.subr.mxu0 0.0
    %9420 = vmatpush1.msra.mxu0 %v9347
    %9421 = vmatprep.subr.mxu0 0.0
    %9422 = vmatpush1.msra.mxu0 %v9348
    %9423 = vmatprep.subr.mxu0 0.0
    %9424 = vmatpush1.msra.mxu0 %v9349
    %9425 = vmatprep.subr.mxu0 0.0
    %9426 = vmatpush1.msra.mxu0 %v9350
    %9427 = vmatprep.subr.mxu0 0.0
    %9428 = vmatpush1.msra.mxu0 %v9351
    %9429 = vmatprep.subr.mxu0 0.0
    %9430 = vmatpush1.msra.mxu0 %v9352
    %9431 = vmatprep.subr.mxu0 0.0
    %9432 = vmatpush1.msra.mxu0 %v9353
    %9433 = vmatprep.subr.mxu0 0.0
    %9434 = vmatpush1.msra.mxu0 %v9354
    %9435 = vmatprep.subr.mxu0 0.0
    %9436 = vmatpush1.msra.mxu0 %v9355
    %9437 = vmatprep.subr.mxu0 0.0
    %9438 = vmatpush1.msra.mxu0 %v9356
    %9439 = vmatprep.subr.mxu0 0.0
    %9440 = vmatpush1.msra.mxu0 %v9357
    %9441 = vmatprep.subr.mxu0 0.0
    %9442 = vmatpush1.msra.mxu0 %v9358
    %9443 = vmatprep.subr.mxu0 0.0
    %9444 = vmatpush1.msra.mxu0 %v9359
    %9445 = vmatprep.subr.mxu0 0.0
    %9446 = vmatpush1.msra.mxu0 %v9360
    %9447 = vmatprep.subr.mxu0 0.0
    %9448 = vmatpush1.msra.mxu0 %v9361
    %9449 = vmatprep.subr.mxu0 0.0
    %9450 = vmatpush1.msra.mxu0 %v9362
    %9451 = vmatprep.mubr.f32.mxu0 %v121
    %9452 = vmatmul.mubr.f32.gmra.mrb[0].mxu0 %v120
    %v9453 = vpop.f32.mrb[0].mxu0
    %v9454 = vadd.f32 0.0, %v9453
    %v9455 = vpop.f32.mrb[0].mxu0
    %9456 = vdwg.mxu0
    %9457 = vmatprep.subr.mxu0 0.0
    %9458 = vmatpush1.msra.mxu0 %v9363
    %9459 = vmatprep.subr.mxu0 0.0
    %9460 = vmatpush1.msra.mxu0 %v9364
    %9461 = vmatprep.subr.mxu0 0.0
    %9462 = vmatpush1.msra.mxu0 %v9365
    %9463 = vmatprep.subr.mxu0 0.0
    %9464 = vmatpush1.msra.mxu0 %v9366
    %9465 = vmatprep.subr.mxu0 0.0
    %9466 = vmatpush1.msra.mxu0 %v9367
    %9467 = vmatprep.subr.mxu0 0.0
    %9468 = vmatpush1.msra.mxu0 %v9368
    %9469 = vmatprep.subr.mxu0 0.0
    %9470 = vmatpush1.msra.mxu0 %v9369
    %9471 = vmatprep.subr.mxu0 0.0
    %9472 = vmatpush1.msra.mxu0 %v9370
    %9473 = vmatprep.subr.mxu0 0.0
    %9474 = vmatpush1.msra.mxu0 %v9371
    %9475 = vmatprep.subr.mxu0 0.0
    %9476 = vmatpush1.msra.mxu0 %v9372
    %9477 = vmatprep.subr.mxu0 0.0
    %9478 = vmatpush1.msra.mxu0 %v9373
    %9479 = vmatprep.subr.mxu0 0.0
    %9480 = vmatpush1.msra.mxu0 %v9374
    %9481 = vmatprep.subr.mxu0 0.0
    %9482 = vmatpush1.msra.mxu0 %v9375
    %9483 = vmatprep.subr.mxu0 0.0
    %9484 = vmatpush1.msra.mxu0 %v9376
    %9485 = vmatprep.subr.mxu0 0.0
    %9486 = vmatpush1.msra.mxu0 %v9377
    %9487 = vmatprep.subr.mxu0 0.0
    %9488 = vmatpush1.msra.mxu0 %v9378
    %9489 = vmatprep.subr.mxu0 0.0
    %9490 = vmatpush1.msra.mxu0 %v9379
    %9491 = vmatprep.subr.mxu0 0.0
    %9492 = vmatpush1.msra.mxu0 %v9380
    %9493 = vmatprep.subr.mxu0 0.0
    %9494 = vmatpush1.msra.mxu0 %v9381
    %9495 = vmatprep.subr.mxu0 0.0
    %9496 = vmatpush1.msra.mxu0 %v9382
    %9497 = vmatprep.subr.mxu0 0.0
    %9498 = vmatpush1.msra.mxu0 %v9383
    %9499 = vmatprep.subr.mxu0 0.0
    %9500 = vmatpush1.msra.mxu0 %v9384
    %9501 = vmatprep.subr.mxu0 0.0
    %9502 = vmatpush1.msra.mxu0 %v9385
    %9503 = vmatprep.subr.mxu0 0.0
    %9504 = vmatpush1.msra.mxu0 %v9386
    %9505 = vmatprep.subr.mxu0 0.0
    %9506 = vmatpush1.msra.mxu0 0.0
    %9507 = vmatprep.subr.mxu0 0.0
    %9508 = vmatpush1.msra.mxu0 0.0
    %9509 = vmatprep.subr.mxu0 0.0
    %9510 = vmatpush1.msra.mxu0 0.0
    %9511 = vmatprep.subr.mxu0 0.0
    %9512 = vmatpush1.msra.mxu0 0.0
    %9513 = vmatprep.subr.mxu0 0.0
    %9514 = vmatpush1.msra.mxu0 0.0
    %9515 = vmatprep.subr.mxu0 0.0
    %9516 = vmatpush1.msra.mxu0 0.0
    %9517 = vmatprep.subr.mxu0 0.0
    %9518 = vmatpush1.msra.mxu0 0.0
    %9519 = vmatprep.subr.mxu0 0.0
    %9520 = vmatpush1.msra.mxu0 0.0
    %9521 = vmatprep.mubr.f32.mxu0 %v3840
    %9522 = vmatmul.mubr.f32.gmra.mrb[0].mxu0 %v122
    %v9523 = vpop.f32.mrb[0].mxu0
    %v9524 = vadd.f32 %v9454, %v9523
    %v9525 = vpop.f32.mrb[0].mxu0
    %9526 = vdwg.mxu0
    %v9527 = vmul.f32 %v9524, 0.020408163
    %v9528 = vpack.c.bf16 %v9527, %v9527
    %v9529 = vld [vmem:[%s5] sm:$0xf]
    %v9530 = vld [vmem:[%s5 + $0x4] sm:$0xf]
    %v9531 = vld [vmem:[%s5 + $0x8] sm:$0xf]
    %v9532 = vld [vmem:[%s5 + $0xc] sm:$0xf]
    %v9533 = vld [vmem:[%s5 + $0x10] sm:$0xf]
    %v9534 = vld [vmem:[%s5 + $0x14] sm:$0xf]
    %v9535 = vld [vmem:[%s5 + $0x18] sm:$0xf]
    %v9536 = vld [vmem:[%s5 + $0x1c] sm:$0xf]
    %v9537 = vld [vmem:[%s5 + $0x20] sm:$0xf]
    %v9538 = vld [vmem:[%s5 + $0x24] sm:$0xf]
    %v9539 = vld [vmem:[%s5 + $0x28] sm:$0xf]
    %v9540 = vld [vmem:[%s5 + $0x2c] sm:$0xf]
    %v9541 = vld [vmem:[%s5 + $0x30] sm:$0xf]
    %v9542 = vld [vmem:[%s5 + $0x34] sm:$0xf]
    %v9543 = vld [vmem:[%s5 + $0x38] sm:$0xf]
    %v9544 = vld [vmem:[%s5 + $0x3c] sm:$0xf]
    %v9545 = vlaneseq
    %v9546 = vshrl.u32 %v9545, 7
    %v9547 = vsub.s32 3, %v9546
    %v9548 = vrot.slane %v74, %v9547
    %v9565 = vunpack.c.l.b16 %v9529
    %v9566 = vunpack.c.l.b16 %v9530
    %v9567 = vunpack.c.l.b16 %v9531
    %v9568 = vunpack.c.l.b16 %v9532
    %v9569 = vunpack.c.l.b16 %v9533
    %v9570 = vunpack.c.l.b16 %v9534
    %v9571 = vunpack.c.l.b16 %v9535
    %v9572 = vunpack.c.l.b16 %v9536
    %v9573 = vunpack.c.l.b16 %v9537
    %v9574 = vunpack.c.l.b16 %v9538
    %v9575 = vunpack.c.l.b16 %v9539
    %v9576 = vunpack.c.l.b16 %v9540
    %v9577 = vunpack.c.l.b16 %v9541
    %v9578 = vunpack.c.l.b16 %v9542
    %v9579 = vunpack.c.l.b16 %v9543
    %v9580 = vunpack.c.l.b16 %v9544
    %v9581 = vpack.c.b16 %v9566, %v9565
    %v9582 = vpack.c.b16 %v9568, %v9567
    %v9583 = vpack.c.b16 %v9570, %v9569
    %v9584 = vpack.c.b16 %v9572, %v9571
    %v9585 = vpack.c.b16 %v9574, %v9573
    %v9586 = vpack.c.b16 %v9576, %v9575
    %v9587 = vpack.c.b16 %v9578, %v9577
    %v9588 = vpack.c.b16 %v9580, %v9579
    %9597 = vmatprep.subr.bf16.mxu0 0
    %9598 = vmatpush1.bf16.msra.mxu0 %v9581
    %9599 = vmatprep.subr.bf16.mxu0 0
    %9600 = vmatpush1.bf16.msra.mxu0 %v9582
    %9601 = vmatprep.subr.bf16.mxu0 0
    %9602 = vmatpush1.bf16.msra.mxu0 %v9583
    %9603 = vmatprep.subr.bf16.mxu0 0
    %9604 = vmatpush1.bf16.msra.mxu0 %v9584
    %9605 = vmatprep.subr.bf16.mxu0 0
    %9606 = vmatpush1.bf16.msra.mxu0 %v9585
    %9607 = vmatprep.subr.bf16.mxu0 0
    %9608 = vmatpush1.bf16.msra.mxu0 %v9586
    %9609 = vmatprep.subr.bf16.mxu0 0
    %9610 = vmatpush1.bf16.msra.mxu0 %v9587
    %9611 = vmatprep.subr.bf16.mxu0 0
    %9612 = vmatpush1.bf16.msra.mxu0 %v9588
    %9613 = vmatprep.subr.bf16.mxu0 0
    %9614 = vmatpush1.bf16.msra.mxu0 0
    %9615 = vmatprep.subr.bf16.mxu0 0
    %9616 = vmatpush1.bf16.msra.mxu0 0
    %9617 = vmatprep.subr.bf16.mxu0 0
    %9618 = vmatpush1.bf16.msra.mxu0 0
    %9619 = vmatprep.subr.bf16.mxu0 0
    %9620 = vmatpush1.bf16.msra.mxu0 0
    %9621 = vmatprep.subr.bf16.mxu0 0
    %9622 = vmatpush1.bf16.msra.mxu0 0
    %9623 = vmatprep.subr.bf16.mxu0 0
    %9624 = vmatpush1.bf16.msra.mxu0 0
    %9625 = vmatprep.subr.bf16.mxu0 0
    %9626 = vmatpush1.bf16.msra.mxu0 0
    %9627 = vmatprep.subr.bf16.mxu0 0
    %9628 = vmatpush1.bf16.msra.mxu0 0
    %9629 = vmatprep.mubr.bf16.mxu0 0
    %9630 = vmatmul.mubr.bf16.gmra.mrb[0].mxu0 %v9528
    %v9631 = vpop.f32.mrb[0].mxu0
    %v9632 = vadd.f32 %v9548, %v9631
    %v9633 = vpop.f32.mrb[0].mxu0
    %v9634 = vpop.f32.mrb[0].mxu0
    %v9635 = vpop.f32.mrb[0].mxu0
    %9636 = vdwg.mxu0
    %v9637 = vmul.f32 %v9632, %v9632
    %v9639 = vsel %vm4260, %v9632, 0
    %v9642 = vsel %vm4260, %v9637, 0
    %9644 = vmatprep.subr.mxu0 0.0
    %9645 = vmatpush1.msra.mxu0 %v95
    %9646 = vmatprep.subr.mxu0 0.0
    %9647 = vmatpush1.msra.mxu0 %v96
    %9648 = vmatprep.subr.mxu0 0.0
    %9649 = vmatpush1.msra.mxu0 %v97
    %9650 = vmatprep.subr.mxu0 0.0
    %9651 = vmatpush1.msra.mxu0 %v98
    %9652 = vmatprep.subr.mxu0 0.0
    %9653 = vmatpush1.msra.mxu0 0.0
    %9654 = vmatprep.subr.mxu0 0.0
    %9655 = vmatpush1.msra.mxu0 0.0
    %9656 = vmatprep.subr.mxu0 0.0
    %9657 = vmatpush1.msra.mxu0 0.0
    %9658 = vmatprep.subr.mxu0 0.0
    %9659 = vmatpush1.msra.mxu0 0.0
    %9660 = vmatprep.subr.mxu0 0.0
    %9661 = vmatpush1.msra.mxu0 0.0
    %9662 = vmatprep.subr.mxu0 0.0
    %9663 = vmatpush1.msra.mxu0 0.0
    %9664 = vmatprep.subr.mxu0 0.0
    %9665 = vmatpush1.msra.mxu0 0.0
    %9666 = vmatprep.subr.mxu0 0.0
    %9667 = vmatpush1.msra.mxu0 0.0
    %9668 = vmatprep.subr.mxu0 0.0
    %9669 = vmatpush1.msra.mxu0 0.0
    %9670 = vmatprep.subr.mxu0 0.0
    %9671 = vmatpush1.msra.mxu0 0.0
    %9672 = vmatprep.subr.mxu0 0.0
    %9673 = vmatpush1.msra.mxu0 0.0
    %9674 = vmatprep.subr.mxu0 0.0
    %9675 = vmatpush1.msra.mxu0 0.0
    %9676 = vmatprep.subr.mxu0 0.0
    %9677 = vmatpush1.msra.mxu0 0.0
    %9678 = vmatprep.subr.mxu0 0.0
    %9679 = vmatpush1.msra.mxu0 0.0
    %9680 = vmatprep.subr.mxu0 0.0
    %9681 = vmatpush1.msra.mxu0 0.0
    %9682 = vmatprep.subr.mxu0 0.0
    %9683 = vmatpush1.msra.mxu0 0.0
    %9684 = vmatprep.subr.mxu0 0.0
    %9685 = vmatpush1.msra.mxu0 0.0
    %9686 = vmatprep.subr.mxu0 0.0
    %9687 = vmatpush1.msra.mxu0 0.0
    %9688 = vmatprep.subr.mxu0 0.0
    %9689 = vmatpush1.msra.mxu0 0.0
    %9690 = vmatprep.subr.mxu0 0.0
    %9691 = vmatpush1.msra.mxu0 0.0
    %9692 = vmatprep.subr.mxu0 0.0
    %9693 = vmatpush1.msra.mxu0 0.0
    %9694 = vmatprep.subr.mxu0 0.0
    %9695 = vmatpush1.msra.mxu0 0.0
    %9696 = vmatprep.subr.mxu0 0.0
    %9697 = vmatpush1.msra.mxu0 0.0
    %9698 = vmatprep.subr.mxu0 0.0
    %9699 = vmatpush1.msra.mxu0 0.0
    %9700 = vmatprep.subr.mxu0 0.0
    %9701 = vmatpush1.msra.mxu0 0.0
    %9702 = vmatprep.subr.mxu0 0.0
    %9703 = vmatpush1.msra.mxu0 0.0
    %9704 = vmatprep.subr.mxu0 0.0
    %9705 = vmatpush1.msra.mxu0 0.0
    %9706 = vmatprep.subr.mxu0 0.0
    %9707 = vmatpush1.msra.mxu0 0.0
    %9708 = vmatprep.mubr.f32.mxu0 0.0
    %9709 = vmatmul.mubr.f32.gmra.mrb[0].mxu0 %v9639
    %v9710 = vpop.f32.mrb[0].mxu0
    %v9711 = vadd.f32 0.0, %v9710
    %v9712 = vpop.f32.mrb[0].mxu0
    %9713 = vmatprep.mubr.f32.mxu0 0.0
    %9714 = vmatmul.mubr.f32.gmra.mrb[0].mxu0 %v9642
    %v9715 = vpop.f32.mrb[0].mxu0
    %v9716 = vadd.f32 0.0, %v9715
    %v9717 = vpop.f32.mrb[0].mxu0
    %9718 = vdwg.mxu0
    %v9719 = vmul.f32 %v9711, %v9711
    %v9720 = vsub.f32 %v9716, %v9719
    %v9721 = vmax.f32 %v9720, 0.0
    %v9722 = vadd.f32 %v9721, 1e-05
    %v9723 = vrsqrt.pop %v9722
    %v9725 = vsel %vm4260, %v9711, 0
    %v9728 = vsel %vm4260, %v9723, 0
    %9730 = vmatprep.subr.mxu0 0.0
    %9731 = vmatpush1.msra.mxu0 %v75
    %9732 = vmatprep.subr.mxu0 0.0
    %9733 = vmatpush1.msra.mxu0 %v76
    %9734 = vmatprep.subr.mxu0 0.0
    %9735 = vmatpush1.msra.mxu0 %v77
    %9736 = vmatprep.subr.mxu0 0.0
    %9737 = vmatpush1.msra.mxu0 %v78
    %9738 = vmatprep.subr.mxu0 0.0
    %9739 = vmatpush1.msra.mxu0 0.0
    %9740 = vmatprep.subr.mxu0 0.0
    %9741 = vmatpush1.msra.mxu0 0.0
    %9742 = vmatprep.subr.mxu0 0.0
    %9743 = vmatpush1.msra.mxu0 0.0
    %9744 = vmatprep.subr.mxu0 0.0
    %9745 = vmatpush1.msra.mxu0 0.0
    %9746 = vmatprep.subr.mxu0 0.0
    %9747 = vmatpush1.msra.mxu0 0.0
    %9748 = vmatprep.subr.mxu0 0.0
    %9749 = vmatpush1.msra.mxu0 0.0
    %9750 = vmatprep.subr.mxu0 0.0
    %9751 = vmatpush1.msra.mxu0 0.0
    %9752 = vmatprep.subr.mxu0 0.0
    %9753 = vmatpush1.msra.mxu0 0.0
    %9754 = vmatprep.subr.mxu0 0.0
    %9755 = vmatpush1.msra.mxu0 0.0
    %9756 = vmatprep.subr.mxu0 0.0
    %9757 = vmatpush1.msra.mxu0 0.0
    %9758 = vmatprep.subr.mxu0 0.0
    %9759 = vmatpush1.msra.mxu0 0.0
    %9760 = vmatprep.subr.mxu0 0.0
    %9761 = vmatpush1.msra.mxu0 0.0
    %9762 = vmatprep.subr.mxu0 0.0
    %9763 = vmatpush1.msra.mxu0 0.0
    %9764 = vmatprep.subr.mxu0 0.0
    %9765 = vmatpush1.msra.mxu0 0.0
    %9766 = vmatprep.subr.mxu0 0.0
    %9767 = vmatpush1.msra.mxu0 0.0
    %9768 = vmatprep.subr.mxu0 0.0
    %9769 = vmatpush1.msra.mxu0 0.0
    %9770 = vmatprep.subr.mxu0 0.0
    %9771 = vmatpush1.msra.mxu0 0.0
    %9772 = vmatprep.subr.mxu0 0.0
    %9773 = vmatpush1.msra.mxu0 0.0
    %9774 = vmatprep.subr.mxu0 0.0
    %9775 = vmatpush1.msra.mxu0 0.0
    %9776 = vmatprep.subr.mxu0 0.0
    %9777 = vmatpush1.msra.mxu0 0.0
    %9778 = vmatprep.subr.mxu0 0.0
    %9779 = vmatpush1.msra.mxu0 0.0
    %9780 = vmatprep.subr.mxu0 0.0
    %9781 = vmatpush1.msra.mxu0 0.0
    %9782 = vmatprep.subr.mxu0 0.0
    %9783 = vmatpush1.msra.mxu0 0.0
    %9784 = vmatprep.subr.mxu0 0.0
    %9785 = vmatpush1.msra.mxu0 0.0
    %9786 = vmatprep.subr.mxu0 0.0
    %9787 = vmatpush1.msra.mxu0 0.0
    %9788 = vmatprep.subr.mxu0 0.0
    %9789 = vmatpush1.msra.mxu0 0.0
    %9790 = vmatprep.subr.mxu0 0.0
    %9791 = vmatpush1.msra.mxu0 0.0
    %9792 = vmatprep.subr.mxu0 0.0
    %9793 = vmatpush1.msra.mxu0 0.0
    %9794 = vmatprep.mubr.f32.mxu0 0.0
    %9795 = vmatmul.mubr.f32.gmra.mrb[0].mxu0 %v9725
    %v9796 = vpop.f32.mrb[0].mxu0
    %v9797 = vadd.f32 0.0, %v9796
    %v9798 = vpop.f32.mrb[0].mxu0
    %9799 = vmatprep.mubr.f32.mxu0 0.0
    %9800 = vmatmul.mubr.f32.gmra.mrb[0].mxu0 %v9728
    %v9801 = vpop.f32.mrb[0].mxu0
    %v9802 = vadd.f32 0.0, %v9801
    %v9803 = vpop.f32.mrb[0].mxu0
    %9804 = vdwg.mxu0
    %v9805 = vsub.f32 %v9632, %v9797
    %v9806 = vmul.f32 %v9805, %v9802
    %v9807 = vlaneseq
    %v9808 = vshrl.u32 %v9807, 7
    %v9809 = vsub.s32 4, %v9808
    %v9810 = vrot.slane %v74, %v9809
    %v9811 = vmul.f32 %v9806, %v9810
    %v9812 = vlaneseq
    %v9813 = vshrl.u32 %v9812, 7
    %v9814 = vsub.s32 5, %v9813
    %v9815 = vrot.slane %v74, %v9814
    %v9816 = vadd.f32 %v9811, %v9815
    %v9817 = vmax.f32 %v9816, 0.0
    %v9818 = vpack.c.bf16 %v9817, %v9817
    %v9819 = vld [vmem:[%s6] sm:$0xf]
    %v9820 = vld [vmem:[%s6 + $0x4] sm:$0xf]
    %v9821 = vld [vmem:[%s6 + $0x8] sm:$0xf]
    %v9822 = vld [vmem:[%s6 + $0xc] sm:$0xf]
    %v9823 = vlaneseq
    %v9824 = vshrl.u32 %v9823, 7
    %v9825 = vsub.s32 6, %v9824
    %v9826 = vrot.slane %v68, %v9825
    %v9831 = vunpack.c.l.b16 %v9819
    %v9832 = vunpack.c.l.b16 %v9820
    %v9833 = vunpack.c.l.b16 %v9821
    %v9834 = vunpack.c.l.b16 %v9822
    %v9835 = vpack.c.b16 %v9832, %v9831
    %v9836 = vpack.c.b16 %v9834, %v9833
    %v9840 = vsel %vm4260, %v9818, 0
    %9842 = vmatprep.subr.bf16.mxu0 0
    %9843 = vmatpush1.bf16.msra.mxu0 %v9835
    %9844 = vmatprep.subr.bf16.mxu0 0
    %9845 = vmatpush1.bf16.msra.mxu0 %v9836
    %9846 = vmatprep.subr.bf16.mxu0 0
    %9847 = vmatpush1.bf16.msra.mxu0 0
    %9848 = vmatprep.subr.bf16.mxu0 0
    %9849 = vmatpush1.bf16.msra.mxu0 0
    %9850 = vmatprep.subr.bf16.mxu0 0
    %9851 = vmatpush1.bf16.msra.mxu0 0
    %9852 = vmatprep.subr.bf16.mxu0 0
    %9853 = vmatpush1.bf16.msra.mxu0 0
    %9854 = vmatprep.subr.bf16.mxu0 0
    %9855 = vmatpush1.bf16.msra.mxu0 0
    %9856 = vmatprep.subr.bf16.mxu0 0
    %9857 = vmatpush1.bf16.msra.mxu0 0
    %9858 = vmatprep.subr.bf16.mxu0 0
    %9859 = vmatpush1.bf16.msra.mxu0 0
    %9860 = vmatprep.subr.bf16.mxu0 0
    %9861 = vmatpush1.bf16.msra.mxu0 0
    %9862 = vmatprep.subr.bf16.mxu0 0
    %9863 = vmatpush1.bf16.msra.mxu0 0
    %9864 = vmatprep.subr.bf16.mxu0 0
    %9865 = vmatpush1.bf16.msra.mxu0 0
    %9866 = vmatprep.subr.bf16.mxu0 0
    %9867 = vmatpush1.bf16.msra.mxu0 0
    %9868 = vmatprep.subr.bf16.mxu0 0
    %9869 = vmatpush1.bf16.msra.mxu0 0
    %9870 = vmatprep.subr.bf16.mxu0 0
    %9871 = vmatpush1.bf16.msra.mxu0 0
    %9872 = vmatprep.subr.bf16.mxu0 0
    %9873 = vmatpush1.bf16.msra.mxu0 0
    %9874 = vmatprep.mubr.bf16.mxu0 0
    %9875 = vmatmul.mubr.bf16.gmra.mrb[0].mxu0 %v9840
    %v9876 = vpop.f32.mrb[0].mxu0
    %v9877 = vadd.f32 %v9826, %v9876
    %v9878 = vpop.f32.mrb[0].mxu0
    %v9879 = vpop.f32.mrb[0].mxu0
    %v9880 = vpop.f32.mrb[0].mxu0
    %9881 = vdwg.mxu0
    %v9882 = vmul.f32 %v9877, %v9877
    %9883 = vmatprep.subr.mxu0 0.0
    %9884 = vmatpush1.msra.mxu0 %v79
    %9885 = vmatprep.subr.mxu0 0.0
    %9886 = vmatpush1.msra.mxu0 %v80
    %9887 = vmatprep.subr.mxu0 0.0
    %9888 = vmatpush1.msra.mxu0 %v81
    %9889 = vmatprep.subr.mxu0 0.0
    %9890 = vmatpush1.msra.mxu0 %v82
    %9891 = vmatprep.subr.mxu0 0.0
    %9892 = vmatpush1.msra.mxu0 %v83
    %9893 = vmatprep.subr.mxu0 0.0
    %9894 = vmatpush1.msra.mxu0 %v84
    %9895 = vmatprep.subr.mxu0 0.0
    %9896 = vmatpush1.msra.mxu0 %v85
    %9897 = vmatprep.subr.mxu0 0.0
    %9898 = vmatpush1.msra.mxu0 %v86
    %9899 = vmatprep.subr.mxu0 0.0
    %9900 = vmatpush1.msra.mxu0 %v87
    %9901 = vmatprep.subr.mxu0 0.0
    %9902 = vmatpush1.msra.mxu0 %v88
    %9903 = vmatprep.subr.mxu0 0.0
    %9904 = vmatpush1.msra.mxu0 %v89
    %9905 = vmatprep.subr.mxu0 0.0
    %9906 = vmatpush1.msra.mxu0 %v90
    %9907 = vmatprep.subr.mxu0 0.0
    %9908 = vmatpush1.msra.mxu0 %v91
    %9909 = vmatprep.subr.mxu0 0.0
    %9910 = vmatpush1.msra.mxu0 %v92
    %9911 = vmatprep.subr.mxu0 0.0
    %9912 = vmatpush1.msra.mxu0 %v93
    %9913 = vmatprep.subr.mxu0 0.0
    %9914 = vmatpush1.msra.mxu0 %v94
    %9915 = vmatprep.subr.mxu0 0.0
    %9916 = vmatpush1.msra.mxu0 0.0
    %9917 = vmatprep.subr.mxu0 0.0
    %9918 = vmatpush1.msra.mxu0 0.0
    %9919 = vmatprep.subr.mxu0 0.0
    %9920 = vmatpush1.msra.mxu0 0.0
    %9921 = vmatprep.subr.mxu0 0.0
    %9922 = vmatpush1.msra.mxu0 0.0
    %9923 = vmatprep.subr.mxu0 0.0
    %9924 = vmatpush1.msra.mxu0 0.0
    %9925 = vmatprep.subr.mxu0 0.0
    %9926 = vmatpush1.msra.mxu0 0.0
    %9927 = vmatprep.subr.mxu0 0.0
    %9928 = vmatpush1.msra.mxu0 0.0
    %9929 = vmatprep.subr.mxu0 0.0
    %9930 = vmatpush1.msra.mxu0 0.0
    %9931 = vmatprep.subr.mxu0 0.0
    %9932 = vmatpush1.msra.mxu0 0.0
    %9933 = vmatprep.subr.mxu0 0.0
    %9934 = vmatpush1.msra.mxu0 0.0
    %9935 = vmatprep.subr.mxu0 0.0
    %9936 = vmatpush1.msra.mxu0 0.0
    %9937 = vmatprep.subr.mxu0 0.0
    %9938 = vmatpush1.msra.mxu0 0.0
    %9939 = vmatprep.subr.mxu0 0.0
    %9940 = vmatpush1.msra.mxu0 0.0
    %9941 = vmatprep.subr.mxu0 0.0
    %9942 = vmatpush1.msra.mxu0 0.0
    %9943 = vmatprep.subr.mxu0 0.0
    %9944 = vmatpush1.msra.mxu0 0.0
    %9945 = vmatprep.subr.mxu0 0.0
    %9946 = vmatpush1.msra.mxu0 0.0
    %9947 = vmatprep.mubr.f32.mxu0 0.0
    %9948 = vmatmul.mubr.f32.gmra.mrb[0].mxu0 %v9877
    %v9949 = vpop.f32.mrb[0].mxu0
    %v9950 = vadd.f32 0.0, %v9949
    %v9951 = vpop.f32.mrb[0].mxu0
    %9952 = vmatprep.mubr.f32.mxu0 0.0
    %9953 = vmatmul.mubr.f32.gmra.mrb[0].mxu0 %v9882
    %v9954 = vpop.f32.mrb[0].mxu0
    %v9955 = vadd.f32 0.0, %v9954
    %v9956 = vpop.f32.mrb[0].mxu0
    %9957 = vdwg.mxu0
    %v9958 = vmul.f32 %v9950, 0.25
    %v9959 = vmul.f32 %v9955, 0.25
    %v9960 = vmul.f32 %v9958, %v9958
    %v9961 = vsub.f32 %v9959, %v9960
    %v9962 = vmax.f32 %v9961, 0.0
    %v9963 = vadd.f32 %v9962, 1e-05
    %v9964 = vrsqrt.pop %v9963
    %v9966 = vsel %vm4260, %v9958, 0
    %v9969 = vsel %vm4260, %v9964, 0
    %9971 = vmatprep.subr.mxu0 0.0
    %9972 = vmatpush1.msra.mxu0 %v70
    %9973 = vmatprep.subr.mxu0 0.0
    %9974 = vmatpush1.msra.mxu0 %v71
    %9975 = vmatprep.subr.mxu0 0.0
    %9976 = vmatpush1.msra.mxu0 %v72
    %9977 = vmatprep.subr.mxu0 0.0
    %9978 = vmatpush1.msra.mxu0 %v73
    %9979 = vmatprep.subr.mxu0 0.0
    %9980 = vmatpush1.msra.mxu0 0.0
    %9981 = vmatprep.subr.mxu0 0.0
    %9982 = vmatpush1.msra.mxu0 0.0
    %9983 = vmatprep.subr.mxu0 0.0
    %9984 = vmatpush1.msra.mxu0 0.0
    %9985 = vmatprep.subr.mxu0 0.0
    %9986 = vmatpush1.msra.mxu0 0.0
    %9987 = vmatprep.subr.mxu0 0.0
    %9988 = vmatpush1.msra.mxu0 0.0
    %9989 = vmatprep.subr.mxu0 0.0
    %9990 = vmatpush1.msra.mxu0 0.0
    %9991 = vmatprep.subr.mxu0 0.0
    %9992 = vmatpush1.msra.mxu0 0.0
    %9993 = vmatprep.subr.mxu0 0.0
    %9994 = vmatpush1.msra.mxu0 0.0
    %9995 = vmatprep.subr.mxu0 0.0
    %9996 = vmatpush1.msra.mxu0 0.0
    %9997 = vmatprep.subr.mxu0 0.0
    %9998 = vmatpush1.msra.mxu0 0.0
    %9999 = vmatprep.subr.mxu0 0.0
    %10000 = vmatpush1.msra.mxu0 0.0
    %10001 = vmatprep.subr.mxu0 0.0
    %10002 = vmatpush1.msra.mxu0 0.0
    %10003 = vmatprep.subr.mxu0 0.0
    %10004 = vmatpush1.msra.mxu0 0.0
    %10005 = vmatprep.subr.mxu0 0.0
    %10006 = vmatpush1.msra.mxu0 0.0
    %10007 = vmatprep.subr.mxu0 0.0
    %10008 = vmatpush1.msra.mxu0 0.0
    %10009 = vmatprep.subr.mxu0 0.0
    %10010 = vmatpush1.msra.mxu0 0.0
    %10011 = vmatprep.subr.mxu0 0.0
    %10012 = vmatpush1.msra.mxu0 0.0
    %10013 = vmatprep.subr.mxu0 0.0
    %10014 = vmatpush1.msra.mxu0 0.0
    %10015 = vmatprep.subr.mxu0 0.0
    %10016 = vmatpush1.msra.mxu0 0.0
    %10017 = vmatprep.subr.mxu0 0.0
    %10018 = vmatpush1.msra.mxu0 0.0
    %10019 = vmatprep.subr.mxu0 0.0
    %10020 = vmatpush1.msra.mxu0 0.0
    %10021 = vmatprep.subr.mxu0 0.0
    %10022 = vmatpush1.msra.mxu0 0.0
    %10023 = vmatprep.subr.mxu0 0.0
    %10024 = vmatpush1.msra.mxu0 0.0
    %10025 = vmatprep.subr.mxu0 0.0
    %10026 = vmatpush1.msra.mxu0 0.0
    %10027 = vmatprep.subr.mxu0 0.0
    %10028 = vmatpush1.msra.mxu0 0.0
    %10029 = vmatprep.subr.mxu0 0.0
    %10030 = vmatpush1.msra.mxu0 0.0
    %10031 = vmatprep.subr.mxu0 0.0
    %10032 = vmatpush1.msra.mxu0 0.0
    %10033 = vmatprep.subr.mxu0 0.0
    %10034 = vmatpush1.msra.mxu0 0.0
    %10035 = vmatprep.mubr.f32.mxu0 0.0
    %10036 = vmatmul.mubr.f32.gmra.mrb[0].mxu0 %v9966
    %v10037 = vpop.f32.mrb[0].mxu0
    %v10038 = vadd.f32 0.0, %v10037
    %v10039 = vpop.f32.mrb[0].mxu0
    %10040 = vmatprep.mubr.f32.mxu0 0.0
    %10041 = vmatmul.mubr.f32.gmra.mrb[0].mxu0 %v9969
    %v10042 = vpop.f32.mrb[0].mxu0
    %v10043 = vadd.f32 0.0, %v10042
    %v10044 = vpop.f32.mrb[0].mxu0
    %10045 = vdwg.mxu0
    %v10046 = vsub.f32 %v9877, %v10038
    %v10047 = vmul.f32 %v10046, %v10043
    %v10048 = vlaneseq
    %v10049 = vshrl.u32 %v10048, 7
    %v10050 = vsub.s32 7, %v10049
    %v10051 = vrot.slane %v68, %v10050
    %v10052 = vmul.f32 %v10047, %v10051
    %v10053 = vlaneseq
    %v10054 = vshrl.u32 %v10053, 7
    %v10055 = vsub.s32 0, %v10054
    %v10056 = vrot.slane %v69, %v10055
    %v10057 = vadd.f32 %v10052, %v10056
    %10058 = vmatprep.subr.mxu0 0.0
    %10059 = vmatpush1.msra.mxu0 %v10057
    %10060 = vmatprep.subr.mxu0 0.0
    %10061 = vmatpush1.msra.mxu0 0.0
    %10062 = vmatprep.subr.mxu0 0.0
    %10063 = vmatpush1.msra.mxu0 0.0
    %10064 = vmatprep.subr.mxu0 0.0
    %10065 = vmatpush1.msra.mxu0 0.0
    %10066 = vmatprep.subr.mxu0 0.0
    %10067 = vmatpush1.msra.mxu0 0.0
    %10068 = vmatprep.subr.mxu0 0.0
    %10069 = vmatpush1.msra.mxu0 0.0
    %10070 = vmatprep.subr.mxu0 0.0
    %10071 = vmatpush1.msra.mxu0 0.0
    %10072 = vmatprep.subr.mxu0 0.0
    %10073 = vmatpush1.msra.mxu0 0.0
    %10074 = vmatprep.subr.mxu0 0.0
    %10075 = vmatpush1.msra.mxu0 0.0
    %10076 = vmatprep.subr.mxu0 0.0
    %10077 = vmatpush1.msra.mxu0 0.0
    %10078 = vmatprep.subr.mxu0 0.0
    %10079 = vmatpush1.msra.mxu0 0.0
    %10080 = vmatprep.subr.mxu0 0.0
    %10081 = vmatpush1.msra.mxu0 0.0
    %10082 = vmatprep.subr.mxu0 0.0
    %10083 = vmatpush1.msra.mxu0 0.0
    %10084 = vmatprep.subr.mxu0 0.0
    %10085 = vmatpush1.msra.mxu0 0.0
    %10086 = vmatprep.subr.mxu0 0.0
    %10087 = vmatpush1.msra.mxu0 0.0
    %10088 = vmatprep.subr.mxu0 0.0
    %10089 = vmatpush1.msra.mxu0 0.0
    %10090 = vmatprep.subr.mxu0 0.0
    %10091 = vmatpush1.msra.mxu0 0.0
    %10092 = vmatprep.subr.mxu0 0.0
    %10093 = vmatpush1.msra.mxu0 0.0
    %10094 = vmatprep.subr.mxu0 0.0
    %10095 = vmatpush1.msra.mxu0 0.0
    %10096 = vmatprep.subr.mxu0 0.0
    %10097 = vmatpush1.msra.mxu0 0.0
    %10098 = vmatprep.subr.mxu0 0.0
    %10099 = vmatpush1.msra.mxu0 0.0
    %10100 = vmatprep.subr.mxu0 0.0
    %10101 = vmatpush1.msra.mxu0 0.0
    %10102 = vmatprep.subr.mxu0 0.0
    %10103 = vmatpush1.msra.mxu0 0.0
    %10104 = vmatprep.subr.mxu0 0.0
    %10105 = vmatpush1.msra.mxu0 0.0
    %10106 = vmatprep.subr.mxu0 0.0
    %10107 = vmatpush1.msra.mxu0 0.0
    %10108 = vmatprep.subr.mxu0 0.0
    %10109 = vmatpush1.msra.mxu0 0.0
    %10110 = vmatprep.subr.mxu0 0.0
    %10111 = vmatpush1.msra.mxu0 0.0
    %10112 = vmatprep.subr.mxu0 0.0
    %10113 = vmatpush1.msra.mxu0 0.0
    %10114 = vmatprep.subr.mxu0 0.0
    %10115 = vmatpush1.msra.mxu0 0.0
    %10116 = vmatprep.subr.mxu0 0.0
    %10117 = vmatpush1.msra.mxu0 0.0
    %10118 = vmatprep.subr.mxu0 0.0
    %10119 = vmatpush1.msra.mxu0 0.0
    %10120 = vmatprep.subr.mxu0 0.0
    %10121 = vmatpush1.msra.mxu0 0.0
    %10122 = vmatprep.mubr.f32.mxu0 0.0
    %10123 = vmatmul.mubr.f32.gmra.mrb[0].mxu0 %v4344
    %v10124 = vpop.f32.mrb[0].mxu0
    %v10125 = vadd.f32 0.0, %v10124
    %v10126 = vpop.f32.mrb[0].mxu0
    %10127 = vmatprep.mubr.f32.mxu0 0.0
    %10128 = vmatmul.mubr.f32.gmra.mrb[0].mxu0 %v4347
    %v10129 = vpop.f32.mrb[0].mxu0
    %v10130 = vadd.f32 0.0, %v10129
    %v10131 = vpop.f32.mrb[0].mxu0
    %10132 = vmatprep.mubr.f32.mxu0 0.0
    %10133 = vmatmul.mubr.f32.gmra.mrb[0].mxu0 %v4350
    %v10134 = vpop.f32.mrb[0].mxu0
    %v10135 = vadd.f32 0.0, %v10134
    %v10136 = vpop.f32.mrb[0].mxu0
    %10137 = vmatprep.mubr.f32.mxu0 0.0
    %10138 = vmatmul.mubr.f32.gmra.mrb[0].mxu0 %v4353
    %v10139 = vpop.f32.mrb[0].mxu0
    %v10140 = vadd.f32 0.0, %v10139
    %v10141 = vpop.f32.mrb[0].mxu0
    %10142 = vmatprep.mubr.f32.mxu0 0.0
    %10143 = vmatmul.mubr.f32.gmra.mrb[0].mxu0 %v4356
    %v10144 = vpop.f32.mrb[0].mxu0
    %v10145 = vadd.f32 0.0, %v10144
    %v10146 = vpop.f32.mrb[0].mxu0
    %10147 = vmatprep.mubr.f32.mxu0 0.0
    %10148 = vmatmul.mubr.f32.gmra.mrb[0].mxu0 %v4359
    %v10149 = vpop.f32.mrb[0].mxu0
    %v10150 = vadd.f32 0.0, %v10149
    %v10151 = vpop.f32.mrb[0].mxu0
    %10152 = vmatprep.mubr.f32.mxu0 0.0
    %10153 = vmatmul.mubr.f32.gmra.mrb[0].mxu0 %v4362
    %v10154 = vpop.f32.mrb[0].mxu0
    %v10155 = vadd.f32 0.0, %v10154
    %v10156 = vpop.f32.mrb[0].mxu0
    %10157 = vmatprep.mubr.f32.mxu0 0.0
    %10158 = vmatmul.mubr.f32.gmra.mrb[0].mxu0 %v4365
    %v10159 = vpop.f32.mrb[0].mxu0
    %v10160 = vadd.f32 0.0, %v10159
    %v10161 = vpop.f32.mrb[0].mxu0
    %10162 = vmatprep.mubr.f32.mxu0 0.0
    %10163 = vmatmul.mubr.f32.gmra.mrb[0].mxu0 %v4368
    %v10164 = vpop.f32.mrb[0].mxu0
    %v10165 = vadd.f32 0.0, %v10164
    %v10166 = vpop.f32.mrb[0].mxu0
    %10167 = vmatprep.mubr.f32.mxu0 0.0
    %10168 = vmatmul.mubr.f32.gmra.mrb[0].mxu0 %v4371
    %v10169 = vpop.f32.mrb[0].mxu0
    %v10170 = vadd.f32 0.0, %v10169
    %v10171 = vpop.f32.mrb[0].mxu0
    %10172 = vmatprep.mubr.f32.mxu0 0.0
    %10173 = vmatmul.mubr.f32.gmra.mrb[0].mxu0 %v4374
    %v10174 = vpop.f32.mrb[0].mxu0
    %v10175 = vadd.f32 0.0, %v10174
    %v10176 = vpop.f32.mrb[0].mxu0
    %10177 = vmatprep.mubr.f32.mxu0 0.0
    %10178 = vmatmul.mubr.f32.gmra.mrb[0].mxu0 %v4377
    %v10179 = vpop.f32.mrb[0].mxu0
    %v10180 = vadd.f32 0.0, %v10179
    %v10181 = vpop.f32.mrb[0].mxu0
    %10182 = vmatprep.mubr.f32.mxu0 0.0
    %10183 = vmatmul.mubr.f32.gmra.mrb[0].mxu0 %v4380
    %v10184 = vpop.f32.mrb[0].mxu0
    %v10185 = vadd.f32 0.0, %v10184
    %v10186 = vpop.f32.mrb[0].mxu0
    %10187 = vmatprep.mubr.f32.mxu0 0.0
    %10188 = vmatmul.mubr.f32.gmra.mrb[0].mxu0 %v4383
    %v10189 = vpop.f32.mrb[0].mxu0
    %v10190 = vadd.f32 0.0, %v10189
    %v10191 = vpop.f32.mrb[0].mxu0
    %10192 = vmatprep.mubr.f32.mxu0 0.0
    %10193 = vmatmul.mubr.f32.gmra.mrb[0].mxu0 %v4386
    %v10194 = vpop.f32.mrb[0].mxu0
    %v10195 = vadd.f32 0.0, %v10194
    %v10196 = vpop.f32.mrb[0].mxu0
    %10197 = vmatprep.mubr.f32.mxu0 0.0
    %10198 = vmatmul.mubr.f32.gmra.mrb[0].mxu0 %v4389
    %v10199 = vpop.f32.mrb[0].mxu0
    %v10200 = vadd.f32 0.0, %v10199
    %v10201 = vpop.f32.mrb[0].mxu0
    %10202 = vmatprep.mubr.f32.mxu0 0.0
    %10203 = vmatmul.mubr.f32.gmra.mrb[0].mxu0 %v4392
    %v10204 = vpop.f32.mrb[0].mxu0
    %v10205 = vadd.f32 0.0, %v10204
    %v10206 = vpop.f32.mrb[0].mxu0
    %10207 = vmatprep.mubr.f32.mxu0 0.0
    %10208 = vmatmul.mubr.f32.gmra.mrb[0].mxu0 %v4395
    %v10209 = vpop.f32.mrb[0].mxu0
    %v10210 = vadd.f32 0.0, %v10209
    %v10211 = vpop.f32.mrb[0].mxu0
    %10212 = vmatprep.mubr.f32.mxu0 0.0
    %10213 = vmatmul.mubr.f32.gmra.mrb[0].mxu0 %v4398
    %v10214 = vpop.f32.mrb[0].mxu0
    %v10215 = vadd.f32 0.0, %v10214
    %v10216 = vpop.f32.mrb[0].mxu0
    %10217 = vmatprep.mubr.f32.mxu0 0.0
    %10218 = vmatmul.mubr.f32.gmra.mrb[0].mxu0 %v4401
    %v10219 = vpop.f32.mrb[0].mxu0
    %v10220 = vadd.f32 0.0, %v10219
    %v10221 = vpop.f32.mrb[0].mxu0
    %10222 = vmatprep.mubr.f32.mxu0 0.0
    %10223 = vmatmul.mubr.f32.gmra.mrb[0].mxu0 %v4404
    %v10224 = vpop.f32.mrb[0].mxu0
    %v10225 = vadd.f32 0.0, %v10224
    %v10226 = vpop.f32.mrb[0].mxu0
    %10227 = vmatprep.mubr.f32.mxu0 0.0
    %10228 = vmatmul.mubr.f32.gmra.mrb[0].mxu0 %v4407
    %v10229 = vpop.f32.mrb[0].mxu0
    %v10230 = vadd.f32 0.0, %v10229
    %v10231 = vpop.f32.mrb[0].mxu0
    %10232 = vmatprep.mubr.f32.mxu0 0.0
    %10233 = vmatmul.mubr.f32.gmra.mrb[0].mxu0 %v4410
    %v10234 = vpop.f32.mrb[0].mxu0
    %v10235 = vadd.f32 0.0, %v10234
    %v10236 = vpop.f32.mrb[0].mxu0
    %10237 = vmatprep.mubr.f32.mxu0 0.0
    %10238 = vmatmul.mubr.f32.gmra.mrb[0].mxu0 %v4413
    %v10239 = vpop.f32.mrb[0].mxu0
    %v10240 = vadd.f32 0.0, %v10239
    %v10241 = vpop.f32.mrb[0].mxu0
    %10242 = vmatprep.mubr.f32.mxu0 0.0
    %10243 = vmatmul.mubr.f32.gmra.mrb[0].mxu0 %v4416
    %v10244 = vpop.f32.mrb[0].mxu0
    %v10245 = vadd.f32 0.0, %v10244
    %v10246 = vpop.f32.mrb[0].mxu0
    %10247 = vmatprep.mubr.f32.mxu0 0.0
    %10248 = vmatmul.mubr.f32.gmra.mrb[0].mxu0 %v4419
    %v10249 = vpop.f32.mrb[0].mxu0
    %v10250 = vadd.f32 0.0, %v10249
    %v10251 = vpop.f32.mrb[0].mxu0
    %10252 = vmatprep.mubr.f32.mxu0 0.0
    %10253 = vmatmul.mubr.f32.gmra.mrb[0].mxu0 %v4422
    %v10254 = vpop.f32.mrb[0].mxu0
    %v10255 = vadd.f32 0.0, %v10254
    %v10256 = vpop.f32.mrb[0].mxu0
    %10257 = vmatprep.mubr.f32.mxu0 0.0
    %10258 = vmatmul.mubr.f32.gmra.mrb[0].mxu0 %v4425
    %v10259 = vpop.f32.mrb[0].mxu0
    %v10260 = vadd.f32 0.0, %v10259
    %v10261 = vpop.f32.mrb[0].mxu0
    %10262 = vmatprep.mubr.f32.mxu0 0.0
    %10263 = vmatmul.mubr.f32.gmra.mrb[0].mxu0 %v4428
    %v10264 = vpop.f32.mrb[0].mxu0
    %v10265 = vadd.f32 0.0, %v10264
    %v10266 = vpop.f32.mrb[0].mxu0
    %10267 = vmatprep.mubr.f32.mxu0 0.0
    %10268 = vmatmul.mubr.f32.gmra.mrb[0].mxu0 %v4431
    %v10269 = vpop.f32.mrb[0].mxu0
    %v10270 = vadd.f32 0.0, %v10269
    %v10271 = vpop.f32.mrb[0].mxu0
    %10272 = vmatprep.mubr.f32.mxu0 0.0
    %10273 = vmatmul.mubr.f32.gmra.mrb[0].mxu0 %v4434
    %v10274 = vpop.f32.mrb[0].mxu0
    %v10275 = vadd.f32 0.0, %v10274
    %v10276 = vpop.f32.mrb[0].mxu0
    %10277 = vmatprep.mubr.f32.mxu0 0.0
    %10278 = vmatmul.mubr.f32.gmra.mrb[0].mxu0 %v4437
    %v10279 = vpop.f32.mrb[0].mxu0
    %v10280 = vadd.f32 0.0, %v10279
    %v10281 = vpop.f32.mrb[0].mxu0
    %10282 = vmatprep.mubr.f32.mxu0 0.0
    %10283 = vmatmul.mubr.f32.gmra.mrb[0].mxu0 %v4440
    %v10284 = vpop.f32.mrb[0].mxu0
    %v10285 = vadd.f32 0.0, %v10284
    %v10286 = vpop.f32.mrb[0].mxu0
    %10287 = vmatprep.mubr.f32.mxu0 0.0
    %10288 = vmatmul.mubr.f32.gmra.mrb[0].mxu0 %v4443
    %v10289 = vpop.f32.mrb[0].mxu0
    %v10290 = vadd.f32 0.0, %v10289
    %v10291 = vpop.f32.mrb[0].mxu0
    %10292 = vmatprep.mubr.f32.mxu0 0.0
    %10293 = vmatmul.mubr.f32.gmra.mrb[0].mxu0 %v4446
    %v10294 = vpop.f32.mrb[0].mxu0
    %v10295 = vadd.f32 0.0, %v10294
    %v10296 = vpop.f32.mrb[0].mxu0
    %10297 = vmatprep.mubr.f32.mxu0 0.0
    %10298 = vmatmul.mubr.f32.gmra.mrb[0].mxu0 %v4449
    %v10299 = vpop.f32.mrb[0].mxu0
    %v10300 = vadd.f32 0.0, %v10299
    %v10301 = vpop.f32.mrb[0].mxu0
    %10302 = vmatprep.mubr.f32.mxu0 0.0
    %10303 = vmatmul.mubr.f32.gmra.mrb[0].mxu0 %v4452
    %v10304 = vpop.f32.mrb[0].mxu0
    %v10305 = vadd.f32 0.0, %v10304
    %v10306 = vpop.f32.mrb[0].mxu0
    %10307 = vmatprep.mubr.f32.mxu0 0.0
    %10308 = vmatmul.mubr.f32.gmra.mrb[0].mxu0 %v4455
    %v10309 = vpop.f32.mrb[0].mxu0
    %v10310 = vadd.f32 0.0, %v10309
    %v10311 = vpop.f32.mrb[0].mxu0
    %10312 = vmatprep.mubr.f32.mxu0 0.0
    %10313 = vmatmul.mubr.f32.gmra.mrb[0].mxu0 %v4458
    %v10314 = vpop.f32.mrb[0].mxu0
    %v10315 = vadd.f32 0.0, %v10314
    %v10316 = vpop.f32.mrb[0].mxu0
    %10317 = vmatprep.mubr.f32.mxu0 0.0
    %10318 = vmatmul.mubr.f32.gmra.mrb[0].mxu0 %v4461
    %v10319 = vpop.f32.mrb[0].mxu0
    %v10320 = vadd.f32 0.0, %v10319
    %v10321 = vpop.f32.mrb[0].mxu0
    %10322 = vmatprep.mubr.f32.mxu0 0.0
    %10323 = vmatmul.mubr.f32.gmra.mrb[0].mxu0 %v4464
    %v10324 = vpop.f32.mrb[0].mxu0
    %v10325 = vadd.f32 0.0, %v10324
    %v10326 = vpop.f32.mrb[0].mxu0
    %10327 = vmatprep.mubr.f32.mxu0 0.0
    %10328 = vmatmul.mubr.f32.gmra.mrb[0].mxu0 %v4467
    %v10329 = vpop.f32.mrb[0].mxu0
    %v10330 = vadd.f32 0.0, %v10329
    %v10331 = vpop.f32.mrb[0].mxu0
    %10332 = vmatprep.mubr.f32.mxu0 0.0
    %10333 = vmatmul.mubr.f32.gmra.mrb[0].mxu0 %v4470
    %v10334 = vpop.f32.mrb[0].mxu0
    %v10335 = vadd.f32 0.0, %v10334
    %v10336 = vpop.f32.mrb[0].mxu0
    %10337 = vmatprep.mubr.f32.mxu0 0.0
    %10338 = vmatmul.mubr.f32.gmra.mrb[0].mxu0 %v4473
    %v10339 = vpop.f32.mrb[0].mxu0
    %v10340 = vadd.f32 0.0, %v10339
    %v10341 = vpop.f32.mrb[0].mxu0
    %10342 = vmatprep.mubr.f32.mxu0 0.0
    %10343 = vmatmul.mubr.f32.gmra.mrb[0].mxu0 %v4476
    %v10344 = vpop.f32.mrb[0].mxu0
    %v10345 = vadd.f32 0.0, %v10344
    %v10346 = vpop.f32.mrb[0].mxu0
    %10347 = vmatprep.mubr.f32.mxu0 0.0
    %10348 = vmatmul.mubr.f32.gmra.mrb[0].mxu0 %v4479
    %v10349 = vpop.f32.mrb[0].mxu0
    %v10350 = vadd.f32 0.0, %v10349
    %v10351 = vpop.f32.mrb[0].mxu0
    %10352 = vmatprep.mubr.f32.mxu0 0.0
    %10353 = vmatmul.mubr.f32.gmra.mrb[0].mxu0 %v4482
    %v10354 = vpop.f32.mrb[0].mxu0
    %v10355 = vadd.f32 0.0, %v10354
    %v10356 = vpop.f32.mrb[0].mxu0
    %10357 = vmatprep.mubr.f32.mxu0 0.0
    %10358 = vmatmul.mubr.f32.gmra.mrb[0].mxu0 %v4485
    %v10359 = vpop.f32.mrb[0].mxu0
    %v10360 = vadd.f32 0.0, %v10359
    %v10361 = vpop.f32.mrb[0].mxu0
    %10362 = vmatprep.mubr.f32.mxu0 0.0
    %10363 = vmatmul.mubr.f32.gmra.mrb[0].mxu0 %v4488
    %v10364 = vpop.f32.mrb[0].mxu0
    %v10365 = vadd.f32 0.0, %v10364
    %v10366 = vpop.f32.mrb[0].mxu0
    %10367 = vmatprep.mubr.f32.mxu0 0.0
    %10368 = vmatmul.mubr.f32.gmra.mrb[0].mxu0 %v4491
    %v10369 = vpop.f32.mrb[0].mxu0
    %v10370 = vadd.f32 0.0, %v10369
    %v10371 = vpop.f32.mrb[0].mxu0
    %10372 = vmatprep.mubr.f32.mxu0 0.0
    %10373 = vmatmul.mubr.f32.gmra.mrb[0].mxu0 %v4494
    %v10374 = vpop.f32.mrb[0].mxu0
    %v10375 = vadd.f32 0.0, %v10374
    %v10376 = vpop.f32.mrb[0].mxu0
    %10377 = vmatprep.mubr.f32.mxu0 0.0
    %10378 = vmatmul.mubr.f32.gmra.mrb[0].mxu0 %v4497
    %v10379 = vpop.f32.mrb[0].mxu0
    %v10380 = vadd.f32 0.0, %v10379
    %v10381 = vpop.f32.mrb[0].mxu0
    %10382 = vmatprep.mubr.f32.mxu0 0.0
    %10383 = vmatmul.mubr.f32.gmra.mrb[0].mxu0 %v4500
    %v10384 = vpop.f32.mrb[0].mxu0
    %v10385 = vadd.f32 0.0, %v10384
    %v10386 = vpop.f32.mrb[0].mxu0
    %10387 = vmatprep.mubr.f32.mxu0 0.0
    %10388 = vmatmul.mubr.f32.gmra.mrb[0].mxu0 %v4503
    %v10389 = vpop.f32.mrb[0].mxu0
    %v10390 = vadd.f32 0.0, %v10389
    %v10391 = vpop.f32.mrb[0].mxu0
    %10392 = vmatprep.mubr.f32.mxu0 0.0
    %10393 = vmatmul.mubr.f32.gmra.mrb[0].mxu0 %v4506
    %v10394 = vpop.f32.mrb[0].mxu0
    %v10395 = vadd.f32 0.0, %v10394
    %v10396 = vpop.f32.mrb[0].mxu0
    %10397 = vmatprep.mubr.f32.mxu0 0.0
    %10398 = vmatmul.mubr.f32.gmra.mrb[0].mxu0 %v4509
    %v10399 = vpop.f32.mrb[0].mxu0
    %v10400 = vadd.f32 0.0, %v10399
    %v10401 = vpop.f32.mrb[0].mxu0
    %10402 = vdwg.mxu0
    %v10403 = vadd.f32 %v9275, %v10125
    %v10404 = vadd.f32 %v9276, %v10130
    %v10405 = vadd.f32 %v9277, %v10135
    %v10406 = vadd.f32 %v9278, %v10140
    %v10407 = vadd.f32 %v9279, %v10145
    %v10408 = vadd.f32 %v9280, %v10150
    %v10409 = vadd.f32 %v9281, %v10155
    %v10410 = vadd.f32 %v9282, %v10160
    %v10411 = vadd.f32 %v9283, %v10165
    %v10412 = vadd.f32 %v9284, %v10170
    %v10413 = vadd.f32 %v9285, %v10175
    %v10414 = vadd.f32 %v9286, %v10180
    %v10415 = vadd.f32 %v9287, %v10185
    %v10416 = vadd.f32 %v9288, %v10190
    %v10417 = vadd.f32 %v9289, %v10195
    %v10418 = vadd.f32 %v9290, %v10200
    %v10419 = vadd.f32 %v9291, %v10205
    %v10420 = vadd.f32 %v9292, %v10210
    %v10421 = vadd.f32 %v9293, %v10215
    %v10422 = vadd.f32 %v9294, %v10220
    %v10423 = vadd.f32 %v9295, %v10225
    %v10424 = vadd.f32 %v9296, %v10230
    %v10425 = vadd.f32 %v9297, %v10235
    %v10426 = vadd.f32 %v9298, %v10240
    %v10427 = vadd.f32 %v9299, %v10245
    %v10428 = vadd.f32 %v9300, %v10250
    %v10429 = vadd.f32 %v9301, %v10255
    %v10430 = vadd.f32 %v9302, %v10260
    %v10431 = vadd.f32 %v9303, %v10265
    %v10432 = vadd.f32 %v9304, %v10270
    %v10433 = vadd.f32 %v9305, %v10275
    %v10434 = vadd.f32 %v9306, %v10280
    %v10435 = vadd.f32 %v9307, %v10285
    %v10436 = vadd.f32 %v9308, %v10290
    %v10437 = vadd.f32 %v9309, %v10295
    %v10438 = vadd.f32 %v9310, %v10300
    %v10439 = vadd.f32 %v9311, %v10305
    %v10440 = vadd.f32 %v9312, %v10310
    %v10441 = vadd.f32 %v9313, %v10315
    %v10442 = vadd.f32 %v9314, %v10320
    %v10443 = vadd.f32 %v9315, %v10325
    %v10444 = vadd.f32 %v9316, %v10330
    %v10445 = vadd.f32 %v9317, %v10335
    %v10446 = vadd.f32 %v9318, %v10340
    %v10447 = vadd.f32 %v9319, %v10345
    %v10448 = vadd.f32 %v9320, %v10350
    %v10449 = vadd.f32 %v9321, %v10355
    %v10450 = vadd.f32 %v9322, %v10360
    %v10451 = vadd.f32 %v9323, %v10365
    %v10452 = vadd.f32 %v9324, %v10370
    %v10453 = vadd.f32 %v9325, %v10375
    %v10454 = vadd.f32 %v9326, %v10380
    %v10455 = vadd.f32 %v9327, %v10385
    %v10456 = vadd.f32 %v9328, %v10390
    %v10457 = vadd.f32 %v9329, %v10395
    %v10458 = vadd.f32 %v9330, %v10400
    %v10459 = vsub.f32 0.0, %v10403
    %v10460 = vsub.f32 0.0, %v10404
    %v10461 = vsub.f32 0.0, %v10405
    %v10462 = vsub.f32 0.0, %v10406
    %v10463 = vsub.f32 0.0, %v10407
    %v10464 = vsub.f32 0.0, %v10408
    %v10465 = vsub.f32 0.0, %v10409
    %v10466 = vsub.f32 0.0, %v10410
    %v10467 = vsub.f32 0.0, %v10411
    %v10468 = vsub.f32 0.0, %v10412
    %v10469 = vsub.f32 0.0, %v10413
    %v10470 = vsub.f32 0.0, %v10414
    %v10471 = vsub.f32 0.0, %v10415
    %v10472 = vsub.f32 0.0, %v10416
    %v10473 = vsub.f32 0.0, %v10417
    %v10474 = vsub.f32 0.0, %v10418
    %v10475 = vsub.f32 0.0, %v10419
    %v10476 = vsub.f32 0.0, %v10420
    %v10477 = vsub.f32 0.0, %v10421
    %v10478 = vsub.f32 0.0, %v10422
    %v10479 = vsub.f32 0.0, %v10423
    %v10480 = vsub.f32 0.0, %v10424
    %v10481 = vsub.f32 0.0, %v10425
    %v10482 = vsub.f32 0.0, %v10426
    %v10483 = vsub.f32 0.0, %v10427
    %v10484 = vsub.f32 0.0, %v10428
    %v10485 = vsub.f32 0.0, %v10429
    %v10486 = vsub.f32 0.0, %v10430
    %v10487 = vsub.f32 0.0, %v10431
    %v10488 = vsub.f32 0.0, %v10432
    %v10489 = vsub.f32 0.0, %v10433
    %v10490 = vsub.f32 0.0, %v10434
    %v10491 = vsub.f32 0.0, %v10435
    %v10492 = vsub.f32 0.0, %v10436
    %v10493 = vsub.f32 0.0, %v10437
    %v10494 = vsub.f32 0.0, %v10438
    %v10495 = vsub.f32 0.0, %v10439
    %v10496 = vsub.f32 0.0, %v10440
    %v10497 = vsub.f32 0.0, %v10441
    %v10498 = vsub.f32 0.0, %v10442
    %v10499 = vsub.f32 0.0, %v10443
    %v10500 = vsub.f32 0.0, %v10444
    %v10501 = vsub.f32 0.0, %v10445
    %v10502 = vsub.f32 0.0, %v10446
    %v10503 = vsub.f32 0.0, %v10447
    %v10504 = vsub.f32 0.0, %v10448
    %v10505 = vsub.f32 0.0, %v10449
    %v10506 = vsub.f32 0.0, %v10450
    %v10507 = vsub.f32 0.0, %v10451
    %v10508 = vsub.f32 0.0, %v10452
    %v10509 = vsub.f32 0.0, %v10453
    %v10510 = vsub.f32 0.0, %v10454
    %v10511 = vsub.f32 0.0, %v10455
    %v10512 = vsub.f32 0.0, %v10456
    %v10513 = vsub.f32 0.0, %v10457
    %v10514 = vsub.f32 0.0, %v10458
    %v10515 = vmul.f32 %v10459, 1.442695
    %v10516 = vpow.pop %v10515
    %v10517 = vmul.f32 %v10460, 1.442695
    %v10518 = vpow.pop %v10517
    %v10519 = vmul.f32 %v10461, 1.442695
    %v10520 = vpow.pop %v10519
    %v10521 = vmul.f32 %v10462, 1.442695
    %v10522 = vpow.pop %v10521
    %v10523 = vmul.f32 %v10463, 1.442695
    %v10524 = vpow.pop %v10523
    %v10525 = vmul.f32 %v10464, 1.442695
    %v10526 = vpow.pop %v10525
    %v10527 = vmul.f32 %v10465, 1.442695
    %v10528 = vpow.pop %v10527
    %v10529 = vmul.f32 %v10466, 1.442695
    %v10530 = vpow.pop %v10529
    %v10531 = vmul.f32 %v10467, 1.442695
    %v10532 = vpow.pop %v10531
    %v10533 = vmul.f32 %v10468, 1.442695
    %v10534 = vpow.pop %v10533
    %v10535 = vmul.f32 %v10469, 1.442695
    %v10536 = vpow.pop %v10535
    %v10537 = vmul.f32 %v10470, 1.442695
    %v10538 = vpow.pop %v10537
    %v10539 = vmul.f32 %v10471, 1.442695
    %v10540 = vpow.pop %v10539
    %v10541 = vmul.f32 %v10472, 1.442695
    %v10542 = vpow.pop %v10541
    %v10543 = vmul.f32 %v10473, 1.442695
    %v10544 = vpow.pop %v10543
    %v10545 = vmul.f32 %v10474, 1.442695
    %v10546 = vpow.pop %v10545
    %v10547 = vmul.f32 %v10475, 1.442695
    %v10548 = vpow.pop %v10547
    %v10549 = vmul.f32 %v10476, 1.442695
    %v10550 = vpow.pop %v10549
    %v10551 = vmul.f32 %v10477, 1.442695
    %v10552 = vpow.pop %v10551
    %v10553 = vmul.f32 %v10478, 1.442695
    %v10554 = vpow.pop %v10553
    %v10555 = vmul.f32 %v10479, 1.442695
    %v10556 = vpow.pop %v10555
    %v10557 = vmul.f32 %v10480, 1.442695
    %v10558 = vpow.pop %v10557
    %v10559 = vmul.f32 %v10481, 1.442695
    %v10560 = vpow.pop %v10559
    %v10561 = vmul.f32 %v10482, 1.442695
    %v10562 = vpow.pop %v10561
    %v10563 = vmul.f32 %v10483, 1.442695
    %v10564 = vpow.pop %v10563
    %v10565 = vmul.f32 %v10484, 1.442695
    %v10566 = vpow.pop %v10565
    %v10567 = vmul.f32 %v10485, 1.442695
    %v10568 = vpow.pop %v10567
    %v10569 = vmul.f32 %v10486, 1.442695
    %v10570 = vpow.pop %v10569
    %v10571 = vmul.f32 %v10487, 1.442695
    %v10572 = vpow.pop %v10571
    %v10573 = vmul.f32 %v10488, 1.442695
    %v10574 = vpow.pop %v10573
    %v10575 = vmul.f32 %v10489, 1.442695
    %v10576 = vpow.pop %v10575
    %v10577 = vmul.f32 %v10490, 1.442695
    %v10578 = vpow.pop %v10577
    %v10579 = vmul.f32 %v10491, 1.442695
    %v10580 = vpow.pop %v10579
    %v10581 = vmul.f32 %v10492, 1.442695
    %v10582 = vpow.pop %v10581
    %v10583 = vmul.f32 %v10493, 1.442695
    %v10584 = vpow.pop %v10583
    %v10585 = vmul.f32 %v10494, 1.442695
    %v10586 = vpow.pop %v10585
    %v10587 = vmul.f32 %v10495, 1.442695
    %v10588 = vpow.pop %v10587
    %v10589 = vmul.f32 %v10496, 1.442695
    %v10590 = vpow.pop %v10589
    %v10591 = vmul.f32 %v10497, 1.442695
    %v10592 = vpow.pop %v10591
    %v10593 = vmul.f32 %v10498, 1.442695
    %v10594 = vpow.pop %v10593
    %v10595 = vmul.f32 %v10499, 1.442695
    %v10596 = vpow.pop %v10595
    %v10597 = vmul.f32 %v10500, 1.442695
    %v10598 = vpow.pop %v10597
    %v10599 = vmul.f32 %v10501, 1.442695
    %v10600 = vpow.pop %v10599
    %v10601 = vmul.f32 %v10502, 1.442695
    %v10602 = vpow.pop %v10601
    %v10603 = vmul.f32 %v10503, 1.442695
    %v10604 = vpow.pop %v10603
    %v10605 = vmul.f32 %v10504, 1.442695
    %v10606 = vpow.pop %v10605
    %v10607 = vmul.f32 %v10505, 1.442695
    %v10608 = vpow.pop %v10607
    %v10609 = vmul.f32 %v10506, 1.442695
    %v10610 = vpow.pop %v10609
    %v10611 = vmul.f32 %v10507, 1.442695
    %v10612 = vpow.pop %v10611
    %v10613 = vmul.f32 %v10508, 1.442695
    %v10614 = vpow.pop %v10613
    %v10615 = vmul.f32 %v10509, 1.442695
    %v10616 = vpow.pop %v10615
    %v10617 = vmul.f32 %v10510, 1.442695
    %v10618 = vpow.pop %v10617
    %v10619 = vmul.f32 %v10511, 1.442695
    %v10620 = vpow.pop %v10619
    %v10621 = vmul.f32 %v10512, 1.442695
    %v10622 = vpow.pop %v10621
    %v10623 = vmul.f32 %v10513, 1.442695
    %v10624 = vpow.pop %v10623
    %v10625 = vmul.f32 %v10514, 1.442695
    %v10626 = vpow.pop %v10625
    %v10627 = vadd.f32 %v10516, 1.0
    %v10628 = vadd.f32 %v10518, 1.0
    %v10629 = vadd.f32 %v10520, 1.0
    %v10630 = vadd.f32 %v10522, 1.0
    %v10631 = vadd.f32 %v10524, 1.0
    %v10632 = vadd.f32 %v10526, 1.0
    %v10633 = vadd.f32 %v10528, 1.0
    %v10634 = vadd.f32 %v10530, 1.0
    %v10635 = vadd.f32 %v10532, 1.0
    %v10636 = vadd.f32 %v10534, 1.0
    %v10637 = vadd.f32 %v10536, 1.0
    %v10638 = vadd.f32 %v10538, 1.0
    %v10639 = vadd.f32 %v10540, 1.0
    %v10640 = vadd.f32 %v10542, 1.0
    %v10641 = vadd.f32 %v10544, 1.0
    %v10642 = vadd.f32 %v10546, 1.0
    %v10643 = vadd.f32 %v10548, 1.0
    %v10644 = vadd.f32 %v10550, 1.0
    %v10645 = vadd.f32 %v10552, 1.0
    %v10646 = vadd.f32 %v10554, 1.0
    %v10647 = vadd.f32 %v10556, 1.0
    %v10648 = vadd.f32 %v10558, 1.0
    %v10649 = vadd.f32 %v10560, 1.0
    %v10650 = vadd.f32 %v10562, 1.0
    %v10651 = vadd.f32 %v10564, 1.0
    %v10652 = vadd.f32 %v10566, 1.0
    %v10653 = vadd.f32 %v10568, 1.0
    %v10654 = vadd.f32 %v10570, 1.0
    %v10655 = vadd.f32 %v10572, 1.0
    %v10656 = vadd.f32 %v10574, 1.0
    %v10657 = vadd.f32 %v10576, 1.0
    %v10658 = vadd.f32 %v10578, 1.0
    %v10659 = vadd.f32 %v10580, 1.0
    %v10660 = vadd.f32 %v10582, 1.0
    %v10661 = vadd.f32 %v10584, 1.0
    %v10662 = vadd.f32 %v10586, 1.0
    %v10663 = vadd.f32 %v10588, 1.0
    %v10664 = vadd.f32 %v10590, 1.0
    %v10665 = vadd.f32 %v10592, 1.0
    %v10666 = vadd.f32 %v10594, 1.0
    %v10667 = vadd.f32 %v10596, 1.0
    %v10668 = vadd.f32 %v10598, 1.0
    %v10669 = vadd.f32 %v10600, 1.0
    %v10670 = vadd.f32 %v10602, 1.0
    %v10671 = vadd.f32 %v10604, 1.0
    %v10672 = vadd.f32 %v10606, 1.0
    %v10673 = vadd.f32 %v10608, 1.0
    %v10674 = vadd.f32 %v10610, 1.0
    %v10675 = vadd.f32 %v10612, 1.0
    %v10676 = vadd.f32 %v10614, 1.0
    %v10677 = vadd.f32 %v10616, 1.0
    %v10678 = vadd.f32 %v10618, 1.0
    %v10679 = vadd.f32 %v10620, 1.0
    %v10680 = vadd.f32 %v10622, 1.0
    %v10681 = vadd.f32 %v10624, 1.0
    %v10682 = vadd.f32 %v10626, 1.0
    %v10683 = vrcp.pop %v10627
    %v10684 = vrcp.pop %v10628
    %v10685 = vrcp.pop %v10629
    %v10686 = vrcp.pop %v10630
    %v10687 = vrcp.pop %v10631
    %v10688 = vrcp.pop %v10632
    %v10689 = vrcp.pop %v10633
    %v10690 = vrcp.pop %v10634
    %v10691 = vrcp.pop %v10635
    %v10692 = vrcp.pop %v10636
    %v10693 = vrcp.pop %v10637
    %v10694 = vrcp.pop %v10638
    %v10695 = vrcp.pop %v10639
    %v10696 = vrcp.pop %v10640
    %v10697 = vrcp.pop %v10641
    %v10698 = vrcp.pop %v10642
    %v10699 = vrcp.pop %v10643
    %v10700 = vrcp.pop %v10644
    %v10701 = vrcp.pop %v10645
    %v10702 = vrcp.pop %v10646
    %v10703 = vrcp.pop %v10647
    %v10704 = vrcp.pop %v10648
    %v10705 = vrcp.pop %v10649
    %v10706 = vrcp.pop %v10650
    %v10707 = vrcp.pop %v10651
    %v10708 = vrcp.pop %v10652
    %v10709 = vrcp.pop %v10653
    %v10710 = vrcp.pop %v10654
    %v10711 = vrcp.pop %v10655
    %v10712 = vrcp.pop %v10656
    %v10713 = vrcp.pop %v10657
    %v10714 = vrcp.pop %v10658
    %v10715 = vrcp.pop %v10659
    %v10716 = vrcp.pop %v10660
    %v10717 = vrcp.pop %v10661
    %v10718 = vrcp.pop %v10662
    %v10719 = vrcp.pop %v10663
    %v10720 = vrcp.pop %v10664
    %v10721 = vrcp.pop %v10665
    %v10722 = vrcp.pop %v10666
    %v10723 = vrcp.pop %v10667
    %v10724 = vrcp.pop %v10668
    %v10725 = vrcp.pop %v10669
    %v10726 = vrcp.pop %v10670
    %v10727 = vrcp.pop %v10671
    %v10728 = vrcp.pop %v10672
    %v10729 = vrcp.pop %v10673
    %v10730 = vrcp.pop %v10674
    %v10731 = vrcp.pop %v10675
    %v10732 = vrcp.pop %v10676
    %v10733 = vrcp.pop %v10677
    %v10734 = vrcp.pop %v10678
    %v10735 = vrcp.pop %v10679
    %v10736 = vrcp.pop %v10680
    %v10737 = vrcp.pop %v10681
    %v10738 = vrcp.pop %v10682
    %v10739 = vmul.f32 %v5433, %v10683
    %v10740 = vmul.f32 %v5434, %v10684
    %v10741 = vmul.f32 %v5435, %v10685
    %v10742 = vmul.f32 %v5436, %v10686
    %v10743 = vmul.f32 %v5437, %v10687
    %v10744 = vmul.f32 %v5438, %v10688
    %v10745 = vmul.f32 %v5439, %v10689
    %v10746 = vmul.f32 %v5440, %v10690
    %v10747 = vmul.f32 %v5441, %v10691
    %v10748 = vmul.f32 %v5442, %v10692
    %v10749 = vmul.f32 %v5443, %v10693
    %v10750 = vmul.f32 %v5444, %v10694
    %v10751 = vmul.f32 %v5445, %v10695
    %v10752 = vmul.f32 %v5446, %v10696
    %v10753 = vmul.f32 %v5447, %v10697
    %v10754 = vmul.f32 %v5448, %v10698
    %v10755 = vmul.f32 %v5449, %v10699
    %v10756 = vmul.f32 %v5450, %v10700
    %v10757 = vmul.f32 %v5451, %v10701
    %v10758 = vmul.f32 %v5452, %v10702
    %v10759 = vmul.f32 %v5453, %v10703
    %v10760 = vmul.f32 %v5454, %v10704
    %v10761 = vmul.f32 %v5455, %v10705
    %v10762 = vmul.f32 %v5456, %v10706
    %v10763 = vmul.f32 %v5457, %v10707
    %v10764 = vmul.f32 %v5458, %v10708
    %v10765 = vmul.f32 %v5459, %v10709
    %v10766 = vmul.f32 %v5460, %v10710
    %v10767 = vmul.f32 %v5461, %v10711
    %v10768 = vmul.f32 %v5462, %v10712
    %v10769 = vmul.f32 %v5463, %v10713
    %v10770 = vmul.f32 %v5464, %v10714
    %v10771 = vmul.f32 %v5465, %v10715
    %v10772 = vmul.f32 %v5466, %v10716
    %v10773 = vmul.f32 %v5467, %v10717
    %v10774 = vmul.f32 %v5468, %v10718
    %v10775 = vmul.f32 %v5469, %v10719
    %v10776 = vmul.f32 %v5470, %v10720
    %v10777 = vmul.f32 %v5471, %v10721
    %v10778 = vmul.f32 %v5472, %v10722
    %v10779 = vmul.f32 %v5473, %v10723
    %v10780 = vmul.f32 %v5474, %v10724
    %v10781 = vmul.f32 %v5475, %v10725
    %v10782 = vmul.f32 %v5476, %v10726
    %v10783 = vmul.f32 %v5477, %v10727
    %v10784 = vmul.f32 %v5478, %v10728
    %v10785 = vmul.f32 %v5479, %v10729
    %v10786 = vmul.f32 %v5480, %v10730
    %v10787 = vmul.f32 %v5481, %v10731
    %v10788 = vmul.f32 %v5482, %v10732
    %v10789 = vmul.f32 %v5483, %v10733
    %v10790 = vmul.f32 %v5484, %v10734
    %v10791 = vmul.f32 %v5485, %v10735
    %v10792 = vmul.f32 %v5486, %v10736
    %v10793 = vmul.f32 %v5487, %v10737
    %v10794 = vmul.f32 %v5488, %v10738
    %10795 = vst [vmem:[#allocation7] sm:$0xff] %v10739
    %10796 = vst [vmem:[#allocation7 + $0x8] sm:$0xff] %v10740
    %10797 = vst [vmem:[#allocation7 + $0x10] sm:$0xff] %v10741
    %10798 = vst [vmem:[#allocation7 + $0x18] sm:$0xff] %v10742
    %10799 = vst [vmem:[#allocation7 + $0x20] sm:$0xff] %v10743
    %10800 = vst [vmem:[#allocation7 + $0x28] sm:$0xff] %v10744
    %10801 = vst [vmem:[#allocation7 + $0x30] sm:$0xff] %v10745
    %10802 = vst [vmem:[#allocation7 + $0x38] sm:$0xff] %v10746
    %10803 = vst [vmem:[#allocation7 + $0x40] sm:$0xff] %v10747
    %10804 = vst [vmem:[#allocation7 + $0x48] sm:$0xff] %v10748
    %10805 = vst [vmem:[#allocation7 + $0x50] sm:$0xff] %v10749
    %10806 = vst [vmem:[#allocation7 + $0x58] sm:$0xff] %v10750
    %10807 = vst [vmem:[#allocation7 + $0x60] sm:$0xff] %v10751
    %10808 = vst [vmem:[#allocation7 + $0x68] sm:$0xff] %v10752
    %10809 = vst [vmem:[#allocation7 + $0x70] sm:$0xff] %v10753
    %10810 = vst [vmem:[#allocation7 + $0x78] sm:$0xff] %v10754
    %10811 = vst [vmem:[#allocation7 + $0x80] sm:$0xff] %v10755
    %10812 = vst [vmem:[#allocation7 + $0x88] sm:$0xff] %v10756
    %10813 = vst [vmem:[#allocation7 + $0x90] sm:$0xff] %v10757
    %10814 = vst [vmem:[#allocation7 + $0x98] sm:$0xff] %v10758
    %10815 = vst [vmem:[#allocation7 + $0xa0] sm:$0xff] %v10759
    %10816 = vst [vmem:[#allocation7 + $0xa8] sm:$0xff] %v10760
    %10817 = vst [vmem:[#allocation7 + $0xb0] sm:$0xff] %v10761
    %10818 = vst [vmem:[#allocation7 + $0xb8] sm:$0xff] %v10762
    %10819 = vst [vmem:[#allocation7 + $0xc0] sm:$0xff] %v10763
    %10820 = vst [vmem:[#allocation7 + $0xc8] sm:$0xff] %v10764
    %10821 = vst [vmem:[#allocation7 + $0xd0] sm:$0xff] %v10765
    %10822 = vst [vmem:[#allocation7 + $0xd8] sm:$0xff] %v10766
    %10823 = vst [vmem:[#allocation7 + $0xe0] sm:$0xff] %v10767
    %10824 = vst [vmem:[#allocation7 + $0xe8] sm:$0xff] %v10768
    %10825 = vst [vmem:[#allocation7 + $0xf0] sm:$0xff] %v10769
    %10826 = vst [vmem:[#allocation7 + $0xf8] sm:$0xff] %v10770
    %10827 = vst [vmem:[#allocation7 + $0x100] sm:$0xff] %v10771
    %10828 = vst [vmem:[#allocation7 + $0x108] sm:$0xff] %v10772
    %10829 = vst [vmem:[#allocation7 + $0x110] sm:$0xff] %v10773
    %10830 = vst [vmem:[#allocation7 + $0x118] sm:$0xff] %v10774
    %10831 = vst [vmem:[#allocation7 + $0x120] sm:$0xff] %v10775
    %10832 = vst [vmem:[#allocation7 + $0x128] sm:$0xff] %v10776
    %10833 = vst [vmem:[#allocation7 + $0x130] sm:$0xff] %v10777
    %10834 = vst [vmem:[#allocation7 + $0x138] sm:$0xff] %v10778
    %10835 = vst [vmem:[#allocation7 + $0x140] sm:$0xff] %v10779
    %10836 = vst [vmem:[#allocation7 + $0x148] sm:$0xff] %v10780
    %10837 = vst [vmem:[#allocation7 + $0x150] sm:$0xff] %v10781
    %10838 = vst [vmem:[#allocation7 + $0x158] sm:$0xff] %v10782
    %10839 = vst [vmem:[#allocation7 + $0x160] sm:$0xff] %v10783
    %10840 = vst [vmem:[#allocation7 + $0x168] sm:$0xff] %v10784
    %10841 = vst [vmem:[#allocation7 + $0x170] sm:$0xff] %v10785
    %10842 = vst [vmem:[#allocation7 + $0x178] sm:$0xff] %v10786
    %10843 = vst [vmem:[#allocation7 + $0x180] sm:$0xff] %v10787
    %10844 = vst [vmem:[#allocation7 + $0x188] sm:$0xff] %v10788
    %10845 = vst [vmem:[#allocation7 + $0x190] sm:$0xff] %v10789
    %10846 = vst [vmem:[#allocation7 + $0x198] sm:$0xff] %v10790
    %10847 = vst [vmem:[#allocation7 + $0x1a0] sm:$0xff] %v10791
    %10848 = vst [vmem:[#allocation7 + $0x1a8] sm:$0xff] %v10792
    %10849 = vst [vmem:[#allocation7 + $0x1b0] sm:$0xff] %v10793
    %10850 = vst [vmem:[#allocation7 + $0x1b8] sm:$0xff] %v10794
    // Predicated region
    $region54: #{tpu_custom_call.1} parent=1 // pred_check
      _
    $region55: #{tpu_custom_call.1} parent=1 // pred_check_branch
      %10852 = sbr.rel (0) target = $region57
    $region56: #{tpu_custom_call.1} parent=1 // pred_region
      %s10854 = ssub.s32 7168, 7168
      %10855 = vsyncadd [#allocation4], %s10854
      %s10856 = sshll.u32 [#allocation7], 4
      %s10857 = int_to_ptr.vmem [resolvable:$true] %s10856
      %10862 = dma.vmem_to_hbm [thread:$0]  %s10857, 7168, %s11, [#allocation4], 128, 128, 8
    $region57: #{tpu_custom_call.1} parent=1 // pred_fallthru
      _
    // Predicated region
    $region58: #{tpu_custom_call.1} parent=1 // pred_check
      _
    $region59: #{tpu_custom_call.1} parent=1 // pred_check_branch
      %10864 = sbr.rel (0) target = $region61
    $region60: #{tpu_custom_call.1} parent=1 // pred_region
      %10865 = dma.done [#allocation4], 7168
    $region61: #{tpu_custom_call.1} parent=1 // pred_fallthru
      _
    %10866 = vsyncpa [#allocation3], 1
    %10867 = vsyncpa [#allocation6], 1
    %10868 = vsyncpa [#allocation4], 1

</llo_original>
